<compile_context>
chip_gen: v7x
topology: tpu7x:2x2x1
jax: 0.10.0
libtpu: 0.0.40
codegen_flags: <defaults>
</compile_context>

<pallas_src>
import functools
import math

import jax
import jax.numpy as jnp
import numpy as np
from jax.experimental import pallas as pl
from jax.experimental.pallas import tpu as pltpu

# ---------------------------------------------------------------------------
# Fixed AtariNet geometry (flatten_size=3136 forces 84x84 inputs).
# Flat row pitch of every in-kernel spatial map is 12 (s2d-by-8 grid is 11x12).
# ---------------------------------------------------------------------------
_H = _W = 84
_GW = 12                     # flat row pitch
_GRID_LEN = 11 * _GW         # 132: s2d-by-8 grid (input padded to 88x96)
_L3 = 6 * _GW + 6 + 1        # 79 : conv3 output, valid at i*12+j, i,j < 7
_L2 = _L3 + 2 * _GW + 2      # 105: conv2 output, valid i,j < 9
_L1 = _L2 + 1 * _GW + 1      # 118: conv1 output (4 phase blocks x 32 ch), valid i,j < 10
assert _L1 + _GW + 1 <= _GRID_LEN


# ---------------------------------------------------------------------------
# Fused kernel: runs one batch element per grid step, everything in VMEM.
# ---------------------------------------------------------------------------
def _fused_kernel(x_ref, w1_ref, b1_ref, w2_ref, b2_ref, w3_ref, b3_ref,
                  wf_ref, bf_ref, wv_ref, bv_ref, wa_ref, ba_ref, o_ref,
                  *, hidden, out_dim, atoms):
    x = x_ref[0]                                                   # (64*Cin, 132) bf16

    # conv1: stride-1 k=2 conv on the s2d-by-8 grid, 64*Cin -> 4 phases x 32 channels
    acc1 = None
    for a in range(2):
        for b in range(2):
            s = a * _GW + b
            part = jnp.dot(w1_ref[a * 2 + b], x[:, s:s + _L1],
                           preferred_element_type=jnp.float32)
            acc1 = part if acc1 is None else acc1 + part
    y1 = jnp.maximum(acc1 + b1_ref[...], 0.0).astype(jnp.bfloat16)  # (128, 118)

    # conv2: k=4 s=2 -> 16 taps; tap picks a phase row-block + contiguous lane shift
    acc2 = None
    for di in range(4):
        for dj in range(4):
            r, a = di % 2, di // 2
            t, b = dj % 2, dj // 2
            rows = (r * 2 + t) * 32
            s = a * _GW + b
            part = jnp.dot(w2_ref[di * 4 + dj],
                           y1[rows:rows + 32, s:s + _L2],
                           preferred_element_type=jnp.float32)
            acc2 = part if acc2 is None else acc2 + part
    y2 = jnp.maximum(acc2 + b2_ref[...], 0.0).astype(jnp.bfloat16)  # (64, 105)

    # conv3: k=3 s=1 -> 9 taps, plain contiguous lane shifts
    acc3 = None
    for di in range(3):
        for dj in range(3):
            s = di * _GW + dj
            part = jnp.dot(w3_ref[di * 3 + dj], y2[:, s:s + _L3],
                           preferred_element_type=jnp.float32)
            acc3 = part if acc3 is None else acc3 + part
    y3 = jnp.maximum(acc3 + b3_ref[...], 0.0).astype(jnp.bfloat16)  # (64, 79)

    # flatten to the torch nn.Flatten order (c, i, j) -> one (1, 3136) row
    y3v = jnp.concatenate([y3[:, i * _GW:i * _GW + 7] for i in range(7)],
                          axis=1)                                    # (64, 49)
    groups = []
    for g in range(8):
        groups.append(jnp.concatenate(
            [y3v[c:c + 1, :] for c in range(g * 8, (g + 1) * 8)], axis=1))
    feat = jnp.concatenate(groups, axis=1)                           # (1, 3136) bf16

    # fused dueling head: value|advantage fc1 in a single matmul, f32 epilogue
    h = jnp.dot(feat, wf_ref[...], preferred_element_type=jnp.float32) + bf_ref[...]
    h = jnp.maximum(h, 0.0)
    hv = h[:, :hidden].astype(jnp.bfloat16)
    ha = h[:, hidden:].astype(jnp.bfloat16)
    v = jnp.dot(hv, wv_ref[...], preferred_element_type=jnp.float32) + bv_ref[...]
    adv = jnp.dot(ha, wa_ref[...], preferred_element_type=jnp.float32) + ba_ref[...]

    a_mean = adv[:, 0:atoms]
    for j in range(1, out_dim):
        a_mean = a_mean + adv[:, j * atoms:(j + 1) * atoms]
    a_mean = a_mean * (1.0 / out_dim)
    for j in range(out_dim):
        q = v + adv[:, j * atoms:(j + 1) * atoms] - a_mean
        q = q - jnp.max(q, axis=-1, keepdims=True)
        e = jnp.exp(q)
        # exact normalization (not approx reciprocal) written straight to the output
        o_ref[0, 0:1, j * atoms:(j + 1) * atoms] = e / jnp.sum(
            e, axis=-1, keepdims=True)


# ---------------------------------------------------------------------------
# Wrapper: single pure-layout input transform + one pallas_call
# ---------------------------------------------------------------------------
def _space_to_depth8(x):
    """(N, Cin, 84, 84) f32 -> (N, 64*Cin, 132) bf16, space-to-depth by 8.

    Pure permutation of the raw input (pad to 88x96, each 8x8 block -> channels);
    the only pre-kernel op, no im2col inflation."""
    n, c, h, w = x.shape
    assert (h, w) == (_H, _W), "flatten_size=3136 implies 84x84 Atari inputs"
    xp = jnp.pad(x, ((0, 0), (0, 0), (0, 88 - h), (0, 96 - w)))
    xp = xp.reshape(n, c, 11, 8, _GW, 8)          # (n, c, qi, pi, qj, pj)
    xp = xp.transpose(0, 3, 5, 1, 2, 4)           # (n, pi, pj, c, qi, qj)
    return xp.reshape(n, 64 * c, _GRID_LEN).astype(jnp.bfloat16)


def base_network_forward(packed, x, *, atom_size, out_dim, hidden):
    n, cin = x.shape[0], x.shape[1]
    xp = _space_to_depth8(x)
    na = out_dim * atom_size
    kernel = functools.partial(_fused_kernel, hidden=hidden, out_dim=out_dim,
                               atoms=atom_size)
    out = pl.pallas_call(
        kernel,
        out_shape=jax.ShapeDtypeStruct((n, 1, na), jnp.float32),
        grid=(n,),
        in_specs=[
            pl.BlockSpec((1, 64 * cin, _GRID_LEN), lambda i: (i, 0, 0)),
            pl.BlockSpec((4, 128, 64 * cin), lambda i: (0, 0, 0)),
            pl.BlockSpec((128, 1), lambda i: (0, 0)),
            pl.BlockSpec((16, 64, 32), lambda i: (0, 0, 0)),
            pl.BlockSpec((64, 1), lambda i: (0, 0)),
            pl.BlockSpec((9, 64, 64), lambda i: (0, 0, 0)),
            pl.BlockSpec((64, 1), lambda i: (0, 0)),
            pl.BlockSpec((3136, 2 * hidden), lambda i: (0, 0)),
            pl.BlockSpec((1, 2 * hidden), lambda i: (0, 0)),
            pl.BlockSpec((hidden, atom_size), lambda i: (0, 0)),
            pl.BlockSpec((1, atom_size), lambda i: (0, 0)),
            pl.BlockSpec((hidden, na), lambda i: (0, 0)),
            pl.BlockSpec((1, na), lambda i: (0, 0)),
        ],
        out_specs=pl.BlockSpec((1, 1, na), lambda i: (i, 0, 0)),
        compiler_params=pltpu.CompilerParams(
            dimension_semantics=("parallel",),     # balanced per-batch blocks (v7x)
            vmem_limit_bytes=32 * 1024 * 1024,
        ),
    )(xp, packed["w1_taps"], packed["b1"], packed["w2_taps"], packed["b2"],
      packed["w3_taps"], packed["b3"], packed["wf1"], packed["bf1"],
      packed["wv2"], packed["bv2"], packed["wa2"], packed["ba2"])
    return out.reshape(n, out_dim, atom_size)


# ---------------------------------------------------------------------------
# Parameters: raw (PyTorch-like, NoisyLayer folded) + one-time kernel repack
# ---------------------------------------------------------------------------
def init_params(key, channels, hidden, atom_size, out_dim, flatten_size=3136):
    ks = jax.random.split(key, 14)

    def lin(kw, kb, fan_in, shape_w, shape_b):
        scale = 1.0 / math.sqrt(fan_in)
        return (jax.random.normal(kw, shape_w, jnp.float32) * scale,
                jax.random.normal(kb, shape_b, jnp.float32) * scale)

    p = {}
    p["conv1_w"], p["conv1_b"] = lin(ks[0], ks[1], channels * 8 * 8,
                                     (32, channels, 8, 8), (32,))
    p["conv2_w"], p["conv2_b"] = lin(ks[2], ks[3], 32 * 4 * 4, (64, 32, 4, 4), (64,))
    p["conv3_w"], p["conv3_b"] = lin(ks[4], ks[5], 64 * 3 * 3, (64, 64, 3, 3), (64,))
    # NoisyLayers folded to deterministic effective (in, out) weight matrices
    p["v_fc1_w"], p["v_fc1_b"] = lin(ks[6], ks[7], flatten_size,
                                     (flatten_size, hidden), (hidden,))
    p["v_fc2_w"], p["v_fc2_b"] = lin(ks[8], ks[9], hidden, (hidden, atom_size),
                                     (atom_size,))
    p["a_fc1_w"], p["a_fc1_b"] = lin(ks[10], ks[11], flatten_size,
                                     (flatten_size, hidden), (hidden,))
    p["a_fc2_w"], p["a_fc2_b"] = lin(ks[12], ks[13], hidden,
                                     (hidden, atom_size * out_dim),
                                     (atom_size * out_dim,))
    return p


def pack_params(p):
    """One-time repack (hoisted out of the forward graph): bf16 casts, fc1 concat,
    per-tap conv weights and conv1 phase decomposition for the s2d-by-8 grid."""
    w1 = np.asarray(p["conv1_w"], np.float32)             # (32, Cin, 8, 8)
    cout1, cin = w1.shape[0], w1.shape[1]
    w1_taps = np.zeros((4, 4 * cout1, 64 * cin), np.float32)
    for a in range(2):
        for b in range(2):
            for ri in range(2):
                for rj in range(2):
                    for pi in range(8):
                        di = 8 * a + pi - 4 * ri
                        if not 0 <= di < 8:
                            continue
                        for pj in range(8):
                            dj = 8 * b + pj - 4 * rj
                            if not 0 <= dj < 8:
                                continue
                            r0 = (ri * 2 + rj) * cout1
                            c0 = (pi * 8 + pj) * cin
                            w1_taps[a * 2 + b, r0:r0 + cout1, c0:c0 + cin] = \
                                w1[:, :, di, dj]
    w2 = np.asarray(p["conv2_w"], np.float32)             # (64, 32, 4, 4)
    w2_taps = np.stack([w2[:, :, di, dj] for di in range(4) for dj in range(4)])
    w3 = np.asarray(p["conv3_w"], np.float32)             # (64, 64, 3, 3)
    w3_taps = np.stack([w3[:, :, di, dj] for di in range(3) for dj in range(3)])

    bf16 = jnp.bfloat16
    return {
        "w1_taps": jnp.asarray(w1_taps, bf16),
        "b1": jnp.asarray(np.tile(np.asarray(p["conv1_b"], np.float32), 4)
                          .reshape(4 * cout1, 1)),
        "w2_taps": jnp.asarray(w2_taps, bf16),
        "b2": jnp.asarray(np.asarray(p["conv2_b"], np.float32).reshape(-1, 1)),
        "w3_taps": jnp.asarray(w3_taps, bf16),
        "b3": jnp.asarray(np.asarray(p["conv3_b"], np.float32).reshape(-1, 1)),
        "wf1": jnp.concatenate([p["v_fc1_w"], p["a_fc1_w"]], axis=1).astype(bf16),
        "bf1": jnp.concatenate([p["v_fc1_b"], p["a_fc1_b"]]).reshape(1, -1)
                  .astype(jnp.float32),
        "wv2": p["v_fc2_w"].astype(bf16),
        "bv2": p["v_fc2_b"].reshape(1, -1).astype(jnp.float32),
        "wa2": p["a_fc2_w"].astype(bf16),
        "ba2": p["a_fc2_b"].reshape(1, -1).astype(jnp.float32),
    }


# ---------------------------------------------------------------------------
# Pure-JAX reference (bf16 operands / f32 accumulation) for validation
# ---------------------------------------------------------------------------
def reference_forward(p, x, *, atom_size, out_dim, hidden):
    bf16 = jnp.bfloat16
    h = x.astype(bf16)

    def conv(z, w, b, s):
        y = jax.lax.conv_general_dilated(
            z, w.astype(bf16), (s, s), "VALID",
            dimension_numbers=("NCHW", "OIHW", "NCHW"),
            preferred_element_type=jnp.float32)
        return jnp.maximum(y + b.reshape(1, -1, 1, 1), 0.0).astype(bf16)

    h = conv(h, p["conv1_w"], p["conv1_b"], 4)
    h = conv(h, p["conv2_w"], p["conv2_b"], 2)
    h = conv(h, p["conv3_w"], p["conv3_b"], 1)
    feat = h.reshape(x.shape[0], -1)

    def lin(z, w, b):
        return jnp.dot(z.astype(bf16), w.astype(bf16),
                       preferred_element_type=jnp.float32) + b

    hv = jnp.maximum(lin(feat, p["v_fc1_w"], p["v_fc1_b"]), 0.0)
    ha = jnp.maximum(lin(feat, p["a_fc1_w"], p["a_fc1_b"]), 0.0)
    v = lin(hv, p["v_fc2_w"], p["v_fc2_b"]).reshape(-1, 1, atom_size)
    a = lin(ha, p["a_fc2_w"], p["a_fc2_b"]).reshape(-1, out_dim, atom_size)
    q = v + a - a.mean(axis=1, keepdims=True)
    return jax.nn.softmax(q, axis=-1)


if __name__ == "__main__":
    batch, channels = 2, 4
    hidden, atom_size, out_dim = 32, 8, 4          # out_dim = env.action_space.n

    key = jax.random.PRNGKey(0)
    kx, kp = jax.random.split(key)
    x = jax.random.normal(kx, (batch, channels, _H, _W), jnp.float32)
    raw = init_params(kp, channels, hidden, atom_size, out_dim)
    packed = pack_params(raw)                       # one-time, outside the jit

    fwd = jax.jit(functools.partial(base_network_forward, atom_size=atom_size,
                                    out_dim=out_dim, hidden=hidden))
    dist = fwd(packed, x)
    jax.block_until_ready(dist)

    assert dist.shape == (batch, out_dim, atom_size)
    dist32 = np.asarray(dist, np.float32)
    assert np.all(np.isfinite(dist32))
    # exact softmax -> per-action distributions sum to 1
    assert np.allclose(dist32.sum(-1), 1.0, atol=1e-4)
    # match the pure-JAX reference (bf16 matmuls, f32 accumulation)
    ref = np.asarray(reference_forward(raw, x, atom_size=atom_size,
                                       out_dim=out_dim, hidden=hidden), np.float32)
    assert np.allclose(dist32, ref, atol=2e-2), float(np.abs(dist32 - ref).max())
    print("KERNEL_OK")
</pallas_src>

<mosaic_0001>
module attributes {stable_mosaic.version = 11 : i64} {
  func.func @_fused_kernel(%arg0: i32, %arg1: memref<1x256x132xbf16, #tpu.memory_space<vmem>>, %arg2: memref<4x128x256xbf16, #tpu.memory_space<vmem>>, %arg3: memref<128x1xf32, #tpu.memory_space<vmem>>, %arg4: memref<16x64x32xbf16, #tpu.memory_space<vmem>>, %arg5: memref<64x1xf32, #tpu.memory_space<vmem>>, %arg6: memref<9x64x64xbf16, #tpu.memory_space<vmem>>, %arg7: memref<64x1xf32, #tpu.memory_space<vmem>>, %arg8: memref<3136x64xbf16, #tpu.memory_space<vmem>>, %arg9: memref<1x64xf32, #tpu.memory_space<vmem>>, %arg10: memref<32x8xbf16, #tpu.memory_space<vmem>>, %arg11: memref<1x8xf32, #tpu.memory_space<vmem>>, %arg12: memref<32x32xbf16, #tpu.memory_space<vmem>>, %arg13: memref<1x32xf32, #tpu.memory_space<vmem>>, %arg14: memref<1x1x32xf32, #tpu.memory_space<vmem>>) attributes {dimension_semantics = [#tpu.dimension_semantics<parallel>], iteration_bounds = array<i64: 2>, scalar_prefetch = 0 : i64, scratch_operands = 0 : i64, tpu.core_type = #tpu.core_type<tc>, window_params = [{transform_indices = @transform_0, window_bounds = array<i64: 1, 256, 132>}, {pipeline_mode = #tpu.pipeline_mode<synchronous>, transform_indices = @transform_1, window_bounds = array<i64: 4, 128, 256>}, {pipeline_mode = #tpu.pipeline_mode<synchronous>, transform_indices = @transform_2, window_bounds = array<i64: 128, 1>}, {pipeline_mode = #tpu.pipeline_mode<synchronous>, transform_indices = @transform_3, window_bounds = array<i64: 16, 64, 32>}, {pipeline_mode = #tpu.pipeline_mode<synchronous>, transform_indices = @transform_4, window_bounds = array<i64: 64, 1>}, {pipeline_mode = #tpu.pipeline_mode<synchronous>, transform_indices = @transform_5, window_bounds = array<i64: 9, 64, 64>}, {pipeline_mode = #tpu.pipeline_mode<synchronous>, transform_indices = @transform_6, window_bounds = array<i64: 64, 1>}, {pipeline_mode = #tpu.pipeline_mode<synchronous>, transform_indices = @transform_7, window_bounds = array<i64: 3136, 64>}, {pipeline_mode = #tpu.pipeline_mode<synchronous>, transform_indices = @transform_8, window_bounds = array<i64: 1, 64>}, {pipeline_mode = #tpu.pipeline_mode<synchronous>, transform_indices = @transform_9, window_bounds = array<i64: 32, 8>}, {pipeline_mode = #tpu.pipeline_mode<synchronous>, transform_indices = @transform_10, window_bounds = array<i64: 1, 8>}, {pipeline_mode = #tpu.pipeline_mode<synchronous>, transform_indices = @transform_11, window_bounds = array<i64: 32, 32>}, {pipeline_mode = #tpu.pipeline_mode<synchronous>, transform_indices = @transform_12, window_bounds = array<i64: 1, 32>}, {transform_indices = @transform_13, window_bounds = array<i64: 1, 1, 32>}]} {
    %c0 = arith.constant 0 : index
    %c0_0 = arith.constant 0 : index
    %c0_1 = arith.constant 0 : index
    %0 = vector.load %arg1[%c0, %c0_0, %c0_1] : memref<1x256x132xbf16, #tpu.memory_space<vmem>>, vector<1x256x132xbf16>
    %1 = vector.shape_cast %0 : vector<1x256x132xbf16> to vector<256x132xbf16>
    %c0_2 = arith.constant 0 : index
    %c0_3 = arith.constant 0 : index
    %c0_4 = arith.constant 0 : index
    %2 = vector.load %arg2[%c0_2, %c0_3, %c0_4] : memref<4x128x256xbf16, #tpu.memory_space<vmem>>, vector<1x128x256xbf16>
    %3 = vector.shape_cast %2 : vector<1x128x256xbf16> to vector<128x256xbf16>
    %4 = vector.extract_strided_slice %1 {offsets = [0, 0], sizes = [256, 118], strides = [1, 1]} : vector<256x132xbf16> to vector<256x118xbf16>
    %cst = arith.constant dense<0.000000e+00> : vector<128x118xf32>
    %5 = tpu.matmul %3, %4, %cst {dimension_numbers = #tpu.dot_dimension_numbers<[1], [0], [0], [1], [0, 0, 1, 1], [], []>} : vector<128x256xbf16>, vector<256x118xbf16>, vector<128x118xf32> -> vector<128x118xf32>
    %c1 = arith.constant 1 : index
    %c0_5 = arith.constant 0 : index
    %c0_6 = arith.constant 0 : index
    %6 = vector.load %arg2[%c1, %c0_5, %c0_6] : memref<4x128x256xbf16, #tpu.memory_space<vmem>>, vector<1x128x256xbf16>
    %7 = vector.shape_cast %6 : vector<1x128x256xbf16> to vector<128x256xbf16>
    %8 = vector.extract_strided_slice %1 {offsets = [0, 1], sizes = [256, 118], strides = [1, 1]} : vector<256x132xbf16> to vector<256x118xbf16>
    %cst_7 = arith.constant dense<0.000000e+00> : vector<128x118xf32>
    %9 = tpu.matmul %7, %8, %cst_7 {dimension_numbers = #tpu.dot_dimension_numbers<[1], [0], [0], [1], [0, 0, 1, 1], [], []>} : vector<128x256xbf16>, vector<256x118xbf16>, vector<128x118xf32> -> vector<128x118xf32>
    %10 = arith.addf %5, %9 : vector<128x118xf32>
    %c2 = arith.constant 2 : index
    %c0_8 = arith.constant 0 : index
    %c0_9 = arith.constant 0 : index
    %11 = vector.load %arg2[%c2, %c0_8, %c0_9] : memref<4x128x256xbf16, #tpu.memory_space<vmem>>, vector<1x128x256xbf16>
    %12 = vector.shape_cast %11 : vector<1x128x256xbf16> to vector<128x256xbf16>
    %13 = vector.extract_strided_slice %1 {offsets = [0, 12], sizes = [256, 118], strides = [1, 1]} : vector<256x132xbf16> to vector<256x118xbf16>
    %cst_10 = arith.constant dense<0.000000e+00> : vector<128x118xf32>
    %14 = tpu.matmul %12, %13, %cst_10 {dimension_numbers = #tpu.dot_dimension_numbers<[1], [0], [0], [1], [0, 0, 1, 1], [], []>} : vector<128x256xbf16>, vector<256x118xbf16>, vector<128x118xf32> -> vector<128x118xf32>
    %15 = arith.addf %10, %14 : vector<128x118xf32>
    %c3 = arith.constant 3 : index
    %c0_11 = arith.constant 0 : index
    %c0_12 = arith.constant 0 : index
    %16 = vector.load %arg2[%c3, %c0_11, %c0_12] : memref<4x128x256xbf16, #tpu.memory_space<vmem>>, vector<1x128x256xbf16>
    %17 = vector.shape_cast %16 : vector<1x128x256xbf16> to vector<128x256xbf16>
    %18 = vector.extract_strided_slice %1 {offsets = [0, 13], sizes = [256, 118], strides = [1, 1]} : vector<256x132xbf16> to vector<256x118xbf16>
    %cst_13 = arith.constant dense<0.000000e+00> : vector<128x118xf32>
    %19 = tpu.matmul %17, %18, %cst_13 {dimension_numbers = #tpu.dot_dimension_numbers<[1], [0], [0], [1], [0, 0, 1, 1], [], []>} : vector<128x256xbf16>, vector<256x118xbf16>, vector<128x118xf32> -> vector<128x118xf32>
    %20 = arith.addf %15, %19 : vector<128x118xf32>
    %c0_14 = arith.constant 0 : index
    %c0_15 = arith.constant 0 : index
    %21 = vector.load %arg3[%c0_14, %c0_15] : memref<128x1xf32, #tpu.memory_space<vmem>>, vector<128x1xf32>
    %22 = vector.broadcast %21 : vector<128x1xf32> to vector<128x118xf32>
    %23 = arith.addf %20, %22 : vector<128x118xf32>
    %cst_16 = arith.constant 0.000000e+00 : f32
    %24 = vector.broadcast %cst_16 : f32 to vector<128x118xf32>
    %25 = arith.maximumf %23, %24 : vector<128x118xf32>
    %26 = arith.truncf %25 : vector<128x118xf32> to vector<128x118xbf16>
    %c0_17 = arith.constant 0 : index
    %c0_18 = arith.constant 0 : index
    %c0_19 = arith.constant 0 : index
    %27 = vector.load %arg4[%c0_17, %c0_18, %c0_19] : memref<16x64x32xbf16, #tpu.memory_space<vmem>>, vector<1x64x32xbf16>
    %28 = vector.shape_cast %27 : vector<1x64x32xbf16> to vector<64x32xbf16>
    %29 = vector.extract_strided_slice %26 {offsets = [0, 0], sizes = [32, 105], strides = [1, 1]} : vector<128x118xbf16> to vector<32x105xbf16>
    %cst_20 = arith.constant dense<0.000000e+00> : vector<64x105xf32>
    %30 = tpu.matmul %28, %29, %cst_20 {dimension_numbers = #tpu.dot_dimension_numbers<[1], [0], [0], [1], [0, 0, 1, 1], [], []>} : vector<64x32xbf16>, vector<32x105xbf16>, vector<64x105xf32> -> vector<64x105xf32>
    %c1_21 = arith.constant 1 : index
    %c0_22 = arith.constant 0 : index
    %c0_23 = arith.constant 0 : index
    %31 = vector.load %arg4[%c1_21, %c0_22, %c0_23] : memref<16x64x32xbf16, #tpu.memory_space<vmem>>, vector<1x64x32xbf16>
    %32 = vector.shape_cast %31 : vector<1x64x32xbf16> to vector<64x32xbf16>
    %33 = vector.extract_strided_slice %26 {offsets = [32, 0], sizes = [32, 105], strides = [1, 1]} : vector<128x118xbf16> to vector<32x105xbf16>
    %cst_24 = arith.constant dense<0.000000e+00> : vector<64x105xf32>
    %34 = tpu.matmul %32, %33, %cst_24 {dimension_numbers = #tpu.dot_dimension_numbers<[1], [0], [0], [1], [0, 0, 1, 1], [], []>} : vector<64x32xbf16>, vector<32x105xbf16>, vector<64x105xf32> -> vector<64x105xf32>
    %35 = arith.addf %30, %34 : vector<64x105xf32>
    %c2_25 = arith.constant 2 : index
    %c0_26 = arith.constant 0 : index
    %c0_27 = arith.constant 0 : index
    %36 = vector.load %arg4[%c2_25, %c0_26, %c0_27] : memref<16x64x32xbf16, #tpu.memory_space<vmem>>, vector<1x64x32xbf16>
    %37 = vector.shape_cast %36 : vector<1x64x32xbf16> to vector<64x32xbf16>
    %38 = vector.extract_strided_slice %26 {offsets = [0, 1], sizes = [32, 105], strides = [1, 1]} : vector<128x118xbf16> to vector<32x105xbf16>
    %cst_28 = arith.constant dense<0.000000e+00> : vector<64x105xf32>
    %39 = tpu.matmul %37, %38, %cst_28 {dimension_numbers = #tpu.dot_dimension_numbers<[1], [0], [0], [1], [0, 0, 1, 1], [], []>} : vector<64x32xbf16>, vector<32x105xbf16>, vector<64x105xf32> -> vector<64x105xf32>
    %40 = arith.addf %35, %39 : vector<64x105xf32>
    %c3_29 = arith.constant 3 : index
    %c0_30 = arith.constant 0 : index
    %c0_31 = arith.constant 0 : index
    %41 = vector.load %arg4[%c3_29, %c0_30, %c0_31] : memref<16x64x32xbf16, #tpu.memory_space<vmem>>, vector<1x64x32xbf16>
    %42 = vector.shape_cast %41 : vector<1x64x32xbf16> to vector<64x32xbf16>
    %43 = vector.extract_strided_slice %26 {offsets = [32, 1], sizes = [32, 105], strides = [1, 1]} : vector<128x118xbf16> to vector<32x105xbf16>
    %cst_32 = arith.constant dense<0.000000e+00> : vector<64x105xf32>
    %44 = tpu.matmul %42, %43, %cst_32 {dimension_numbers = #tpu.dot_dimension_numbers<[1], [0], [0], [1], [0, 0, 1, 1], [], []>} : vector<64x32xbf16>, vector<32x105xbf16>, vector<64x105xf32> -> vector<64x105xf32>
    %45 = arith.addf %40, %44 : vector<64x105xf32>
    %c4 = arith.constant 4 : index
    %c0_33 = arith.constant 0 : index
    %c0_34 = arith.constant 0 : index
    %46 = vector.load %arg4[%c4, %c0_33, %c0_34] : memref<16x64x32xbf16, #tpu.memory_space<vmem>>, vector<1x64x32xbf16>
    %47 = vector.shape_cast %46 : vector<1x64x32xbf16> to vector<64x32xbf16>
    %48 = vector.extract_strided_slice %26 {offsets = [64, 0], sizes = [32, 105], strides = [1, 1]} : vector<128x118xbf16> to vector<32x105xbf16>
    %cst_35 = arith.constant dense<0.000000e+00> : vector<64x105xf32>
    %49 = tpu.matmul %47, %48, %cst_35 {dimension_numbers = #tpu.dot_dimension_numbers<[1], [0], [0], [1], [0, 0, 1, 1], [], []>} : vector<64x32xbf16>, vector<32x105xbf16>, vector<64x105xf32> -> vector<64x105xf32>
    %50 = arith.addf %45, %49 : vector<64x105xf32>
    %c5 = arith.constant 5 : index
    %c0_36 = arith.constant 0 : index
    %c0_37 = arith.constant 0 : index
    %51 = vector.load %arg4[%c5, %c0_36, %c0_37] : memref<16x64x32xbf16, #tpu.memory_space<vmem>>, vector<1x64x32xbf16>
    %52 = vector.shape_cast %51 : vector<1x64x32xbf16> to vector<64x32xbf16>
    %53 = vector.extract_strided_slice %26 {offsets = [96, 0], sizes = [32, 105], strides = [1, 1]} : vector<128x118xbf16> to vector<32x105xbf16>
    %cst_38 = arith.constant dense<0.000000e+00> : vector<64x105xf32>
    %54 = tpu.matmul %52, %53, %cst_38 {dimension_numbers = #tpu.dot_dimension_numbers<[1], [0], [0], [1], [0, 0, 1, 1], [], []>} : vector<64x32xbf16>, vector<32x105xbf16>, vector<64x105xf32> -> vector<64x105xf32>
    %55 = arith.addf %50, %54 : vector<64x105xf32>
    %c6 = arith.constant 6 : index
    %c0_39 = arith.constant 0 : index
    %c0_40 = arith.constant 0 : index
    %56 = vector.load %arg4[%c6, %c0_39, %c0_40] : memref<16x64x32xbf16, #tpu.memory_space<vmem>>, vector<1x64x32xbf16>
    %57 = vector.shape_cast %56 : vector<1x64x32xbf16> to vector<64x32xbf16>
    %58 = vector.extract_strided_slice %26 {offsets = [64, 1], sizes = [32, 105], strides = [1, 1]} : vector<128x118xbf16> to vector<32x105xbf16>
    %cst_41 = arith.constant dense<0.000000e+00> : vector<64x105xf32>
    %59 = tpu.matmul %57, %58, %cst_41 {dimension_numbers = #tpu.dot_dimension_numbers<[1], [0], [0], [1], [0, 0, 1, 1], [], []>} : vector<64x32xbf16>, vector<32x105xbf16>, vector<64x105xf32> -> vector<64x105xf32>
    %60 = arith.addf %55, %59 : vector<64x105xf32>
    %c7 = arith.constant 7 : index
    %c0_42 = arith.constant 0 : index
    %c0_43 = arith.constant 0 : index
    %61 = vector.load %arg4[%c7, %c0_42, %c0_43] : memref<16x64x32xbf16, #tpu.memory_space<vmem>>, vector<1x64x32xbf16>
    %62 = vector.shape_cast %61 : vector<1x64x32xbf16> to vector<64x32xbf16>
    %63 = vector.extract_strided_slice %26 {offsets = [96, 1], sizes = [32, 105], strides = [1, 1]} : vector<128x118xbf16> to vector<32x105xbf16>
    %cst_44 = arith.constant dense<0.000000e+00> : vector<64x105xf32>
    %64 = tpu.matmul %62, %63, %cst_44 {dimension_numbers = #tpu.dot_dimension_numbers<[1], [0], [0], [1], [0, 0, 1, 1], [], []>} : vector<64x32xbf16>, vector<32x105xbf16>, vector<64x105xf32> -> vector<64x105xf32>
    %65 = arith.addf %60, %64 : vector<64x105xf32>
    %c8 = arith.constant 8 : index
    %c0_45 = arith.constant 0 : index
    %c0_46 = arith.constant 0 : index
    %66 = vector.load %arg4[%c8, %c0_45, %c0_46] : memref<16x64x32xbf16, #tpu.memory_space<vmem>>, vector<1x64x32xbf16>
    %67 = vector.shape_cast %66 : vector<1x64x32xbf16> to vector<64x32xbf16>
    %68 = vector.extract_strided_slice %26 {offsets = [0, 12], sizes = [32, 105], strides = [1, 1]} : vector<128x118xbf16> to vector<32x105xbf16>
    %cst_47 = arith.constant dense<0.000000e+00> : vector<64x105xf32>
    %69 = tpu.matmul %67, %68, %cst_47 {dimension_numbers = #tpu.dot_dimension_numbers<[1], [0], [0], [1], [0, 0, 1, 1], [], []>} : vector<64x32xbf16>, vector<32x105xbf16>, vector<64x105xf32> -> vector<64x105xf32>
    %70 = arith.addf %65, %69 : vector<64x105xf32>
    %c9 = arith.constant 9 : index
    %c0_48 = arith.constant 0 : index
    %c0_49 = arith.constant 0 : index
    %71 = vector.load %arg4[%c9, %c0_48, %c0_49] : memref<16x64x32xbf16, #tpu.memory_space<vmem>>, vector<1x64x32xbf16>
    %72 = vector.shape_cast %71 : vector<1x64x32xbf16> to vector<64x32xbf16>
    %73 = vector.extract_strided_slice %26 {offsets = [32, 12], sizes = [32, 105], strides = [1, 1]} : vector<128x118xbf16> to vector<32x105xbf16>
    %cst_50 = arith.constant dense<0.000000e+00> : vector<64x105xf32>
    %74 = tpu.matmul %72, %73, %cst_50 {dimension_numbers = #tpu.dot_dimension_numbers<[1], [0], [0], [1], [0, 0, 1, 1], [], []>} : vector<64x32xbf16>, vector<32x105xbf16>, vector<64x105xf32> -> vector<64x105xf32>
    %75 = arith.addf %70, %74 : vector<64x105xf32>
    %c10 = arith.constant 10 : index
    %c0_51 = arith.constant 0 : index
    %c0_52 = arith.constant 0 : index
    %76 = vector.load %arg4[%c10, %c0_51, %c0_52] : memref<16x64x32xbf16, #tpu.memory_space<vmem>>, vector<1x64x32xbf16>
    %77 = vector.shape_cast %76 : vector<1x64x32xbf16> to vector<64x32xbf16>
    %78 = vector.extract_strided_slice %26 {offsets = [0, 13], sizes = [32, 105], strides = [1, 1]} : vector<128x118xbf16> to vector<32x105xbf16>
    %cst_53 = arith.constant dense<0.000000e+00> : vector<64x105xf32>
    %79 = tpu.matmul %77, %78, %cst_53 {dimension_numbers = #tpu.dot_dimension_numbers<[1], [0], [0], [1], [0, 0, 1, 1], [], []>} : vector<64x32xbf16>, vector<32x105xbf16>, vector<64x105xf32> -> vector<64x105xf32>
    %80 = arith.addf %75, %79 : vector<64x105xf32>
    %c11 = arith.constant 11 : index
    %c0_54 = arith.constant 0 : index
    %c0_55 = arith.constant 0 : index
    %81 = vector.load %arg4[%c11, %c0_54, %c0_55] : memref<16x64x32xbf16, #tpu.memory_space<vmem>>, vector<1x64x32xbf16>
    %82 = vector.shape_cast %81 : vector<1x64x32xbf16> to vector<64x32xbf16>
    %83 = vector.extract_strided_slice %26 {offsets = [32, 13], sizes = [32, 105], strides = [1, 1]} : vector<128x118xbf16> to vector<32x105xbf16>
    %cst_56 = arith.constant dense<0.000000e+00> : vector<64x105xf32>
    %84 = tpu.matmul %82, %83, %cst_56 {dimension_numbers = #tpu.dot_dimension_numbers<[1], [0], [0], [1], [0, 0, 1, 1], [], []>} : vector<64x32xbf16>, vector<32x105xbf16>, vector<64x105xf32> -> vector<64x105xf32>
    %85 = arith.addf %80, %84 : vector<64x105xf32>
    %c12 = arith.constant 12 : index
    %c0_57 = arith.constant 0 : index
    %c0_58 = arith.constant 0 : index
    %86 = vector.load %arg4[%c12, %c0_57, %c0_58] : memref<16x64x32xbf16, #tpu.memory_space<vmem>>, vector<1x64x32xbf16>
    %87 = vector.shape_cast %86 : vector<1x64x32xbf16> to vector<64x32xbf16>
    %88 = vector.extract_strided_slice %26 {offsets = [64, 12], sizes = [32, 105], strides = [1, 1]} : vector<128x118xbf16> to vector<32x105xbf16>
    %cst_59 = arith.constant dense<0.000000e+00> : vector<64x105xf32>
    %89 = tpu.matmul %87, %88, %cst_59 {dimension_numbers = #tpu.dot_dimension_numbers<[1], [0], [0], [1], [0, 0, 1, 1], [], []>} : vector<64x32xbf16>, vector<32x105xbf16>, vector<64x105xf32> -> vector<64x105xf32>
    %90 = arith.addf %85, %89 : vector<64x105xf32>
    %c13 = arith.constant 13 : index
    %c0_60 = arith.constant 0 : index
    %c0_61 = arith.constant 0 : index
    %91 = vector.load %arg4[%c13, %c0_60, %c0_61] : memref<16x64x32xbf16, #tpu.memory_space<vmem>>, vector<1x64x32xbf16>
    %92 = vector.shape_cast %91 : vector<1x64x32xbf16> to vector<64x32xbf16>
    %93 = vector.extract_strided_slice %26 {offsets = [96, 12], sizes = [32, 105], strides = [1, 1]} : vector<128x118xbf16> to vector<32x105xbf16>
    %cst_62 = arith.constant dense<0.000000e+00> : vector<64x105xf32>
    %94 = tpu.matmul %92, %93, %cst_62 {dimension_numbers = #tpu.dot_dimension_numbers<[1], [0], [0], [1], [0, 0, 1, 1], [], []>} : vector<64x32xbf16>, vector<32x105xbf16>, vector<64x105xf32> -> vector<64x105xf32>
    %95 = arith.addf %90, %94 : vector<64x105xf32>
    %c14 = arith.constant 14 : index
    %c0_63 = arith.constant 0 : index
    %c0_64 = arith.constant 0 : index
    %96 = vector.load %arg4[%c14, %c0_63, %c0_64] : memref<16x64x32xbf16, #tpu.memory_space<vmem>>, vector<1x64x32xbf16>
    %97 = vector.shape_cast %96 : vector<1x64x32xbf16> to vector<64x32xbf16>
    %98 = vector.extract_strided_slice %26 {offsets = [64, 13], sizes = [32, 105], strides = [1, 1]} : vector<128x118xbf16> to vector<32x105xbf16>
    %cst_65 = arith.constant dense<0.000000e+00> : vector<64x105xf32>
    %99 = tpu.matmul %97, %98, %cst_65 {dimension_numbers = #tpu.dot_dimension_numbers<[1], [0], [0], [1], [0, 0, 1, 1], [], []>} : vector<64x32xbf16>, vector<32x105xbf16>, vector<64x105xf32> -> vector<64x105xf32>
    %100 = arith.addf %95, %99 : vector<64x105xf32>
    %c15 = arith.constant 15 : index
    %c0_66 = arith.constant 0 : index
    %c0_67 = arith.constant 0 : index
    %101 = vector.load %arg4[%c15, %c0_66, %c0_67] : memref<16x64x32xbf16, #tpu.memory_space<vmem>>, vector<1x64x32xbf16>
    %102 = vector.shape_cast %101 : vector<1x64x32xbf16> to vector<64x32xbf16>
    %103 = vector.extract_strided_slice %26 {offsets = [96, 13], sizes = [32, 105], strides = [1, 1]} : vector<128x118xbf16> to vector<32x105xbf16>
    %cst_68 = arith.constant dense<0.000000e+00> : vector<64x105xf32>
    %104 = tpu.matmul %102, %103, %cst_68 {dimension_numbers = #tpu.dot_dimension_numbers<[1], [0], [0], [1], [0, 0, 1, 1], [], []>} : vector<64x32xbf16>, vector<32x105xbf16>, vector<64x105xf32> -> vector<64x105xf32>
    %105 = arith.addf %100, %104 : vector<64x105xf32>
    %c0_69 = arith.constant 0 : index
    %c0_70 = arith.constant 0 : index
    %106 = vector.load %arg5[%c0_69, %c0_70] : memref<64x1xf32, #tpu.memory_space<vmem>>, vector<64x1xf32>
    %107 = vector.broadcast %106 : vector<64x1xf32> to vector<64x105xf32>
    %108 = arith.addf %105, %107 : vector<64x105xf32>
    %cst_71 = arith.constant 0.000000e+00 : f32
    %109 = vector.broadcast %cst_71 : f32 to vector<64x105xf32>
    %110 = arith.maximumf %108, %109 : vector<64x105xf32>
    %111 = arith.truncf %110 : vector<64x105xf32> to vector<64x105xbf16>
    %c0_72 = arith.constant 0 : index
    %c0_73 = arith.constant 0 : index
    %c0_74 = arith.constant 0 : index
    %112 = vector.load %arg6[%c0_72, %c0_73, %c0_74] : memref<9x64x64xbf16, #tpu.memory_space<vmem>>, vector<1x64x64xbf16>
    %113 = vector.shape_cast %112 : vector<1x64x64xbf16> to vector<64x64xbf16>
    %114 = vector.extract_strided_slice %111 {offsets = [0, 0], sizes = [64, 79], strides = [1, 1]} : vector<64x105xbf16> to vector<64x79xbf16>
    %cst_75 = arith.constant dense<0.000000e+00> : vector<64x79xf32>
    %115 = tpu.matmul %113, %114, %cst_75 {dimension_numbers = #tpu.dot_dimension_numbers<[1], [0], [0], [1], [0, 0, 1, 1], [], []>} : vector<64x64xbf16>, vector<64x79xbf16>, vector<64x79xf32> -> vector<64x79xf32>
    %c1_76 = arith.constant 1 : index
    %c0_77 = arith.constant 0 : index
    %c0_78 = arith.constant 0 : index
    %116 = vector.load %arg6[%c1_76, %c0_77, %c0_78] : memref<9x64x64xbf16, #tpu.memory_space<vmem>>, vector<1x64x64xbf16>
    %117 = vector.shape_cast %116 : vector<1x64x64xbf16> to vector<64x64xbf16>
    %118 = vector.extract_strided_slice %111 {offsets = [0, 1], sizes = [64, 79], strides = [1, 1]} : vector<64x105xbf16> to vector<64x79xbf16>
    %cst_79 = arith.constant dense<0.000000e+00> : vector<64x79xf32>
    %119 = tpu.matmul %117, %118, %cst_79 {dimension_numbers = #tpu.dot_dimension_numbers<[1], [0], [0], [1], [0, 0, 1, 1], [], []>} : vector<64x64xbf16>, vector<64x79xbf16>, vector<64x79xf32> -> vector<64x79xf32>
    %120 = arith.addf %115, %119 : vector<64x79xf32>
    %c2_80 = arith.constant 2 : index
    %c0_81 = arith.constant 0 : index
    %c0_82 = arith.constant 0 : index
    %121 = vector.load %arg6[%c2_80, %c0_81, %c0_82] : memref<9x64x64xbf16, #tpu.memory_space<vmem>>, vector<1x64x64xbf16>
    %122 = vector.shape_cast %121 : vector<1x64x64xbf16> to vector<64x64xbf16>
    %123 = vector.extract_strided_slice %111 {offsets = [0, 2], sizes = [64, 79], strides = [1, 1]} : vector<64x105xbf16> to vector<64x79xbf16>
    %cst_83 = arith.constant dense<0.000000e+00> : vector<64x79xf32>
    %124 = tpu.matmul %122, %123, %cst_83 {dimension_numbers = #tpu.dot_dimension_numbers<[1], [0], [0], [1], [0, 0, 1, 1], [], []>} : vector<64x64xbf16>, vector<64x79xbf16>, vector<64x79xf32> -> vector<64x79xf32>
    %125 = arith.addf %120, %124 : vector<64x79xf32>
    %c3_84 = arith.constant 3 : index
    %c0_85 = arith.constant 0 : index
    %c0_86 = arith.constant 0 : index
    %126 = vector.load %arg6[%c3_84, %c0_85, %c0_86] : memref<9x64x64xbf16, #tpu.memory_space<vmem>>, vector<1x64x64xbf16>
    %127 = vector.shape_cast %126 : vector<1x64x64xbf16> to vector<64x64xbf16>
    %128 = vector.extract_strided_slice %111 {offsets = [0, 12], sizes = [64, 79], strides = [1, 1]} : vector<64x105xbf16> to vector<64x79xbf16>
    %cst_87 = arith.constant dense<0.000000e+00> : vector<64x79xf32>
    %129 = tpu.matmul %127, %128, %cst_87 {dimension_numbers = #tpu.dot_dimension_numbers<[1], [0], [0], [1], [0, 0, 1, 1], [], []>} : vector<64x64xbf16>, vector<64x79xbf16>, vector<64x79xf32> -> vector<64x79xf32>
    %130 = arith.addf %125, %129 : vector<64x79xf32>
    %c4_88 = arith.constant 4 : index
    %c0_89 = arith.constant 0 : index
    %c0_90 = arith.constant 0 : index
    %131 = vector.load %arg6[%c4_88, %c0_89, %c0_90] : memref<9x64x64xbf16, #tpu.memory_space<vmem>>, vector<1x64x64xbf16>
    %132 = vector.shape_cast %131 : vector<1x64x64xbf16> to vector<64x64xbf16>
    %133 = vector.extract_strided_slice %111 {offsets = [0, 13], sizes = [64, 79], strides = [1, 1]} : vector<64x105xbf16> to vector<64x79xbf16>
    %cst_91 = arith.constant dense<0.000000e+00> : vector<64x79xf32>
    %134 = tpu.matmul %132, %133, %cst_91 {dimension_numbers = #tpu.dot_dimension_numbers<[1], [0], [0], [1], [0, 0, 1, 1], [], []>} : vector<64x64xbf16>, vector<64x79xbf16>, vector<64x79xf32> -> vector<64x79xf32>
    %135 = arith.addf %130, %134 : vector<64x79xf32>
    %c5_92 = arith.constant 5 : index
    %c0_93 = arith.constant 0 : index
    %c0_94 = arith.constant 0 : index
    %136 = vector.load %arg6[%c5_92, %c0_93, %c0_94] : memref<9x64x64xbf16, #tpu.memory_space<vmem>>, vector<1x64x64xbf16>
    %137 = vector.shape_cast %136 : vector<1x64x64xbf16> to vector<64x64xbf16>
    %138 = vector.extract_strided_slice %111 {offsets = [0, 14], sizes = [64, 79], strides = [1, 1]} : vector<64x105xbf16> to vector<64x79xbf16>
    %cst_95 = arith.constant dense<0.000000e+00> : vector<64x79xf32>
    %139 = tpu.matmul %137, %138, %cst_95 {dimension_numbers = #tpu.dot_dimension_numbers<[1], [0], [0], [1], [0, 0, 1, 1], [], []>} : vector<64x64xbf16>, vector<64x79xbf16>, vector<64x79xf32> -> vector<64x79xf32>
    %140 = arith.addf %135, %139 : vector<64x79xf32>
    %c6_96 = arith.constant 6 : index
    %c0_97 = arith.constant 0 : index
    %c0_98 = arith.constant 0 : index
    %141 = vector.load %arg6[%c6_96, %c0_97, %c0_98] : memref<9x64x64xbf16, #tpu.memory_space<vmem>>, vector<1x64x64xbf16>
    %142 = vector.shape_cast %141 : vector<1x64x64xbf16> to vector<64x64xbf16>
    %143 = vector.extract_strided_slice %111 {offsets = [0, 24], sizes = [64, 79], strides = [1, 1]} : vector<64x105xbf16> to vector<64x79xbf16>
    %cst_99 = arith.constant dense<0.000000e+00> : vector<64x79xf32>
    %144 = tpu.matmul %142, %143, %cst_99 {dimension_numbers = #tpu.dot_dimension_numbers<[1], [0], [0], [1], [0, 0, 1, 1], [], []>} : vector<64x64xbf16>, vector<64x79xbf16>, vector<64x79xf32> -> vector<64x79xf32>
    %145 = arith.addf %140, %144 : vector<64x79xf32>
    %c7_100 = arith.constant 7 : index
    %c0_101 = arith.constant 0 : index
    %c0_102 = arith.constant 0 : index
    %146 = vector.load %arg6[%c7_100, %c0_101, %c0_102] : memref<9x64x64xbf16, #tpu.memory_space<vmem>>, vector<1x64x64xbf16>
    %147 = vector.shape_cast %146 : vector<1x64x64xbf16> to vector<64x64xbf16>
    %148 = vector.extract_strided_slice %111 {offsets = [0, 25], sizes = [64, 79], strides = [1, 1]} : vector<64x105xbf16> to vector<64x79xbf16>
    %cst_103 = arith.constant dense<0.000000e+00> : vector<64x79xf32>
    %149 = tpu.matmul %147, %148, %cst_103 {dimension_numbers = #tpu.dot_dimension_numbers<[1], [0], [0], [1], [0, 0, 1, 1], [], []>} : vector<64x64xbf16>, vector<64x79xbf16>, vector<64x79xf32> -> vector<64x79xf32>
    %150 = arith.addf %145, %149 : vector<64x79xf32>
    %c8_104 = arith.constant 8 : index
    %c0_105 = arith.constant 0 : index
    %c0_106 = arith.constant 0 : index
    %151 = vector.load %arg6[%c8_104, %c0_105, %c0_106] : memref<9x64x64xbf16, #tpu.memory_space<vmem>>, vector<1x64x64xbf16>
    %152 = vector.shape_cast %151 : vector<1x64x64xbf16> to vector<64x64xbf16>
    %153 = vector.extract_strided_slice %111 {offsets = [0, 26], sizes = [64, 79], strides = [1, 1]} : vector<64x105xbf16> to vector<64x79xbf16>
    %cst_107 = arith.constant dense<0.000000e+00> : vector<64x79xf32>
    %154 = tpu.matmul %152, %153, %cst_107 {dimension_numbers = #tpu.dot_dimension_numbers<[1], [0], [0], [1], [0, 0, 1, 1], [], []>} : vector<64x64xbf16>, vector<64x79xbf16>, vector<64x79xf32> -> vector<64x79xf32>
    %155 = arith.addf %150, %154 : vector<64x79xf32>
    %c0_108 = arith.constant 0 : index
    %c0_109 = arith.constant 0 : index
    %156 = vector.load %arg7[%c0_108, %c0_109] : memref<64x1xf32, #tpu.memory_space<vmem>>, vector<64x1xf32>
    %157 = vector.broadcast %156 : vector<64x1xf32> to vector<64x79xf32>
    %158 = arith.addf %155, %157 : vector<64x79xf32>
    %cst_110 = arith.constant 0.000000e+00 : f32
    %159 = vector.broadcast %cst_110 : f32 to vector<64x79xf32>
    %160 = arith.maximumf %158, %159 : vector<64x79xf32>
    %161 = arith.truncf %160 : vector<64x79xf32> to vector<64x79xbf16>
    %162 = vector.extract_strided_slice %161 {offsets = [0, 0], sizes = [64, 7], strides = [1, 1]} : vector<64x79xbf16> to vector<64x7xbf16>
    %163 = vector.extract_strided_slice %161 {offsets = [0, 12], sizes = [64, 7], strides = [1, 1]} : vector<64x79xbf16> to vector<64x7xbf16>
    %164 = vector.extract_strided_slice %161 {offsets = [0, 24], sizes = [64, 7], strides = [1, 1]} : vector<64x79xbf16> to vector<64x7xbf16>
    %165 = vector.extract_strided_slice %161 {offsets = [0, 36], sizes = [64, 7], strides = [1, 1]} : vector<64x79xbf16> to vector<64x7xbf16>
    %166 = vector.extract_strided_slice %161 {offsets = [0, 48], sizes = [64, 7], strides = [1, 1]} : vector<64x79xbf16> to vector<64x7xbf16>
    %167 = vector.extract_strided_slice %161 {offsets = [0, 60], sizes = [64, 7], strides = [1, 1]} : vector<64x79xbf16> to vector<64x7xbf16>
    %168 = vector.extract_strided_slice %161 {offsets = [0, 72], sizes = [64, 7], strides = [1, 1]} : vector<64x79xbf16> to vector<64x7xbf16>
    %169 = tpu.concatenate %162, %163, %164, %165, %166, %167, %168 in 1 : vector<64x7xbf16>, vector<64x7xbf16>, vector<64x7xbf16>, vector<64x7xbf16>, vector<64x7xbf16>, vector<64x7xbf16>, vector<64x7xbf16> -> vector<64x49xbf16>
    %170 = vector.extract_strided_slice %169 {offsets = [0, 0], sizes = [1, 49], strides = [1, 1]} : vector<64x49xbf16> to vector<1x49xbf16>
    %171 = vector.extract_strided_slice %169 {offsets = [1, 0], sizes = [1, 49], strides = [1, 1]} : vector<64x49xbf16> to vector<1x49xbf16>
    %172 = vector.extract_strided_slice %169 {offsets = [2, 0], sizes = [1, 49], strides = [1, 1]} : vector<64x49xbf16> to vector<1x49xbf16>
    %173 = vector.extract_strided_slice %169 {offsets = [3, 0], sizes = [1, 49], strides = [1, 1]} : vector<64x49xbf16> to vector<1x49xbf16>
    %174 = vector.extract_strided_slice %169 {offsets = [4, 0], sizes = [1, 49], strides = [1, 1]} : vector<64x49xbf16> to vector<1x49xbf16>
    %175 = vector.extract_strided_slice %169 {offsets = [5, 0], sizes = [1, 49], strides = [1, 1]} : vector<64x49xbf16> to vector<1x49xbf16>
    %176 = vector.extract_strided_slice %169 {offsets = [6, 0], sizes = [1, 49], strides = [1, 1]} : vector<64x49xbf16> to vector<1x49xbf16>
    %177 = vector.extract_strided_slice %169 {offsets = [7, 0], sizes = [1, 49], strides = [1, 1]} : vector<64x49xbf16> to vector<1x49xbf16>
    %178 = tpu.concatenate %170, %171, %172, %173, %174, %175, %176, %177 in 1 : vector<1x49xbf16>, vector<1x49xbf16>, vector<1x49xbf16>, vector<1x49xbf16>, vector<1x49xbf16>, vector<1x49xbf16>, vector<1x49xbf16>, vector<1x49xbf16> -> vector<1x392xbf16>
    %179 = vector.extract_strided_slice %169 {offsets = [8, 0], sizes = [1, 49], strides = [1, 1]} : vector<64x49xbf16> to vector<1x49xbf16>
    %180 = vector.extract_strided_slice %169 {offsets = [9, 0], sizes = [1, 49], strides = [1, 1]} : vector<64x49xbf16> to vector<1x49xbf16>
    %181 = vector.extract_strided_slice %169 {offsets = [10, 0], sizes = [1, 49], strides = [1, 1]} : vector<64x49xbf16> to vector<1x49xbf16>
    %182 = vector.extract_strided_slice %169 {offsets = [11, 0], sizes = [1, 49], strides = [1, 1]} : vector<64x49xbf16> to vector<1x49xbf16>
    %183 = vector.extract_strided_slice %169 {offsets = [12, 0], sizes = [1, 49], strides = [1, 1]} : vector<64x49xbf16> to vector<1x49xbf16>
    %184 = vector.extract_strided_slice %169 {offsets = [13, 0], sizes = [1, 49], strides = [1, 1]} : vector<64x49xbf16> to vector<1x49xbf16>
    %185 = vector.extract_strided_slice %169 {offsets = [14, 0], sizes = [1, 49], strides = [1, 1]} : vector<64x49xbf16> to vector<1x49xbf16>
    %186 = vector.extract_strided_slice %169 {offsets = [15, 0], sizes = [1, 49], strides = [1, 1]} : vector<64x49xbf16> to vector<1x49xbf16>
    %187 = tpu.concatenate %179, %180, %181, %182, %183, %184, %185, %186 in 1 : vector<1x49xbf16>, vector<1x49xbf16>, vector<1x49xbf16>, vector<1x49xbf16>, vector<1x49xbf16>, vector<1x49xbf16>, vector<1x49xbf16>, vector<1x49xbf16> -> vector<1x392xbf16>
    %188 = vector.extract_strided_slice %169 {offsets = [16, 0], sizes = [1, 49], strides = [1, 1]} : vector<64x49xbf16> to vector<1x49xbf16>
    %189 = vector.extract_strided_slice %169 {offsets = [17, 0], sizes = [1, 49], strides = [1, 1]} : vector<64x49xbf16> to vector<1x49xbf16>
    %190 = vector.extract_strided_slice %169 {offsets = [18, 0], sizes = [1, 49], strides = [1, 1]} : vector<64x49xbf16> to vector<1x49xbf16>
    %191 = vector.extract_strided_slice %169 {offsets = [19, 0], sizes = [1, 49], strides = [1, 1]} : vector<64x49xbf16> to vector<1x49xbf16>
    %192 = vector.extract_strided_slice %169 {offsets = [20, 0], sizes = [1, 49], strides = [1, 1]} : vector<64x49xbf16> to vector<1x49xbf16>
    %193 = vector.extract_strided_slice %169 {offsets = [21, 0], sizes = [1, 49], strides = [1, 1]} : vector<64x49xbf16> to vector<1x49xbf16>
    %194 = vector.extract_strided_slice %169 {offsets = [22, 0], sizes = [1, 49], strides = [1, 1]} : vector<64x49xbf16> to vector<1x49xbf16>
    %195 = vector.extract_strided_slice %169 {offsets = [23, 0], sizes = [1, 49], strides = [1, 1]} : vector<64x49xbf16> to vector<1x49xbf16>
    %196 = tpu.concatenate %188, %189, %190, %191, %192, %193, %194, %195 in 1 : vector<1x49xbf16>, vector<1x49xbf16>, vector<1x49xbf16>, vector<1x49xbf16>, vector<1x49xbf16>, vector<1x49xbf16>, vector<1x49xbf16>, vector<1x49xbf16> -> vector<1x392xbf16>
    %197 = vector.extract_strided_slice %169 {offsets = [24, 0], sizes = [1, 49], strides = [1, 1]} : vector<64x49xbf16> to vector<1x49xbf16>
    %198 = vector.extract_strided_slice %169 {offsets = [25, 0], sizes = [1, 49], strides = [1, 1]} : vector<64x49xbf16> to vector<1x49xbf16>
    %199 = vector.extract_strided_slice %169 {offsets = [26, 0], sizes = [1, 49], strides = [1, 1]} : vector<64x49xbf16> to vector<1x49xbf16>
    %200 = vector.extract_strided_slice %169 {offsets = [27, 0], sizes = [1, 49], strides = [1, 1]} : vector<64x49xbf16> to vector<1x49xbf16>
    %201 = vector.extract_strided_slice %169 {offsets = [28, 0], sizes = [1, 49], strides = [1, 1]} : vector<64x49xbf16> to vector<1x49xbf16>
    %202 = vector.extract_strided_slice %169 {offsets = [29, 0], sizes = [1, 49], strides = [1, 1]} : vector<64x49xbf16> to vector<1x49xbf16>
    %203 = vector.extract_strided_slice %169 {offsets = [30, 0], sizes = [1, 49], strides = [1, 1]} : vector<64x49xbf16> to vector<1x49xbf16>
    %204 = vector.extract_strided_slice %169 {offsets = [31, 0], sizes = [1, 49], strides = [1, 1]} : vector<64x49xbf16> to vector<1x49xbf16>
    %205 = tpu.concatenate %197, %198, %199, %200, %201, %202, %203, %204 in 1 : vector<1x49xbf16>, vector<1x49xbf16>, vector<1x49xbf16>, vector<1x49xbf16>, vector<1x49xbf16>, vector<1x49xbf16>, vector<1x49xbf16>, vector<1x49xbf16> -> vector<1x392xbf16>
    %206 = vector.extract_strided_slice %169 {offsets = [32, 0], sizes = [1, 49], strides = [1, 1]} : vector<64x49xbf16> to vector<1x49xbf16>
    %207 = vector.extract_strided_slice %169 {offsets = [33, 0], sizes = [1, 49], strides = [1, 1]} : vector<64x49xbf16> to vector<1x49xbf16>
    %208 = vector.extract_strided_slice %169 {offsets = [34, 0], sizes = [1, 49], strides = [1, 1]} : vector<64x49xbf16> to vector<1x49xbf16>
    %209 = vector.extract_strided_slice %169 {offsets = [35, 0], sizes = [1, 49], strides = [1, 1]} : vector<64x49xbf16> to vector<1x49xbf16>
    %210 = vector.extract_strided_slice %169 {offsets = [36, 0], sizes = [1, 49], strides = [1, 1]} : vector<64x49xbf16> to vector<1x49xbf16>
    %211 = vector.extract_strided_slice %169 {offsets = [37, 0], sizes = [1, 49], strides = [1, 1]} : vector<64x49xbf16> to vector<1x49xbf16>
    %212 = vector.extract_strided_slice %169 {offsets = [38, 0], sizes = [1, 49], strides = [1, 1]} : vector<64x49xbf16> to vector<1x49xbf16>
    %213 = vector.extract_strided_slice %169 {offsets = [39, 0], sizes = [1, 49], strides = [1, 1]} : vector<64x49xbf16> to vector<1x49xbf16>
    %214 = tpu.concatenate %206, %207, %208, %209, %210, %211, %212, %213 in 1 : vector<1x49xbf16>, vector<1x49xbf16>, vector<1x49xbf16>, vector<1x49xbf16>, vector<1x49xbf16>, vector<1x49xbf16>, vector<1x49xbf16>, vector<1x49xbf16> -> vector<1x392xbf16>
    %215 = vector.extract_strided_slice %169 {offsets = [40, 0], sizes = [1, 49], strides = [1, 1]} : vector<64x49xbf16> to vector<1x49xbf16>
    %216 = vector.extract_strided_slice %169 {offsets = [41, 0], sizes = [1, 49], strides = [1, 1]} : vector<64x49xbf16> to vector<1x49xbf16>
    %217 = vector.extract_strided_slice %169 {offsets = [42, 0], sizes = [1, 49], strides = [1, 1]} : vector<64x49xbf16> to vector<1x49xbf16>
    %218 = vector.extract_strided_slice %169 {offsets = [43, 0], sizes = [1, 49], strides = [1, 1]} : vector<64x49xbf16> to vector<1x49xbf16>
    %219 = vector.extract_strided_slice %169 {offsets = [44, 0], sizes = [1, 49], strides = [1, 1]} : vector<64x49xbf16> to vector<1x49xbf16>
    %220 = vector.extract_strided_slice %169 {offsets = [45, 0], sizes = [1, 49], strides = [1, 1]} : vector<64x49xbf16> to vector<1x49xbf16>
    %221 = vector.extract_strided_slice %169 {offsets = [46, 0], sizes = [1, 49], strides = [1, 1]} : vector<64x49xbf16> to vector<1x49xbf16>
    %222 = vector.extract_strided_slice %169 {offsets = [47, 0], sizes = [1, 49], strides = [1, 1]} : vector<64x49xbf16> to vector<1x49xbf16>
    %223 = tpu.concatenate %215, %216, %217, %218, %219, %220, %221, %222 in 1 : vector<1x49xbf16>, vector<1x49xbf16>, vector<1x49xbf16>, vector<1x49xbf16>, vector<1x49xbf16>, vector<1x49xbf16>, vector<1x49xbf16>, vector<1x49xbf16> -> vector<1x392xbf16>
    %224 = vector.extract_strided_slice %169 {offsets = [48, 0], sizes = [1, 49], strides = [1, 1]} : vector<64x49xbf16> to vector<1x49xbf16>
    %225 = vector.extract_strided_slice %169 {offsets = [49, 0], sizes = [1, 49], strides = [1, 1]} : vector<64x49xbf16> to vector<1x49xbf16>
    %226 = vector.extract_strided_slice %169 {offsets = [50, 0], sizes = [1, 49], strides = [1, 1]} : vector<64x49xbf16> to vector<1x49xbf16>
    %227 = vector.extract_strided_slice %169 {offsets = [51, 0], sizes = [1, 49], strides = [1, 1]} : vector<64x49xbf16> to vector<1x49xbf16>
    %228 = vector.extract_strided_slice %169 {offsets = [52, 0], sizes = [1, 49], strides = [1, 1]} : vector<64x49xbf16> to vector<1x49xbf16>
    %229 = vector.extract_strided_slice %169 {offsets = [53, 0], sizes = [1, 49], strides = [1, 1]} : vector<64x49xbf16> to vector<1x49xbf16>
    %230 = vector.extract_strided_slice %169 {offsets = [54, 0], sizes = [1, 49], strides = [1, 1]} : vector<64x49xbf16> to vector<1x49xbf16>
    %231 = vector.extract_strided_slice %169 {offsets = [55, 0], sizes = [1, 49], strides = [1, 1]} : vector<64x49xbf16> to vector<1x49xbf16>
    %232 = tpu.concatenate %224, %225, %226, %227, %228, %229, %230, %231 in 1 : vector<1x49xbf16>, vector<1x49xbf16>, vector<1x49xbf16>, vector<1x49xbf16>, vector<1x49xbf16>, vector<1x49xbf16>, vector<1x49xbf16>, vector<1x49xbf16> -> vector<1x392xbf16>
    %233 = vector.extract_strided_slice %169 {offsets = [56, 0], sizes = [1, 49], strides = [1, 1]} : vector<64x49xbf16> to vector<1x49xbf16>
    %234 = vector.extract_strided_slice %169 {offsets = [57, 0], sizes = [1, 49], strides = [1, 1]} : vector<64x49xbf16> to vector<1x49xbf16>
    %235 = vector.extract_strided_slice %169 {offsets = [58, 0], sizes = [1, 49], strides = [1, 1]} : vector<64x49xbf16> to vector<1x49xbf16>
    %236 = vector.extract_strided_slice %169 {offsets = [59, 0], sizes = [1, 49], strides = [1, 1]} : vector<64x49xbf16> to vector<1x49xbf16>
    %237 = vector.extract_strided_slice %169 {offsets = [60, 0], sizes = [1, 49], strides = [1, 1]} : vector<64x49xbf16> to vector<1x49xbf16>
    %238 = vector.extract_strided_slice %169 {offsets = [61, 0], sizes = [1, 49], strides = [1, 1]} : vector<64x49xbf16> to vector<1x49xbf16>
    %239 = vector.extract_strided_slice %169 {offsets = [62, 0], sizes = [1, 49], strides = [1, 1]} : vector<64x49xbf16> to vector<1x49xbf16>
    %240 = vector.extract_strided_slice %169 {offsets = [63, 0], sizes = [1, 49], strides = [1, 1]} : vector<64x49xbf16> to vector<1x49xbf16>
    %241 = tpu.concatenate %233, %234, %235, %236, %237, %238, %239, %240 in 1 : vector<1x49xbf16>, vector<1x49xbf16>, vector<1x49xbf16>, vector<1x49xbf16>, vector<1x49xbf16>, vector<1x49xbf16>, vector<1x49xbf16>, vector<1x49xbf16> -> vector<1x392xbf16>
    %242 = tpu.concatenate %178, %187, %196, %205, %214, %223, %232, %241 in 1 : vector<1x392xbf16>, vector<1x392xbf16>, vector<1x392xbf16>, vector<1x392xbf16>, vector<1x392xbf16>, vector<1x392xbf16>, vector<1x392xbf16>, vector<1x392xbf16> -> vector<1x3136xbf16>
    %c0_111 = arith.constant 0 : index
    %c0_112 = arith.constant 0 : index
    %243 = vector.load %arg8[%c0_111, %c0_112] : memref<3136x64xbf16, #tpu.memory_space<vmem>>, vector<3136x64xbf16>
    %cst_113 = arith.constant dense<0.000000e+00> : vector<1x64xf32>
    %244 = tpu.matmul %242, %243, %cst_113 {dimension_numbers = #tpu.dot_dimension_numbers<[1], [0], [0], [1], [0, 0, 1, 1], [], []>} : vector<1x3136xbf16>, vector<3136x64xbf16>, vector<1x64xf32> -> vector<1x64xf32>
    %c0_114 = arith.constant 0 : index
    %c0_115 = arith.constant 0 : index
    %245 = vector.load %arg9[%c0_114, %c0_115] : memref<1x64xf32, #tpu.memory_space<vmem>>, vector<1x64xf32>
    %246 = arith.addf %244, %245 : vector<1x64xf32>
    %cst_116 = arith.constant 0.000000e+00 : f32
    %247 = vector.broadcast %cst_116 : f32 to vector<1x64xf32>
    %248 = arith.maximumf %246, %247 : vector<1x64xf32>
    %249 = vector.extract_strided_slice %248 {offsets = [0, 0], sizes = [1, 32], strides = [1, 1]} : vector<1x64xf32> to vector<1x32xf32>
    %250 = arith.truncf %249 : vector<1x32xf32> to vector<1x32xbf16>
    %251 = vector.extract_strided_slice %248 {offsets = [0, 32], sizes = [1, 32], strides = [1, 1]} : vector<1x64xf32> to vector<1x32xf32>
    %252 = arith.truncf %251 : vector<1x32xf32> to vector<1x32xbf16>
    %c0_117 = arith.constant 0 : index
    %c0_118 = arith.constant 0 : index
    %253 = vector.load %arg10[%c0_117, %c0_118] : memref<32x8xbf16, #tpu.memory_space<vmem>>, vector<32x8xbf16>
    %cst_119 = arith.constant dense<0.000000e+00> : vector<1x8xf32>
    %254 = tpu.matmul %250, %253, %cst_119 {dimension_numbers = #tpu.dot_dimension_numbers<[1], [0], [0], [1], [0, 0, 1, 1], [], []>} : vector<1x32xbf16>, vector<32x8xbf16>, vector<1x8xf32> -> vector<1x8xf32>
    %c0_120 = arith.constant 0 : index
    %c0_121 = arith.constant 0 : index
    %255 = vector.load %arg11[%c0_120, %c0_121] : memref<1x8xf32, #tpu.memory_space<vmem>>, vector<1x8xf32>
    %256 = arith.addf %254, %255 : vector<1x8xf32>
    %c0_122 = arith.constant 0 : index
    %c0_123 = arith.constant 0 : index
    %257 = vector.load %arg12[%c0_122, %c0_123] : memref<32x32xbf16, #tpu.memory_space<vmem>>, vector<32x32xbf16>
    %cst_124 = arith.constant dense<0.000000e+00> : vector<1x32xf32>
    %258 = tpu.matmul %252, %257, %cst_124 {dimension_numbers = #tpu.dot_dimension_numbers<[1], [0], [0], [1], [0, 0, 1, 1], [], []>} : vector<1x32xbf16>, vector<32x32xbf16>, vector<1x32xf32> -> vector<1x32xf32>
    %c0_125 = arith.constant 0 : index
    %c0_126 = arith.constant 0 : index
    %259 = vector.load %arg13[%c0_125, %c0_126] : memref<1x32xf32, #tpu.memory_space<vmem>>, vector<1x32xf32>
    %260 = arith.addf %258, %259 : vector<1x32xf32>
    %261 = vector.extract_strided_slice %260 {offsets = [0, 0], sizes = [1, 8], strides = [1, 1]} : vector<1x32xf32> to vector<1x8xf32>
    %262 = vector.extract_strided_slice %260 {offsets = [0, 8], sizes = [1, 8], strides = [1, 1]} : vector<1x32xf32> to vector<1x8xf32>
    %263 = arith.addf %261, %262 : vector<1x8xf32>
    %264 = vector.extract_strided_slice %260 {offsets = [0, 16], sizes = [1, 8], strides = [1, 1]} : vector<1x32xf32> to vector<1x8xf32>
    %265 = arith.addf %263, %264 : vector<1x8xf32>
    %266 = vector.extract_strided_slice %260 {offsets = [0, 24], sizes = [1, 8], strides = [1, 1]} : vector<1x32xf32> to vector<1x8xf32>
    %267 = arith.addf %265, %266 : vector<1x8xf32>
    %cst_127 = arith.constant 2.500000e-01 : f32
    %268 = vector.broadcast %cst_127 : f32 to vector<1x8xf32>
    %269 = arith.mulf %267, %268 : vector<1x8xf32>
    %270 = vector.extract_strided_slice %260 {offsets = [0, 0], sizes = [1, 8], strides = [1, 1]} : vector<1x32xf32> to vector<1x8xf32>
    %271 = arith.addf %256, %270 : vector<1x8xf32>
    %272 = arith.subf %271, %269 : vector<1x8xf32>
    %cst_128 = arith.constant dense<0xFF800000> : vector<1xf32>
    %273 = vector.multi_reduction <maximumf>, %272, %cst_128 [1] : vector<1x8xf32> to vector<1xf32>
    %274 = vector.shape_cast %273 : vector<1xf32> to vector<1x1xf32>
    %275 = vector.broadcast %274 : vector<1x1xf32> to vector<1x8xf32>
    %276 = arith.subf %272, %275 : vector<1x8xf32>
    %277 = math.exp %276 : vector<1x8xf32>
    %cst_129 = arith.constant dense<0.000000e+00> : vector<1xf32>
    %278 = vector.multi_reduction <add>, %277, %cst_129 [1] : vector<1x8xf32> to vector<1xf32>
    %279 = vector.shape_cast %278 : vector<1xf32> to vector<1x1xf32>
    %280 = vector.broadcast %279 : vector<1x1xf32> to vector<1x8xf32>
    %281 = arith.divf %277, %280 : vector<1x8xf32>
    %c0_130 = arith.constant 0 : index
    %c0_131 = arith.constant 0 : index
    %c0_132 = arith.constant 0 : index
    %282 = vector.load %arg14[%c0_130, %c0_131, %c0_132] : memref<1x1x32xf32, #tpu.memory_space<vmem>>, vector<1x1x8xf32>
    %283 = vector.shape_cast %282 : vector<1x1x8xf32> to vector<1x8xf32>
    %284 = vector.shape_cast %281 : vector<1x8xf32> to vector<1x1x8xf32>
    tpu.vector_store %arg14[%c0_130, %c0_131, %c0_132], %284 {strides = array<i32>} : memref<1x1x32xf32, #tpu.memory_space<vmem>>, vector<1x1x8xf32>,
    %285 = vector.extract_strided_slice %260 {offsets = [0, 8], sizes = [1, 8], strides = [1, 1]} : vector<1x32xf32> to vector<1x8xf32>
    %286 = arith.addf %256, %285 : vector<1x8xf32>
    %287 = arith.subf %286, %269 : vector<1x8xf32>
    %cst_133 = arith.constant dense<0xFF800000> : vector<1xf32>
    %288 = vector.multi_reduction <maximumf>, %287, %cst_133 [1] : vector<1x8xf32> to vector<1xf32>
    %289 = vector.shape_cast %288 : vector<1xf32> to vector<1x1xf32>
    %290 = vector.broadcast %289 : vector<1x1xf32> to vector<1x8xf32>
    %291 = arith.subf %287, %290 : vector<1x8xf32>
    %292 = math.exp %291 : vector<1x8xf32>
    %cst_134 = arith.constant dense<0.000000e+00> : vector<1xf32>
    %293 = vector.multi_reduction <add>, %292, %cst_134 [1] : vector<1x8xf32> to vector<1xf32>
    %294 = vector.shape_cast %293 : vector<1xf32> to vector<1x1xf32>
    %295 = vector.broadcast %294 : vector<1x1xf32> to vector<1x8xf32>
    %296 = arith.divf %292, %295 : vector<1x8xf32>
    %c0_135 = arith.constant 0 : index
    %c0_136 = arith.constant 0 : index
    %c8_137 = arith.constant 8 : index
    %297 = vector.load %arg14[%c0_135, %c0_136, %c8_137] : memref<1x1x32xf32, #tpu.memory_space<vmem>>, vector<1x1x8xf32>
    %298 = vector.shape_cast %297 : vector<1x1x8xf32> to vector<1x8xf32>
    %299 = vector.shape_cast %296 : vector<1x8xf32> to vector<1x1x8xf32>
    tpu.vector_store %arg14[%c0_135, %c0_136, %c8_137], %299 {strides = array<i32>} : memref<1x1x32xf32, #tpu.memory_space<vmem>>, vector<1x1x8xf32>,
    %300 = vector.extract_strided_slice %260 {offsets = [0, 16], sizes = [1, 8], strides = [1, 1]} : vector<1x32xf32> to vector<1x8xf32>
    %301 = arith.addf %256, %300 : vector<1x8xf32>
    %302 = arith.subf %301, %269 : vector<1x8xf32>
    %cst_138 = arith.constant dense<0xFF800000> : vector<1xf32>
    %303 = vector.multi_reduction <maximumf>, %302, %cst_138 [1] : vector<1x8xf32> to vector<1xf32>
    %304 = vector.shape_cast %303 : vector<1xf32> to vector<1x1xf32>
    %305 = vector.broadcast %304 : vector<1x1xf32> to vector<1x8xf32>
    %306 = arith.subf %302, %305 : vector<1x8xf32>
    %307 = math.exp %306 : vector<1x8xf32>
    %cst_139 = arith.constant dense<0.000000e+00> : vector<1xf32>
    %308 = vector.multi_reduction <add>, %307, %cst_139 [1] : vector<1x8xf32> to vector<1xf32>
    %309 = vector.shape_cast %308 : vector<1xf32> to vector<1x1xf32>
    %310 = vector.broadcast %309 : vector<1x1xf32> to vector<1x8xf32>
    %311 = arith.divf %307, %310 : vector<1x8xf32>
    %c0_140 = arith.constant 0 : index
    %c0_141 = arith.constant 0 : index
    %c16 = arith.constant 16 : index
    %312 = vector.load %arg14[%c0_140, %c0_141, %c16] : memref<1x1x32xf32, #tpu.memory_space<vmem>>, vector<1x1x8xf32>
    %313 = vector.shape_cast %312 : vector<1x1x8xf32> to vector<1x8xf32>
    %314 = vector.shape_cast %311 : vector<1x8xf32> to vector<1x1x8xf32>
    tpu.vector_store %arg14[%c0_140, %c0_141, %c16], %314 {strides = array<i32>} : memref<1x1x32xf32, #tpu.memory_space<vmem>>, vector<1x1x8xf32>,
    %315 = vector.extract_strided_slice %260 {offsets = [0, 24], sizes = [1, 8], strides = [1, 1]} : vector<1x32xf32> to vector<1x8xf32>
    %316 = arith.addf %256, %315 : vector<1x8xf32>
    %317 = arith.subf %316, %269 : vector<1x8xf32>
    %cst_142 = arith.constant dense<0xFF800000> : vector<1xf32>
    %318 = vector.multi_reduction <maximumf>, %317, %cst_142 [1] : vector<1x8xf32> to vector<1xf32>
    %319 = vector.shape_cast %318 : vector<1xf32> to vector<1x1xf32>
    %320 = vector.broadcast %319 : vector<1x1xf32> to vector<1x8xf32>
    %321 = arith.subf %317, %320 : vector<1x8xf32>
    %322 = math.exp %321 : vector<1x8xf32>
    %cst_143 = arith.constant dense<0.000000e+00> : vector<1xf32>
    %323 = vector.multi_reduction <add>, %322, %cst_143 [1] : vector<1x8xf32> to vector<1xf32>
    %324 = vector.shape_cast %323 : vector<1xf32> to vector<1x1xf32>
    %325 = vector.broadcast %324 : vector<1x1xf32> to vector<1x8xf32>
    %326 = arith.divf %322, %325 : vector<1x8xf32>
    %c0_144 = arith.constant 0 : index
    %c0_145 = arith.constant 0 : index
    %c24 = arith.constant 24 : index
    %327 = vector.load %arg14[%c0_144, %c0_145, %c24] : memref<1x1x32xf32, #tpu.memory_space<vmem>>, vector<1x1x8xf32>
    %328 = vector.shape_cast %327 : vector<1x1x8xf32> to vector<1x8xf32>
    %329 = vector.shape_cast %326 : vector<1x8xf32> to vector<1x1x8xf32>
    tpu.vector_store %arg14[%c0_144, %c0_145, %c24], %329 {strides = array<i32>} : memref<1x1x32xf32, #tpu.memory_space<vmem>>, vector<1x1x8xf32>,
    return
  }
  func.func @transform_0(%arg0: i32) -> (i32, i32, i32) {
    %c0_i32 = arith.constant 0 : i32
    %c0_i32_0 = arith.constant 0 : i32
    %c0_i32_1 = arith.constant 0 : i32
    return %arg0, %c0_i32, %c0_i32_0 : i32, i32, i32
  }
  func.func @transform_1(%arg0: i32) -> (i32, i32, i32) {
    %c0_i32 = arith.constant 0 : i32
    %c0_i32_0 = arith.constant 0 : i32
    %c0_i32_1 = arith.constant 0 : i32
    %c0_i32_2 = arith.constant 0 : i32
    return %c0_i32, %c0_i32_0, %c0_i32_1 : i32, i32, i32
  }
  func.func @transform_2(%arg0: i32) -> (i32, i32) {
    %c0_i32 = arith.constant 0 : i32
    %c0_i32_0 = arith.constant 0 : i32
    %c0_i32_1 = arith.constant 0 : i32
    return %c0_i32, %c0_i32_0 : i32, i32
  }
  func.func @transform_3(%arg0: i32) -> (i32, i32, i32) {
    %c0_i32 = arith.constant 0 : i32
    %c0_i32_0 = arith.constant 0 : i32
    %c0_i32_1 = arith.constant 0 : i32
    %c0_i32_2 = arith.constant 0 : i32
    return %c0_i32, %c0_i32_0, %c0_i32_1 : i32, i32, i32
  }
  func.func @transform_4(%arg0: i32) -> (i32, i32) {
    %c0_i32 = arith.constant 0 : i32
    %c0_i32_0 = arith.constant 0 : i32
    %c0_i32_1 = arith.constant 0 : i32
    return %c0_i32, %c0_i32_0 : i32, i32
  }
  func.func @transform_5(%arg0: i32) -> (i32, i32, i32) {
    %c0_i32 = arith.constant 0 : i32
    %c0_i32_0 = arith.constant 0 : i32
    %c0_i32_1 = arith.constant 0 : i32
    %c0_i32_2 = arith.constant 0 : i32
    return %c0_i32, %c0_i32_0, %c0_i32_1 : i32, i32, i32
  }
  func.func @transform_6(%arg0: i32) -> (i32, i32) {
    %c0_i32 = arith.constant 0 : i32
    %c0_i32_0 = arith.constant 0 : i32
    %c0_i32_1 = arith.constant 0 : i32
    return %c0_i32, %c0_i32_0 : i32, i32
  }
  func.func @transform_7(%arg0: i32) -> (i32, i32) {
    %c0_i32 = arith.constant 0 : i32
    %c0_i32_0 = arith.constant 0 : i32
    %c0_i32_1 = arith.constant 0 : i32
    return %c0_i32, %c0_i32_0 : i32, i32
  }
  func.func @transform_8(%arg0: i32) -> (i32, i32) {
    %c0_i32 = arith.constant 0 : i32
    %c0_i32_0 = arith.constant 0 : i32
    %c0_i32_1 = arith.constant 0 : i32
    return %c0_i32, %c0_i32_0 : i32, i32
  }
  func.func @transform_9(%arg0: i32) -> (i32, i32) {
    %c0_i32 = arith.constant 0 : i32
    %c0_i32_0 = arith.constant 0 : i32
    %c0_i32_1 = arith.constant 0 : i32
    return %c0_i32, %c0_i32_0 : i32, i32
  }
  func.func @transform_10(%arg0: i32) -> (i32, i32) {
    %c0_i32 = arith.constant 0 : i32
    %c0_i32_0 = arith.constant 0 : i32
    %c0_i32_1 = arith.constant 0 : i32
    return %c0_i32, %c0_i32_0 : i32, i32
  }
  func.func @transform_11(%arg0: i32) -> (i32, i32) {
    %c0_i32 = arith.constant 0 : i32
    %c0_i32_0 = arith.constant 0 : i32
    %c0_i32_1 = arith.constant 0 : i32
    return %c0_i32, %c0_i32_0 : i32, i32
  }
  func.func @transform_12(%arg0: i32) -> (i32, i32) {
    %c0_i32 = arith.constant 0 : i32
    %c0_i32_0 = arith.constant 0 : i32
    %c0_i32_1 = arith.constant 0 : i32
    return %c0_i32, %c0_i32_0 : i32, i32
  }
  func.func @transform_13(%arg0: i32) -> (i32, i32, i32) {
    %c0_i32 = arith.constant 0 : i32
    %c0_i32_0 = arith.constant 0 : i32
    %c0_i32_1 = arith.constant 0 : i32
    return %arg0, %c0_i32, %c0_i32_0 : i32, i32, i32
  }
}

</mosaic_0001>

<llo_original>
// kernel: base_network_forward.1
$region0: #{base_network_forward.1}
  #allocation0 [shape = 'u32[]', space=smem, size = 0x4, offset = 0x4, fixed_abs, tag = 'smem constant byte address 0x4 - core index']
  #allocation1 [shape = 'u32[144,128]{1,0:T(1,128)}', space=vmem, size = 0x12000, scoped, tag = 'internal scratch']
  %s0 = inlined_call_operand.vmem [shape: bf16[2,256,132], index: 0, kind: input, shape index: {}]
  %s1 = inlined_call_operand.vmem [shape: bf16[4,128,256], index: 1, kind: input, shape index: {}]
  %s2 = inlined_call_operand.vmem [shape: f32[128,1], index: 2, kind: input, shape index: {}]
  %s3 = inlined_call_operand.vmem [shape: bf16[16,64,32], index: 3, kind: input, shape index: {}]
  %s4 = inlined_call_operand.vmem [shape: f32[64,1], index: 4, kind: input, shape index: {}]
  %s5 = inlined_call_operand.vmem [shape: bf16[9,64,64], index: 5, kind: input, shape index: {}]
  %s6 = inlined_call_operand.vmem [shape: f32[64,1], index: 6, kind: input, shape index: {}]
  %s7 = inlined_call_operand.vmem [shape: bf16[3136,64], index: 7, kind: input, shape index: {}]
  %s8 = inlined_call_operand.vmem [shape: f32[1,64], index: 8, kind: input, shape index: {}]
  %s9 = inlined_call_operand.vmem [shape: bf16[32,8], index: 9, kind: input, shape index: {}]
  %s10 = inlined_call_operand.vmem [shape: f32[1,8], index: 10, kind: input, shape index: {}]
  %s11 = inlined_call_operand.vmem [shape: bf16[32,32], index: 11, kind: input, shape index: {}]
  %s12 = inlined_call_operand.vmem [shape: f32[1,32], index: 12, kind: input, shape index: {}]
  %s13 = inlined_call_operand.vmem [shape: f32[2,1,32], index: 13, kind: output, shape index: {}]
  %s14 = sld [smem:[#allocation0]]
  $region85: #{base_network_forward.1} parent=0
    _
  %s16 = ssub.s32 1, %s14
  %s17 = scalar_select 0, %s16, %s14
  loop: start=0, step=1, limit=4
  $region2: #{base_network_forward.1} parent=0 // loop_pre_header
    _
  $region3: #{base_network_forward.1} parent=0 // loop_header
    %s19 = sphi 0, %s23
    %p20 = scmp.ge.s32.totalorder %s19, 4
    %s29 = sphi 0, %s31
    %s32 = sphi 0, %s29
    %s33 = sphi 0, %s32
    %s49 = sphi 0, %s33
    %s53 = sphi 0, %s53
    %s55 = sphi 0, %s53
    %s56 = sphi 0, %s55
    %s70 = sphi 0, %s56
    %s74 = sphi 0, %s74
    %s76 = sphi 0, %s74
    %s77 = sphi 0, %s76
    %s91 = sphi 0, %s77
    %s95 = sphi 0, %s95
    %s97 = sphi 0, %s95
    %s98 = sphi 0, %s97
    %s112 = sphi 0, %s98
    %s116 = sphi 0, %s116
    %s118 = sphi 0, %s116
    %s119 = sphi 0, %s118
    %s133 = sphi 0, %s119
    %s137 = sphi 0, %s137
    %s139 = sphi 0, %s137
    %s140 = sphi 0, %s139
    %s154 = sphi 0, %s140
    %s158 = sphi 0, %s158
    %s160 = sphi 0, %s158
    %s161 = sphi 0, %s160
    %s175 = sphi 0, %s161
    %s179 = sphi 0, %s179
    %s181 = sphi 0, %s179
    %s182 = sphi 0, %s181
    %s196 = sphi 0, %s182
    %s200 = sphi 0, %s200
    %s202 = sphi 0, %s200
    %s203 = sphi 0, %s202
    %s217 = sphi 0, %s203
    %s221 = sphi 0, %s221
    %s223 = sphi 0, %s221
    %s224 = sphi 0, %s223
    %s238 = sphi 0, %s224
    %s242 = sphi 0, %s242
    %s244 = sphi 0, %s242
    %s245 = sphi 0, %s244
    %s259 = sphi 0, %s245
    %s263 = sphi 0, %s263
    %s265 = sphi 0, %s263
    %s266 = sphi 0, %s265
    %s280 = sphi 0, %s266
    %s284 = sphi 0, %s284
    %s286 = sphi 0, %s284
    %s287 = sphi 0, %s286
    %s301 = sphi 0, %s287
    %s307 = sphi 0, %s309
    %s310 = sphi 0, %s307
    %s311 = sphi 0, %s310
    %s327 = sphi 0, %s311
  $region4: #{base_network_forward.1} parent=0 // loop_header_branch
    %22 = sbr.rel (%p20) target = $region8
  $region5: #{base_network_forward.1} parent=0 // loop_body
    %s24 = ssub.s32 %s19, 1
    %s25 = ssub.s32 %s19, 2
    %s26 = sadd.s32 %s19, 1
    %s27 = ssub.s32 %s19, %s26
    %p28 = scmp.eq.s32.totalorder %s27, 0
    %s30 = sadd.s32 %s29, 1
    %s31 = scalar_select %p28, %s29, %s30
    %p34 = pneg %p28
    %p35 = scmp.eq.s32.totalorder %s19, 1
    %p36 = por %p34, %p35
    %p37 = scmp.ne.s32.totalorder %s29, %s32
    %p38 = scmp.eq.s32.totalorder %s19, 0
    %p39 = por %p37, %p38
    %p40 = scmp.ne.s32.totalorder %s29, %s32
    %p41 = scmp.eq.s32.totalorder %s24, 1
    %p42 = por %p40, %p41
    %p43 = scmp.ne.s32.totalorder %s32, %s33
    %p44 = scmp.eq.s32.totalorder %s24, 0
    %p45 = por %p43, %p44
    %p46 = scmp.ne.s32.totalorder %s32, %s33
    %p47 = scmp.eq.s32.totalorder %s25, 1
    %p48 = por %p46, %p47
    %p50 = scmp.ne.s32.totalorder %s33, %s49
    %p51 = scmp.eq.s32.totalorder %s25, 0
    %p52 = por %p50, %p51
    %s54 = sadd.s32 %s53, 1
    %p57 = scmp.eq.s32.totalorder %s19, 1
    %p58 = scmp.ne.s32.totalorder %s53, %s55
    %p59 = scmp.eq.s32.totalorder %s19, 0
    %p60 = por %p58, %p59
    %p61 = scmp.ne.s32.totalorder %s53, %s55
    %p62 = scmp.eq.s32.totalorder %s24, 1
    %p63 = por %p61, %p62
    %p64 = scmp.ne.s32.totalorder %s55, %s56
    %p65 = scmp.eq.s32.totalorder %s24, 0
    %p66 = por %p64, %p65
    %p67 = scmp.ne.s32.totalorder %s55, %s56
    %p68 = scmp.eq.s32.totalorder %s25, 1
    %p69 = por %p67, %p68
    %p71 = scmp.ne.s32.totalorder %s56, %s70
    %p72 = scmp.eq.s32.totalorder %s25, 0
    %p73 = por %p71, %p72
    %s75 = sadd.s32 %s74, 1
    %p78 = scmp.eq.s32.totalorder %s19, 1
    %p79 = scmp.ne.s32.totalorder %s74, %s76
    %p80 = scmp.eq.s32.totalorder %s19, 0
    %p81 = por %p79, %p80
    %p82 = scmp.ne.s32.totalorder %s74, %s76
    %p83 = scmp.eq.s32.totalorder %s24, 1
    %p84 = por %p82, %p83
    %p85 = scmp.ne.s32.totalorder %s76, %s77
    %p86 = scmp.eq.s32.totalorder %s24, 0
    %p87 = por %p85, %p86
    %p88 = scmp.ne.s32.totalorder %s76, %s77
    %p89 = scmp.eq.s32.totalorder %s25, 1
    %p90 = por %p88, %p89
    %p92 = scmp.ne.s32.totalorder %s77, %s91
    %p93 = scmp.eq.s32.totalorder %s25, 0
    %p94 = por %p92, %p93
    %s96 = sadd.s32 %s95, 1
    %p99 = scmp.eq.s32.totalorder %s19, 1
    %p100 = scmp.ne.s32.totalorder %s95, %s97
    %p101 = scmp.eq.s32.totalorder %s19, 0
    %p102 = por %p100, %p101
    %p103 = scmp.ne.s32.totalorder %s95, %s97
    %p104 = scmp.eq.s32.totalorder %s24, 1
    %p105 = por %p103, %p104
    %p106 = scmp.ne.s32.totalorder %s97, %s98
    %p107 = scmp.eq.s32.totalorder %s24, 0
    %p108 = por %p106, %p107
    %p109 = scmp.ne.s32.totalorder %s97, %s98
    %p110 = scmp.eq.s32.totalorder %s25, 1
    %p111 = por %p109, %p110
    %p113 = scmp.ne.s32.totalorder %s98, %s112
    %p114 = scmp.eq.s32.totalorder %s25, 0
    %p115 = por %p113, %p114
    %s117 = sadd.s32 %s116, 1
    %p120 = scmp.eq.s32.totalorder %s19, 1
    %p121 = scmp.ne.s32.totalorder %s116, %s118
    %p122 = scmp.eq.s32.totalorder %s19, 0
    %p123 = por %p121, %p122
    %p124 = scmp.ne.s32.totalorder %s116, %s118
    %p125 = scmp.eq.s32.totalorder %s24, 1
    %p126 = por %p124, %p125
    %p127 = scmp.ne.s32.totalorder %s118, %s119
    %p128 = scmp.eq.s32.totalorder %s24, 0
    %p129 = por %p127, %p128
    %p130 = scmp.ne.s32.totalorder %s118, %s119
    %p131 = scmp.eq.s32.totalorder %s25, 1
    %p132 = por %p130, %p131
    %p134 = scmp.ne.s32.totalorder %s119, %s133
    %p135 = scmp.eq.s32.totalorder %s25, 0
    %p136 = por %p134, %p135
    %s138 = sadd.s32 %s137, 1
    %p141 = scmp.eq.s32.totalorder %s19, 1
    %p142 = scmp.ne.s32.totalorder %s137, %s139
    %p143 = scmp.eq.s32.totalorder %s19, 0
    %p144 = por %p142, %p143
    %p145 = scmp.ne.s32.totalorder %s137, %s139
    %p146 = scmp.eq.s32.totalorder %s24, 1
    %p147 = por %p145, %p146
    %p148 = scmp.ne.s32.totalorder %s139, %s140
    %p149 = scmp.eq.s32.totalorder %s24, 0
    %p150 = por %p148, %p149
    %p151 = scmp.ne.s32.totalorder %s139, %s140
    %p152 = scmp.eq.s32.totalorder %s25, 1
    %p153 = por %p151, %p152
    %p155 = scmp.ne.s32.totalorder %s140, %s154
    %p156 = scmp.eq.s32.totalorder %s25, 0
    %p157 = por %p155, %p156
    %s159 = sadd.s32 %s158, 1
    %p162 = scmp.eq.s32.totalorder %s19, 1
    %p163 = scmp.ne.s32.totalorder %s158, %s160
    %p164 = scmp.eq.s32.totalorder %s19, 0
    %p165 = por %p163, %p164
    %p166 = scmp.ne.s32.totalorder %s158, %s160
    %p167 = scmp.eq.s32.totalorder %s24, 1
    %p168 = por %p166, %p167
    %p169 = scmp.ne.s32.totalorder %s160, %s161
    %p170 = scmp.eq.s32.totalorder %s24, 0
    %p171 = por %p169, %p170
    %p172 = scmp.ne.s32.totalorder %s160, %s161
    %p173 = scmp.eq.s32.totalorder %s25, 1
    %p174 = por %p172, %p173
    %p176 = scmp.ne.s32.totalorder %s161, %s175
    %p177 = scmp.eq.s32.totalorder %s25, 0
    %p178 = por %p176, %p177
    %s180 = sadd.s32 %s179, 1
    %p183 = scmp.eq.s32.totalorder %s19, 1
    %p184 = scmp.ne.s32.totalorder %s179, %s181
    %p185 = scmp.eq.s32.totalorder %s19, 0
    %p186 = por %p184, %p185
    %p187 = scmp.ne.s32.totalorder %s179, %s181
    %p188 = scmp.eq.s32.totalorder %s24, 1
    %p189 = por %p187, %p188
    %p190 = scmp.ne.s32.totalorder %s181, %s182
    %p191 = scmp.eq.s32.totalorder %s24, 0
    %p192 = por %p190, %p191
    %p193 = scmp.ne.s32.totalorder %s181, %s182
    %p194 = scmp.eq.s32.totalorder %s25, 1
    %p195 = por %p193, %p194
    %p197 = scmp.ne.s32.totalorder %s182, %s196
    %p198 = scmp.eq.s32.totalorder %s25, 0
    %p199 = por %p197, %p198
    %s201 = sadd.s32 %s200, 1
    %p204 = scmp.eq.s32.totalorder %s19, 1
    %p205 = scmp.ne.s32.totalorder %s200, %s202
    %p206 = scmp.eq.s32.totalorder %s19, 0
    %p207 = por %p205, %p206
    %p208 = scmp.ne.s32.totalorder %s200, %s202
    %p209 = scmp.eq.s32.totalorder %s24, 1
    %p210 = por %p208, %p209
    %p211 = scmp.ne.s32.totalorder %s202, %s203
    %p212 = scmp.eq.s32.totalorder %s24, 0
    %p213 = por %p211, %p212
    %p214 = scmp.ne.s32.totalorder %s202, %s203
    %p215 = scmp.eq.s32.totalorder %s25, 1
    %p216 = por %p214, %p215
    %p218 = scmp.ne.s32.totalorder %s203, %s217
    %p219 = scmp.eq.s32.totalorder %s25, 0
    %p220 = por %p218, %p219
    %s222 = sadd.s32 %s221, 1
    %p225 = scmp.eq.s32.totalorder %s19, 1
    %p226 = scmp.ne.s32.totalorder %s221, %s223
    %p227 = scmp.eq.s32.totalorder %s19, 0
    %p228 = por %p226, %p227
    %p229 = scmp.ne.s32.totalorder %s221, %s223
    %p230 = scmp.eq.s32.totalorder %s24, 1
    %p231 = por %p229, %p230
    %p232 = scmp.ne.s32.totalorder %s223, %s224
    %p233 = scmp.eq.s32.totalorder %s24, 0
    %p234 = por %p232, %p233
    %p235 = scmp.ne.s32.totalorder %s223, %s224
    %p236 = scmp.eq.s32.totalorder %s25, 1
    %p237 = por %p235, %p236
    %p239 = scmp.ne.s32.totalorder %s224, %s238
    %p240 = scmp.eq.s32.totalorder %s25, 0
    %p241 = por %p239, %p240
    %s243 = sadd.s32 %s242, 1
    %p246 = scmp.eq.s32.totalorder %s19, 1
    %p247 = scmp.ne.s32.totalorder %s242, %s244
    %p248 = scmp.eq.s32.totalorder %s19, 0
    %p249 = por %p247, %p248
    %p250 = scmp.ne.s32.totalorder %s242, %s244
    %p251 = scmp.eq.s32.totalorder %s24, 1
    %p252 = por %p250, %p251
    %p253 = scmp.ne.s32.totalorder %s244, %s245
    %p254 = scmp.eq.s32.totalorder %s24, 0
    %p255 = por %p253, %p254
    %p256 = scmp.ne.s32.totalorder %s244, %s245
    %p257 = scmp.eq.s32.totalorder %s25, 1
    %p258 = por %p256, %p257
    %p260 = scmp.ne.s32.totalorder %s245, %s259
    %p261 = scmp.eq.s32.totalorder %s25, 0
    %p262 = por %p260, %p261
    %s264 = sadd.s32 %s263, 1
    %p267 = scmp.eq.s32.totalorder %s19, 1
    %p268 = scmp.ne.s32.totalorder %s263, %s265
    %p269 = scmp.eq.s32.totalorder %s19, 0
    %p270 = por %p268, %p269
    %p271 = scmp.ne.s32.totalorder %s263, %s265
    %p272 = scmp.eq.s32.totalorder %s24, 1
    %p273 = por %p271, %p272
    %p274 = scmp.ne.s32.totalorder %s265, %s266
    %p275 = scmp.eq.s32.totalorder %s24, 0
    %p276 = por %p274, %p275
    %p277 = scmp.ne.s32.totalorder %s265, %s266
    %p278 = scmp.eq.s32.totalorder %s25, 1
    %p279 = por %p277, %p278
    %p281 = scmp.ne.s32.totalorder %s266, %s280
    %p282 = scmp.eq.s32.totalorder %s25, 0
    %p283 = por %p281, %p282
    %s285 = sadd.s32 %s284, 1
    %p288 = scmp.eq.s32.totalorder %s19, 1
    %p289 = scmp.ne.s32.totalorder %s284, %s286
    %p290 = scmp.eq.s32.totalorder %s19, 0
    %p291 = por %p289, %p290
    %p292 = scmp.ne.s32.totalorder %s284, %s286
    %p293 = scmp.eq.s32.totalorder %s24, 1
    %p294 = por %p292, %p293
    %p295 = scmp.ne.s32.totalorder %s286, %s287
    %p296 = scmp.eq.s32.totalorder %s24, 0
    %p297 = por %p295, %p296
    %p298 = scmp.ne.s32.totalorder %s286, %s287
    %p299 = scmp.eq.s32.totalorder %s25, 1
    %p300 = por %p298, %p299
    %p302 = scmp.ne.s32.totalorder %s287, %s301
    %p303 = scmp.eq.s32.totalorder %s25, 0
    %p304 = por %p302, %p303
    %s305 = ssub.s32 %s19, %s26
    %p306 = scmp.eq.s32.totalorder %s305, 0
    %s308 = sadd.s32 %s307, 1
    %s309 = scalar_select %p306, %s307, %s308
    %p312 = pneg %p306
    %p313 = scmp.eq.s32.totalorder %s19, 1
    %p314 = por %p312, %p313
    %p315 = scmp.ne.s32.totalorder %s307, %s310
    %p316 = scmp.eq.s32.totalorder %s19, 0
    %p317 = por %p315, %p316
    %p318 = scmp.ne.s32.totalorder %s307, %s310
    %p319 = scmp.eq.s32.totalorder %s24, 1
    %p320 = por %p318, %p319
    %p321 = scmp.ne.s32.totalorder %s310, %s311
    %p322 = scmp.eq.s32.totalorder %s24, 0
    %p323 = por %p321, %p322
    %p324 = scmp.ne.s32.totalorder %s310, %s311
    %p325 = scmp.eq.s32.totalorder %s25, 1
    %p326 = por %p324, %p325
    %p328 = scmp.ne.s32.totalorder %s311, %s327
    %p329 = scmp.eq.s32.totalorder %s25, 0
    %p330 = por %p328, %p329
    %p331 = scmp.le.s32.totalorder 1, %s19
    %p332 = scmp.lt.s32.totalorder %s19, 3
    %p333 = pnand %p331, %p332
    %p334 = pneg %p333
    // Predicated region
    $region9: #{base_network_forward.1} parent=5 // pred_check
      _
    $region10: #{base_network_forward.1} parent=5 // pred_check_branch
      %336 = sbr.rel (%p333) target = $region12
    $region11: #{base_network_forward.1} parent=5 // pred_region
      %s337 = ssub.s32 %s19, 1
      // Predicated region
      $region13: #{base_network_forward.1} parent=11 // pred_check
        %p338 = pneg %p66
      $region14: #{base_network_forward.1} parent=11 // pred_check_branch
        %340 = sbr.rel (%p338) target = $region16
      $region15: #{base_network_forward.1} parent=11 // pred_region
        _
      $region16: #{base_network_forward.1} parent=11 // pred_fallthru
        _
      // Predicated region
      $region17: #{base_network_forward.1} parent=11 // pred_check
        %p341 = pneg %p87
      $region18: #{base_network_forward.1} parent=11 // pred_check_branch
        %343 = sbr.rel (%p341) target = $region20
      $region19: #{base_network_forward.1} parent=11 // pred_region
        _
      $region20: #{base_network_forward.1} parent=11 // pred_fallthru
        _
      // Predicated region
      $region21: #{base_network_forward.1} parent=11 // pred_check
        %p344 = pneg %p108
      $region22: #{base_network_forward.1} parent=11 // pred_check_branch
        %346 = sbr.rel (%p344) target = $region24
      $region23: #{base_network_forward.1} parent=11 // pred_region
        _
      $region24: #{base_network_forward.1} parent=11 // pred_fallthru
        _
      // Predicated region
      $region25: #{base_network_forward.1} parent=11 // pred_check
        %p347 = pneg %p129
      $region26: #{base_network_forward.1} parent=11 // pred_check_branch
        %349 = sbr.rel (%p347) target = $region28
      $region27: #{base_network_forward.1} parent=11 // pred_region
        _
      $region28: #{base_network_forward.1} parent=11 // pred_fallthru
        _
      // Predicated region
      $region29: #{base_network_forward.1} parent=11 // pred_check
        %p350 = pneg %p150
      $region30: #{base_network_forward.1} parent=11 // pred_check_branch
        %352 = sbr.rel (%p350) target = $region32
      $region31: #{base_network_forward.1} parent=11 // pred_region
        _
      $region32: #{base_network_forward.1} parent=11 // pred_fallthru
        _
      // Predicated region
      $region33: #{base_network_forward.1} parent=11 // pred_check
        %p353 = pneg %p171
      $region34: #{base_network_forward.1} parent=11 // pred_check_branch
        %355 = sbr.rel (%p353) target = $region36
      $region35: #{base_network_forward.1} parent=11 // pred_region
        _
      $region36: #{base_network_forward.1} parent=11 // pred_fallthru
        _
      // Predicated region
      $region37: #{base_network_forward.1} parent=11 // pred_check
        %p356 = pneg %p192
      $region38: #{base_network_forward.1} parent=11 // pred_check_branch
        %358 = sbr.rel (%p356) target = $region40
      $region39: #{base_network_forward.1} parent=11 // pred_region
        _
      $region40: #{base_network_forward.1} parent=11 // pred_fallthru
        _
      // Predicated region
      $region41: #{base_network_forward.1} parent=11 // pred_check
        %p359 = pneg %p213
      $region42: #{base_network_forward.1} parent=11 // pred_check_branch
        %361 = sbr.rel (%p359) target = $region44
      $region43: #{base_network_forward.1} parent=11 // pred_region
        _
      $region44: #{base_network_forward.1} parent=11 // pred_fallthru
        _
      // Predicated region
      $region45: #{base_network_forward.1} parent=11 // pred_check
        %p362 = pneg %p234
      $region46: #{base_network_forward.1} parent=11 // pred_check_branch
        %364 = sbr.rel (%p362) target = $region48
      $region47: #{base_network_forward.1} parent=11 // pred_region
        _
      $region48: #{base_network_forward.1} parent=11 // pred_fallthru
        _
      // Predicated region
      $region49: #{base_network_forward.1} parent=11 // pred_check
        %p365 = pneg %p255
      $region50: #{base_network_forward.1} parent=11 // pred_check_branch
        %367 = sbr.rel (%p365) target = $region52
      $region51: #{base_network_forward.1} parent=11 // pred_region
        _
      $region52: #{base_network_forward.1} parent=11 // pred_fallthru
        _
      // Predicated region
      $region53: #{base_network_forward.1} parent=11 // pred_check
        %p368 = pneg %p276
      $region54: #{base_network_forward.1} parent=11 // pred_check_branch
        %370 = sbr.rel (%p368) target = $region56
      $region55: #{base_network_forward.1} parent=11 // pred_region
        _
      $region56: #{base_network_forward.1} parent=11 // pred_fallthru
        _
      // Predicated region
      $region57: #{base_network_forward.1} parent=11 // pred_check
        %p371 = pneg %p297
      $region58: #{base_network_forward.1} parent=11 // pred_check_branch
        %373 = sbr.rel (%p371) target = $region60
      $region59: #{base_network_forward.1} parent=11 // pred_region
        _
      $region60: #{base_network_forward.1} parent=11 // pred_fallthru
        _
    $region12: #{base_network_forward.1} parent=5 // pred_fallthru
      _
    %p374 = scmp.lt.s32.totalorder %s19, 2
    // Predicated region
    $region61: #{base_network_forward.1} parent=5 // pred_check
      %p375 = pneg %p374
    $region62: #{base_network_forward.1} parent=5 // pred_check_branch
      %377 = sbr.rel (%p375) target = $region64
    $region63: #{base_network_forward.1} parent=5 // pred_region
      // Predicated region
      $region65: #{base_network_forward.1} parent=63 // pred_check
        %p378 = pneg %p39
      $region66: #{base_network_forward.1} parent=63 // pred_check_branch
        %380 = sbr.rel (%p378) target = $region68
      $region67: #{base_network_forward.1} parent=63 // pred_region
        %p381 = scmp.lt.s32.totalorder %s19, 1
        %s382 = scalar_select %p381, %s19, 1
        %s383 = smul.addr %s382, 64
        %s384 = smul.addr %s383, 4
        %s385 = scalar_lea.vmem %s0, %s384
      $region68: #{base_network_forward.1} parent=63 // pred_fallthru
        _
    $region64: #{base_network_forward.1} parent=5 // pred_fallthru
      _
    %p386 = scmp.le.s32.totalorder 1, %s19
    %p387 = scmp.lt.s32.totalorder %s19, 3
    %p388 = pnand %p386, %p387
    %p389 = pneg %p388
    // Predicated region
    $region69: #{base_network_forward.1} parent=5 // pred_check
      _
    $region70: #{base_network_forward.1} parent=5 // pred_check_branch
      %391 = sbr.rel (%p388) target = $region72
    $region71: #{base_network_forward.1} parent=5 // pred_region
      %s392 = ssub.s32 %s19, 1
      %p393 = scmp.lt.s32.totalorder %s24, 1
      %s394 = scalar_select %p393, %s24, 1
      %s395 = smul.addr %s394, 64
      %s396 = smul.addr %s395, 4
      %s397 = scalar_lea.vmem %s0, %s396
      %p398 = pneg %p45
      %p399 = pneg %p42
      %p400 = pneg %p66
      %p401 = pneg %p63
      %p402 = pneg %p87
      %p403 = pneg %p84
      %p404 = pneg %p108
      %p405 = pneg %p105
      %p406 = pneg %p129
      %p407 = pneg %p126
      %p408 = pneg %p150
      %p409 = pneg %p147
      %p410 = pneg %p171
      %p411 = pneg %p168
      %p412 = pneg %p192
      %p413 = pneg %p189
      %p414 = pneg %p213
      %p415 = pneg %p210
      %p416 = pneg %p234
      %p417 = pneg %p231
      %p418 = pneg %p255
      %p419 = pneg %p252
      %p420 = pneg %p276
      %p421 = pneg %p273
      %p422 = pneg %p297
      %p423 = pneg %p294
      %p424 = pneg %p323
      %p425 = pneg %p320
      %p426 = scmp.lt.s32.totalorder %s24, 1
      %s427 = scalar_select %p426, %s24, 1
      %s428 = scalar_lea.vmem %s13, %s427
      %p429 = scmp.lt.s32.totalorder %s24, 1
      %s430 = scalar_select %p429, %s24, 1
      %s431 = smul.addr %s430, 64
      %s432 = smul.addr %s431, 4
      %s433 = scalar_lea.vmem %s0, %s432
      %p434 = scmp.lt.s32.totalorder %s24, 1
      %s435 = scalar_select %p434, %s24, 1
      %s436 = scalar_lea.vmem %s13, %s435
      %v438 = vld [vmem:[%s433] sm:$0xff]
      %v439 = vld [vmem:[%s433 + $0x8] sm:$0xff]
      %v440 = vld [vmem:[%s433 + $0x10] sm:$0xff]
      %v441 = vld [vmem:[%s433 + $0x18] sm:$0xff]
      %v442 = vld [vmem:[%s433 + $0x20] sm:$0xff]
      %v443 = vld [vmem:[%s433 + $0x28] sm:$0xff]
      %v444 = vld [vmem:[%s433 + $0x30] sm:$0xff]
      %v445 = vld [vmem:[%s433 + $0x38] sm:$0xff]
      %v446 = vld [vmem:[%s433 + $0x40] sm:$0xff]
      %v447 = vld [vmem:[%s433 + $0x48] sm:$0xff]
      %v448 = vld [vmem:[%s433 + $0x50] sm:$0xff]
      %v449 = vld [vmem:[%s433 + $0x58] sm:$0xff]
      %v450 = vld [vmem:[%s433 + $0x60] sm:$0xff]
      %v451 = vld [vmem:[%s433 + $0x68] sm:$0xff]
      %v452 = vld [vmem:[%s433 + $0x70] sm:$0xff]
      %v453 = vld [vmem:[%s433 + $0x78] sm:$0xff]
      %v454 = vld [vmem:[%s433 + $0x80] sm:$0xff]
      %v455 = vld [vmem:[%s433 + $0x88] sm:$0xff]
      %v456 = vld [vmem:[%s433 + $0x90] sm:$0xff]
      %v457 = vld [vmem:[%s433 + $0x98] sm:$0xff]
      %v458 = vld [vmem:[%s433 + $0xa0] sm:$0xff]
      %v459 = vld [vmem:[%s433 + $0xa8] sm:$0xff]
      %v460 = vld [vmem:[%s433 + $0xb0] sm:$0xff]
      %v461 = vld [vmem:[%s433 + $0xb8] sm:$0xff]
      %v462 = vld [vmem:[%s433 + $0xc0] sm:$0xff]
      %v463 = vld [vmem:[%s433 + $0xc8] sm:$0xff]
      %v464 = vld [vmem:[%s433 + $0xd0] sm:$0xff]
      %v465 = vld [vmem:[%s433 + $0xd8] sm:$0xff]
      %v466 = vld [vmem:[%s433 + $0xe0] sm:$0xff]
      %v467 = vld [vmem:[%s433 + $0xe8] sm:$0xff]
      %v468 = vld [vmem:[%s433 + $0xf0] sm:$0xff]
      %v469 = vld [vmem:[%s433 + $0xf8] sm:$0xff]
      %v470 = vld [vmem:[%s1] sm:$0xff]
      %v471 = vld [vmem:[%s1 + $0x8] sm:$0xff]
      %v472 = vld [vmem:[%s1 + $0x10] sm:$0xff]
      %v473 = vld [vmem:[%s1 + $0x18] sm:$0xff]
      %v474 = vld [vmem:[%s1 + $0x20] sm:$0xff]
      %v475 = vld [vmem:[%s1 + $0x28] sm:$0xff]
      %v476 = vld [vmem:[%s1 + $0x30] sm:$0xff]
      %v477 = vld [vmem:[%s1 + $0x38] sm:$0xff]
      %v478 = vld [vmem:[%s1 + $0x40] sm:$0xff]
      %v479 = vld [vmem:[%s1 + $0x48] sm:$0xff]
      %v480 = vld [vmem:[%s1 + $0x50] sm:$0xff]
      %v481 = vld [vmem:[%s1 + $0x58] sm:$0xff]
      %v482 = vld [vmem:[%s1 + $0x60] sm:$0xff]
      %v483 = vld [vmem:[%s1 + $0x68] sm:$0xff]
      %v484 = vld [vmem:[%s1 + $0x70] sm:$0xff]
      %v485 = vld [vmem:[%s1 + $0x78] sm:$0xff]
      %s486 = scalar_lea.vmem %s1, 128
      %v487 = vld [vmem:[%s486] sm:$0xff]
      %v488 = vld [vmem:[%s486 + $0x8] sm:$0xff]
      %v489 = vld [vmem:[%s486 + $0x10] sm:$0xff]
      %v490 = vld [vmem:[%s486 + $0x18] sm:$0xff]
      %v491 = vld [vmem:[%s486 + $0x20] sm:$0xff]
      %v492 = vld [vmem:[%s486 + $0x28] sm:$0xff]
      %v493 = vld [vmem:[%s486 + $0x30] sm:$0xff]
      %v494 = vld [vmem:[%s486 + $0x38] sm:$0xff]
      %v495 = vld [vmem:[%s486 + $0x40] sm:$0xff]
      %v496 = vld [vmem:[%s486 + $0x48] sm:$0xff]
      %v497 = vld [vmem:[%s486 + $0x50] sm:$0xff]
      %v498 = vld [vmem:[%s486 + $0x58] sm:$0xff]
      %v499 = vld [vmem:[%s486 + $0x60] sm:$0xff]
      %v500 = vld [vmem:[%s486 + $0x68] sm:$0xff]
      %v501 = vld [vmem:[%s486 + $0x70] sm:$0xff]
      %v502 = vld [vmem:[%s486 + $0x78] sm:$0xff]
      %v519 = vunpack.c.l.b16 %v487
      %v520 = vunpack.c.h.b16 %v487
      %v521 = vunpack.c.l.b16 %v488
      %v522 = vunpack.c.h.b16 %v488
      %v523 = vunpack.c.l.b16 %v489
      %v524 = vunpack.c.h.b16 %v489
      %v525 = vunpack.c.l.b16 %v490
      %v526 = vunpack.c.h.b16 %v490
      %v527 = vunpack.c.l.b16 %v491
      %v528 = vunpack.c.h.b16 %v491
      %v529 = vunpack.c.l.b16 %v492
      %v530 = vunpack.c.h.b16 %v492
      %v531 = vunpack.c.l.b16 %v493
      %v532 = vunpack.c.h.b16 %v493
      %v533 = vunpack.c.l.b16 %v494
      %v534 = vunpack.c.h.b16 %v494
      %v535 = vunpack.c.l.b16 %v495
      %v536 = vunpack.c.h.b16 %v495
      %v537 = vunpack.c.l.b16 %v496
      %v538 = vunpack.c.h.b16 %v496
      %v539 = vunpack.c.l.b16 %v497
      %v540 = vunpack.c.h.b16 %v497
      %v541 = vunpack.c.l.b16 %v498
      %v542 = vunpack.c.h.b16 %v498
      %v543 = vunpack.c.l.b16 %v499
      %v544 = vunpack.c.h.b16 %v499
      %v545 = vunpack.c.l.b16 %v500
      %v546 = vunpack.c.h.b16 %v500
      %v547 = vunpack.c.l.b16 %v501
      %v548 = vunpack.c.h.b16 %v501
      %v549 = vunpack.c.l.b16 %v502
      %v550 = vunpack.c.h.b16 %v502
      %v551 = vpack.c.b16 %v521, %v519
      %v552 = vpack.c.b16 %v522, %v520
      %v553 = vpack.c.b16 %v525, %v523
      %v554 = vpack.c.b16 %v526, %v524
      %v555 = vpack.c.b16 %v529, %v527
      %v556 = vpack.c.b16 %v530, %v528
      %v557 = vpack.c.b16 %v533, %v531
      %v558 = vpack.c.b16 %v534, %v532
      %v559 = vpack.c.b16 %v537, %v535
      %v560 = vpack.c.b16 %v538, %v536
      %v561 = vpack.c.b16 %v541, %v539
      %v562 = vpack.c.b16 %v542, %v540
      %v563 = vpack.c.b16 %v545, %v543
      %v564 = vpack.c.b16 %v546, %v544
      %v565 = vpack.c.b16 %v549, %v547
      %v566 = vpack.c.b16 %v550, %v548
      %v615 = vunpack.c.l.b16 %v438
      %v616 = vunpack.c.l.b16 %v439
      %v617 = vunpack.c.l.b16 %v440
      %v618 = vunpack.c.l.b16 %v441
      %v619 = vunpack.c.l.b16 %v442
      %v620 = vunpack.c.l.b16 %v443
      %v621 = vunpack.c.l.b16 %v444
      %v622 = vunpack.c.l.b16 %v445
      %v623 = vunpack.c.l.b16 %v446
      %v624 = vunpack.c.l.b16 %v447
      %v625 = vunpack.c.l.b16 %v448
      %v626 = vunpack.c.l.b16 %v449
      %v627 = vunpack.c.l.b16 %v450
      %v628 = vunpack.c.l.b16 %v451
      %v629 = vunpack.c.l.b16 %v452
      %v630 = vunpack.c.l.b16 %v453
      %v631 = vunpack.c.l.b16 %v454
      %v632 = vunpack.c.l.b16 %v455
      %v633 = vunpack.c.l.b16 %v456
      %v634 = vunpack.c.l.b16 %v457
      %v635 = vunpack.c.l.b16 %v458
      %v636 = vunpack.c.l.b16 %v459
      %v637 = vunpack.c.l.b16 %v460
      %v638 = vunpack.c.l.b16 %v461
      %v639 = vunpack.c.l.b16 %v462
      %v640 = vunpack.c.l.b16 %v463
      %v641 = vunpack.c.l.b16 %v464
      %v642 = vunpack.c.l.b16 %v465
      %v643 = vunpack.c.l.b16 %v466
      %v644 = vunpack.c.l.b16 %v467
      %v645 = vunpack.c.l.b16 %v468
      %v646 = vunpack.c.l.b16 %v469
      %v647 = vpack.c.b16 %v616, %v615
      %v648 = vpack.c.b16 %v618, %v617
      %v649 = vpack.c.b16 %v620, %v619
      %v650 = vpack.c.b16 %v622, %v621
      %v651 = vpack.c.b16 %v624, %v623
      %v652 = vpack.c.b16 %v626, %v625
      %v653 = vpack.c.b16 %v628, %v627
      %v654 = vpack.c.b16 %v630, %v629
      %v655 = vpack.c.b16 %v632, %v631
      %v656 = vpack.c.b16 %v634, %v633
      %v657 = vpack.c.b16 %v636, %v635
      %v658 = vpack.c.b16 %v638, %v637
      %v659 = vpack.c.b16 %v640, %v639
      %v660 = vpack.c.b16 %v642, %v641
      %v661 = vpack.c.b16 %v644, %v643
      %v662 = vpack.c.b16 %v646, %v645
      %663 = vrot.lane.b32.xlu0 %v647, 127
      %v664 = vpop.permute.xlu0 %663
      %665 = vrot.lane.b32.xlu0 %v648, 127
      %v666 = vpop.permute.xlu0 %665
      %667 = vrot.lane.b32.xlu0 %v649, 127
      %v668 = vpop.permute.xlu0 %667
      %669 = vrot.lane.b32.xlu0 %v650, 127
      %v670 = vpop.permute.xlu0 %669
      %671 = vrot.lane.b32.xlu0 %v651, 127
      %v672 = vpop.permute.xlu0 %671
      %673 = vrot.lane.b32.xlu0 %v652, 127
      %v674 = vpop.permute.xlu0 %673
      %675 = vrot.lane.b32.xlu0 %v653, 127
      %v676 = vpop.permute.xlu0 %675
      %677 = vrot.lane.b32.xlu0 %v654, 127
      %v678 = vpop.permute.xlu0 %677
      %679 = vrot.lane.b32.xlu0 %v655, 127
      %v680 = vpop.permute.xlu0 %679
      %681 = vrot.lane.b32.xlu0 %v656, 127
      %v682 = vpop.permute.xlu0 %681
      %683 = vrot.lane.b32.xlu0 %v657, 127
      %v684 = vpop.permute.xlu0 %683
      %685 = vrot.lane.b32.xlu0 %v658, 127
      %v686 = vpop.permute.xlu0 %685
      %687 = vrot.lane.b32.xlu0 %v659, 127
      %v688 = vpop.permute.xlu0 %687
      %689 = vrot.lane.b32.xlu0 %v660, 127
      %v690 = vpop.permute.xlu0 %689
      %691 = vrot.lane.b32.xlu0 %v661, 127
      %v692 = vpop.permute.xlu0 %691
      %693 = vrot.lane.b32.xlu0 %v662, 127
      %v694 = vpop.permute.xlu0 %693
      %711 = vmatprep.subr.bf16.mxu0 0
      %712 = vmatpush1.bf16.msra.mxu0 %v664
      %713 = vmatprep.subr.bf16.mxu0 0
      %714 = vmatpush1.bf16.msra.mxu0 %v666
      %715 = vmatprep.subr.bf16.mxu0 0
      %716 = vmatpush1.bf16.msra.mxu0 %v668
      %717 = vmatprep.subr.bf16.mxu0 0
      %718 = vmatpush1.bf16.msra.mxu0 %v670
      %719 = vmatprep.subr.bf16.mxu0 0
      %720 = vmatpush1.bf16.msra.mxu0 %v672
      %721 = vmatprep.subr.bf16.mxu0 0
      %722 = vmatpush1.bf16.msra.mxu0 %v674
      %723 = vmatprep.subr.bf16.mxu0 0
      %724 = vmatpush1.bf16.msra.mxu0 %v676
      %725 = vmatprep.subr.bf16.mxu0 0
      %726 = vmatpush1.bf16.msra.mxu0 %v678
      %727 = vmatprep.subr.bf16.mxu0 0
      %728 = vmatpush1.bf16.msra.mxu0 %v680
      %729 = vmatprep.subr.bf16.mxu0 0
      %730 = vmatpush1.bf16.msra.mxu0 %v682
      %731 = vmatprep.subr.bf16.mxu0 0
      %732 = vmatpush1.bf16.msra.mxu0 %v684
      %733 = vmatprep.subr.bf16.mxu0 0
      %734 = vmatpush1.bf16.msra.mxu0 %v686
      %735 = vmatprep.subr.bf16.mxu0 0
      %736 = vmatpush1.bf16.msra.mxu0 %v688
      %737 = vmatprep.subr.bf16.mxu0 0
      %738 = vmatpush1.bf16.msra.mxu0 %v690
      %739 = vmatprep.subr.bf16.mxu0 0
      %740 = vmatpush1.bf16.msra.mxu0 %v692
      %741 = vmatprep.subr.bf16.mxu0 0
      %742 = vmatpush1.bf16.msra.mxu0 %v694
      %743 = vmatprep.mubr.bf16.mxu0 %v552
      %744 = vmatmul.mubr.bf16.gmra.mrb[0].mxu0 %v551
      %v745 = vpop.f32.mrb[0].mxu0
      %v746 = vadd.f32 0.0, %v745
      %v747 = vpop.f32.mrb[0].mxu0
      %v748 = vpop.f32.mrb[0].mxu0
      %v749 = vadd.f32 0.0, %v748
      %v750 = vpop.f32.mrb[0].mxu0
      %751 = vmatprep.mubr.bf16.mxu0 %v554
      %752 = vmatmul.mubr.bf16.gmra.mrb[0].mxu0 %v553
      %v753 = vpop.f32.mrb[0].mxu0
      %v754 = vadd.f32 0.0, %v753
      %v755 = vpop.f32.mrb[0].mxu0
      %v756 = vpop.f32.mrb[0].mxu0
      %v757 = vadd.f32 0.0, %v756
      %v758 = vpop.f32.mrb[0].mxu0
      %759 = vmatprep.mubr.bf16.mxu0 %v556
      %760 = vmatmul.mubr.bf16.gmra.mrb[0].mxu0 %v555
      %v761 = vpop.f32.mrb[0].mxu0
      %v762 = vadd.f32 0.0, %v761
      %v763 = vpop.f32.mrb[0].mxu0
      %v764 = vpop.f32.mrb[0].mxu0
      %v765 = vadd.f32 0.0, %v764
      %v766 = vpop.f32.mrb[0].mxu0
      %767 = vmatprep.mubr.bf16.mxu0 %v558
      %768 = vmatmul.mubr.bf16.gmra.mrb[0].mxu0 %v557
      %v769 = vpop.f32.mrb[0].mxu0
      %v770 = vadd.f32 0.0, %v769
      %v771 = vpop.f32.mrb[0].mxu0
      %v772 = vpop.f32.mrb[0].mxu0
      %v773 = vadd.f32 0.0, %v772
      %v774 = vpop.f32.mrb[0].mxu0
      %775 = vmatprep.mubr.bf16.mxu0 %v560
      %776 = vmatmul.mubr.bf16.gmra.mrb[0].mxu0 %v559
      %v777 = vpop.f32.mrb[0].mxu0
      %v778 = vadd.f32 0.0, %v777
      %v779 = vpop.f32.mrb[0].mxu0
      %v780 = vpop.f32.mrb[0].mxu0
      %v781 = vadd.f32 0.0, %v780
      %v782 = vpop.f32.mrb[0].mxu0
      %783 = vmatprep.mubr.bf16.mxu0 %v562
      %784 = vmatmul.mubr.bf16.gmra.mrb[0].mxu0 %v561
      %v785 = vpop.f32.mrb[0].mxu0
      %v786 = vadd.f32 0.0, %v785
      %v787 = vpop.f32.mrb[0].mxu0
      %v788 = vpop.f32.mrb[0].mxu0
      %v789 = vadd.f32 0.0, %v788
      %v790 = vpop.f32.mrb[0].mxu0
      %791 = vmatprep.mubr.bf16.mxu0 %v564
      %792 = vmatmul.mubr.bf16.gmra.mrb[0].mxu0 %v563
      %v793 = vpop.f32.mrb[0].mxu0
      %v794 = vadd.f32 0.0, %v793
      %v795 = vpop.f32.mrb[0].mxu0
      %v796 = vpop.f32.mrb[0].mxu0
      %v797 = vadd.f32 0.0, %v796
      %v798 = vpop.f32.mrb[0].mxu0
      %799 = vmatprep.mubr.bf16.mxu0 %v566
      %800 = vmatmul.mubr.bf16.gmra.mrb[0].mxu0 %v565
      %v801 = vpop.f32.mrb[0].mxu0
      %v802 = vadd.f32 0.0, %v801
      %v803 = vpop.f32.mrb[0].mxu0
      %v804 = vpop.f32.mrb[0].mxu0
      %v805 = vadd.f32 0.0, %v804
      %v806 = vpop.f32.mrb[0].mxu0
      %807 = vdwg.mxu0
      %v824 = vunpack.c.l.b16 %v470
      %v825 = vunpack.c.h.b16 %v470
      %v826 = vunpack.c.l.b16 %v471
      %v827 = vunpack.c.h.b16 %v471
      %v828 = vunpack.c.l.b16 %v472
      %v829 = vunpack.c.h.b16 %v472
      %v830 = vunpack.c.l.b16 %v473
      %v831 = vunpack.c.h.b16 %v473
      %v832 = vunpack.c.l.b16 %v474
      %v833 = vunpack.c.h.b16 %v474
      %v834 = vunpack.c.l.b16 %v475
      %v835 = vunpack.c.h.b16 %v475
      %v836 = vunpack.c.l.b16 %v476
      %v837 = vunpack.c.h.b16 %v476
      %v838 = vunpack.c.l.b16 %v477
      %v839 = vunpack.c.h.b16 %v477
      %v840 = vunpack.c.l.b16 %v478
      %v841 = vunpack.c.h.b16 %v478
      %v842 = vunpack.c.l.b16 %v479
      %v843 = vunpack.c.h.b16 %v479
      %v844 = vunpack.c.l.b16 %v480
      %v845 = vunpack.c.h.b16 %v480
      %v846 = vunpack.c.l.b16 %v481
      %v847 = vunpack.c.h.b16 %v481
      %v848 = vunpack.c.l.b16 %v482
      %v849 = vunpack.c.h.b16 %v482
      %v850 = vunpack.c.l.b16 %v483
      %v851 = vunpack.c.h.b16 %v483
      %v852 = vunpack.c.l.b16 %v484
      %v853 = vunpack.c.h.b16 %v484
      %v854 = vunpack.c.l.b16 %v485
      %v855 = vunpack.c.h.b16 %v485
      %v856 = vpack.c.b16 %v826, %v824
      %v857 = vpack.c.b16 %v827, %v825
      %v858 = vpack.c.b16 %v830, %v828
      %v859 = vpack.c.b16 %v831, %v829
      %v860 = vpack.c.b16 %v834, %v832
      %v861 = vpack.c.b16 %v835, %v833
      %v862 = vpack.c.b16 %v838, %v836
      %v863 = vpack.c.b16 %v839, %v837
      %v864 = vpack.c.b16 %v842, %v840
      %v865 = vpack.c.b16 %v843, %v841
      %v866 = vpack.c.b16 %v846, %v844
      %v867 = vpack.c.b16 %v847, %v845
      %v868 = vpack.c.b16 %v850, %v848
      %v869 = vpack.c.b16 %v851, %v849
      %v870 = vpack.c.b16 %v854, %v852
      %v871 = vpack.c.b16 %v855, %v853
      %904 = vmatprep.subr.bf16.mxu0 0
      %905 = vmatpush1.bf16.msra.mxu0 %v647
      %906 = vmatprep.subr.bf16.mxu0 0
      %907 = vmatpush1.bf16.msra.mxu0 %v648
      %908 = vmatprep.subr.bf16.mxu0 0
      %909 = vmatpush1.bf16.msra.mxu0 %v649
      %910 = vmatprep.subr.bf16.mxu0 0
      %911 = vmatpush1.bf16.msra.mxu0 %v650
      %912 = vmatprep.subr.bf16.mxu0 0
      %913 = vmatpush1.bf16.msra.mxu0 %v651
      %914 = vmatprep.subr.bf16.mxu0 0
      %915 = vmatpush1.bf16.msra.mxu0 %v652
      %916 = vmatprep.subr.bf16.mxu0 0
      %917 = vmatpush1.bf16.msra.mxu0 %v653
      %918 = vmatprep.subr.bf16.mxu0 0
      %919 = vmatpush1.bf16.msra.mxu0 %v654
      %920 = vmatprep.subr.bf16.mxu0 0
      %921 = vmatpush1.bf16.msra.mxu0 %v655
      %922 = vmatprep.subr.bf16.mxu0 0
      %923 = vmatpush1.bf16.msra.mxu0 %v656
      %924 = vmatprep.subr.bf16.mxu0 0
      %925 = vmatpush1.bf16.msra.mxu0 %v657
      %926 = vmatprep.subr.bf16.mxu0 0
      %927 = vmatpush1.bf16.msra.mxu0 %v658
      %928 = vmatprep.subr.bf16.mxu0 0
      %929 = vmatpush1.bf16.msra.mxu0 %v659
      %930 = vmatprep.subr.bf16.mxu0 0
      %931 = vmatpush1.bf16.msra.mxu0 %v660
      %932 = vmatprep.subr.bf16.mxu0 0
      %933 = vmatpush1.bf16.msra.mxu0 %v661
      %934 = vmatprep.subr.bf16.mxu0 0
      %935 = vmatpush1.bf16.msra.mxu0 %v662
      %936 = vmatprep.mubr.bf16.mxu0 %v857
      %937 = vmatmul.mubr.bf16.gmra.mrb[0].mxu0 %v856
      %v938 = vpop.f32.mrb[0].mxu0
      %v939 = vadd.f32 %v746, %v938
      %v940 = vpop.f32.mrb[0].mxu0
      %v941 = vpop.f32.mrb[0].mxu0
      %v942 = vadd.f32 %v749, %v941
      %v943 = vpop.f32.mrb[0].mxu0
      %944 = vmatprep.mubr.bf16.mxu0 %v859
      %945 = vmatmul.mubr.bf16.gmra.mrb[0].mxu0 %v858
      %v946 = vpop.f32.mrb[0].mxu0
      %v947 = vadd.f32 %v754, %v946
      %v948 = vpop.f32.mrb[0].mxu0
      %v949 = vpop.f32.mrb[0].mxu0
      %v950 = vadd.f32 %v757, %v949
      %v951 = vpop.f32.mrb[0].mxu0
      %952 = vmatprep.mubr.bf16.mxu0 %v861
      %953 = vmatmul.mubr.bf16.gmra.mrb[0].mxu0 %v860
      %v954 = vpop.f32.mrb[0].mxu0
      %v955 = vadd.f32 %v762, %v954
      %v956 = vpop.f32.mrb[0].mxu0
      %v957 = vpop.f32.mrb[0].mxu0
      %v958 = vadd.f32 %v765, %v957
      %v959 = vpop.f32.mrb[0].mxu0
      %960 = vmatprep.mubr.bf16.mxu0 %v863
      %961 = vmatmul.mubr.bf16.gmra.mrb[0].mxu0 %v862
      %v962 = vpop.f32.mrb[0].mxu0
      %v963 = vadd.f32 %v770, %v962
      %v964 = vpop.f32.mrb[0].mxu0
      %v965 = vpop.f32.mrb[0].mxu0
      %v966 = vadd.f32 %v773, %v965
      %v967 = vpop.f32.mrb[0].mxu0
      %968 = vmatprep.mubr.bf16.mxu0 %v865
      %969 = vmatmul.mubr.bf16.gmra.mrb[0].mxu0 %v864
      %v970 = vpop.f32.mrb[0].mxu0
      %v971 = vadd.f32 %v778, %v970
      %v972 = vpop.f32.mrb[0].mxu0
      %v973 = vpop.f32.mrb[0].mxu0
      %v974 = vadd.f32 %v781, %v973
      %v975 = vpop.f32.mrb[0].mxu0
      %976 = vmatprep.mubr.bf16.mxu0 %v867
      %977 = vmatmul.mubr.bf16.gmra.mrb[0].mxu0 %v866
      %v978 = vpop.f32.mrb[0].mxu0
      %v979 = vadd.f32 %v786, %v978
      %v980 = vpop.f32.mrb[0].mxu0
      %v981 = vpop.f32.mrb[0].mxu0
      %v982 = vadd.f32 %v789, %v981
      %v983 = vpop.f32.mrb[0].mxu0
      %984 = vmatprep.mubr.bf16.mxu0 %v869
      %985 = vmatmul.mubr.bf16.gmra.mrb[0].mxu0 %v868
      %v986 = vpop.f32.mrb[0].mxu0
      %v987 = vadd.f32 %v794, %v986
      %v988 = vpop.f32.mrb[0].mxu0
      %v989 = vpop.f32.mrb[0].mxu0
      %v990 = vadd.f32 %v797, %v989
      %v991 = vpop.f32.mrb[0].mxu0
      %992 = vmatprep.mubr.bf16.mxu0 %v871
      %993 = vmatmul.mubr.bf16.gmra.mrb[0].mxu0 %v870
      %v994 = vpop.f32.mrb[0].mxu0
      %v995 = vadd.f32 %v802, %v994
      %v996 = vpop.f32.mrb[0].mxu0
      %v997 = vpop.f32.mrb[0].mxu0
      %v998 = vadd.f32 %v805, %v997
      %v999 = vpop.f32.mrb[0].mxu0
      %1000 = vdwg.mxu0
      %s1001 = scalar_lea.vmem %s1, 256
      %v1002 = vld [vmem:[%s1001] sm:$0xff]
      %v1003 = vld [vmem:[%s1001 + $0x8] sm:$0xff]
      %v1004 = vld [vmem:[%s1001 + $0x10] sm:$0xff]
      %v1005 = vld [vmem:[%s1001 + $0x18] sm:$0xff]
      %v1006 = vld [vmem:[%s1001 + $0x20] sm:$0xff]
      %v1007 = vld [vmem:[%s1001 + $0x28] sm:$0xff]
      %v1008 = vld [vmem:[%s1001 + $0x30] sm:$0xff]
      %v1009 = vld [vmem:[%s1001 + $0x38] sm:$0xff]
      %v1010 = vld [vmem:[%s1001 + $0x40] sm:$0xff]
      %v1011 = vld [vmem:[%s1001 + $0x48] sm:$0xff]
      %v1012 = vld [vmem:[%s1001 + $0x50] sm:$0xff]
      %v1013 = vld [vmem:[%s1001 + $0x58] sm:$0xff]
      %v1014 = vld [vmem:[%s1001 + $0x60] sm:$0xff]
      %v1015 = vld [vmem:[%s1001 + $0x68] sm:$0xff]
      %v1016 = vld [vmem:[%s1001 + $0x70] sm:$0xff]
      %v1017 = vld [vmem:[%s1001 + $0x78] sm:$0xff]
      %v1034 = vunpack.c.l.b16 %v1002
      %v1035 = vunpack.c.h.b16 %v1002
      %v1036 = vunpack.c.l.b16 %v1003
      %v1037 = vunpack.c.h.b16 %v1003
      %v1038 = vunpack.c.l.b16 %v1004
      %v1039 = vunpack.c.h.b16 %v1004
      %v1040 = vunpack.c.l.b16 %v1005
      %v1041 = vunpack.c.h.b16 %v1005
      %v1042 = vunpack.c.l.b16 %v1006
      %v1043 = vunpack.c.h.b16 %v1006
      %v1044 = vunpack.c.l.b16 %v1007
      %v1045 = vunpack.c.h.b16 %v1007
      %v1046 = vunpack.c.l.b16 %v1008
      %v1047 = vunpack.c.h.b16 %v1008
      %v1048 = vunpack.c.l.b16 %v1009
      %v1049 = vunpack.c.h.b16 %v1009
      %v1050 = vunpack.c.l.b16 %v1010
      %v1051 = vunpack.c.h.b16 %v1010
      %v1052 = vunpack.c.l.b16 %v1011
      %v1053 = vunpack.c.h.b16 %v1011
      %v1054 = vunpack.c.l.b16 %v1012
      %v1055 = vunpack.c.h.b16 %v1012
      %v1056 = vunpack.c.l.b16 %v1013
      %v1057 = vunpack.c.h.b16 %v1013
      %v1058 = vunpack.c.l.b16 %v1014
      %v1059 = vunpack.c.h.b16 %v1014
      %v1060 = vunpack.c.l.b16 %v1015
      %v1061 = vunpack.c.h.b16 %v1015
      %v1062 = vunpack.c.l.b16 %v1016
      %v1063 = vunpack.c.h.b16 %v1016
      %v1064 = vunpack.c.l.b16 %v1017
      %v1065 = vunpack.c.h.b16 %v1017
      %v1066 = vpack.c.b16 %v1036, %v1034
      %v1067 = vpack.c.b16 %v1037, %v1035
      %v1068 = vpack.c.b16 %v1040, %v1038
      %v1069 = vpack.c.b16 %v1041, %v1039
      %v1070 = vpack.c.b16 %v1044, %v1042
      %v1071 = vpack.c.b16 %v1045, %v1043
      %v1072 = vpack.c.b16 %v1048, %v1046
      %v1073 = vpack.c.b16 %v1049, %v1047
      %v1074 = vpack.c.b16 %v1052, %v1050
      %v1075 = vpack.c.b16 %v1053, %v1051
      %v1076 = vpack.c.b16 %v1056, %v1054
      %v1077 = vpack.c.b16 %v1057, %v1055
      %v1078 = vpack.c.b16 %v1060, %v1058
      %v1079 = vpack.c.b16 %v1061, %v1059
      %v1080 = vpack.c.b16 %v1064, %v1062
      %v1081 = vpack.c.b16 %v1065, %v1063
      %v1098 = vunpack.c.h.b16 %v438
      %v1099 = vunpack.c.h.b16 %v439
      %v1100 = vunpack.c.h.b16 %v440
      %v1101 = vunpack.c.h.b16 %v441
      %v1102 = vunpack.c.h.b16 %v442
      %v1103 = vunpack.c.h.b16 %v443
      %v1104 = vunpack.c.h.b16 %v444
      %v1105 = vunpack.c.h.b16 %v445
      %v1106 = vunpack.c.h.b16 %v446
      %v1107 = vunpack.c.h.b16 %v447
      %v1108 = vunpack.c.h.b16 %v448
      %v1109 = vunpack.c.h.b16 %v449
      %v1110 = vunpack.c.h.b16 %v450
      %v1111 = vunpack.c.h.b16 %v451
      %v1112 = vunpack.c.h.b16 %v452
      %v1113 = vunpack.c.h.b16 %v453
      %v1114 = vunpack.c.h.b16 %v454
      %v1115 = vunpack.c.h.b16 %v455
      %v1116 = vunpack.c.h.b16 %v456
      %v1117 = vunpack.c.h.b16 %v457
      %v1118 = vunpack.c.h.b16 %v458
      %v1119 = vunpack.c.h.b16 %v459
      %v1120 = vunpack.c.h.b16 %v460
      %v1121 = vunpack.c.h.b16 %v461
      %v1122 = vunpack.c.h.b16 %v462
      %v1123 = vunpack.c.h.b16 %v463
      %v1124 = vunpack.c.h.b16 %v464
      %v1125 = vunpack.c.h.b16 %v465
      %v1126 = vunpack.c.h.b16 %v466
      %v1127 = vunpack.c.h.b16 %v467
      %v1128 = vunpack.c.h.b16 %v468
      %v1129 = vunpack.c.h.b16 %v469
      %v1130 = vpack.c.b16 %v1099, %v1098
      %v1131 = vpack.c.b16 %v1101, %v1100
      %v1132 = vpack.c.b16 %v1103, %v1102
      %v1133 = vpack.c.b16 %v1105, %v1104
      %v1134 = vpack.c.b16 %v1107, %v1106
      %v1135 = vpack.c.b16 %v1109, %v1108
      %v1136 = vpack.c.b16 %v1111, %v1110
      %v1137 = vpack.c.b16 %v1113, %v1112
      %v1138 = vpack.c.b16 %v1115, %v1114
      %v1139 = vpack.c.b16 %v1117, %v1116
      %v1140 = vpack.c.b16 %v1119, %v1118
      %v1141 = vpack.c.b16 %v1121, %v1120
      %v1142 = vpack.c.b16 %v1123, %v1122
      %v1143 = vpack.c.b16 %v1125, %v1124
      %v1144 = vpack.c.b16 %v1127, %v1126
      %v1145 = vpack.c.b16 %v1129, %v1128
      %1146 = vrot.lane.b32.xlu0 %v647, 116
      %v1147 = vpop.permute.xlu0 %1146
      %1148 = vrot.lane.b32.xlu0 %v1130, 116
      %v1149 = vpop.permute.xlu0 %1148
      %1150 = vrot.lane.b32.xlu0 %v648, 116
      %v1151 = vpop.permute.xlu0 %1150
      %1152 = vrot.lane.b32.xlu0 %v1131, 116
      %v1153 = vpop.permute.xlu0 %1152
      %1154 = vrot.lane.b32.xlu0 %v649, 116
      %v1155 = vpop.permute.xlu0 %1154
      %1156 = vrot.lane.b32.xlu0 %v1132, 116
      %v1157 = vpop.permute.xlu0 %1156
      %1158 = vrot.lane.b32.xlu0 %v650, 116
      %v1159 = vpop.permute.xlu0 %1158
      %1160 = vrot.lane.b32.xlu0 %v1133, 116
      %v1161 = vpop.permute.xlu0 %1160
      %1162 = vrot.lane.b32.xlu0 %v651, 116
      %v1163 = vpop.permute.xlu0 %1162
      %1164 = vrot.lane.b32.xlu0 %v1134, 116
      %v1165 = vpop.permute.xlu0 %1164
      %1166 = vrot.lane.b32.xlu0 %v652, 116
      %v1167 = vpop.permute.xlu0 %1166
      %1168 = vrot.lane.b32.xlu0 %v1135, 116
      %v1169 = vpop.permute.xlu0 %1168
      %1170 = vrot.lane.b32.xlu0 %v653, 116
      %v1171 = vpop.permute.xlu0 %1170
      %1172 = vrot.lane.b32.xlu0 %v1136, 116
      %v1173 = vpop.permute.xlu0 %1172
      %1174 = vrot.lane.b32.xlu0 %v654, 116
      %v1175 = vpop.permute.xlu0 %1174
      %1176 = vrot.lane.b32.xlu0 %v1137, 116
      %v1177 = vpop.permute.xlu0 %1176
      %1178 = vrot.lane.b32.xlu0 %v655, 116
      %v1179 = vpop.permute.xlu0 %1178
      %1180 = vrot.lane.b32.xlu0 %v1138, 116
      %v1181 = vpop.permute.xlu0 %1180
      %1182 = vrot.lane.b32.xlu0 %v656, 116
      %v1183 = vpop.permute.xlu0 %1182
      %1184 = vrot.lane.b32.xlu0 %v1139, 116
      %v1185 = vpop.permute.xlu0 %1184
      %1186 = vrot.lane.b32.xlu0 %v657, 116
      %v1187 = vpop.permute.xlu0 %1186
      %1188 = vrot.lane.b32.xlu0 %v1140, 116
      %v1189 = vpop.permute.xlu0 %1188
      %1190 = vrot.lane.b32.xlu0 %v658, 116
      %v1191 = vpop.permute.xlu0 %1190
      %1192 = vrot.lane.b32.xlu0 %v1141, 116
      %v1193 = vpop.permute.xlu0 %1192
      %1194 = vrot.lane.b32.xlu0 %v659, 116
      %v1195 = vpop.permute.xlu0 %1194
      %1196 = vrot.lane.b32.xlu0 %v1142, 116
      %v1197 = vpop.permute.xlu0 %1196
      %1198 = vrot.lane.b32.xlu0 %v660, 116
      %v1199 = vpop.permute.xlu0 %1198
      %1200 = vrot.lane.b32.xlu0 %v1143, 116
      %v1201 = vpop.permute.xlu0 %1200
      %1202 = vrot.lane.b32.xlu0 %v661, 116
      %v1203 = vpop.permute.xlu0 %1202
      %1204 = vrot.lane.b32.xlu0 %v1144, 116
      %v1205 = vpop.permute.xlu0 %1204
      %1206 = vrot.lane.b32.xlu0 %v662, 116
      %v1207 = vpop.permute.xlu0 %1206
      %1208 = vrot.lane.b32.xlu0 %v1145, 116
      %v1209 = vpop.permute.xlu0 %1208
      %vm1210 = vcmask 949248
      %v1211 = vsel %vm1210, %v1147, %v1149
      %v1212 = vsel %vm1210, %v1151, %v1153
      %v1213 = vsel %vm1210, %v1155, %v1157
      %v1214 = vsel %vm1210, %v1159, %v1161
      %v1215 = vsel %vm1210, %v1163, %v1165
      %v1216 = vsel %vm1210, %v1167, %v1169
      %v1217 = vsel %vm1210, %v1171, %v1173
      %v1218 = vsel %vm1210, %v1175, %v1177
      %v1219 = vsel %vm1210, %v1179, %v1181
      %v1220 = vsel %vm1210, %v1183, %v1185
      %v1221 = vsel %vm1210, %v1187, %v1189
      %v1222 = vsel %vm1210, %v1191, %v1193
      %v1223 = vsel %vm1210, %v1195, %v1197
      %v1224 = vsel %vm1210, %v1199, %v1201
      %v1225 = vsel %vm1210, %v1203, %v1205
      %v1226 = vsel %vm1210, %v1207, %v1209
      %1243 = vmatprep.subr.bf16.mxu0 0
      %1244 = vmatpush1.bf16.msra.mxu0 %v1211
      %1245 = vmatprep.subr.bf16.mxu0 0
      %1246 = vmatpush1.bf16.msra.mxu0 %v1212
      %1247 = vmatprep.subr.bf16.mxu0 0
      %1248 = vmatpush1.bf16.msra.mxu0 %v1213
      %1249 = vmatprep.subr.bf16.mxu0 0
      %1250 = vmatpush1.bf16.msra.mxu0 %v1214
      %1251 = vmatprep.subr.bf16.mxu0 0
      %1252 = vmatpush1.bf16.msra.mxu0 %v1215
      %1253 = vmatprep.subr.bf16.mxu0 0
      %1254 = vmatpush1.bf16.msra.mxu0 %v1216
      %1255 = vmatprep.subr.bf16.mxu0 0
      %1256 = vmatpush1.bf16.msra.mxu0 %v1217
      %1257 = vmatprep.subr.bf16.mxu0 0
      %1258 = vmatpush1.bf16.msra.mxu0 %v1218
      %1259 = vmatprep.subr.bf16.mxu0 0
      %1260 = vmatpush1.bf16.msra.mxu0 %v1219
      %1261 = vmatprep.subr.bf16.mxu0 0
      %1262 = vmatpush1.bf16.msra.mxu0 %v1220
      %1263 = vmatprep.subr.bf16.mxu0 0
      %1264 = vmatpush1.bf16.msra.mxu0 %v1221
      %1265 = vmatprep.subr.bf16.mxu0 0
      %1266 = vmatpush1.bf16.msra.mxu0 %v1222
      %1267 = vmatprep.subr.bf16.mxu0 0
      %1268 = vmatpush1.bf16.msra.mxu0 %v1223
      %1269 = vmatprep.subr.bf16.mxu0 0
      %1270 = vmatpush1.bf16.msra.mxu0 %v1224
      %1271 = vmatprep.subr.bf16.mxu0 0
      %1272 = vmatpush1.bf16.msra.mxu0 %v1225
      %1273 = vmatprep.subr.bf16.mxu0 0
      %1274 = vmatpush1.bf16.msra.mxu0 %v1226
      %1275 = vmatprep.mubr.bf16.mxu0 %v1067
      %1276 = vmatmul.mubr.bf16.gmra.mrb[0].mxu0 %v1066
      %v1277 = vpop.f32.mrb[0].mxu0
      %v1278 = vadd.f32 0.0, %v1277
      %v1279 = vpop.f32.mrb[0].mxu0
      %v1280 = vpop.f32.mrb[0].mxu0
      %v1281 = vadd.f32 0.0, %v1280
      %v1282 = vpop.f32.mrb[0].mxu0
      %1283 = vmatprep.mubr.bf16.mxu0 %v1069
      %1284 = vmatmul.mubr.bf16.gmra.mrb[0].mxu0 %v1068
      %v1285 = vpop.f32.mrb[0].mxu0
      %v1286 = vadd.f32 0.0, %v1285
      %v1287 = vpop.f32.mrb[0].mxu0
      %v1288 = vpop.f32.mrb[0].mxu0
      %v1289 = vadd.f32 0.0, %v1288
      %v1290 = vpop.f32.mrb[0].mxu0
      %1291 = vmatprep.mubr.bf16.mxu0 %v1071
      %1292 = vmatmul.mubr.bf16.gmra.mrb[0].mxu0 %v1070
      %v1293 = vpop.f32.mrb[0].mxu0
      %v1294 = vadd.f32 0.0, %v1293
      %v1295 = vpop.f32.mrb[0].mxu0
      %v1296 = vpop.f32.mrb[0].mxu0
      %v1297 = vadd.f32 0.0, %v1296
      %v1298 = vpop.f32.mrb[0].mxu0
      %1299 = vmatprep.mubr.bf16.mxu0 %v1073
      %1300 = vmatmul.mubr.bf16.gmra.mrb[0].mxu0 %v1072
      %v1301 = vpop.f32.mrb[0].mxu0
      %v1302 = vadd.f32 0.0, %v1301
      %v1303 = vpop.f32.mrb[0].mxu0
      %v1304 = vpop.f32.mrb[0].mxu0
      %v1305 = vadd.f32 0.0, %v1304
      %v1306 = vpop.f32.mrb[0].mxu0
      %1307 = vmatprep.mubr.bf16.mxu0 %v1075
      %1308 = vmatmul.mubr.bf16.gmra.mrb[0].mxu0 %v1074
      %v1309 = vpop.f32.mrb[0].mxu0
      %v1310 = vadd.f32 0.0, %v1309
      %v1311 = vpop.f32.mrb[0].mxu0
      %v1312 = vpop.f32.mrb[0].mxu0
      %v1313 = vadd.f32 0.0, %v1312
      %v1314 = vpop.f32.mrb[0].mxu0
      %1315 = vmatprep.mubr.bf16.mxu0 %v1077
      %1316 = vmatmul.mubr.bf16.gmra.mrb[0].mxu0 %v1076
      %v1317 = vpop.f32.mrb[0].mxu0
      %v1318 = vadd.f32 0.0, %v1317
      %v1319 = vpop.f32.mrb[0].mxu0
      %v1320 = vpop.f32.mrb[0].mxu0
      %v1321 = vadd.f32 0.0, %v1320
      %v1322 = vpop.f32.mrb[0].mxu0
      %1323 = vmatprep.mubr.bf16.mxu0 %v1079
      %1324 = vmatmul.mubr.bf16.gmra.mrb[0].mxu0 %v1078
      %v1325 = vpop.f32.mrb[0].mxu0
      %v1326 = vadd.f32 0.0, %v1325
      %v1327 = vpop.f32.mrb[0].mxu0
      %v1328 = vpop.f32.mrb[0].mxu0
      %v1329 = vadd.f32 0.0, %v1328
      %v1330 = vpop.f32.mrb[0].mxu0
      %1331 = vmatprep.mubr.bf16.mxu0 %v1081
      %1332 = vmatmul.mubr.bf16.gmra.mrb[0].mxu0 %v1080
      %v1333 = vpop.f32.mrb[0].mxu0
      %v1334 = vadd.f32 0.0, %v1333
      %v1335 = vpop.f32.mrb[0].mxu0
      %v1336 = vpop.f32.mrb[0].mxu0
      %v1337 = vadd.f32 0.0, %v1336
      %v1338 = vpop.f32.mrb[0].mxu0
      %1339 = vdwg.mxu0
      %v1340 = vadd.f32 %v939, %v1278
      %v1341 = vadd.f32 %v942, %v1281
      %v1342 = vadd.f32 %v947, %v1286
      %v1343 = vadd.f32 %v950, %v1289
      %v1344 = vadd.f32 %v955, %v1294
      %v1345 = vadd.f32 %v958, %v1297
      %v1346 = vadd.f32 %v963, %v1302
      %v1347 = vadd.f32 %v966, %v1305
      %v1348 = vadd.f32 %v971, %v1310
      %v1349 = vadd.f32 %v974, %v1313
      %v1350 = vadd.f32 %v979, %v1318
      %v1351 = vadd.f32 %v982, %v1321
      %v1352 = vadd.f32 %v987, %v1326
      %v1353 = vadd.f32 %v990, %v1329
      %v1354 = vadd.f32 %v995, %v1334
      %v1355 = vadd.f32 %v998, %v1337
      %s1356 = scalar_lea.vmem %s1, 384
      %v1357 = vld [vmem:[%s1356] sm:$0xff]
      %v1358 = vld [vmem:[%s1356 + $0x8] sm:$0xff]
      %v1359 = vld [vmem:[%s1356 + $0x10] sm:$0xff]
      %v1360 = vld [vmem:[%s1356 + $0x18] sm:$0xff]
      %v1361 = vld [vmem:[%s1356 + $0x20] sm:$0xff]
      %v1362 = vld [vmem:[%s1356 + $0x28] sm:$0xff]
      %v1363 = vld [vmem:[%s1356 + $0x30] sm:$0xff]
      %v1364 = vld [vmem:[%s1356 + $0x38] sm:$0xff]
      %v1365 = vld [vmem:[%s1356 + $0x40] sm:$0xff]
      %v1366 = vld [vmem:[%s1356 + $0x48] sm:$0xff]
      %v1367 = vld [vmem:[%s1356 + $0x50] sm:$0xff]
      %v1368 = vld [vmem:[%s1356 + $0x58] sm:$0xff]
      %v1369 = vld [vmem:[%s1356 + $0x60] sm:$0xff]
      %v1370 = vld [vmem:[%s1356 + $0x68] sm:$0xff]
      %v1371 = vld [vmem:[%s1356 + $0x70] sm:$0xff]
      %v1372 = vld [vmem:[%s1356 + $0x78] sm:$0xff]
      %v1389 = vunpack.c.l.b16 %v1357
      %v1390 = vunpack.c.h.b16 %v1357
      %v1391 = vunpack.c.l.b16 %v1358
      %v1392 = vunpack.c.h.b16 %v1358
      %v1393 = vunpack.c.l.b16 %v1359
      %v1394 = vunpack.c.h.b16 %v1359
      %v1395 = vunpack.c.l.b16 %v1360
      %v1396 = vunpack.c.h.b16 %v1360
      %v1397 = vunpack.c.l.b16 %v1361
      %v1398 = vunpack.c.h.b16 %v1361
      %v1399 = vunpack.c.l.b16 %v1362
      %v1400 = vunpack.c.h.b16 %v1362
      %v1401 = vunpack.c.l.b16 %v1363
      %v1402 = vunpack.c.h.b16 %v1363
      %v1403 = vunpack.c.l.b16 %v1364
      %v1404 = vunpack.c.h.b16 %v1364
      %v1405 = vunpack.c.l.b16 %v1365
      %v1406 = vunpack.c.h.b16 %v1365
      %v1407 = vunpack.c.l.b16 %v1366
      %v1408 = vunpack.c.h.b16 %v1366
      %v1409 = vunpack.c.l.b16 %v1367
      %v1410 = vunpack.c.h.b16 %v1367
      %v1411 = vunpack.c.l.b16 %v1368
      %v1412 = vunpack.c.h.b16 %v1368
      %v1413 = vunpack.c.l.b16 %v1369
      %v1414 = vunpack.c.h.b16 %v1369
      %v1415 = vunpack.c.l.b16 %v1370
      %v1416 = vunpack.c.h.b16 %v1370
      %v1417 = vunpack.c.l.b16 %v1371
      %v1418 = vunpack.c.h.b16 %v1371
      %v1419 = vunpack.c.l.b16 %v1372
      %v1420 = vunpack.c.h.b16 %v1372
      %v1421 = vpack.c.b16 %v1391, %v1389
      %v1422 = vpack.c.b16 %v1392, %v1390
      %v1423 = vpack.c.b16 %v1395, %v1393
      %v1424 = vpack.c.b16 %v1396, %v1394
      %v1425 = vpack.c.b16 %v1399, %v1397
      %v1426 = vpack.c.b16 %v1400, %v1398
      %v1427 = vpack.c.b16 %v1403, %v1401
      %v1428 = vpack.c.b16 %v1404, %v1402
      %v1429 = vpack.c.b16 %v1407, %v1405
      %v1430 = vpack.c.b16 %v1408, %v1406
      %v1431 = vpack.c.b16 %v1411, %v1409
      %v1432 = vpack.c.b16 %v1412, %v1410
      %v1433 = vpack.c.b16 %v1415, %v1413
      %v1434 = vpack.c.b16 %v1416, %v1414
      %v1435 = vpack.c.b16 %v1419, %v1417
      %v1436 = vpack.c.b16 %v1420, %v1418
      %1453 = vrot.lane.b32.xlu0 %v647, 115
      %v1454 = vpop.permute.xlu0 %1453
      %1455 = vrot.lane.b32.xlu0 %v1130, 115
      %v1456 = vpop.permute.xlu0 %1455
      %1457 = vrot.lane.b32.xlu0 %v648, 115
      %v1458 = vpop.permute.xlu0 %1457
      %1459 = vrot.lane.b32.xlu0 %v1131, 115
      %v1460 = vpop.permute.xlu0 %1459
      %1461 = vrot.lane.b32.xlu0 %v649, 115
      %v1462 = vpop.permute.xlu0 %1461
      %1463 = vrot.lane.b32.xlu0 %v1132, 115
      %v1464 = vpop.permute.xlu0 %1463
      %1465 = vrot.lane.b32.xlu0 %v650, 115
      %v1466 = vpop.permute.xlu0 %1465
      %1467 = vrot.lane.b32.xlu0 %v1133, 115
      %v1468 = vpop.permute.xlu0 %1467
      %1469 = vrot.lane.b32.xlu0 %v651, 115
      %v1470 = vpop.permute.xlu0 %1469
      %1471 = vrot.lane.b32.xlu0 %v1134, 115
      %v1472 = vpop.permute.xlu0 %1471
      %1473 = vrot.lane.b32.xlu0 %v652, 115
      %v1474 = vpop.permute.xlu0 %1473
      %1475 = vrot.lane.b32.xlu0 %v1135, 115
      %v1476 = vpop.permute.xlu0 %1475
      %1477 = vrot.lane.b32.xlu0 %v653, 115
      %v1478 = vpop.permute.xlu0 %1477
      %1479 = vrot.lane.b32.xlu0 %v1136, 115
      %v1480 = vpop.permute.xlu0 %1479
      %1481 = vrot.lane.b32.xlu0 %v654, 115
      %v1482 = vpop.permute.xlu0 %1481
      %1483 = vrot.lane.b32.xlu0 %v1137, 115
      %v1484 = vpop.permute.xlu0 %1483
      %1485 = vrot.lane.b32.xlu0 %v655, 115
      %v1486 = vpop.permute.xlu0 %1485
      %1487 = vrot.lane.b32.xlu0 %v1138, 115
      %v1488 = vpop.permute.xlu0 %1487
      %1489 = vrot.lane.b32.xlu0 %v656, 115
      %v1490 = vpop.permute.xlu0 %1489
      %1491 = vrot.lane.b32.xlu0 %v1139, 115
      %v1492 = vpop.permute.xlu0 %1491
      %1493 = vrot.lane.b32.xlu0 %v657, 115
      %v1494 = vpop.permute.xlu0 %1493
      %1495 = vrot.lane.b32.xlu0 %v1140, 115
      %v1496 = vpop.permute.xlu0 %1495
      %1497 = vrot.lane.b32.xlu0 %v658, 115
      %v1498 = vpop.permute.xlu0 %1497
      %1499 = vrot.lane.b32.xlu0 %v1141, 115
      %v1500 = vpop.permute.xlu0 %1499
      %1501 = vrot.lane.b32.xlu0 %v659, 115
      %v1502 = vpop.permute.xlu0 %1501
      %1503 = vrot.lane.b32.xlu0 %v1142, 115
      %v1504 = vpop.permute.xlu0 %1503
      %1505 = vrot.lane.b32.xlu0 %v660, 115
      %v1506 = vpop.permute.xlu0 %1505
      %1507 = vrot.lane.b32.xlu0 %v1143, 115
      %v1508 = vpop.permute.xlu0 %1507
      %1509 = vrot.lane.b32.xlu0 %v661, 115
      %v1510 = vpop.permute.xlu0 %1509
      %1511 = vrot.lane.b32.xlu0 %v1144, 115
      %v1512 = vpop.permute.xlu0 %1511
      %1513 = vrot.lane.b32.xlu0 %v662, 115
      %v1514 = vpop.permute.xlu0 %1513
      %1515 = vrot.lane.b32.xlu0 %v1145, 115
      %v1516 = vpop.permute.xlu0 %1515
      %vm1517 = vcmask 941056
      %v1518 = vsel %vm1517, %v1454, %v1456
      %v1519 = vsel %vm1517, %v1458, %v1460
      %v1520 = vsel %vm1517, %v1462, %v1464
      %v1521 = vsel %vm1517, %v1466, %v1468
      %v1522 = vsel %vm1517, %v1470, %v1472
      %v1523 = vsel %vm1517, %v1474, %v1476
      %v1524 = vsel %vm1517, %v1478, %v1480
      %v1525 = vsel %vm1517, %v1482, %v1484
      %v1526 = vsel %vm1517, %v1486, %v1488
      %v1527 = vsel %vm1517, %v1490, %v1492
      %v1528 = vsel %vm1517, %v1494, %v1496
      %v1529 = vsel %vm1517, %v1498, %v1500
      %v1530 = vsel %vm1517, %v1502, %v1504
      %v1531 = vsel %vm1517, %v1506, %v1508
      %v1532 = vsel %vm1517, %v1510, %v1512
      %v1533 = vsel %vm1517, %v1514, %v1516
      %1550 = vmatprep.subr.bf16.mxu0 0
      %1551 = vmatpush1.bf16.msra.mxu0 %v1518
      %1552 = vmatprep.subr.bf16.mxu0 0
      %1553 = vmatpush1.bf16.msra.mxu0 %v1519
      %1554 = vmatprep.subr.bf16.mxu0 0
      %1555 = vmatpush1.bf16.msra.mxu0 %v1520
      %1556 = vmatprep.subr.bf16.mxu0 0
      %1557 = vmatpush1.bf16.msra.mxu0 %v1521
      %1558 = vmatprep.subr.bf16.mxu0 0
      %1559 = vmatpush1.bf16.msra.mxu0 %v1522
      %1560 = vmatprep.subr.bf16.mxu0 0
      %1561 = vmatpush1.bf16.msra.mxu0 %v1523
      %1562 = vmatprep.subr.bf16.mxu0 0
      %1563 = vmatpush1.bf16.msra.mxu0 %v1524
      %1564 = vmatprep.subr.bf16.mxu0 0
      %1565 = vmatpush1.bf16.msra.mxu0 %v1525
      %1566 = vmatprep.subr.bf16.mxu0 0
      %1567 = vmatpush1.bf16.msra.mxu0 %v1526
      %1568 = vmatprep.subr.bf16.mxu0 0
      %1569 = vmatpush1.bf16.msra.mxu0 %v1527
      %1570 = vmatprep.subr.bf16.mxu0 0
      %1571 = vmatpush1.bf16.msra.mxu0 %v1528
      %1572 = vmatprep.subr.bf16.mxu0 0
      %1573 = vmatpush1.bf16.msra.mxu0 %v1529
      %1574 = vmatprep.subr.bf16.mxu0 0
      %1575 = vmatpush1.bf16.msra.mxu0 %v1530
      %1576 = vmatprep.subr.bf16.mxu0 0
      %1577 = vmatpush1.bf16.msra.mxu0 %v1531
      %1578 = vmatprep.subr.bf16.mxu0 0
      %1579 = vmatpush1.bf16.msra.mxu0 %v1532
      %1580 = vmatprep.subr.bf16.mxu0 0
      %1581 = vmatpush1.bf16.msra.mxu0 %v1533
      %1582 = vmatprep.mubr.bf16.mxu0 %v1422
      %1583 = vmatmul.mubr.bf16.gmra.mrb[0].mxu0 %v1421
      %v1584 = vpop.f32.mrb[0].mxu0
      %v1585 = vadd.f32 0.0, %v1584
      %v1586 = vpop.f32.mrb[0].mxu0
      %v1587 = vpop.f32.mrb[0].mxu0
      %v1588 = vadd.f32 0.0, %v1587
      %v1589 = vpop.f32.mrb[0].mxu0
      %1590 = vmatprep.mubr.bf16.mxu0 %v1424
      %1591 = vmatmul.mubr.bf16.gmra.mrb[0].mxu0 %v1423
      %v1592 = vpop.f32.mrb[0].mxu0
      %v1593 = vadd.f32 0.0, %v1592
      %v1594 = vpop.f32.mrb[0].mxu0
      %v1595 = vpop.f32.mrb[0].mxu0
      %v1596 = vadd.f32 0.0, %v1595
      %v1597 = vpop.f32.mrb[0].mxu0
      %1598 = vmatprep.mubr.bf16.mxu0 %v1426
      %1599 = vmatmul.mubr.bf16.gmra.mrb[0].mxu0 %v1425
      %v1600 = vpop.f32.mrb[0].mxu0
      %v1601 = vadd.f32 0.0, %v1600
      %v1602 = vpop.f32.mrb[0].mxu0
      %v1603 = vpop.f32.mrb[0].mxu0
      %v1604 = vadd.f32 0.0, %v1603
      %v1605 = vpop.f32.mrb[0].mxu0
      %1606 = vmatprep.mubr.bf16.mxu0 %v1428
      %1607 = vmatmul.mubr.bf16.gmra.mrb[0].mxu0 %v1427
      %v1608 = vpop.f32.mrb[0].mxu0
      %v1609 = vadd.f32 0.0, %v1608
      %v1610 = vpop.f32.mrb[0].mxu0
      %v1611 = vpop.f32.mrb[0].mxu0
      %v1612 = vadd.f32 0.0, %v1611
      %v1613 = vpop.f32.mrb[0].mxu0
      %1614 = vmatprep.mubr.bf16.mxu0 %v1430
      %1615 = vmatmul.mubr.bf16.gmra.mrb[0].mxu0 %v1429
      %v1616 = vpop.f32.mrb[0].mxu0
      %v1617 = vadd.f32 0.0, %v1616
      %v1618 = vpop.f32.mrb[0].mxu0
      %v1619 = vpop.f32.mrb[0].mxu0
      %v1620 = vadd.f32 0.0, %v1619
      %v1621 = vpop.f32.mrb[0].mxu0
      %1622 = vmatprep.mubr.bf16.mxu0 %v1432
      %1623 = vmatmul.mubr.bf16.gmra.mrb[0].mxu0 %v1431
      %v1624 = vpop.f32.mrb[0].mxu0
      %v1625 = vadd.f32 0.0, %v1624
      %v1626 = vpop.f32.mrb[0].mxu0
      %v1627 = vpop.f32.mrb[0].mxu0
      %v1628 = vadd.f32 0.0, %v1627
      %v1629 = vpop.f32.mrb[0].mxu0
      %1630 = vmatprep.mubr.bf16.mxu0 %v1434
      %1631 = vmatmul.mubr.bf16.gmra.mrb[0].mxu0 %v1433
      %v1632 = vpop.f32.mrb[0].mxu0
      %v1633 = vadd.f32 0.0, %v1632
      %v1634 = vpop.f32.mrb[0].mxu0
      %v1635 = vpop.f32.mrb[0].mxu0
      %v1636 = vadd.f32 0.0, %v1635
      %v1637 = vpop.f32.mrb[0].mxu0
      %1638 = vmatprep.mubr.bf16.mxu0 %v1436
      %1639 = vmatmul.mubr.bf16.gmra.mrb[0].mxu0 %v1435
      %v1640 = vpop.f32.mrb[0].mxu0
      %v1641 = vadd.f32 0.0, %v1640
      %v1642 = vpop.f32.mrb[0].mxu0
      %v1643 = vpop.f32.mrb[0].mxu0
      %v1644 = vadd.f32 0.0, %v1643
      %v1645 = vpop.f32.mrb[0].mxu0
      %1646 = vdwg.mxu0
      %v1647 = vadd.f32 %v1340, %v1585
      %v1648 = vadd.f32 %v1341, %v1588
      %v1649 = vadd.f32 %v1342, %v1593
      %v1650 = vadd.f32 %v1343, %v1596
      %v1651 = vadd.f32 %v1344, %v1601
      %v1652 = vadd.f32 %v1345, %v1604
      %v1653 = vadd.f32 %v1346, %v1609
      %v1654 = vadd.f32 %v1347, %v1612
      %v1655 = vadd.f32 %v1348, %v1617
      %v1656 = vadd.f32 %v1349, %v1620
      %v1657 = vadd.f32 %v1350, %v1625
      %v1658 = vadd.f32 %v1351, %v1628
      %v1659 = vadd.f32 %v1352, %v1633
      %v1660 = vadd.f32 %v1353, %v1636
      %v1661 = vadd.f32 %v1354, %v1641
      %v1662 = vadd.f32 %v1355, %v1644
      %v1663 = vld [vmem:[%s2] sm:$0xff]
      %v1664 = vld [vmem:[%s2 + $0x8] sm:$0xff]
      %v1665 = vld [vmem:[%s2 + $0x10] sm:$0xff]
      %v1666 = vld [vmem:[%s2 + $0x18] sm:$0xff]
      %v1667 = vld [vmem:[%s2 + $0x20] sm:$0xff]
      %v1668 = vld [vmem:[%s2 + $0x28] sm:$0xff]
      %v1669 = vld [vmem:[%s2 + $0x30] sm:$0xff]
      %v1670 = vld [vmem:[%s2 + $0x38] sm:$0xff]
      %v1671 = vld [vmem:[%s2 + $0x40] sm:$0xff]
      %v1672 = vld [vmem:[%s2 + $0x48] sm:$0xff]
      %v1673 = vld [vmem:[%s2 + $0x50] sm:$0xff]
      %v1674 = vld [vmem:[%s2 + $0x58] sm:$0xff]
      %v1675 = vld [vmem:[%s2 + $0x60] sm:$0xff]
      %v1676 = vld [vmem:[%s2 + $0x68] sm:$0xff]
      %v1677 = vld [vmem:[%s2 + $0x70] sm:$0xff]
      %v1678 = vld [vmem:[%s2 + $0x78] sm:$0xff]
      %1680 = vset.pattern.permute.xlu0 0
      %1681 = vperm.xlu0 %1680, %v1663
      %v1682 = vpop.permute.xlu0 %1681
      %1685 = vset.pattern.permute.xlu0 0
      %1686 = vperm.xlu0 %1685, %v1664
      %v1687 = vpop.permute.xlu0 %1686
      %1690 = vset.pattern.permute.xlu0 0
      %1691 = vperm.xlu0 %1690, %v1665
      %v1692 = vpop.permute.xlu0 %1691
      %1695 = vset.pattern.permute.xlu0 0
      %1696 = vperm.xlu0 %1695, %v1666
      %v1697 = vpop.permute.xlu0 %1696
      %1700 = vset.pattern.permute.xlu0 0
      %1701 = vperm.xlu0 %1700, %v1667
      %v1702 = vpop.permute.xlu0 %1701
      %1705 = vset.pattern.permute.xlu0 0
      %1706 = vperm.xlu0 %1705, %v1668
      %v1707 = vpop.permute.xlu0 %1706
      %1710 = vset.pattern.permute.xlu0 0
      %1711 = vperm.xlu0 %1710, %v1669
      %v1712 = vpop.permute.xlu0 %1711
      %1715 = vset.pattern.permute.xlu0 0
      %1716 = vperm.xlu0 %1715, %v1670
      %v1717 = vpop.permute.xlu0 %1716
      %1720 = vset.pattern.permute.xlu0 0
      %1721 = vperm.xlu0 %1720, %v1671
      %v1722 = vpop.permute.xlu0 %1721
      %1725 = vset.pattern.permute.xlu0 0
      %1726 = vperm.xlu0 %1725, %v1672
      %v1727 = vpop.permute.xlu0 %1726
      %1730 = vset.pattern.permute.xlu0 0
      %1731 = vperm.xlu0 %1730, %v1673
      %v1732 = vpop.permute.xlu0 %1731
      %1735 = vset.pattern.permute.xlu0 0
      %1736 = vperm.xlu0 %1735, %v1674
      %v1737 = vpop.permute.xlu0 %1736
      %1740 = vset.pattern.permute.xlu0 0
      %1741 = vperm.xlu0 %1740, %v1675
      %v1742 = vpop.permute.xlu0 %1741
      %1745 = vset.pattern.permute.xlu0 0
      %1746 = vperm.xlu0 %1745, %v1676
      %v1747 = vpop.permute.xlu0 %1746
      %1750 = vset.pattern.permute.xlu0 0
      %1751 = vperm.xlu0 %1750, %v1677
      %v1752 = vpop.permute.xlu0 %1751
      %1755 = vset.pattern.permute.xlu0 0
      %1756 = vperm.xlu0 %1755, %v1678
      %v1757 = vpop.permute.xlu0 %1756
      %v1759 = vadd.f32 %v1647, %v1682
      %v1760 = vadd.f32 %v1648, %v1687
      %v1761 = vadd.f32 %v1649, %v1692
      %v1762 = vadd.f32 %v1650, %v1697
      %v1763 = vadd.f32 %v1651, %v1702
      %v1764 = vadd.f32 %v1652, %v1707
      %v1765 = vadd.f32 %v1653, %v1712
      %v1766 = vadd.f32 %v1654, %v1717
      %v1767 = vadd.f32 %v1655, %v1722
      %v1768 = vadd.f32 %v1656, %v1727
      %v1769 = vadd.f32 %v1657, %v1732
      %v1770 = vadd.f32 %v1658, %v1737
      %v1771 = vadd.f32 %v1659, %v1742
      %v1772 = vadd.f32 %v1660, %v1747
      %v1773 = vadd.f32 %v1661, %v1752
      %v1774 = vadd.f32 %v1662, %v1757
      %v1775 = vmax.f32 %v1759, 0.0
      %v1776 = vmax.f32 %v1760, 0.0
      %v1777 = vmax.f32 %v1761, 0.0
      %v1778 = vmax.f32 %v1762, 0.0
      %v1779 = vmax.f32 %v1763, 0.0
      %v1780 = vmax.f32 %v1764, 0.0
      %v1781 = vmax.f32 %v1765, 0.0
      %v1782 = vmax.f32 %v1766, 0.0
      %v1783 = vmax.f32 %v1767, 0.0
      %v1784 = vmax.f32 %v1768, 0.0
      %v1785 = vmax.f32 %v1769, 0.0
      %v1786 = vmax.f32 %v1770, 0.0
      %v1787 = vmax.f32 %v1771, 0.0
      %v1788 = vmax.f32 %v1772, 0.0
      %v1789 = vmax.f32 %v1773, 0.0
      %v1790 = vmax.f32 %v1774, 0.0
      %v1791 = vpack.c.bf16 %v1776, %v1775
      %v1792 = vpack.c.bf16 %v1778, %v1777
      %v1793 = vpack.c.bf16 %v1780, %v1779
      %v1794 = vpack.c.bf16 %v1782, %v1781
      %v1795 = vpack.c.bf16 %v1784, %v1783
      %v1796 = vpack.c.bf16 %v1786, %v1785
      %v1797 = vpack.c.bf16 %v1788, %v1787
      %v1798 = vpack.c.bf16 %v1790, %v1789
      %v1799 = vld [vmem:[%s3] sm:$0xf]
      %v1800 = vld [vmem:[%s3 + $0x4] sm:$0xf]
      %v1801 = vld [vmem:[%s3 + $0x8] sm:$0xf]
      %v1802 = vld [vmem:[%s3 + $0xc] sm:$0xf]
      %v1803 = vld [vmem:[%s3 + $0x10] sm:$0xf]
      %v1804 = vld [vmem:[%s3 + $0x14] sm:$0xf]
      %v1805 = vld [vmem:[%s3 + $0x18] sm:$0xf]
      %v1806 = vld [vmem:[%s3 + $0x1c] sm:$0xf]
      %s1807 = scalar_lea.vmem %s3, 32
      %v1808 = vld [vmem:[%s1807] sm:$0xf]
      %v1809 = vld [vmem:[%s1807 + $0x4] sm:$0xf]
      %v1810 = vld [vmem:[%s1807 + $0x8] sm:$0xf]
      %v1811 = vld [vmem:[%s1807 + $0xc] sm:$0xf]
      %v1812 = vld [vmem:[%s1807 + $0x10] sm:$0xf]
      %v1813 = vld [vmem:[%s1807 + $0x14] sm:$0xf]
      %v1814 = vld [vmem:[%s1807 + $0x18] sm:$0xf]
      %v1815 = vld [vmem:[%s1807 + $0x1c] sm:$0xf]
      %v1824 = vunpack.c.l.b16 %v1808
      %v1825 = vunpack.c.l.b16 %v1809
      %v1826 = vunpack.c.l.b16 %v1810
      %v1827 = vunpack.c.l.b16 %v1811
      %v1828 = vunpack.c.l.b16 %v1812
      %v1829 = vunpack.c.l.b16 %v1813
      %v1830 = vunpack.c.l.b16 %v1814
      %v1831 = vunpack.c.l.b16 %v1815
      %v1832 = vpack.c.b16 %v1825, %v1824
      %v1833 = vpack.c.b16 %v1827, %v1826
      %v1834 = vpack.c.b16 %v1829, %v1828
      %v1835 = vpack.c.b16 %v1831, %v1830
      %vm1836 = vcmask 261120
      %v1838 = vsel %vm1836, %v1832, 0
      %v1841 = vsel %vm1836, %v1833, 0
      %v1844 = vsel %vm1836, %v1834, 0
      %v1847 = vsel %vm1836, %v1835, 0
      %1849 = vmatprep.subr.bf16.mxu0 0
      %1850 = vmatpush1.bf16.msra.mxu0 %v1793
      %1851 = vmatprep.subr.bf16.mxu0 0
      %1852 = vmatpush1.bf16.msra.mxu0 %v1794
      %1853 = vmatprep.subr.bf16.mxu0 0
      %1854 = vmatpush1.bf16.msra.mxu0 0
      %1855 = vmatprep.subr.bf16.mxu0 0
      %1856 = vmatpush1.bf16.msra.mxu0 0
      %1857 = vmatprep.subr.bf16.mxu0 0
      %1858 = vmatpush1.bf16.msra.mxu0 0
      %1859 = vmatprep.subr.bf16.mxu0 0
      %1860 = vmatpush1.bf16.msra.mxu0 0
      %1861 = vmatprep.subr.bf16.mxu0 0
      %1862 = vmatpush1.bf16.msra.mxu0 0
      %1863 = vmatprep.subr.bf16.mxu0 0
      %1864 = vmatpush1.bf16.msra.mxu0 0
      %1865 = vmatprep.subr.bf16.mxu0 0
      %1866 = vmatpush1.bf16.msra.mxu0 0
      %1867 = vmatprep.subr.bf16.mxu0 0
      %1868 = vmatpush1.bf16.msra.mxu0 0
      %1869 = vmatprep.subr.bf16.mxu0 0
      %1870 = vmatpush1.bf16.msra.mxu0 0
      %1871 = vmatprep.subr.bf16.mxu0 0
      %1872 = vmatpush1.bf16.msra.mxu0 0
      %1873 = vmatprep.subr.bf16.mxu0 0
      %1874 = vmatpush1.bf16.msra.mxu0 0
      %1875 = vmatprep.subr.bf16.mxu0 0
      %1876 = vmatpush1.bf16.msra.mxu0 0
      %1877 = vmatprep.subr.bf16.mxu0 0
      %1878 = vmatpush1.bf16.msra.mxu0 0
      %1879 = vmatprep.subr.bf16.mxu0 0
      %1880 = vmatpush1.bf16.msra.mxu0 0
      %1881 = vmatprep.mubr.bf16.mxu0 0
      %1882 = vmatmul.mubr.bf16.gmra.mrb[0].mxu0 %v1838
      %v1883 = vpop.f32.mrb[0].mxu0
      %v1884 = vadd.f32 0.0, %v1883
      %v1885 = vpop.f32.mrb[0].mxu0
      %v1886 = vpop.f32.mrb[0].mxu0
      %v1887 = vadd.f32 0.0, %v1886
      %v1888 = vpop.f32.mrb[0].mxu0
      %1889 = vmatprep.mubr.bf16.mxu0 0
      %1890 = vmatmul.mubr.bf16.gmra.mrb[0].mxu0 %v1841
      %v1891 = vpop.f32.mrb[0].mxu0
      %v1892 = vadd.f32 0.0, %v1891
      %v1893 = vpop.f32.mrb[0].mxu0
      %v1894 = vpop.f32.mrb[0].mxu0
      %v1895 = vadd.f32 0.0, %v1894
      %v1896 = vpop.f32.mrb[0].mxu0
      %1897 = vmatprep.mubr.bf16.mxu0 0
      %1898 = vmatmul.mubr.bf16.gmra.mrb[0].mxu0 %v1844
      %v1899 = vpop.f32.mrb[0].mxu0
      %v1900 = vadd.f32 0.0, %v1899
      %v1901 = vpop.f32.mrb[0].mxu0
      %v1902 = vpop.f32.mrb[0].mxu0
      %v1903 = vadd.f32 0.0, %v1902
      %v1904 = vpop.f32.mrb[0].mxu0
      %1905 = vmatprep.mubr.bf16.mxu0 0
      %1906 = vmatmul.mubr.bf16.gmra.mrb[0].mxu0 %v1847
      %v1907 = vpop.f32.mrb[0].mxu0
      %v1908 = vadd.f32 0.0, %v1907
      %v1909 = vpop.f32.mrb[0].mxu0
      %v1910 = vpop.f32.mrb[0].mxu0
      %v1911 = vadd.f32 0.0, %v1910
      %v1912 = vpop.f32.mrb[0].mxu0
      %1913 = vdwg.mxu0
      %v1922 = vunpack.c.l.b16 %v1799
      %v1923 = vunpack.c.l.b16 %v1800
      %v1924 = vunpack.c.l.b16 %v1801
      %v1925 = vunpack.c.l.b16 %v1802
      %v1926 = vunpack.c.l.b16 %v1803
      %v1927 = vunpack.c.l.b16 %v1804
      %v1928 = vunpack.c.l.b16 %v1805
      %v1929 = vunpack.c.l.b16 %v1806
      %v1930 = vpack.c.b16 %v1923, %v1922
      %v1931 = vpack.c.b16 %v1925, %v1924
      %v1932 = vpack.c.b16 %v1927, %v1926
      %v1933 = vpack.c.b16 %v1929, %v1928
      %v1935 = vsel %vm1836, %v1930, 0
      %v1938 = vsel %vm1836, %v1931, 0
      %v1941 = vsel %vm1836, %v1932, 0
      %v1944 = vsel %vm1836, %v1933, 0
      %1946 = vmatprep.subr.bf16.mxu0 0
      %1947 = vmatpush1.bf16.msra.mxu0 %v1791
      %1948 = vmatprep.subr.bf16.mxu0 0
      %1949 = vmatpush1.bf16.msra.mxu0 %v1792
      %1950 = vmatprep.subr.bf16.mxu0 0
      %1951 = vmatpush1.bf16.msra.mxu0 0
      %1952 = vmatprep.subr.bf16.mxu0 0
      %1953 = vmatpush1.bf16.msra.mxu0 0
      %1954 = vmatprep.subr.bf16.mxu0 0
      %1955 = vmatpush1.bf16.msra.mxu0 0
      %1956 = vmatprep.subr.bf16.mxu0 0
      %1957 = vmatpush1.bf16.msra.mxu0 0
      %1958 = vmatprep.subr.bf16.mxu0 0
      %1959 = vmatpush1.bf16.msra.mxu0 0
      %1960 = vmatprep.subr.bf16.mxu0 0
      %1961 = vmatpush1.bf16.msra.mxu0 0
      %1962 = vmatprep.subr.bf16.mxu0 0
      %1963 = vmatpush1.bf16.msra.mxu0 0
      %1964 = vmatprep.subr.bf16.mxu0 0
      %1965 = vmatpush1.bf16.msra.mxu0 0
      %1966 = vmatprep.subr.bf16.mxu0 0
      %1967 = vmatpush1.bf16.msra.mxu0 0
      %1968 = vmatprep.subr.bf16.mxu0 0
      %1969 = vmatpush1.bf16.msra.mxu0 0
      %1970 = vmatprep.subr.bf16.mxu0 0
      %1971 = vmatpush1.bf16.msra.mxu0 0
      %1972 = vmatprep.subr.bf16.mxu0 0
      %1973 = vmatpush1.bf16.msra.mxu0 0
      %1974 = vmatprep.subr.bf16.mxu0 0
      %1975 = vmatpush1.bf16.msra.mxu0 0
      %1976 = vmatprep.subr.bf16.mxu0 0
      %1977 = vmatpush1.bf16.msra.mxu0 0
      %1978 = vmatprep.mubr.bf16.mxu0 0
      %1979 = vmatmul.mubr.bf16.gmra.mrb[0].mxu0 %v1935
      %v1980 = vpop.f32.mrb[0].mxu0
      %v1981 = vadd.f32 %v1884, %v1980
      %v1982 = vpop.f32.mrb[0].mxu0
      %v1983 = vpop.f32.mrb[0].mxu0
      %v1984 = vadd.f32 %v1887, %v1983
      %v1985 = vpop.f32.mrb[0].mxu0
      %1986 = vmatprep.mubr.bf16.mxu0 0
      %1987 = vmatmul.mubr.bf16.gmra.mrb[0].mxu0 %v1938
      %v1988 = vpop.f32.mrb[0].mxu0
      %v1989 = vadd.f32 %v1892, %v1988
      %v1990 = vpop.f32.mrb[0].mxu0
      %v1991 = vpop.f32.mrb[0].mxu0
      %v1992 = vadd.f32 %v1895, %v1991
      %v1993 = vpop.f32.mrb[0].mxu0
      %1994 = vmatprep.mubr.bf16.mxu0 0
      %1995 = vmatmul.mubr.bf16.gmra.mrb[0].mxu0 %v1941
      %v1996 = vpop.f32.mrb[0].mxu0
      %v1997 = vadd.f32 %v1900, %v1996
      %v1998 = vpop.f32.mrb[0].mxu0
      %v1999 = vpop.f32.mrb[0].mxu0
      %v2000 = vadd.f32 %v1903, %v1999
      %v2001 = vpop.f32.mrb[0].mxu0
      %2002 = vmatprep.mubr.bf16.mxu0 0
      %2003 = vmatmul.mubr.bf16.gmra.mrb[0].mxu0 %v1944
      %v2004 = vpop.f32.mrb[0].mxu0
      %v2005 = vadd.f32 %v1908, %v2004
      %v2006 = vpop.f32.mrb[0].mxu0
      %v2007 = vpop.f32.mrb[0].mxu0
      %v2008 = vadd.f32 %v1911, %v2007
      %v2009 = vpop.f32.mrb[0].mxu0
      %2010 = vdwg.mxu0
      %s2011 = scalar_lea.vmem %s3, 64
      %v2012 = vld [vmem:[%s2011] sm:$0xf]
      %v2013 = vld [vmem:[%s2011 + $0x4] sm:$0xf]
      %v2014 = vld [vmem:[%s2011 + $0x8] sm:$0xf]
      %v2015 = vld [vmem:[%s2011 + $0xc] sm:$0xf]
      %v2016 = vld [vmem:[%s2011 + $0x10] sm:$0xf]
      %v2017 = vld [vmem:[%s2011 + $0x14] sm:$0xf]
      %v2018 = vld [vmem:[%s2011 + $0x18] sm:$0xf]
      %v2019 = vld [vmem:[%s2011 + $0x1c] sm:$0xf]
      %v2028 = vunpack.c.l.b16 %v2012
      %v2029 = vunpack.c.l.b16 %v2013
      %v2030 = vunpack.c.l.b16 %v2014
      %v2031 = vunpack.c.l.b16 %v2015
      %v2032 = vunpack.c.l.b16 %v2016
      %v2033 = vunpack.c.l.b16 %v2017
      %v2034 = vunpack.c.l.b16 %v2018
      %v2035 = vunpack.c.l.b16 %v2019
      %v2036 = vpack.c.b16 %v2029, %v2028
      %v2037 = vpack.c.b16 %v2031, %v2030
      %v2038 = vpack.c.b16 %v2033, %v2032
      %v2039 = vpack.c.b16 %v2035, %v2034
      %2042 = vrot.lane.b32.xlu0 %v1791, 127
      %v2043 = vpop.permute.xlu0 %2042
      %2044 = vrot.lane.b32.xlu0 %v1792, 127
      %v2045 = vpop.permute.xlu0 %2044
      %v2049 = vsel %vm1836, %v2036, 0
      %v2052 = vsel %vm1836, %v2037, 0
      %v2055 = vsel %vm1836, %v2038, 0
      %v2058 = vsel %vm1836, %v2039, 0
      %2060 = vmatprep.subr.bf16.mxu0 0
      %2061 = vmatpush1.bf16.msra.mxu0 %v2043
      %2062 = vmatprep.subr.bf16.mxu0 0
      %2063 = vmatpush1.bf16.msra.mxu0 %v2045
      %2064 = vmatprep.subr.bf16.mxu0 0
      %2065 = vmatpush1.bf16.msra.mxu0 0
      %2066 = vmatprep.subr.bf16.mxu0 0
      %2067 = vmatpush1.bf16.msra.mxu0 0
      %2068 = vmatprep.subr.bf16.mxu0 0
      %2069 = vmatpush1.bf16.msra.mxu0 0
      %2070 = vmatprep.subr.bf16.mxu0 0
      %2071 = vmatpush1.bf16.msra.mxu0 0
      %2072 = vmatprep.subr.bf16.mxu0 0
      %2073 = vmatpush1.bf16.msra.mxu0 0
      %2074 = vmatprep.subr.bf16.mxu0 0
      %2075 = vmatpush1.bf16.msra.mxu0 0
      %2076 = vmatprep.subr.bf16.mxu0 0
      %2077 = vmatpush1.bf16.msra.mxu0 0
      %2078 = vmatprep.subr.bf16.mxu0 0
      %2079 = vmatpush1.bf16.msra.mxu0 0
      %2080 = vmatprep.subr.bf16.mxu0 0
      %2081 = vmatpush1.bf16.msra.mxu0 0
      %2082 = vmatprep.subr.bf16.mxu0 0
      %2083 = vmatpush1.bf16.msra.mxu0 0
      %2084 = vmatprep.subr.bf16.mxu0 0
      %2085 = vmatpush1.bf16.msra.mxu0 0
      %2086 = vmatprep.subr.bf16.mxu0 0
      %2087 = vmatpush1.bf16.msra.mxu0 0
      %2088 = vmatprep.subr.bf16.mxu0 0
      %2089 = vmatpush1.bf16.msra.mxu0 0
      %2090 = vmatprep.subr.bf16.mxu0 0
      %2091 = vmatpush1.bf16.msra.mxu0 0
      %2092 = vmatprep.mubr.bf16.mxu0 0
      %2093 = vmatmul.mubr.bf16.gmra.mrb[0].mxu0 %v2049
      %v2094 = vpop.f32.mrb[0].mxu0
      %v2095 = vadd.f32 0.0, %v2094
      %v2096 = vpop.f32.mrb[0].mxu0
      %v2097 = vpop.f32.mrb[0].mxu0
      %v2098 = vadd.f32 0.0, %v2097
      %v2099 = vpop.f32.mrb[0].mxu0
      %2100 = vmatprep.mubr.bf16.mxu0 0
      %2101 = vmatmul.mubr.bf16.gmra.mrb[0].mxu0 %v2052
      %v2102 = vpop.f32.mrb[0].mxu0
      %v2103 = vadd.f32 0.0, %v2102
      %v2104 = vpop.f32.mrb[0].mxu0
      %v2105 = vpop.f32.mrb[0].mxu0
      %v2106 = vadd.f32 0.0, %v2105
      %v2107 = vpop.f32.mrb[0].mxu0
      %2108 = vmatprep.mubr.bf16.mxu0 0
      %2109 = vmatmul.mubr.bf16.gmra.mrb[0].mxu0 %v2055
      %v2110 = vpop.f32.mrb[0].mxu0
      %v2111 = vadd.f32 0.0, %v2110
      %v2112 = vpop.f32.mrb[0].mxu0
      %v2113 = vpop.f32.mrb[0].mxu0
      %v2114 = vadd.f32 0.0, %v2113
      %v2115 = vpop.f32.mrb[0].mxu0
      %2116 = vmatprep.mubr.bf16.mxu0 0
      %2117 = vmatmul.mubr.bf16.gmra.mrb[0].mxu0 %v2058
      %v2118 = vpop.f32.mrb[0].mxu0
      %v2119 = vadd.f32 0.0, %v2118
      %v2120 = vpop.f32.mrb[0].mxu0
      %v2121 = vpop.f32.mrb[0].mxu0
      %v2122 = vadd.f32 0.0, %v2121
      %v2123 = vpop.f32.mrb[0].mxu0
      %2124 = vdwg.mxu0
      %v2125 = vadd.f32 %v1981, %v2095
      %v2126 = vadd.f32 %v1984, %v2098
      %v2127 = vadd.f32 %v1989, %v2103
      %v2128 = vadd.f32 %v1992, %v2106
      %v2129 = vadd.f32 %v1997, %v2111
      %v2130 = vadd.f32 %v2000, %v2114
      %v2131 = vadd.f32 %v2005, %v2119
      %v2132 = vadd.f32 %v2008, %v2122
      %s2133 = scalar_lea.vmem %s3, 96
      %v2134 = vld [vmem:[%s2133] sm:$0xf]
      %v2135 = vld [vmem:[%s2133 + $0x4] sm:$0xf]
      %v2136 = vld [vmem:[%s2133 + $0x8] sm:$0xf]
      %v2137 = vld [vmem:[%s2133 + $0xc] sm:$0xf]
      %v2138 = vld [vmem:[%s2133 + $0x10] sm:$0xf]
      %v2139 = vld [vmem:[%s2133 + $0x14] sm:$0xf]
      %v2140 = vld [vmem:[%s2133 + $0x18] sm:$0xf]
      %v2141 = vld [vmem:[%s2133 + $0x1c] sm:$0xf]
      %v2150 = vunpack.c.l.b16 %v2134
      %v2151 = vunpack.c.l.b16 %v2135
      %v2152 = vunpack.c.l.b16 %v2136
      %v2153 = vunpack.c.l.b16 %v2137
      %v2154 = vunpack.c.l.b16 %v2138
      %v2155 = vunpack.c.l.b16 %v2139
      %v2156 = vunpack.c.l.b16 %v2140
      %v2157 = vunpack.c.l.b16 %v2141
      %v2158 = vpack.c.b16 %v2151, %v2150
      %v2159 = vpack.c.b16 %v2153, %v2152
      %v2160 = vpack.c.b16 %v2155, %v2154
      %v2161 = vpack.c.b16 %v2157, %v2156
      %2164 = vrot.lane.b32.xlu0 %v1793, 127
      %v2165 = vpop.permute.xlu0 %2164
      %2166 = vrot.lane.b32.xlu0 %v1794, 127
      %v2167 = vpop.permute.xlu0 %2166
      %v2171 = vsel %vm1836, %v2158, 0
      %v2174 = vsel %vm1836, %v2159, 0
      %v2177 = vsel %vm1836, %v2160, 0
      %v2180 = vsel %vm1836, %v2161, 0
      %2182 = vmatprep.subr.bf16.mxu0 0
      %2183 = vmatpush1.bf16.msra.mxu0 %v2165
      %2184 = vmatprep.subr.bf16.mxu0 0
      %2185 = vmatpush1.bf16.msra.mxu0 %v2167
      %2186 = vmatprep.subr.bf16.mxu0 0
      %2187 = vmatpush1.bf16.msra.mxu0 0
      %2188 = vmatprep.subr.bf16.mxu0 0
      %2189 = vmatpush1.bf16.msra.mxu0 0
      %2190 = vmatprep.subr.bf16.mxu0 0
      %2191 = vmatpush1.bf16.msra.mxu0 0
      %2192 = vmatprep.subr.bf16.mxu0 0
      %2193 = vmatpush1.bf16.msra.mxu0 0
      %2194 = vmatprep.subr.bf16.mxu0 0
      %2195 = vmatpush1.bf16.msra.mxu0 0
      %2196 = vmatprep.subr.bf16.mxu0 0
      %2197 = vmatpush1.bf16.msra.mxu0 0
      %2198 = vmatprep.subr.bf16.mxu0 0
      %2199 = vmatpush1.bf16.msra.mxu0 0
      %2200 = vmatprep.subr.bf16.mxu0 0
      %2201 = vmatpush1.bf16.msra.mxu0 0
      %2202 = vmatprep.subr.bf16.mxu0 0
      %2203 = vmatpush1.bf16.msra.mxu0 0
      %2204 = vmatprep.subr.bf16.mxu0 0
      %2205 = vmatpush1.bf16.msra.mxu0 0
      %2206 = vmatprep.subr.bf16.mxu0 0
      %2207 = vmatpush1.bf16.msra.mxu0 0
      %2208 = vmatprep.subr.bf16.mxu0 0
      %2209 = vmatpush1.bf16.msra.mxu0 0
      %2210 = vmatprep.subr.bf16.mxu0 0
      %2211 = vmatpush1.bf16.msra.mxu0 0
      %2212 = vmatprep.subr.bf16.mxu0 0
      %2213 = vmatpush1.bf16.msra.mxu0 0
      %2214 = vmatprep.mubr.bf16.mxu0 0
      %2215 = vmatmul.mubr.bf16.gmra.mrb[0].mxu0 %v2171
      %v2216 = vpop.f32.mrb[0].mxu0
      %v2217 = vadd.f32 0.0, %v2216
      %v2218 = vpop.f32.mrb[0].mxu0
      %v2219 = vpop.f32.mrb[0].mxu0
      %v2220 = vadd.f32 0.0, %v2219
      %v2221 = vpop.f32.mrb[0].mxu0
      %2222 = vmatprep.mubr.bf16.mxu0 0
      %2223 = vmatmul.mubr.bf16.gmra.mrb[0].mxu0 %v2174
      %v2224 = vpop.f32.mrb[0].mxu0
      %v2225 = vadd.f32 0.0, %v2224
      %v2226 = vpop.f32.mrb[0].mxu0
      %v2227 = vpop.f32.mrb[0].mxu0
      %v2228 = vadd.f32 0.0, %v2227
      %v2229 = vpop.f32.mrb[0].mxu0
      %2230 = vmatprep.mubr.bf16.mxu0 0
      %2231 = vmatmul.mubr.bf16.gmra.mrb[0].mxu0 %v2177
      %v2232 = vpop.f32.mrb[0].mxu0
      %v2233 = vadd.f32 0.0, %v2232
      %v2234 = vpop.f32.mrb[0].mxu0
      %v2235 = vpop.f32.mrb[0].mxu0
      %v2236 = vadd.f32 0.0, %v2235
      %v2237 = vpop.f32.mrb[0].mxu0
      %2238 = vmatprep.mubr.bf16.mxu0 0
      %2239 = vmatmul.mubr.bf16.gmra.mrb[0].mxu0 %v2180
      %v2240 = vpop.f32.mrb[0].mxu0
      %v2241 = vadd.f32 0.0, %v2240
      %v2242 = vpop.f32.mrb[0].mxu0
      %v2243 = vpop.f32.mrb[0].mxu0
      %v2244 = vadd.f32 0.0, %v2243
      %v2245 = vpop.f32.mrb[0].mxu0
      %2246 = vdwg.mxu0
      %v2247 = vadd.f32 %v2125, %v2217
      %v2248 = vadd.f32 %v2126, %v2220
      %v2249 = vadd.f32 %v2127, %v2225
      %v2250 = vadd.f32 %v2128, %v2228
      %v2251 = vadd.f32 %v2129, %v2233
      %v2252 = vadd.f32 %v2130, %v2236
      %v2253 = vadd.f32 %v2131, %v2241
      %v2254 = vadd.f32 %v2132, %v2244
      %s2255 = scalar_lea.vmem %s3, 128
      %v2256 = vld [vmem:[%s2255] sm:$0xf]
      %v2257 = vld [vmem:[%s2255 + $0x4] sm:$0xf]
      %v2258 = vld [vmem:[%s2255 + $0x8] sm:$0xf]
      %v2259 = vld [vmem:[%s2255 + $0xc] sm:$0xf]
      %v2260 = vld [vmem:[%s2255 + $0x10] sm:$0xf]
      %v2261 = vld [vmem:[%s2255 + $0x14] sm:$0xf]
      %v2262 = vld [vmem:[%s2255 + $0x18] sm:$0xf]
      %v2263 = vld [vmem:[%s2255 + $0x1c] sm:$0xf]
      %v2272 = vunpack.c.l.b16 %v2256
      %v2273 = vunpack.c.l.b16 %v2257
      %v2274 = vunpack.c.l.b16 %v2258
      %v2275 = vunpack.c.l.b16 %v2259
      %v2276 = vunpack.c.l.b16 %v2260
      %v2277 = vunpack.c.l.b16 %v2261
      %v2278 = vunpack.c.l.b16 %v2262
      %v2279 = vunpack.c.l.b16 %v2263
      %v2280 = vpack.c.b16 %v2273, %v2272
      %v2281 = vpack.c.b16 %v2275, %v2274
      %v2282 = vpack.c.b16 %v2277, %v2276
      %v2283 = vpack.c.b16 %v2279, %v2278
      %v2285 = vsel %vm1836, %v2280, 0
      %v2288 = vsel %vm1836, %v2281, 0
      %v2291 = vsel %vm1836, %v2282, 0
      %v2294 = vsel %vm1836, %v2283, 0
      %2296 = vmatprep.subr.bf16.mxu0 0
      %2297 = vmatpush1.bf16.msra.mxu0 %v1795
      %2298 = vmatprep.subr.bf16.mxu0 0
      %2299 = vmatpush1.bf16.msra.mxu0 %v1796
      %2300 = vmatprep.subr.bf16.mxu0 0
      %2301 = vmatpush1.bf16.msra.mxu0 0
      %2302 = vmatprep.subr.bf16.mxu0 0
      %2303 = vmatpush1.bf16.msra.mxu0 0
      %2304 = vmatprep.subr.bf16.mxu0 0
      %2305 = vmatpush1.bf16.msra.mxu0 0
      %2306 = vmatprep.subr.bf16.mxu0 0
      %2307 = vmatpush1.bf16.msra.mxu0 0
      %2308 = vmatprep.subr.bf16.mxu0 0
      %2309 = vmatpush1.bf16.msra.mxu0 0
      %2310 = vmatprep.subr.bf16.mxu0 0
      %2311 = vmatpush1.bf16.msra.mxu0 0
      %2312 = vmatprep.subr.bf16.mxu0 0
      %2313 = vmatpush1.bf16.msra.mxu0 0
      %2314 = vmatprep.subr.bf16.mxu0 0
      %2315 = vmatpush1.bf16.msra.mxu0 0
      %2316 = vmatprep.subr.bf16.mxu0 0
      %2317 = vmatpush1.bf16.msra.mxu0 0
      %2318 = vmatprep.subr.bf16.mxu0 0
      %2319 = vmatpush1.bf16.msra.mxu0 0
      %2320 = vmatprep.subr.bf16.mxu0 0
      %2321 = vmatpush1.bf16.msra.mxu0 0
      %2322 = vmatprep.subr.bf16.mxu0 0
      %2323 = vmatpush1.bf16.msra.mxu0 0
      %2324 = vmatprep.subr.bf16.mxu0 0
      %2325 = vmatpush1.bf16.msra.mxu0 0
      %2326 = vmatprep.subr.bf16.mxu0 0
      %2327 = vmatpush1.bf16.msra.mxu0 0
      %2328 = vmatprep.mubr.bf16.mxu0 0
      %2329 = vmatmul.mubr.bf16.gmra.mrb[0].mxu0 %v2285
      %v2330 = vpop.f32.mrb[0].mxu0
      %v2331 = vadd.f32 0.0, %v2330
      %v2332 = vpop.f32.mrb[0].mxu0
      %v2333 = vpop.f32.mrb[0].mxu0
      %v2334 = vadd.f32 0.0, %v2333
      %v2335 = vpop.f32.mrb[0].mxu0
      %2336 = vmatprep.mubr.bf16.mxu0 0
      %2337 = vmatmul.mubr.bf16.gmra.mrb[0].mxu0 %v2288
      %v2338 = vpop.f32.mrb[0].mxu0
      %v2339 = vadd.f32 0.0, %v2338
      %v2340 = vpop.f32.mrb[0].mxu0
      %v2341 = vpop.f32.mrb[0].mxu0
      %v2342 = vadd.f32 0.0, %v2341
      %v2343 = vpop.f32.mrb[0].mxu0
      %2344 = vmatprep.mubr.bf16.mxu0 0
      %2345 = vmatmul.mubr.bf16.gmra.mrb[0].mxu0 %v2291
      %v2346 = vpop.f32.mrb[0].mxu0
      %v2347 = vadd.f32 0.0, %v2346
      %v2348 = vpop.f32.mrb[0].mxu0
      %v2349 = vpop.f32.mrb[0].mxu0
      %v2350 = vadd.f32 0.0, %v2349
      %v2351 = vpop.f32.mrb[0].mxu0
      %2352 = vmatprep.mubr.bf16.mxu0 0
      %2353 = vmatmul.mubr.bf16.gmra.mrb[0].mxu0 %v2294
      %v2354 = vpop.f32.mrb[0].mxu0
      %v2355 = vadd.f32 0.0, %v2354
      %v2356 = vpop.f32.mrb[0].mxu0
      %v2357 = vpop.f32.mrb[0].mxu0
      %v2358 = vadd.f32 0.0, %v2357
      %v2359 = vpop.f32.mrb[0].mxu0
      %2360 = vdwg.mxu0
      %v2361 = vadd.f32 %v2247, %v2331
      %v2362 = vadd.f32 %v2248, %v2334
      %v2363 = vadd.f32 %v2249, %v2339
      %v2364 = vadd.f32 %v2250, %v2342
      %v2365 = vadd.f32 %v2251, %v2347
      %v2366 = vadd.f32 %v2252, %v2350
      %v2367 = vadd.f32 %v2253, %v2355
      %v2368 = vadd.f32 %v2254, %v2358
      %s2369 = scalar_lea.vmem %s3, 160
      %v2370 = vld [vmem:[%s2369] sm:$0xf]
      %v2371 = vld [vmem:[%s2369 + $0x4] sm:$0xf]
      %v2372 = vld [vmem:[%s2369 + $0x8] sm:$0xf]
      %v2373 = vld [vmem:[%s2369 + $0xc] sm:$0xf]
      %v2374 = vld [vmem:[%s2369 + $0x10] sm:$0xf]
      %v2375 = vld [vmem:[%s2369 + $0x14] sm:$0xf]
      %v2376 = vld [vmem:[%s2369 + $0x18] sm:$0xf]
      %v2377 = vld [vmem:[%s2369 + $0x1c] sm:$0xf]
      %v2386 = vunpack.c.l.b16 %v2370
      %v2387 = vunpack.c.l.b16 %v2371
      %v2388 = vunpack.c.l.b16 %v2372
      %v2389 = vunpack.c.l.b16 %v2373
      %v2390 = vunpack.c.l.b16 %v2374
      %v2391 = vunpack.c.l.b16 %v2375
      %v2392 = vunpack.c.l.b16 %v2376
      %v2393 = vunpack.c.l.b16 %v2377
      %v2394 = vpack.c.b16 %v2387, %v2386
      %v2395 = vpack.c.b16 %v2389, %v2388
      %v2396 = vpack.c.b16 %v2391, %v2390
      %v2397 = vpack.c.b16 %v2393, %v2392
      %v2399 = vsel %vm1836, %v2394, 0
      %v2402 = vsel %vm1836, %v2395, 0
      %v2405 = vsel %vm1836, %v2396, 0
      %v2408 = vsel %vm1836, %v2397, 0
      %2410 = vmatprep.subr.bf16.mxu0 0
      %2411 = vmatpush1.bf16.msra.mxu0 %v1797
      %2412 = vmatprep.subr.bf16.mxu0 0
      %2413 = vmatpush1.bf16.msra.mxu0 %v1798
      %2414 = vmatprep.subr.bf16.mxu0 0
      %2415 = vmatpush1.bf16.msra.mxu0 0
      %2416 = vmatprep.subr.bf16.mxu0 0
      %2417 = vmatpush1.bf16.msra.mxu0 0
      %2418 = vmatprep.subr.bf16.mxu0 0
      %2419 = vmatpush1.bf16.msra.mxu0 0
      %2420 = vmatprep.subr.bf16.mxu0 0
      %2421 = vmatpush1.bf16.msra.mxu0 0
      %2422 = vmatprep.subr.bf16.mxu0 0
      %2423 = vmatpush1.bf16.msra.mxu0 0
      %2424 = vmatprep.subr.bf16.mxu0 0
      %2425 = vmatpush1.bf16.msra.mxu0 0
      %2426 = vmatprep.subr.bf16.mxu0 0
      %2427 = vmatpush1.bf16.msra.mxu0 0
      %2428 = vmatprep.subr.bf16.mxu0 0
      %2429 = vmatpush1.bf16.msra.mxu0 0
      %2430 = vmatprep.subr.bf16.mxu0 0
      %2431 = vmatpush1.bf16.msra.mxu0 0
      %2432 = vmatprep.subr.bf16.mxu0 0
      %2433 = vmatpush1.bf16.msra.mxu0 0
      %2434 = vmatprep.subr.bf16.mxu0 0
      %2435 = vmatpush1.bf16.msra.mxu0 0
      %2436 = vmatprep.subr.bf16.mxu0 0
      %2437 = vmatpush1.bf16.msra.mxu0 0
      %2438 = vmatprep.subr.bf16.mxu0 0
      %2439 = vmatpush1.bf16.msra.mxu0 0
      %2440 = vmatprep.subr.bf16.mxu0 0
      %2441 = vmatpush1.bf16.msra.mxu0 0
      %2442 = vmatprep.mubr.bf16.mxu0 0
      %2443 = vmatmul.mubr.bf16.gmra.mrb[0].mxu0 %v2399
      %v2444 = vpop.f32.mrb[0].mxu0
      %v2445 = vadd.f32 0.0, %v2444
      %v2446 = vpop.f32.mrb[0].mxu0
      %v2447 = vpop.f32.mrb[0].mxu0
      %v2448 = vadd.f32 0.0, %v2447
      %v2449 = vpop.f32.mrb[0].mxu0
      %2450 = vmatprep.mubr.bf16.mxu0 0
      %2451 = vmatmul.mubr.bf16.gmra.mrb[0].mxu0 %v2402
      %v2452 = vpop.f32.mrb[0].mxu0
      %v2453 = vadd.f32 0.0, %v2452
      %v2454 = vpop.f32.mrb[0].mxu0
      %v2455 = vpop.f32.mrb[0].mxu0
      %v2456 = vadd.f32 0.0, %v2455
      %v2457 = vpop.f32.mrb[0].mxu0
      %2458 = vmatprep.mubr.bf16.mxu0 0
      %2459 = vmatmul.mubr.bf16.gmra.mrb[0].mxu0 %v2405
      %v2460 = vpop.f32.mrb[0].mxu0
      %v2461 = vadd.f32 0.0, %v2460
      %v2462 = vpop.f32.mrb[0].mxu0
      %v2463 = vpop.f32.mrb[0].mxu0
      %v2464 = vadd.f32 0.0, %v2463
      %v2465 = vpop.f32.mrb[0].mxu0
      %2466 = vmatprep.mubr.bf16.mxu0 0
      %2467 = vmatmul.mubr.bf16.gmra.mrb[0].mxu0 %v2408
      %v2468 = vpop.f32.mrb[0].mxu0
      %v2469 = vadd.f32 0.0, %v2468
      %v2470 = vpop.f32.mrb[0].mxu0
      %v2471 = vpop.f32.mrb[0].mxu0
      %v2472 = vadd.f32 0.0, %v2471
      %v2473 = vpop.f32.mrb[0].mxu0
      %2474 = vdwg.mxu0
      %v2475 = vadd.f32 %v2361, %v2445
      %v2476 = vadd.f32 %v2362, %v2448
      %v2477 = vadd.f32 %v2363, %v2453
      %v2478 = vadd.f32 %v2364, %v2456
      %v2479 = vadd.f32 %v2365, %v2461
      %v2480 = vadd.f32 %v2366, %v2464
      %v2481 = vadd.f32 %v2367, %v2469
      %v2482 = vadd.f32 %v2368, %v2472
      %s2483 = scalar_lea.vmem %s3, 192
      %v2484 = vld [vmem:[%s2483] sm:$0xf]
      %v2485 = vld [vmem:[%s2483 + $0x4] sm:$0xf]
      %v2486 = vld [vmem:[%s2483 + $0x8] sm:$0xf]
      %v2487 = vld [vmem:[%s2483 + $0xc] sm:$0xf]
      %v2488 = vld [vmem:[%s2483 + $0x10] sm:$0xf]
      %v2489 = vld [vmem:[%s2483 + $0x14] sm:$0xf]
      %v2490 = vld [vmem:[%s2483 + $0x18] sm:$0xf]
      %v2491 = vld [vmem:[%s2483 + $0x1c] sm:$0xf]
      %v2500 = vunpack.c.l.b16 %v2484
      %v2501 = vunpack.c.l.b16 %v2485
      %v2502 = vunpack.c.l.b16 %v2486
      %v2503 = vunpack.c.l.b16 %v2487
      %v2504 = vunpack.c.l.b16 %v2488
      %v2505 = vunpack.c.l.b16 %v2489
      %v2506 = vunpack.c.l.b16 %v2490
      %v2507 = vunpack.c.l.b16 %v2491
      %v2508 = vpack.c.b16 %v2501, %v2500
      %v2509 = vpack.c.b16 %v2503, %v2502
      %v2510 = vpack.c.b16 %v2505, %v2504
      %v2511 = vpack.c.b16 %v2507, %v2506
      %2514 = vrot.lane.b32.xlu0 %v1795, 127
      %v2515 = vpop.permute.xlu0 %2514
      %2516 = vrot.lane.b32.xlu0 %v1796, 127
      %v2517 = vpop.permute.xlu0 %2516
      %v2521 = vsel %vm1836, %v2508, 0
      %v2524 = vsel %vm1836, %v2509, 0
      %v2527 = vsel %vm1836, %v2510, 0
      %v2530 = vsel %vm1836, %v2511, 0
      %2532 = vmatprep.subr.bf16.mxu0 0
      %2533 = vmatpush1.bf16.msra.mxu0 %v2515
      %2534 = vmatprep.subr.bf16.mxu0 0
      %2535 = vmatpush1.bf16.msra.mxu0 %v2517
      %2536 = vmatprep.subr.bf16.mxu0 0
      %2537 = vmatpush1.bf16.msra.mxu0 0
      %2538 = vmatprep.subr.bf16.mxu0 0
      %2539 = vmatpush1.bf16.msra.mxu0 0
      %2540 = vmatprep.subr.bf16.mxu0 0
      %2541 = vmatpush1.bf16.msra.mxu0 0
      %2542 = vmatprep.subr.bf16.mxu0 0
      %2543 = vmatpush1.bf16.msra.mxu0 0
      %2544 = vmatprep.subr.bf16.mxu0 0
      %2545 = vmatpush1.bf16.msra.mxu0 0
      %2546 = vmatprep.subr.bf16.mxu0 0
      %2547 = vmatpush1.bf16.msra.mxu0 0
      %2548 = vmatprep.subr.bf16.mxu0 0
      %2549 = vmatpush1.bf16.msra.mxu0 0
      %2550 = vmatprep.subr.bf16.mxu0 0
      %2551 = vmatpush1.bf16.msra.mxu0 0
      %2552 = vmatprep.subr.bf16.mxu0 0
      %2553 = vmatpush1.bf16.msra.mxu0 0
      %2554 = vmatprep.subr.bf16.mxu0 0
      %2555 = vmatpush1.bf16.msra.mxu0 0
      %2556 = vmatprep.subr.bf16.mxu0 0
      %2557 = vmatpush1.bf16.msra.mxu0 0
      %2558 = vmatprep.subr.bf16.mxu0 0
      %2559 = vmatpush1.bf16.msra.mxu0 0
      %2560 = vmatprep.subr.bf16.mxu0 0
      %2561 = vmatpush1.bf16.msra.mxu0 0
      %2562 = vmatprep.subr.bf16.mxu0 0
      %2563 = vmatpush1.bf16.msra.mxu0 0
      %2564 = vmatprep.mubr.bf16.mxu0 0
      %2565 = vmatmul.mubr.bf16.gmra.mrb[0].mxu0 %v2521
      %v2566 = vpop.f32.mrb[0].mxu0
      %v2567 = vadd.f32 0.0, %v2566
      %v2568 = vpop.f32.mrb[0].mxu0
      %v2569 = vpop.f32.mrb[0].mxu0
      %v2570 = vadd.f32 0.0, %v2569
      %v2571 = vpop.f32.mrb[0].mxu0
      %2572 = vmatprep.mubr.bf16.mxu0 0
      %2573 = vmatmul.mubr.bf16.gmra.mrb[0].mxu0 %v2524
      %v2574 = vpop.f32.mrb[0].mxu0
      %v2575 = vadd.f32 0.0, %v2574
      %v2576 = vpop.f32.mrb[0].mxu0
      %v2577 = vpop.f32.mrb[0].mxu0
      %v2578 = vadd.f32 0.0, %v2577
      %v2579 = vpop.f32.mrb[0].mxu0
      %2580 = vmatprep.mubr.bf16.mxu0 0
      %2581 = vmatmul.mubr.bf16.gmra.mrb[0].mxu0 %v2527
      %v2582 = vpop.f32.mrb[0].mxu0
      %v2583 = vadd.f32 0.0, %v2582
      %v2584 = vpop.f32.mrb[0].mxu0
      %v2585 = vpop.f32.mrb[0].mxu0
      %v2586 = vadd.f32 0.0, %v2585
      %v2587 = vpop.f32.mrb[0].mxu0
      %2588 = vmatprep.mubr.bf16.mxu0 0
      %2589 = vmatmul.mubr.bf16.gmra.mrb[0].mxu0 %v2530
      %v2590 = vpop.f32.mrb[0].mxu0
      %v2591 = vadd.f32 0.0, %v2590
      %v2592 = vpop.f32.mrb[0].mxu0
      %v2593 = vpop.f32.mrb[0].mxu0
      %v2594 = vadd.f32 0.0, %v2593
      %v2595 = vpop.f32.mrb[0].mxu0
      %2596 = vdwg.mxu0
      %v2597 = vadd.f32 %v2475, %v2567
      %v2598 = vadd.f32 %v2476, %v2570
      %v2599 = vadd.f32 %v2477, %v2575
      %v2600 = vadd.f32 %v2478, %v2578
      %v2601 = vadd.f32 %v2479, %v2583
      %v2602 = vadd.f32 %v2480, %v2586
      %v2603 = vadd.f32 %v2481, %v2591
      %v2604 = vadd.f32 %v2482, %v2594
      %s2605 = scalar_lea.vmem %s3, 224
      %v2606 = vld [vmem:[%s2605] sm:$0xf]
      %v2607 = vld [vmem:[%s2605 + $0x4] sm:$0xf]
      %v2608 = vld [vmem:[%s2605 + $0x8] sm:$0xf]
      %v2609 = vld [vmem:[%s2605 + $0xc] sm:$0xf]
      %v2610 = vld [vmem:[%s2605 + $0x10] sm:$0xf]
      %v2611 = vld [vmem:[%s2605 + $0x14] sm:$0xf]
      %v2612 = vld [vmem:[%s2605 + $0x18] sm:$0xf]
      %v2613 = vld [vmem:[%s2605 + $0x1c] sm:$0xf]
      %v2622 = vunpack.c.l.b16 %v2606
      %v2623 = vunpack.c.l.b16 %v2607
      %v2624 = vunpack.c.l.b16 %v2608
      %v2625 = vunpack.c.l.b16 %v2609
      %v2626 = vunpack.c.l.b16 %v2610
      %v2627 = vunpack.c.l.b16 %v2611
      %v2628 = vunpack.c.l.b16 %v2612
      %v2629 = vunpack.c.l.b16 %v2613
      %v2630 = vpack.c.b16 %v2623, %v2622
      %v2631 = vpack.c.b16 %v2625, %v2624
      %v2632 = vpack.c.b16 %v2627, %v2626
      %v2633 = vpack.c.b16 %v2629, %v2628
      %2636 = vrot.lane.b32.xlu0 %v1797, 127
      %v2637 = vpop.permute.xlu0 %2636
      %2638 = vrot.lane.b32.xlu0 %v1798, 127
      %v2639 = vpop.permute.xlu0 %2638
      %v2643 = vsel %vm1836, %v2630, 0
      %v2646 = vsel %vm1836, %v2631, 0
      %v2649 = vsel %vm1836, %v2632, 0
      %v2652 = vsel %vm1836, %v2633, 0
      %2654 = vmatprep.subr.bf16.mxu0 0
      %2655 = vmatpush1.bf16.msra.mxu0 %v2637
      %2656 = vmatprep.subr.bf16.mxu0 0
      %2657 = vmatpush1.bf16.msra.mxu0 %v2639
      %2658 = vmatprep.subr.bf16.mxu0 0
      %2659 = vmatpush1.bf16.msra.mxu0 0
      %2660 = vmatprep.subr.bf16.mxu0 0
      %2661 = vmatpush1.bf16.msra.mxu0 0
      %2662 = vmatprep.subr.bf16.mxu0 0
      %2663 = vmatpush1.bf16.msra.mxu0 0
      %2664 = vmatprep.subr.bf16.mxu0 0
      %2665 = vmatpush1.bf16.msra.mxu0 0
      %2666 = vmatprep.subr.bf16.mxu0 0
      %2667 = vmatpush1.bf16.msra.mxu0 0
      %2668 = vmatprep.subr.bf16.mxu0 0
      %2669 = vmatpush1.bf16.msra.mxu0 0
      %2670 = vmatprep.subr.bf16.mxu0 0
      %2671 = vmatpush1.bf16.msra.mxu0 0
      %2672 = vmatprep.subr.bf16.mxu0 0
      %2673 = vmatpush1.bf16.msra.mxu0 0
      %2674 = vmatprep.subr.bf16.mxu0 0
      %2675 = vmatpush1.bf16.msra.mxu0 0
      %2676 = vmatprep.subr.bf16.mxu0 0
      %2677 = vmatpush1.bf16.msra.mxu0 0
      %2678 = vmatprep.subr.bf16.mxu0 0
      %2679 = vmatpush1.bf16.msra.mxu0 0
      %2680 = vmatprep.subr.bf16.mxu0 0
      %2681 = vmatpush1.bf16.msra.mxu0 0
      %2682 = vmatprep.subr.bf16.mxu0 0
      %2683 = vmatpush1.bf16.msra.mxu0 0
      %2684 = vmatprep.subr.bf16.mxu0 0
      %2685 = vmatpush1.bf16.msra.mxu0 0
      %2686 = vmatprep.mubr.bf16.mxu0 0
      %2687 = vmatmul.mubr.bf16.gmra.mrb[0].mxu0 %v2643
      %v2688 = vpop.f32.mrb[0].mxu0
      %v2689 = vadd.f32 0.0, %v2688
      %v2690 = vpop.f32.mrb[0].mxu0
      %v2691 = vpop.f32.mrb[0].mxu0
      %v2692 = vadd.f32 0.0, %v2691
      %v2693 = vpop.f32.mrb[0].mxu0
      %2694 = vmatprep.mubr.bf16.mxu0 0
      %2695 = vmatmul.mubr.bf16.gmra.mrb[0].mxu0 %v2646
      %v2696 = vpop.f32.mrb[0].mxu0
      %v2697 = vadd.f32 0.0, %v2696
      %v2698 = vpop.f32.mrb[0].mxu0
      %v2699 = vpop.f32.mrb[0].mxu0
      %v2700 = vadd.f32 0.0, %v2699
      %v2701 = vpop.f32.mrb[0].mxu0
      %2702 = vmatprep.mubr.bf16.mxu0 0
      %2703 = vmatmul.mubr.bf16.gmra.mrb[0].mxu0 %v2649
      %v2704 = vpop.f32.mrb[0].mxu0
      %v2705 = vadd.f32 0.0, %v2704
      %v2706 = vpop.f32.mrb[0].mxu0
      %v2707 = vpop.f32.mrb[0].mxu0
      %v2708 = vadd.f32 0.0, %v2707
      %v2709 = vpop.f32.mrb[0].mxu0
      %2710 = vmatprep.mubr.bf16.mxu0 0
      %2711 = vmatmul.mubr.bf16.gmra.mrb[0].mxu0 %v2652
      %v2712 = vpop.f32.mrb[0].mxu0
      %v2713 = vadd.f32 0.0, %v2712
      %v2714 = vpop.f32.mrb[0].mxu0
      %v2715 = vpop.f32.mrb[0].mxu0
      %v2716 = vadd.f32 0.0, %v2715
      %v2717 = vpop.f32.mrb[0].mxu0
      %2718 = vdwg.mxu0
      %v2719 = vadd.f32 %v2597, %v2689
      %v2720 = vadd.f32 %v2598, %v2692
      %v2721 = vadd.f32 %v2599, %v2697
      %v2722 = vadd.f32 %v2600, %v2700
      %v2723 = vadd.f32 %v2601, %v2705
      %v2724 = vadd.f32 %v2602, %v2708
      %v2725 = vadd.f32 %v2603, %v2713
      %v2726 = vadd.f32 %v2604, %v2716
      %s2727 = scalar_lea.vmem %s3, 256
      %v2728 = vld [vmem:[%s2727] sm:$0xf]
      %v2729 = vld [vmem:[%s2727 + $0x4] sm:$0xf]
      %v2730 = vld [vmem:[%s2727 + $0x8] sm:$0xf]
      %v2731 = vld [vmem:[%s2727 + $0xc] sm:$0xf]
      %v2732 = vld [vmem:[%s2727 + $0x10] sm:$0xf]
      %v2733 = vld [vmem:[%s2727 + $0x14] sm:$0xf]
      %v2734 = vld [vmem:[%s2727 + $0x18] sm:$0xf]
      %v2735 = vld [vmem:[%s2727 + $0x1c] sm:$0xf]
      %v2744 = vunpack.c.l.b16 %v2728
      %v2745 = vunpack.c.l.b16 %v2729
      %v2746 = vunpack.c.l.b16 %v2730
      %v2747 = vunpack.c.l.b16 %v2731
      %v2748 = vunpack.c.l.b16 %v2732
      %v2749 = vunpack.c.l.b16 %v2733
      %v2750 = vunpack.c.l.b16 %v2734
      %v2751 = vunpack.c.l.b16 %v2735
      %v2752 = vpack.c.b16 %v2745, %v2744
      %v2753 = vpack.c.b16 %v2747, %v2746
      %v2754 = vpack.c.b16 %v2749, %v2748
      %v2755 = vpack.c.b16 %v2751, %v2750
      %2756 = vrot.lane.b32.xlu0 %v1791, 116
      %v2757 = vpop.permute.xlu0 %2756
      %2758 = vrot.lane.b32.xlu0 %v1792, 116
      %v2759 = vpop.permute.xlu0 %2758
      %v2763 = vsel %vm1836, %v2752, 0
      %v2766 = vsel %vm1836, %v2753, 0
      %v2769 = vsel %vm1836, %v2754, 0
      %v2772 = vsel %vm1836, %v2755, 0
      %2774 = vmatprep.subr.bf16.mxu0 0
      %2775 = vmatpush1.bf16.msra.mxu0 %v2757
      %2776 = vmatprep.subr.bf16.mxu0 0
      %2777 = vmatpush1.bf16.msra.mxu0 %v2759
      %2778 = vmatprep.subr.bf16.mxu0 0
      %2779 = vmatpush1.bf16.msra.mxu0 0
      %2780 = vmatprep.subr.bf16.mxu0 0
      %2781 = vmatpush1.bf16.msra.mxu0 0
      %2782 = vmatprep.subr.bf16.mxu0 0
      %2783 = vmatpush1.bf16.msra.mxu0 0
      %2784 = vmatprep.subr.bf16.mxu0 0
      %2785 = vmatpush1.bf16.msra.mxu0 0
      %2786 = vmatprep.subr.bf16.mxu0 0
      %2787 = vmatpush1.bf16.msra.mxu0 0
      %2788 = vmatprep.subr.bf16.mxu0 0
      %2789 = vmatpush1.bf16.msra.mxu0 0
      %2790 = vmatprep.subr.bf16.mxu0 0
      %2791 = vmatpush1.bf16.msra.mxu0 0
      %2792 = vmatprep.subr.bf16.mxu0 0
      %2793 = vmatpush1.bf16.msra.mxu0 0
      %2794 = vmatprep.subr.bf16.mxu0 0
      %2795 = vmatpush1.bf16.msra.mxu0 0
      %2796 = vmatprep.subr.bf16.mxu0 0
      %2797 = vmatpush1.bf16.msra.mxu0 0
      %2798 = vmatprep.subr.bf16.mxu0 0
      %2799 = vmatpush1.bf16.msra.mxu0 0
      %2800 = vmatprep.subr.bf16.mxu0 0
      %2801 = vmatpush1.bf16.msra.mxu0 0
      %2802 = vmatprep.subr.bf16.mxu0 0
      %2803 = vmatpush1.bf16.msra.mxu0 0
      %2804 = vmatprep.subr.bf16.mxu0 0
      %2805 = vmatpush1.bf16.msra.mxu0 0
      %2806 = vmatprep.mubr.bf16.mxu0 0
      %2807 = vmatmul.mubr.bf16.gmra.mrb[0].mxu0 %v2763
      %v2808 = vpop.f32.mrb[0].mxu0
      %v2809 = vadd.f32 0.0, %v2808
      %v2810 = vpop.f32.mrb[0].mxu0
      %v2811 = vpop.f32.mrb[0].mxu0
      %v2812 = vadd.f32 0.0, %v2811
      %v2813 = vpop.f32.mrb[0].mxu0
      %2814 = vmatprep.mubr.bf16.mxu0 0
      %2815 = vmatmul.mubr.bf16.gmra.mrb[0].mxu0 %v2766
      %v2816 = vpop.f32.mrb[0].mxu0
      %v2817 = vadd.f32 0.0, %v2816
      %v2818 = vpop.f32.mrb[0].mxu0
      %v2819 = vpop.f32.mrb[0].mxu0
      %v2820 = vadd.f32 0.0, %v2819
      %v2821 = vpop.f32.mrb[0].mxu0
      %2822 = vmatprep.mubr.bf16.mxu0 0
      %2823 = vmatmul.mubr.bf16.gmra.mrb[0].mxu0 %v2769
      %v2824 = vpop.f32.mrb[0].mxu0
      %v2825 = vadd.f32 0.0, %v2824
      %v2826 = vpop.f32.mrb[0].mxu0
      %v2827 = vpop.f32.mrb[0].mxu0
      %v2828 = vadd.f32 0.0, %v2827
      %v2829 = vpop.f32.mrb[0].mxu0
      %2830 = vmatprep.mubr.bf16.mxu0 0
      %2831 = vmatmul.mubr.bf16.gmra.mrb[0].mxu0 %v2772
      %v2832 = vpop.f32.mrb[0].mxu0
      %v2833 = vadd.f32 0.0, %v2832
      %v2834 = vpop.f32.mrb[0].mxu0
      %v2835 = vpop.f32.mrb[0].mxu0
      %v2836 = vadd.f32 0.0, %v2835
      %v2837 = vpop.f32.mrb[0].mxu0
      %2838 = vdwg.mxu0
      %v2839 = vadd.f32 %v2719, %v2809
      %v2840 = vadd.f32 %v2720, %v2812
      %v2841 = vadd.f32 %v2721, %v2817
      %v2842 = vadd.f32 %v2722, %v2820
      %v2843 = vadd.f32 %v2723, %v2825
      %v2844 = vadd.f32 %v2724, %v2828
      %v2845 = vadd.f32 %v2725, %v2833
      %v2846 = vadd.f32 %v2726, %v2836
      %s2847 = scalar_lea.vmem %s3, 288
      %v2848 = vld [vmem:[%s2847] sm:$0xf]
      %v2849 = vld [vmem:[%s2847 + $0x4] sm:$0xf]
      %v2850 = vld [vmem:[%s2847 + $0x8] sm:$0xf]
      %v2851 = vld [vmem:[%s2847 + $0xc] sm:$0xf]
      %v2852 = vld [vmem:[%s2847 + $0x10] sm:$0xf]
      %v2853 = vld [vmem:[%s2847 + $0x14] sm:$0xf]
      %v2854 = vld [vmem:[%s2847 + $0x18] sm:$0xf]
      %v2855 = vld [vmem:[%s2847 + $0x1c] sm:$0xf]
      %v2864 = vunpack.c.l.b16 %v2848
      %v2865 = vunpack.c.l.b16 %v2849
      %v2866 = vunpack.c.l.b16 %v2850
      %v2867 = vunpack.c.l.b16 %v2851
      %v2868 = vunpack.c.l.b16 %v2852
      %v2869 = vunpack.c.l.b16 %v2853
      %v2870 = vunpack.c.l.b16 %v2854
      %v2871 = vunpack.c.l.b16 %v2855
      %v2872 = vpack.c.b16 %v2865, %v2864
      %v2873 = vpack.c.b16 %v2867, %v2866
      %v2874 = vpack.c.b16 %v2869, %v2868
      %v2875 = vpack.c.b16 %v2871, %v2870
      %2876 = vrot.lane.b32.xlu0 %v1793, 116
      %v2877 = vpop.permute.xlu0 %2876
      %2878 = vrot.lane.b32.xlu0 %v1794, 116
      %v2879 = vpop.permute.xlu0 %2878
      %v2883 = vsel %vm1836, %v2872, 0
      %v2886 = vsel %vm1836, %v2873, 0
      %v2889 = vsel %vm1836, %v2874, 0
      %v2892 = vsel %vm1836, %v2875, 0
      %2894 = vmatprep.subr.bf16.mxu0 0
      %2895 = vmatpush1.bf16.msra.mxu0 %v2877
      %2896 = vmatprep.subr.bf16.mxu0 0
      %2897 = vmatpush1.bf16.msra.mxu0 %v2879
      %2898 = vmatprep.subr.bf16.mxu0 0
      %2899 = vmatpush1.bf16.msra.mxu0 0
      %2900 = vmatprep.subr.bf16.mxu0 0
      %2901 = vmatpush1.bf16.msra.mxu0 0
      %2902 = vmatprep.subr.bf16.mxu0 0
      %2903 = vmatpush1.bf16.msra.mxu0 0
      %2904 = vmatprep.subr.bf16.mxu0 0
      %2905 = vmatpush1.bf16.msra.mxu0 0
      %2906 = vmatprep.subr.bf16.mxu0 0
      %2907 = vmatpush1.bf16.msra.mxu0 0
      %2908 = vmatprep.subr.bf16.mxu0 0
      %2909 = vmatpush1.bf16.msra.mxu0 0
      %2910 = vmatprep.subr.bf16.mxu0 0
      %2911 = vmatpush1.bf16.msra.mxu0 0
      %2912 = vmatprep.subr.bf16.mxu0 0
      %2913 = vmatpush1.bf16.msra.mxu0 0
      %2914 = vmatprep.subr.bf16.mxu0 0
      %2915 = vmatpush1.bf16.msra.mxu0 0
      %2916 = vmatprep.subr.bf16.mxu0 0
      %2917 = vmatpush1.bf16.msra.mxu0 0
      %2918 = vmatprep.subr.bf16.mxu0 0
      %2919 = vmatpush1.bf16.msra.mxu0 0
      %2920 = vmatprep.subr.bf16.mxu0 0
      %2921 = vmatpush1.bf16.msra.mxu0 0
      %2922 = vmatprep.subr.bf16.mxu0 0
      %2923 = vmatpush1.bf16.msra.mxu0 0
      %2924 = vmatprep.subr.bf16.mxu0 0
      %2925 = vmatpush1.bf16.msra.mxu0 0
      %2926 = vmatprep.mubr.bf16.mxu0 0
      %2927 = vmatmul.mubr.bf16.gmra.mrb[0].mxu0 %v2883
      %v2928 = vpop.f32.mrb[0].mxu0
      %v2929 = vadd.f32 0.0, %v2928
      %v2930 = vpop.f32.mrb[0].mxu0
      %v2931 = vpop.f32.mrb[0].mxu0
      %v2932 = vadd.f32 0.0, %v2931
      %v2933 = vpop.f32.mrb[0].mxu0
      %2934 = vmatprep.mubr.bf16.mxu0 0
      %2935 = vmatmul.mubr.bf16.gmra.mrb[0].mxu0 %v2886
      %v2936 = vpop.f32.mrb[0].mxu0
      %v2937 = vadd.f32 0.0, %v2936
      %v2938 = vpop.f32.mrb[0].mxu0
      %v2939 = vpop.f32.mrb[0].mxu0
      %v2940 = vadd.f32 0.0, %v2939
      %v2941 = vpop.f32.mrb[0].mxu0
      %2942 = vmatprep.mubr.bf16.mxu0 0
      %2943 = vmatmul.mubr.bf16.gmra.mrb[0].mxu0 %v2889
      %v2944 = vpop.f32.mrb[0].mxu0
      %v2945 = vadd.f32 0.0, %v2944
      %v2946 = vpop.f32.mrb[0].mxu0
      %v2947 = vpop.f32.mrb[0].mxu0
      %v2948 = vadd.f32 0.0, %v2947
      %v2949 = vpop.f32.mrb[0].mxu0
      %2950 = vmatprep.mubr.bf16.mxu0 0
      %2951 = vmatmul.mubr.bf16.gmra.mrb[0].mxu0 %v2892
      %v2952 = vpop.f32.mrb[0].mxu0
      %v2953 = vadd.f32 0.0, %v2952
      %v2954 = vpop.f32.mrb[0].mxu0
      %v2955 = vpop.f32.mrb[0].mxu0
      %v2956 = vadd.f32 0.0, %v2955
      %v2957 = vpop.f32.mrb[0].mxu0
      %2958 = vdwg.mxu0
      %v2959 = vadd.f32 %v2839, %v2929
      %v2960 = vadd.f32 %v2840, %v2932
      %v2961 = vadd.f32 %v2841, %v2937
      %v2962 = vadd.f32 %v2842, %v2940
      %v2963 = vadd.f32 %v2843, %v2945
      %v2964 = vadd.f32 %v2844, %v2948
      %v2965 = vadd.f32 %v2845, %v2953
      %v2966 = vadd.f32 %v2846, %v2956
      %s2967 = scalar_lea.vmem %s3, 320
      %v2968 = vld [vmem:[%s2967] sm:$0xf]
      %v2969 = vld [vmem:[%s2967 + $0x4] sm:$0xf]
      %v2970 = vld [vmem:[%s2967 + $0x8] sm:$0xf]
      %v2971 = vld [vmem:[%s2967 + $0xc] sm:$0xf]
      %v2972 = vld [vmem:[%s2967 + $0x10] sm:$0xf]
      %v2973 = vld [vmem:[%s2967 + $0x14] sm:$0xf]
      %v2974 = vld [vmem:[%s2967 + $0x18] sm:$0xf]
      %v2975 = vld [vmem:[%s2967 + $0x1c] sm:$0xf]
      %v2984 = vunpack.c.l.b16 %v2968
      %v2985 = vunpack.c.l.b16 %v2969
      %v2986 = vunpack.c.l.b16 %v2970
      %v2987 = vunpack.c.l.b16 %v2971
      %v2988 = vunpack.c.l.b16 %v2972
      %v2989 = vunpack.c.l.b16 %v2973
      %v2990 = vunpack.c.l.b16 %v2974
      %v2991 = vunpack.c.l.b16 %v2975
      %v2992 = vpack.c.b16 %v2985, %v2984
      %v2993 = vpack.c.b16 %v2987, %v2986
      %v2994 = vpack.c.b16 %v2989, %v2988
      %v2995 = vpack.c.b16 %v2991, %v2990
      %2996 = vrot.lane.b32.xlu0 %v1791, 115
      %v2997 = vpop.permute.xlu0 %2996
      %2998 = vrot.lane.b32.xlu0 %v1792, 115
      %v2999 = vpop.permute.xlu0 %2998
      %v3003 = vsel %vm1836, %v2992, 0
      %v3006 = vsel %vm1836, %v2993, 0
      %v3009 = vsel %vm1836, %v2994, 0
      %v3012 = vsel %vm1836, %v2995, 0
      %3014 = vmatprep.subr.bf16.mxu0 0
      %3015 = vmatpush1.bf16.msra.mxu0 %v2997
      %3016 = vmatprep.subr.bf16.mxu0 0
      %3017 = vmatpush1.bf16.msra.mxu0 %v2999
      %3018 = vmatprep.subr.bf16.mxu0 0
      %3019 = vmatpush1.bf16.msra.mxu0 0
      %3020 = vmatprep.subr.bf16.mxu0 0
      %3021 = vmatpush1.bf16.msra.mxu0 0
      %3022 = vmatprep.subr.bf16.mxu0 0
      %3023 = vmatpush1.bf16.msra.mxu0 0
      %3024 = vmatprep.subr.bf16.mxu0 0
      %3025 = vmatpush1.bf16.msra.mxu0 0
      %3026 = vmatprep.subr.bf16.mxu0 0
      %3027 = vmatpush1.bf16.msra.mxu0 0
      %3028 = vmatprep.subr.bf16.mxu0 0
      %3029 = vmatpush1.bf16.msra.mxu0 0
      %3030 = vmatprep.subr.bf16.mxu0 0
      %3031 = vmatpush1.bf16.msra.mxu0 0
      %3032 = vmatprep.subr.bf16.mxu0 0
      %3033 = vmatpush1.bf16.msra.mxu0 0
      %3034 = vmatprep.subr.bf16.mxu0 0
      %3035 = vmatpush1.bf16.msra.mxu0 0
      %3036 = vmatprep.subr.bf16.mxu0 0
      %3037 = vmatpush1.bf16.msra.mxu0 0
      %3038 = vmatprep.subr.bf16.mxu0 0
      %3039 = vmatpush1.bf16.msra.mxu0 0
      %3040 = vmatprep.subr.bf16.mxu0 0
      %3041 = vmatpush1.bf16.msra.mxu0 0
      %3042 = vmatprep.subr.bf16.mxu0 0
      %3043 = vmatpush1.bf16.msra.mxu0 0
      %3044 = vmatprep.subr.bf16.mxu0 0
      %3045 = vmatpush1.bf16.msra.mxu0 0
      %3046 = vmatprep.mubr.bf16.mxu0 0
      %3047 = vmatmul.mubr.bf16.gmra.mrb[0].mxu0 %v3003
      %v3048 = vpop.f32.mrb[0].mxu0
      %v3049 = vadd.f32 0.0, %v3048
      %v3050 = vpop.f32.mrb[0].mxu0
      %v3051 = vpop.f32.mrb[0].mxu0
      %v3052 = vadd.f32 0.0, %v3051
      %v3053 = vpop.f32.mrb[0].mxu0
      %3054 = vmatprep.mubr.bf16.mxu0 0
      %3055 = vmatmul.mubr.bf16.gmra.mrb[0].mxu0 %v3006
      %v3056 = vpop.f32.mrb[0].mxu0
      %v3057 = vadd.f32 0.0, %v3056
      %v3058 = vpop.f32.mrb[0].mxu0
      %v3059 = vpop.f32.mrb[0].mxu0
      %v3060 = vadd.f32 0.0, %v3059
      %v3061 = vpop.f32.mrb[0].mxu0
      %3062 = vmatprep.mubr.bf16.mxu0 0
      %3063 = vmatmul.mubr.bf16.gmra.mrb[0].mxu0 %v3009
      %v3064 = vpop.f32.mrb[0].mxu0
      %v3065 = vadd.f32 0.0, %v3064
      %v3066 = vpop.f32.mrb[0].mxu0
      %v3067 = vpop.f32.mrb[0].mxu0
      %v3068 = vadd.f32 0.0, %v3067
      %v3069 = vpop.f32.mrb[0].mxu0
      %3070 = vmatprep.mubr.bf16.mxu0 0
      %3071 = vmatmul.mubr.bf16.gmra.mrb[0].mxu0 %v3012
      %v3072 = vpop.f32.mrb[0].mxu0
      %v3073 = vadd.f32 0.0, %v3072
      %v3074 = vpop.f32.mrb[0].mxu0
      %v3075 = vpop.f32.mrb[0].mxu0
      %v3076 = vadd.f32 0.0, %v3075
      %v3077 = vpop.f32.mrb[0].mxu0
      %3078 = vdwg.mxu0
      %v3079 = vadd.f32 %v2959, %v3049
      %v3080 = vadd.f32 %v2960, %v3052
      %v3081 = vadd.f32 %v2961, %v3057
      %v3082 = vadd.f32 %v2962, %v3060
      %v3083 = vadd.f32 %v2963, %v3065
      %v3084 = vadd.f32 %v2964, %v3068
      %v3085 = vadd.f32 %v2965, %v3073
      %v3086 = vadd.f32 %v2966, %v3076
      %s3087 = scalar_lea.vmem %s3, 352
      %v3088 = vld [vmem:[%s3087] sm:$0xf]
      %v3089 = vld [vmem:[%s3087 + $0x4] sm:$0xf]
      %v3090 = vld [vmem:[%s3087 + $0x8] sm:$0xf]
      %v3091 = vld [vmem:[%s3087 + $0xc] sm:$0xf]
      %v3092 = vld [vmem:[%s3087 + $0x10] sm:$0xf]
      %v3093 = vld [vmem:[%s3087 + $0x14] sm:$0xf]
      %v3094 = vld [vmem:[%s3087 + $0x18] sm:$0xf]
      %v3095 = vld [vmem:[%s3087 + $0x1c] sm:$0xf]
      %v3104 = vunpack.c.l.b16 %v3088
      %v3105 = vunpack.c.l.b16 %v3089
      %v3106 = vunpack.c.l.b16 %v3090
      %v3107 = vunpack.c.l.b16 %v3091
      %v3108 = vunpack.c.l.b16 %v3092
      %v3109 = vunpack.c.l.b16 %v3093
      %v3110 = vunpack.c.l.b16 %v3094
      %v3111 = vunpack.c.l.b16 %v3095
      %v3112 = vpack.c.b16 %v3105, %v3104
      %v3113 = vpack.c.b16 %v3107, %v3106
      %v3114 = vpack.c.b16 %v3109, %v3108
      %v3115 = vpack.c.b16 %v3111, %v3110
      %3116 = vrot.lane.b32.xlu0 %v1793, 115
      %v3117 = vpop.permute.xlu0 %3116
      %3118 = vrot.lane.b32.xlu0 %v1794, 115
      %v3119 = vpop.permute.xlu0 %3118
      %v3123 = vsel %vm1836, %v3112, 0
      %v3126 = vsel %vm1836, %v3113, 0
      %v3129 = vsel %vm1836, %v3114, 0
      %v3132 = vsel %vm1836, %v3115, 0
      %3134 = vmatprep.subr.bf16.mxu0 0
      %3135 = vmatpush1.bf16.msra.mxu0 %v3117
      %3136 = vmatprep.subr.bf16.mxu0 0
      %3137 = vmatpush1.bf16.msra.mxu0 %v3119
      %3138 = vmatprep.subr.bf16.mxu0 0
      %3139 = vmatpush1.bf16.msra.mxu0 0
      %3140 = vmatprep.subr.bf16.mxu0 0
      %3141 = vmatpush1.bf16.msra.mxu0 0
      %3142 = vmatprep.subr.bf16.mxu0 0
      %3143 = vmatpush1.bf16.msra.mxu0 0
      %3144 = vmatprep.subr.bf16.mxu0 0
      %3145 = vmatpush1.bf16.msra.mxu0 0
      %3146 = vmatprep.subr.bf16.mxu0 0
      %3147 = vmatpush1.bf16.msra.mxu0 0
      %3148 = vmatprep.subr.bf16.mxu0 0
      %3149 = vmatpush1.bf16.msra.mxu0 0
      %3150 = vmatprep.subr.bf16.mxu0 0
      %3151 = vmatpush1.bf16.msra.mxu0 0
      %3152 = vmatprep.subr.bf16.mxu0 0
      %3153 = vmatpush1.bf16.msra.mxu0 0
      %3154 = vmatprep.subr.bf16.mxu0 0
      %3155 = vmatpush1.bf16.msra.mxu0 0
      %3156 = vmatprep.subr.bf16.mxu0 0
      %3157 = vmatpush1.bf16.msra.mxu0 0
      %3158 = vmatprep.subr.bf16.mxu0 0
      %3159 = vmatpush1.bf16.msra.mxu0 0
      %3160 = vmatprep.subr.bf16.mxu0 0
      %3161 = vmatpush1.bf16.msra.mxu0 0
      %3162 = vmatprep.subr.bf16.mxu0 0
      %3163 = vmatpush1.bf16.msra.mxu0 0
      %3164 = vmatprep.subr.bf16.mxu0 0
      %3165 = vmatpush1.bf16.msra.mxu0 0
      %3166 = vmatprep.mubr.bf16.mxu0 0
      %3167 = vmatmul.mubr.bf16.gmra.mrb[0].mxu0 %v3123
      %v3168 = vpop.f32.mrb[0].mxu0
      %v3169 = vadd.f32 0.0, %v3168
      %v3170 = vpop.f32.mrb[0].mxu0
      %v3171 = vpop.f32.mrb[0].mxu0
      %v3172 = vadd.f32 0.0, %v3171
      %v3173 = vpop.f32.mrb[0].mxu0
      %3174 = vmatprep.mubr.bf16.mxu0 0
      %3175 = vmatmul.mubr.bf16.gmra.mrb[0].mxu0 %v3126
      %v3176 = vpop.f32.mrb[0].mxu0
      %v3177 = vadd.f32 0.0, %v3176
      %v3178 = vpop.f32.mrb[0].mxu0
      %v3179 = vpop.f32.mrb[0].mxu0
      %v3180 = vadd.f32 0.0, %v3179
      %v3181 = vpop.f32.mrb[0].mxu0
      %3182 = vmatprep.mubr.bf16.mxu0 0
      %3183 = vmatmul.mubr.bf16.gmra.mrb[0].mxu0 %v3129
      %v3184 = vpop.f32.mrb[0].mxu0
      %v3185 = vadd.f32 0.0, %v3184
      %v3186 = vpop.f32.mrb[0].mxu0
      %v3187 = vpop.f32.mrb[0].mxu0
      %v3188 = vadd.f32 0.0, %v3187
      %v3189 = vpop.f32.mrb[0].mxu0
      %3190 = vmatprep.mubr.bf16.mxu0 0
      %3191 = vmatmul.mubr.bf16.gmra.mrb[0].mxu0 %v3132
      %v3192 = vpop.f32.mrb[0].mxu0
      %v3193 = vadd.f32 0.0, %v3192
      %v3194 = vpop.f32.mrb[0].mxu0
      %v3195 = vpop.f32.mrb[0].mxu0
      %v3196 = vadd.f32 0.0, %v3195
      %v3197 = vpop.f32.mrb[0].mxu0
      %3198 = vdwg.mxu0
      %v3199 = vadd.f32 %v3079, %v3169
      %v3200 = vadd.f32 %v3080, %v3172
      %v3201 = vadd.f32 %v3081, %v3177
      %v3202 = vadd.f32 %v3082, %v3180
      %v3203 = vadd.f32 %v3083, %v3185
      %v3204 = vadd.f32 %v3084, %v3188
      %v3205 = vadd.f32 %v3085, %v3193
      %v3206 = vadd.f32 %v3086, %v3196
      %s3207 = scalar_lea.vmem %s3, 384
      %v3208 = vld [vmem:[%s3207] sm:$0xf]
      %v3209 = vld [vmem:[%s3207 + $0x4] sm:$0xf]
      %v3210 = vld [vmem:[%s3207 + $0x8] sm:$0xf]
      %v3211 = vld [vmem:[%s3207 + $0xc] sm:$0xf]
      %v3212 = vld [vmem:[%s3207 + $0x10] sm:$0xf]
      %v3213 = vld [vmem:[%s3207 + $0x14] sm:$0xf]
      %v3214 = vld [vmem:[%s3207 + $0x18] sm:$0xf]
      %v3215 = vld [vmem:[%s3207 + $0x1c] sm:$0xf]
      %v3224 = vunpack.c.l.b16 %v3208
      %v3225 = vunpack.c.l.b16 %v3209
      %v3226 = vunpack.c.l.b16 %v3210
      %v3227 = vunpack.c.l.b16 %v3211
      %v3228 = vunpack.c.l.b16 %v3212
      %v3229 = vunpack.c.l.b16 %v3213
      %v3230 = vunpack.c.l.b16 %v3214
      %v3231 = vunpack.c.l.b16 %v3215
      %v3232 = vpack.c.b16 %v3225, %v3224
      %v3233 = vpack.c.b16 %v3227, %v3226
      %v3234 = vpack.c.b16 %v3229, %v3228
      %v3235 = vpack.c.b16 %v3231, %v3230
      %3236 = vrot.lane.b32.xlu0 %v1795, 116
      %v3237 = vpop.permute.xlu0 %3236
      %3238 = vrot.lane.b32.xlu0 %v1796, 116
      %v3239 = vpop.permute.xlu0 %3238
      %v3243 = vsel %vm1836, %v3232, 0
      %v3246 = vsel %vm1836, %v3233, 0
      %v3249 = vsel %vm1836, %v3234, 0
      %v3252 = vsel %vm1836, %v3235, 0
      %3254 = vmatprep.subr.bf16.mxu0 0
      %3255 = vmatpush1.bf16.msra.mxu0 %v3237
      %3256 = vmatprep.subr.bf16.mxu0 0
      %3257 = vmatpush1.bf16.msra.mxu0 %v3239
      %3258 = vmatprep.subr.bf16.mxu0 0
      %3259 = vmatpush1.bf16.msra.mxu0 0
      %3260 = vmatprep.subr.bf16.mxu0 0
      %3261 = vmatpush1.bf16.msra.mxu0 0
      %3262 = vmatprep.subr.bf16.mxu0 0
      %3263 = vmatpush1.bf16.msra.mxu0 0
      %3264 = vmatprep.subr.bf16.mxu0 0
      %3265 = vmatpush1.bf16.msra.mxu0 0
      %3266 = vmatprep.subr.bf16.mxu0 0
      %3267 = vmatpush1.bf16.msra.mxu0 0
      %3268 = vmatprep.subr.bf16.mxu0 0
      %3269 = vmatpush1.bf16.msra.mxu0 0
      %3270 = vmatprep.subr.bf16.mxu0 0
      %3271 = vmatpush1.bf16.msra.mxu0 0
      %3272 = vmatprep.subr.bf16.mxu0 0
      %3273 = vmatpush1.bf16.msra.mxu0 0
      %3274 = vmatprep.subr.bf16.mxu0 0
      %3275 = vmatpush1.bf16.msra.mxu0 0
      %3276 = vmatprep.subr.bf16.mxu0 0
      %3277 = vmatpush1.bf16.msra.mxu0 0
      %3278 = vmatprep.subr.bf16.mxu0 0
      %3279 = vmatpush1.bf16.msra.mxu0 0
      %3280 = vmatprep.subr.bf16.mxu0 0
      %3281 = vmatpush1.bf16.msra.mxu0 0
      %3282 = vmatprep.subr.bf16.mxu0 0
      %3283 = vmatpush1.bf16.msra.mxu0 0
      %3284 = vmatprep.subr.bf16.mxu0 0
      %3285 = vmatpush1.bf16.msra.mxu0 0
      %3286 = vmatprep.mubr.bf16.mxu0 0
      %3287 = vmatmul.mubr.bf16.gmra.mrb[0].mxu0 %v3243
      %v3288 = vpop.f32.mrb[0].mxu0
      %v3289 = vadd.f32 0.0, %v3288
      %v3290 = vpop.f32.mrb[0].mxu0
      %v3291 = vpop.f32.mrb[0].mxu0
      %v3292 = vadd.f32 0.0, %v3291
      %v3293 = vpop.f32.mrb[0].mxu0
      %3294 = vmatprep.mubr.bf16.mxu0 0
      %3295 = vmatmul.mubr.bf16.gmra.mrb[0].mxu0 %v3246
      %v3296 = vpop.f32.mrb[0].mxu0
      %v3297 = vadd.f32 0.0, %v3296
      %v3298 = vpop.f32.mrb[0].mxu0
      %v3299 = vpop.f32.mrb[0].mxu0
      %v3300 = vadd.f32 0.0, %v3299
      %v3301 = vpop.f32.mrb[0].mxu0
      %3302 = vmatprep.mubr.bf16.mxu0 0
      %3303 = vmatmul.mubr.bf16.gmra.mrb[0].mxu0 %v3249
      %v3304 = vpop.f32.mrb[0].mxu0
      %v3305 = vadd.f32 0.0, %v3304
      %v3306 = vpop.f32.mrb[0].mxu0
      %v3307 = vpop.f32.mrb[0].mxu0
      %v3308 = vadd.f32 0.0, %v3307
      %v3309 = vpop.f32.mrb[0].mxu0
      %3310 = vmatprep.mubr.bf16.mxu0 0
      %3311 = vmatmul.mubr.bf16.gmra.mrb[0].mxu0 %v3252
      %v3312 = vpop.f32.mrb[0].mxu0
      %v3313 = vadd.f32 0.0, %v3312
      %v3314 = vpop.f32.mrb[0].mxu0
      %v3315 = vpop.f32.mrb[0].mxu0
      %v3316 = vadd.f32 0.0, %v3315
      %v3317 = vpop.f32.mrb[0].mxu0
      %3318 = vdwg.mxu0
      %v3319 = vadd.f32 %v3199, %v3289
      %v3320 = vadd.f32 %v3200, %v3292
      %v3321 = vadd.f32 %v3201, %v3297
      %v3322 = vadd.f32 %v3202, %v3300
      %v3323 = vadd.f32 %v3203, %v3305
      %v3324 = vadd.f32 %v3204, %v3308
      %v3325 = vadd.f32 %v3205, %v3313
      %v3326 = vadd.f32 %v3206, %v3316
      %s3327 = scalar_lea.vmem %s3, 416
      %v3328 = vld [vmem:[%s3327] sm:$0xf]
      %v3329 = vld [vmem:[%s3327 + $0x4] sm:$0xf]
      %v3330 = vld [vmem:[%s3327 + $0x8] sm:$0xf]
      %v3331 = vld [vmem:[%s3327 + $0xc] sm:$0xf]
      %v3332 = vld [vmem:[%s3327 + $0x10] sm:$0xf]
      %v3333 = vld [vmem:[%s3327 + $0x14] sm:$0xf]
      %v3334 = vld [vmem:[%s3327 + $0x18] sm:$0xf]
      %v3335 = vld [vmem:[%s3327 + $0x1c] sm:$0xf]
      %v3344 = vunpack.c.l.b16 %v3328
      %v3345 = vunpack.c.l.b16 %v3329
      %v3346 = vunpack.c.l.b16 %v3330
      %v3347 = vunpack.c.l.b16 %v3331
      %v3348 = vunpack.c.l.b16 %v3332
      %v3349 = vunpack.c.l.b16 %v3333
      %v3350 = vunpack.c.l.b16 %v3334
      %v3351 = vunpack.c.l.b16 %v3335
      %v3352 = vpack.c.b16 %v3345, %v3344
      %v3353 = vpack.c.b16 %v3347, %v3346
      %v3354 = vpack.c.b16 %v3349, %v3348
      %v3355 = vpack.c.b16 %v3351, %v3350
      %3356 = vrot.lane.b32.xlu0 %v1797, 116
      %v3357 = vpop.permute.xlu0 %3356
      %3358 = vrot.lane.b32.xlu0 %v1798, 116
      %v3359 = vpop.permute.xlu0 %3358
      %v3363 = vsel %vm1836, %v3352, 0
      %v3366 = vsel %vm1836, %v3353, 0
      %v3369 = vsel %vm1836, %v3354, 0
      %v3372 = vsel %vm1836, %v3355, 0
      %3374 = vmatprep.subr.bf16.mxu0 0
      %3375 = vmatpush1.bf16.msra.mxu0 %v3357
      %3376 = vmatprep.subr.bf16.mxu0 0
      %3377 = vmatpush1.bf16.msra.mxu0 %v3359
      %3378 = vmatprep.subr.bf16.mxu0 0
      %3379 = vmatpush1.bf16.msra.mxu0 0
      %3380 = vmatprep.subr.bf16.mxu0 0
      %3381 = vmatpush1.bf16.msra.mxu0 0
      %3382 = vmatprep.subr.bf16.mxu0 0
      %3383 = vmatpush1.bf16.msra.mxu0 0
      %3384 = vmatprep.subr.bf16.mxu0 0
      %3385 = vmatpush1.bf16.msra.mxu0 0
      %3386 = vmatprep.subr.bf16.mxu0 0
      %3387 = vmatpush1.bf16.msra.mxu0 0
      %3388 = vmatprep.subr.bf16.mxu0 0
      %3389 = vmatpush1.bf16.msra.mxu0 0
      %3390 = vmatprep.subr.bf16.mxu0 0
      %3391 = vmatpush1.bf16.msra.mxu0 0
      %3392 = vmatprep.subr.bf16.mxu0 0
      %3393 = vmatpush1.bf16.msra.mxu0 0
      %3394 = vmatprep.subr.bf16.mxu0 0
      %3395 = vmatpush1.bf16.msra.mxu0 0
      %3396 = vmatprep.subr.bf16.mxu0 0
      %3397 = vmatpush1.bf16.msra.mxu0 0
      %3398 = vmatprep.subr.bf16.mxu0 0
      %3399 = vmatpush1.bf16.msra.mxu0 0
      %3400 = vmatprep.subr.bf16.mxu0 0
      %3401 = vmatpush1.bf16.msra.mxu0 0
      %3402 = vmatprep.subr.bf16.mxu0 0
      %3403 = vmatpush1.bf16.msra.mxu0 0
      %3404 = vmatprep.subr.bf16.mxu0 0
      %3405 = vmatpush1.bf16.msra.mxu0 0
      %3406 = vmatprep.mubr.bf16.mxu0 0
      %3407 = vmatmul.mubr.bf16.gmra.mrb[0].mxu0 %v3363
      %v3408 = vpop.f32.mrb[0].mxu0
      %v3409 = vadd.f32 0.0, %v3408
      %v3410 = vpop.f32.mrb[0].mxu0
      %v3411 = vpop.f32.mrb[0].mxu0
      %v3412 = vadd.f32 0.0, %v3411
      %v3413 = vpop.f32.mrb[0].mxu0
      %3414 = vmatprep.mubr.bf16.mxu0 0
      %3415 = vmatmul.mubr.bf16.gmra.mrb[0].mxu0 %v3366
      %v3416 = vpop.f32.mrb[0].mxu0
      %v3417 = vadd.f32 0.0, %v3416
      %v3418 = vpop.f32.mrb[0].mxu0
      %v3419 = vpop.f32.mrb[0].mxu0
      %v3420 = vadd.f32 0.0, %v3419
      %v3421 = vpop.f32.mrb[0].mxu0
      %3422 = vmatprep.mubr.bf16.mxu0 0
      %3423 = vmatmul.mubr.bf16.gmra.mrb[0].mxu0 %v3369
      %v3424 = vpop.f32.mrb[0].mxu0
      %v3425 = vadd.f32 0.0, %v3424
      %v3426 = vpop.f32.mrb[0].mxu0
      %v3427 = vpop.f32.mrb[0].mxu0
      %v3428 = vadd.f32 0.0, %v3427
      %v3429 = vpop.f32.mrb[0].mxu0
      %3430 = vmatprep.mubr.bf16.mxu0 0
      %3431 = vmatmul.mubr.bf16.gmra.mrb[0].mxu0 %v3372
      %v3432 = vpop.f32.mrb[0].mxu0
      %v3433 = vadd.f32 0.0, %v3432
      %v3434 = vpop.f32.mrb[0].mxu0
      %v3435 = vpop.f32.mrb[0].mxu0
      %v3436 = vadd.f32 0.0, %v3435
      %v3437 = vpop.f32.mrb[0].mxu0
      %3438 = vdwg.mxu0
      %v3439 = vadd.f32 %v3319, %v3409
      %v3440 = vadd.f32 %v3320, %v3412
      %v3441 = vadd.f32 %v3321, %v3417
      %v3442 = vadd.f32 %v3322, %v3420
      %v3443 = vadd.f32 %v3323, %v3425
      %v3444 = vadd.f32 %v3324, %v3428
      %v3445 = vadd.f32 %v3325, %v3433
      %v3446 = vadd.f32 %v3326, %v3436
      %s3447 = scalar_lea.vmem %s3, 448
      %v3448 = vld [vmem:[%s3447] sm:$0xf]
      %v3449 = vld [vmem:[%s3447 + $0x4] sm:$0xf]
      %v3450 = vld [vmem:[%s3447 + $0x8] sm:$0xf]
      %v3451 = vld [vmem:[%s3447 + $0xc] sm:$0xf]
      %v3452 = vld [vmem:[%s3447 + $0x10] sm:$0xf]
      %v3453 = vld [vmem:[%s3447 + $0x14] sm:$0xf]
      %v3454 = vld [vmem:[%s3447 + $0x18] sm:$0xf]
      %v3455 = vld [vmem:[%s3447 + $0x1c] sm:$0xf]
      %v3464 = vunpack.c.l.b16 %v3448
      %v3465 = vunpack.c.l.b16 %v3449
      %v3466 = vunpack.c.l.b16 %v3450
      %v3467 = vunpack.c.l.b16 %v3451
      %v3468 = vunpack.c.l.b16 %v3452
      %v3469 = vunpack.c.l.b16 %v3453
      %v3470 = vunpack.c.l.b16 %v3454
      %v3471 = vunpack.c.l.b16 %v3455
      %v3472 = vpack.c.b16 %v3465, %v3464
      %v3473 = vpack.c.b16 %v3467, %v3466
      %v3474 = vpack.c.b16 %v3469, %v3468
      %v3475 = vpack.c.b16 %v3471, %v3470
      %3476 = vrot.lane.b32.xlu0 %v1795, 115
      %v3477 = vpop.permute.xlu0 %3476
      %3478 = vrot.lane.b32.xlu0 %v1796, 115
      %v3479 = vpop.permute.xlu0 %3478
      %v3483 = vsel %vm1836, %v3472, 0
      %v3486 = vsel %vm1836, %v3473, 0
      %v3489 = vsel %vm1836, %v3474, 0
      %v3492 = vsel %vm1836, %v3475, 0
      %3494 = vmatprep.subr.bf16.mxu0 0
      %3495 = vmatpush1.bf16.msra.mxu0 %v3477
      %3496 = vmatprep.subr.bf16.mxu0 0
      %3497 = vmatpush1.bf16.msra.mxu0 %v3479
      %3498 = vmatprep.subr.bf16.mxu0 0
      %3499 = vmatpush1.bf16.msra.mxu0 0
      %3500 = vmatprep.subr.bf16.mxu0 0
      %3501 = vmatpush1.bf16.msra.mxu0 0
      %3502 = vmatprep.subr.bf16.mxu0 0
      %3503 = vmatpush1.bf16.msra.mxu0 0
      %3504 = vmatprep.subr.bf16.mxu0 0
      %3505 = vmatpush1.bf16.msra.mxu0 0
      %3506 = vmatprep.subr.bf16.mxu0 0
      %3507 = vmatpush1.bf16.msra.mxu0 0
      %3508 = vmatprep.subr.bf16.mxu0 0
      %3509 = vmatpush1.bf16.msra.mxu0 0
      %3510 = vmatprep.subr.bf16.mxu0 0
      %3511 = vmatpush1.bf16.msra.mxu0 0
      %3512 = vmatprep.subr.bf16.mxu0 0
      %3513 = vmatpush1.bf16.msra.mxu0 0
      %3514 = vmatprep.subr.bf16.mxu0 0
      %3515 = vmatpush1.bf16.msra.mxu0 0
      %3516 = vmatprep.subr.bf16.mxu0 0
      %3517 = vmatpush1.bf16.msra.mxu0 0
      %3518 = vmatprep.subr.bf16.mxu0 0
      %3519 = vmatpush1.bf16.msra.mxu0 0
      %3520 = vmatprep.subr.bf16.mxu0 0
      %3521 = vmatpush1.bf16.msra.mxu0 0
      %3522 = vmatprep.subr.bf16.mxu0 0
      %3523 = vmatpush1.bf16.msra.mxu0 0
      %3524 = vmatprep.subr.bf16.mxu0 0
      %3525 = vmatpush1.bf16.msra.mxu0 0
      %3526 = vmatprep.mubr.bf16.mxu0 0
      %3527 = vmatmul.mubr.bf16.gmra.mrb[0].mxu0 %v3483
      %v3528 = vpop.f32.mrb[0].mxu0
      %v3529 = vadd.f32 0.0, %v3528
      %v3530 = vpop.f32.mrb[0].mxu0
      %v3531 = vpop.f32.mrb[0].mxu0
      %v3532 = vadd.f32 0.0, %v3531
      %v3533 = vpop.f32.mrb[0].mxu0
      %3534 = vmatprep.mubr.bf16.mxu0 0
      %3535 = vmatmul.mubr.bf16.gmra.mrb[0].mxu0 %v3486
      %v3536 = vpop.f32.mrb[0].mxu0
      %v3537 = vadd.f32 0.0, %v3536
      %v3538 = vpop.f32.mrb[0].mxu0
      %v3539 = vpop.f32.mrb[0].mxu0
      %v3540 = vadd.f32 0.0, %v3539
      %v3541 = vpop.f32.mrb[0].mxu0
      %3542 = vmatprep.mubr.bf16.mxu0 0
      %3543 = vmatmul.mubr.bf16.gmra.mrb[0].mxu0 %v3489
      %v3544 = vpop.f32.mrb[0].mxu0
      %v3545 = vadd.f32 0.0, %v3544
      %v3546 = vpop.f32.mrb[0].mxu0
      %v3547 = vpop.f32.mrb[0].mxu0
      %v3548 = vadd.f32 0.0, %v3547
      %v3549 = vpop.f32.mrb[0].mxu0
      %3550 = vmatprep.mubr.bf16.mxu0 0
      %3551 = vmatmul.mubr.bf16.gmra.mrb[0].mxu0 %v3492
      %v3552 = vpop.f32.mrb[0].mxu0
      %v3553 = vadd.f32 0.0, %v3552
      %v3554 = vpop.f32.mrb[0].mxu0
      %v3555 = vpop.f32.mrb[0].mxu0
      %v3556 = vadd.f32 0.0, %v3555
      %v3557 = vpop.f32.mrb[0].mxu0
      %3558 = vdwg.mxu0
      %v3559 = vadd.f32 %v3439, %v3529
      %v3560 = vadd.f32 %v3440, %v3532
      %v3561 = vadd.f32 %v3441, %v3537
      %v3562 = vadd.f32 %v3442, %v3540
      %v3563 = vadd.f32 %v3443, %v3545
      %v3564 = vadd.f32 %v3444, %v3548
      %v3565 = vadd.f32 %v3445, %v3553
      %v3566 = vadd.f32 %v3446, %v3556
      %s3567 = scalar_lea.vmem %s3, 480
      %v3568 = vld [vmem:[%s3567] sm:$0xf]
      %v3569 = vld [vmem:[%s3567 + $0x4] sm:$0xf]
      %v3570 = vld [vmem:[%s3567 + $0x8] sm:$0xf]
      %v3571 = vld [vmem:[%s3567 + $0xc] sm:$0xf]
      %v3572 = vld [vmem:[%s3567 + $0x10] sm:$0xf]
      %v3573 = vld [vmem:[%s3567 + $0x14] sm:$0xf]
      %v3574 = vld [vmem:[%s3567 + $0x18] sm:$0xf]
      %v3575 = vld [vmem:[%s3567 + $0x1c] sm:$0xf]
      %v3584 = vunpack.c.l.b16 %v3568
      %v3585 = vunpack.c.l.b16 %v3569
      %v3586 = vunpack.c.l.b16 %v3570
      %v3587 = vunpack.c.l.b16 %v3571
      %v3588 = vunpack.c.l.b16 %v3572
      %v3589 = vunpack.c.l.b16 %v3573
      %v3590 = vunpack.c.l.b16 %v3574
      %v3591 = vunpack.c.l.b16 %v3575
      %v3592 = vpack.c.b16 %v3585, %v3584
      %v3593 = vpack.c.b16 %v3587, %v3586
      %v3594 = vpack.c.b16 %v3589, %v3588
      %v3595 = vpack.c.b16 %v3591, %v3590
      %3596 = vrot.lane.b32.xlu0 %v1797, 115
      %v3597 = vpop.permute.xlu0 %3596
      %3598 = vrot.lane.b32.xlu0 %v1798, 115
      %v3599 = vpop.permute.xlu0 %3598
      %v3603 = vsel %vm1836, %v3592, 0
      %v3606 = vsel %vm1836, %v3593, 0
      %v3609 = vsel %vm1836, %v3594, 0
      %v3612 = vsel %vm1836, %v3595, 0
      %3614 = vmatprep.subr.bf16.mxu0 0
      %3615 = vmatpush1.bf16.msra.mxu0 %v3597
      %3616 = vmatprep.subr.bf16.mxu0 0
      %3617 = vmatpush1.bf16.msra.mxu0 %v3599
      %3618 = vmatprep.subr.bf16.mxu0 0
      %3619 = vmatpush1.bf16.msra.mxu0 0
      %3620 = vmatprep.subr.bf16.mxu0 0
      %3621 = vmatpush1.bf16.msra.mxu0 0
      %3622 = vmatprep.subr.bf16.mxu0 0
      %3623 = vmatpush1.bf16.msra.mxu0 0
      %3624 = vmatprep.subr.bf16.mxu0 0
      %3625 = vmatpush1.bf16.msra.mxu0 0
      %3626 = vmatprep.subr.bf16.mxu0 0
      %3627 = vmatpush1.bf16.msra.mxu0 0
      %3628 = vmatprep.subr.bf16.mxu0 0
      %3629 = vmatpush1.bf16.msra.mxu0 0
      %3630 = vmatprep.subr.bf16.mxu0 0
      %3631 = vmatpush1.bf16.msra.mxu0 0
      %3632 = vmatprep.subr.bf16.mxu0 0
      %3633 = vmatpush1.bf16.msra.mxu0 0
      %3634 = vmatprep.subr.bf16.mxu0 0
      %3635 = vmatpush1.bf16.msra.mxu0 0
      %3636 = vmatprep.subr.bf16.mxu0 0
      %3637 = vmatpush1.bf16.msra.mxu0 0
      %3638 = vmatprep.subr.bf16.mxu0 0
      %3639 = vmatpush1.bf16.msra.mxu0 0
      %3640 = vmatprep.subr.bf16.mxu0 0
      %3641 = vmatpush1.bf16.msra.mxu0 0
      %3642 = vmatprep.subr.bf16.mxu0 0
      %3643 = vmatpush1.bf16.msra.mxu0 0
      %3644 = vmatprep.subr.bf16.mxu0 0
      %3645 = vmatpush1.bf16.msra.mxu0 0
      %3646 = vmatprep.mubr.bf16.mxu0 0
      %3647 = vmatmul.mubr.bf16.gmra.mrb[0].mxu0 %v3603
      %v3648 = vpop.f32.mrb[0].mxu0
      %v3649 = vadd.f32 0.0, %v3648
      %v3650 = vpop.f32.mrb[0].mxu0
      %v3651 = vpop.f32.mrb[0].mxu0
      %v3652 = vadd.f32 0.0, %v3651
      %v3653 = vpop.f32.mrb[0].mxu0
      %3654 = vmatprep.mubr.bf16.mxu0 0
      %3655 = vmatmul.mubr.bf16.gmra.mrb[0].mxu0 %v3606
      %v3656 = vpop.f32.mrb[0].mxu0
      %v3657 = vadd.f32 0.0, %v3656
      %v3658 = vpop.f32.mrb[0].mxu0
      %v3659 = vpop.f32.mrb[0].mxu0
      %v3660 = vadd.f32 0.0, %v3659
      %v3661 = vpop.f32.mrb[0].mxu0
      %3662 = vmatprep.mubr.bf16.mxu0 0
      %3663 = vmatmul.mubr.bf16.gmra.mrb[0].mxu0 %v3609
      %v3664 = vpop.f32.mrb[0].mxu0
      %v3665 = vadd.f32 0.0, %v3664
      %v3666 = vpop.f32.mrb[0].mxu0
      %v3667 = vpop.f32.mrb[0].mxu0
      %v3668 = vadd.f32 0.0, %v3667
      %v3669 = vpop.f32.mrb[0].mxu0
      %3670 = vmatprep.mubr.bf16.mxu0 0
      %3671 = vmatmul.mubr.bf16.gmra.mrb[0].mxu0 %v3612
      %v3672 = vpop.f32.mrb[0].mxu0
      %v3673 = vadd.f32 0.0, %v3672
      %v3674 = vpop.f32.mrb[0].mxu0
      %v3675 = vpop.f32.mrb[0].mxu0
      %v3676 = vadd.f32 0.0, %v3675
      %v3677 = vpop.f32.mrb[0].mxu0
      %3678 = vdwg.mxu0
      %v3679 = vadd.f32 %v3559, %v3649
      %v3680 = vadd.f32 %v3560, %v3652
      %v3681 = vadd.f32 %v3561, %v3657
      %v3682 = vadd.f32 %v3562, %v3660
      %v3683 = vadd.f32 %v3563, %v3665
      %v3684 = vadd.f32 %v3564, %v3668
      %v3685 = vadd.f32 %v3565, %v3673
      %v3686 = vadd.f32 %v3566, %v3676
      %v3687 = vld [vmem:[%s4] sm:$0xff]
      %v3688 = vld [vmem:[%s4 + $0x8] sm:$0xff]
      %v3689 = vld [vmem:[%s4 + $0x10] sm:$0xff]
      %v3690 = vld [vmem:[%s4 + $0x18] sm:$0xff]
      %v3691 = vld [vmem:[%s4 + $0x20] sm:$0xff]
      %v3692 = vld [vmem:[%s4 + $0x28] sm:$0xff]
      %v3693 = vld [vmem:[%s4 + $0x30] sm:$0xff]
      %v3694 = vld [vmem:[%s4 + $0x38] sm:$0xff]
      %3696 = vset.pattern.permute.xlu0 0
      %3697 = vperm.xlu0 %3696, %v3687
      %v3698 = vpop.permute.xlu0 %3697
      %3701 = vset.pattern.permute.xlu0 0
      %3702 = vperm.xlu0 %3701, %v3688
      %v3703 = vpop.permute.xlu0 %3702
      %3706 = vset.pattern.permute.xlu0 0
      %3707 = vperm.xlu0 %3706, %v3689
      %v3708 = vpop.permute.xlu0 %3707
      %3711 = vset.pattern.permute.xlu0 0
      %3712 = vperm.xlu0 %3711, %v3690
      %v3713 = vpop.permute.xlu0 %3712
      %3716 = vset.pattern.permute.xlu0 0
      %3717 = vperm.xlu0 %3716, %v3691
      %v3718 = vpop.permute.xlu0 %3717
      %3721 = vset.pattern.permute.xlu0 0
      %3722 = vperm.xlu0 %3721, %v3692
      %v3723 = vpop.permute.xlu0 %3722
      %3726 = vset.pattern.permute.xlu0 0
      %3727 = vperm.xlu0 %3726, %v3693
      %v3728 = vpop.permute.xlu0 %3727
      %3731 = vset.pattern.permute.xlu0 0
      %3732 = vperm.xlu0 %3731, %v3694
      %v3733 = vpop.permute.xlu0 %3732
      %v3735 = vadd.f32 %v3679, %v3698
      %v3736 = vadd.f32 %v3680, %v3703
      %v3737 = vadd.f32 %v3681, %v3708
      %v3738 = vadd.f32 %v3682, %v3713
      %v3739 = vadd.f32 %v3683, %v3718
      %v3740 = vadd.f32 %v3684, %v3723
      %v3741 = vadd.f32 %v3685, %v3728
      %v3742 = vadd.f32 %v3686, %v3733
      %v3743 = vmax.f32 %v3735, 0.0
      %v3744 = vmax.f32 %v3736, 0.0
      %v3745 = vmax.f32 %v3737, 0.0
      %v3746 = vmax.f32 %v3738, 0.0
      %v3747 = vmax.f32 %v3739, 0.0
      %v3748 = vmax.f32 %v3740, 0.0
      %v3749 = vmax.f32 %v3741, 0.0
      %v3750 = vmax.f32 %v3742, 0.0
      %v3751 = vpack.c.bf16 %v3744, %v3743
      %v3752 = vpack.c.bf16 %v3746, %v3745
      %v3753 = vpack.c.bf16 %v3748, %v3747
      %v3754 = vpack.c.bf16 %v3750, %v3749
      %v3755 = vld [vmem:[%s5] sm:$0xf]
      %v3756 = vld [vmem:[%s5 + $0x4] sm:$0xf]
      %v3757 = vld [vmem:[%s5 + $0x8] sm:$0xf]
      %v3758 = vld [vmem:[%s5 + $0xc] sm:$0xf]
      %v3759 = vld [vmem:[%s5 + $0x10] sm:$0xf]
      %v3760 = vld [vmem:[%s5 + $0x14] sm:$0xf]
      %v3761 = vld [vmem:[%s5 + $0x18] sm:$0xf]
      %v3762 = vld [vmem:[%s5 + $0x1c] sm:$0xf]
      %s3763 = scalar_lea.vmem %s5, 32
      %v3764 = vld [vmem:[%s3763] sm:$0xf]
      %v3765 = vld [vmem:[%s3763 + $0x4] sm:$0xf]
      %v3766 = vld [vmem:[%s3763 + $0x8] sm:$0xf]
      %v3767 = vld [vmem:[%s3763 + $0xc] sm:$0xf]
      %v3768 = vld [vmem:[%s3763 + $0x10] sm:$0xf]
      %v3769 = vld [vmem:[%s3763 + $0x14] sm:$0xf]
      %v3770 = vld [vmem:[%s3763 + $0x18] sm:$0xf]
      %v3771 = vld [vmem:[%s3763 + $0x1c] sm:$0xf]
      %v3780 = vunpack.c.l.b16 %v3764
      %v3781 = vunpack.c.l.b16 %v3765
      %v3782 = vunpack.c.l.b16 %v3766
      %v3783 = vunpack.c.l.b16 %v3767
      %v3784 = vunpack.c.l.b16 %v3768
      %v3785 = vunpack.c.l.b16 %v3769
      %v3786 = vunpack.c.l.b16 %v3770
      %v3787 = vunpack.c.l.b16 %v3771
      %v3788 = vpack.c.b16 %v3781, %v3780
      %v3789 = vpack.c.b16 %v3783, %v3782
      %v3790 = vpack.c.b16 %v3785, %v3784
      %v3791 = vpack.c.b16 %v3787, %v3786
      %3796 = vrot.lane.b32.xlu0 %v3751, 127
      %v3797 = vpop.permute.xlu0 %3796
      %3798 = vrot.lane.b32.xlu0 %v3752, 127
      %v3799 = vpop.permute.xlu0 %3798
      %3800 = vrot.lane.b32.xlu0 %v3753, 127
      %v3801 = vpop.permute.xlu0 %3800
      %3802 = vrot.lane.b32.xlu0 %v3754, 127
      %v3803 = vpop.permute.xlu0 %3802
      %vm3808 = vcmask 523264
      %v3810 = vsel %vm3808, %v3788, 0
      %v3813 = vsel %vm3808, %v3789, 0
      %v3816 = vsel %vm3808, %v3790, 0
      %v3819 = vsel %vm3808, %v3791, 0
      %3821 = vmatprep.subr.bf16.mxu0 0
      %3822 = vmatpush1.bf16.msra.mxu0 %v3797
      %3823 = vmatprep.subr.bf16.mxu0 0
      %3824 = vmatpush1.bf16.msra.mxu0 %v3799
      %3825 = vmatprep.subr.bf16.mxu0 0
      %3826 = vmatpush1.bf16.msra.mxu0 %v3801
      %3827 = vmatprep.subr.bf16.mxu0 0
      %3828 = vmatpush1.bf16.msra.mxu0 %v3803
      %3829 = vmatprep.subr.bf16.mxu0 0
      %3830 = vmatpush1.bf16.msra.mxu0 0
      %3831 = vmatprep.subr.bf16.mxu0 0
      %3832 = vmatpush1.bf16.msra.mxu0 0
      %3833 = vmatprep.subr.bf16.mxu0 0
      %3834 = vmatpush1.bf16.msra.mxu0 0
      %3835 = vmatprep.subr.bf16.mxu0 0
      %3836 = vmatpush1.bf16.msra.mxu0 0
      %3837 = vmatprep.subr.bf16.mxu0 0
      %3838 = vmatpush1.bf16.msra.mxu0 0
      %3839 = vmatprep.subr.bf16.mxu0 0
      %3840 = vmatpush1.bf16.msra.mxu0 0
      %3841 = vmatprep.subr.bf16.mxu0 0
      %3842 = vmatpush1.bf16.msra.mxu0 0
      %3843 = vmatprep.subr.bf16.mxu0 0
      %3844 = vmatpush1.bf16.msra.mxu0 0
      %3845 = vmatprep.subr.bf16.mxu0 0
      %3846 = vmatpush1.bf16.msra.mxu0 0
      %3847 = vmatprep.subr.bf16.mxu0 0
      %3848 = vmatpush1.bf16.msra.mxu0 0
      %3849 = vmatprep.subr.bf16.mxu0 0
      %3850 = vmatpush1.bf16.msra.mxu0 0
      %3851 = vmatprep.subr.bf16.mxu0 0
      %3852 = vmatpush1.bf16.msra.mxu0 0
      %3853 = vmatprep.mubr.bf16.mxu0 0
      %3854 = vmatmul.mubr.bf16.gmra.mrb[0].mxu0 %v3810
      %v3855 = vpop.f32.mrb[0].mxu0
      %v3856 = vadd.f32 0.0, %v3855
      %v3857 = vpop.f32.mrb[0].mxu0
      %v3858 = vpop.f32.mrb[0].mxu0
      %v3859 = vadd.f32 0.0, %v3858
      %v3860 = vpop.f32.mrb[0].mxu0
      %3861 = vmatprep.mubr.bf16.mxu0 0
      %3862 = vmatmul.mubr.bf16.gmra.mrb[0].mxu0 %v3813
      %v3863 = vpop.f32.mrb[0].mxu0
      %v3864 = vadd.f32 0.0, %v3863
      %v3865 = vpop.f32.mrb[0].mxu0
      %v3866 = vpop.f32.mrb[0].mxu0
      %v3867 = vadd.f32 0.0, %v3866
      %v3868 = vpop.f32.mrb[0].mxu0
      %3869 = vmatprep.mubr.bf16.mxu0 0
      %3870 = vmatmul.mubr.bf16.gmra.mrb[0].mxu0 %v3816
      %v3871 = vpop.f32.mrb[0].mxu0
      %v3872 = vadd.f32 0.0, %v3871
      %v3873 = vpop.f32.mrb[0].mxu0
      %v3874 = vpop.f32.mrb[0].mxu0
      %v3875 = vadd.f32 0.0, %v3874
      %v3876 = vpop.f32.mrb[0].mxu0
      %3877 = vmatprep.mubr.bf16.mxu0 0
      %3878 = vmatmul.mubr.bf16.gmra.mrb[0].mxu0 %v3819
      %v3879 = vpop.f32.mrb[0].mxu0
      %v3880 = vadd.f32 0.0, %v3879
      %v3881 = vpop.f32.mrb[0].mxu0
      %v3882 = vpop.f32.mrb[0].mxu0
      %v3883 = vadd.f32 0.0, %v3882
      %v3884 = vpop.f32.mrb[0].mxu0
      %3885 = vdwg.mxu0
      %v3894 = vunpack.c.l.b16 %v3755
      %v3895 = vunpack.c.l.b16 %v3756
      %v3896 = vunpack.c.l.b16 %v3757
      %v3897 = vunpack.c.l.b16 %v3758
      %v3898 = vunpack.c.l.b16 %v3759
      %v3899 = vunpack.c.l.b16 %v3760
      %v3900 = vunpack.c.l.b16 %v3761
      %v3901 = vunpack.c.l.b16 %v3762
      %v3902 = vpack.c.b16 %v3895, %v3894
      %v3903 = vpack.c.b16 %v3897, %v3896
      %v3904 = vpack.c.b16 %v3899, %v3898
      %v3905 = vpack.c.b16 %v3901, %v3900
      %v3907 = vsel %vm3808, %v3902, 0
      %v3910 = vsel %vm3808, %v3903, 0
      %v3913 = vsel %vm3808, %v3904, 0
      %v3916 = vsel %vm3808, %v3905, 0
      %3918 = vmatprep.subr.bf16.mxu0 0
      %3919 = vmatpush1.bf16.msra.mxu0 %v3751
      %3920 = vmatprep.subr.bf16.mxu0 0
      %3921 = vmatpush1.bf16.msra.mxu0 %v3752
      %3922 = vmatprep.subr.bf16.mxu0 0
      %3923 = vmatpush1.bf16.msra.mxu0 %v3753
      %3924 = vmatprep.subr.bf16.mxu0 0
      %3925 = vmatpush1.bf16.msra.mxu0 %v3754
      %3926 = vmatprep.subr.bf16.mxu0 0
      %3927 = vmatpush1.bf16.msra.mxu0 0
      %3928 = vmatprep.subr.bf16.mxu0 0
      %3929 = vmatpush1.bf16.msra.mxu0 0
      %3930 = vmatprep.subr.bf16.mxu0 0
      %3931 = vmatpush1.bf16.msra.mxu0 0
      %3932 = vmatprep.subr.bf16.mxu0 0
      %3933 = vmatpush1.bf16.msra.mxu0 0
      %3934 = vmatprep.subr.bf16.mxu0 0
      %3935 = vmatpush1.bf16.msra.mxu0 0
      %3936 = vmatprep.subr.bf16.mxu0 0
      %3937 = vmatpush1.bf16.msra.mxu0 0
      %3938 = vmatprep.subr.bf16.mxu0 0
      %3939 = vmatpush1.bf16.msra.mxu0 0
      %3940 = vmatprep.subr.bf16.mxu0 0
      %3941 = vmatpush1.bf16.msra.mxu0 0
      %3942 = vmatprep.subr.bf16.mxu0 0
      %3943 = vmatpush1.bf16.msra.mxu0 0
      %3944 = vmatprep.subr.bf16.mxu0 0
      %3945 = vmatpush1.bf16.msra.mxu0 0
      %3946 = vmatprep.subr.bf16.mxu0 0
      %3947 = vmatpush1.bf16.msra.mxu0 0
      %3948 = vmatprep.subr.bf16.mxu0 0
      %3949 = vmatpush1.bf16.msra.mxu0 0
      %3950 = vmatprep.mubr.bf16.mxu0 0
      %3951 = vmatmul.mubr.bf16.gmra.mrb[0].mxu0 %v3907
      %v3952 = vpop.f32.mrb[0].mxu0
      %v3953 = vadd.f32 %v3856, %v3952
      %v3954 = vpop.f32.mrb[0].mxu0
      %v3955 = vpop.f32.mrb[0].mxu0
      %v3956 = vadd.f32 %v3859, %v3955
      %v3957 = vpop.f32.mrb[0].mxu0
      %3958 = vmatprep.mubr.bf16.mxu0 0
      %3959 = vmatmul.mubr.bf16.gmra.mrb[0].mxu0 %v3910
      %v3960 = vpop.f32.mrb[0].mxu0
      %v3961 = vadd.f32 %v3864, %v3960
      %v3962 = vpop.f32.mrb[0].mxu0
      %v3963 = vpop.f32.mrb[0].mxu0
      %v3964 = vadd.f32 %v3867, %v3963
      %v3965 = vpop.f32.mrb[0].mxu0
      %3966 = vmatprep.mubr.bf16.mxu0 0
      %3967 = vmatmul.mubr.bf16.gmra.mrb[0].mxu0 %v3913
      %v3968 = vpop.f32.mrb[0].mxu0
      %v3969 = vadd.f32 %v3872, %v3968
      %v3970 = vpop.f32.mrb[0].mxu0
      %v3971 = vpop.f32.mrb[0].mxu0
      %v3972 = vadd.f32 %v3875, %v3971
      %v3973 = vpop.f32.mrb[0].mxu0
      %3974 = vmatprep.mubr.bf16.mxu0 0
      %3975 = vmatmul.mubr.bf16.gmra.mrb[0].mxu0 %v3916
      %v3976 = vpop.f32.mrb[0].mxu0
      %v3977 = vadd.f32 %v3880, %v3976
      %v3978 = vpop.f32.mrb[0].mxu0
      %v3979 = vpop.f32.mrb[0].mxu0
      %v3980 = vadd.f32 %v3883, %v3979
      %v3981 = vpop.f32.mrb[0].mxu0
      %3982 = vdwg.mxu0
      %s3983 = scalar_lea.vmem %s5, 64
      %v3984 = vld [vmem:[%s3983] sm:$0xf]
      %v3985 = vld [vmem:[%s3983 + $0x4] sm:$0xf]
      %v3986 = vld [vmem:[%s3983 + $0x8] sm:$0xf]
      %v3987 = vld [vmem:[%s3983 + $0xc] sm:$0xf]
      %v3988 = vld [vmem:[%s3983 + $0x10] sm:$0xf]
      %v3989 = vld [vmem:[%s3983 + $0x14] sm:$0xf]
      %v3990 = vld [vmem:[%s3983 + $0x18] sm:$0xf]
      %v3991 = vld [vmem:[%s3983 + $0x1c] sm:$0xf]
      %v4000 = vunpack.c.l.b16 %v3984
      %v4001 = vunpack.c.l.b16 %v3985
      %v4002 = vunpack.c.l.b16 %v3986
      %v4003 = vunpack.c.l.b16 %v3987
      %v4004 = vunpack.c.l.b16 %v3988
      %v4005 = vunpack.c.l.b16 %v3989
      %v4006 = vunpack.c.l.b16 %v3990
      %v4007 = vunpack.c.l.b16 %v3991
      %v4008 = vpack.c.b16 %v4001, %v4000
      %v4009 = vpack.c.b16 %v4003, %v4002
      %v4010 = vpack.c.b16 %v4005, %v4004
      %v4011 = vpack.c.b16 %v4007, %v4006
      %4012 = vrot.lane.b32.xlu0 %v3751, 126
      %v4013 = vpop.permute.xlu0 %4012
      %4014 = vrot.lane.b32.xlu0 %v3752, 126
      %v4015 = vpop.permute.xlu0 %4014
      %4016 = vrot.lane.b32.xlu0 %v3753, 126
      %v4017 = vpop.permute.xlu0 %4016
      %4018 = vrot.lane.b32.xlu0 %v3754, 126
      %v4019 = vpop.permute.xlu0 %4018
      %v4025 = vsel %vm3808, %v4008, 0
      %v4028 = vsel %vm3808, %v4009, 0
      %v4031 = vsel %vm3808, %v4010, 0
      %v4034 = vsel %vm3808, %v4011, 0
      %4036 = vmatprep.subr.bf16.mxu0 0
      %4037 = vmatpush1.bf16.msra.mxu0 %v4013
      %4038 = vmatprep.subr.bf16.mxu0 0
      %4039 = vmatpush1.bf16.msra.mxu0 %v4015
      %4040 = vmatprep.subr.bf16.mxu0 0
      %4041 = vmatpush1.bf16.msra.mxu0 %v4017
      %4042 = vmatprep.subr.bf16.mxu0 0
      %4043 = vmatpush1.bf16.msra.mxu0 %v4019
      %4044 = vmatprep.subr.bf16.mxu0 0
      %4045 = vmatpush1.bf16.msra.mxu0 0
      %4046 = vmatprep.subr.bf16.mxu0 0
      %4047 = vmatpush1.bf16.msra.mxu0 0
      %4048 = vmatprep.subr.bf16.mxu0 0
      %4049 = vmatpush1.bf16.msra.mxu0 0
      %4050 = vmatprep.subr.bf16.mxu0 0
      %4051 = vmatpush1.bf16.msra.mxu0 0
      %4052 = vmatprep.subr.bf16.mxu0 0
      %4053 = vmatpush1.bf16.msra.mxu0 0
      %4054 = vmatprep.subr.bf16.mxu0 0
      %4055 = vmatpush1.bf16.msra.mxu0 0
      %4056 = vmatprep.subr.bf16.mxu0 0
      %4057 = vmatpush1.bf16.msra.mxu0 0
      %4058 = vmatprep.subr.bf16.mxu0 0
      %4059 = vmatpush1.bf16.msra.mxu0 0
      %4060 = vmatprep.subr.bf16.mxu0 0
      %4061 = vmatpush1.bf16.msra.mxu0 0
      %4062 = vmatprep.subr.bf16.mxu0 0
      %4063 = vmatpush1.bf16.msra.mxu0 0
      %4064 = vmatprep.subr.bf16.mxu0 0
      %4065 = vmatpush1.bf16.msra.mxu0 0
      %4066 = vmatprep.subr.bf16.mxu0 0
      %4067 = vmatpush1.bf16.msra.mxu0 0
      %4068 = vmatprep.mubr.bf16.mxu0 0
      %4069 = vmatmul.mubr.bf16.gmra.mrb[0].mxu0 %v4025
      %v4070 = vpop.f32.mrb[0].mxu0
      %v4071 = vadd.f32 0.0, %v4070
      %v4072 = vpop.f32.mrb[0].mxu0
      %v4073 = vpop.f32.mrb[0].mxu0
      %v4074 = vadd.f32 0.0, %v4073
      %v4075 = vpop.f32.mrb[0].mxu0
      %4076 = vmatprep.mubr.bf16.mxu0 0
      %4077 = vmatmul.mubr.bf16.gmra.mrb[0].mxu0 %v4028
      %v4078 = vpop.f32.mrb[0].mxu0
      %v4079 = vadd.f32 0.0, %v4078
      %v4080 = vpop.f32.mrb[0].mxu0
      %v4081 = vpop.f32.mrb[0].mxu0
      %v4082 = vadd.f32 0.0, %v4081
      %v4083 = vpop.f32.mrb[0].mxu0
      %4084 = vmatprep.mubr.bf16.mxu0 0
      %4085 = vmatmul.mubr.bf16.gmra.mrb[0].mxu0 %v4031
      %v4086 = vpop.f32.mrb[0].mxu0
      %v4087 = vadd.f32 0.0, %v4086
      %v4088 = vpop.f32.mrb[0].mxu0
      %v4089 = vpop.f32.mrb[0].mxu0
      %v4090 = vadd.f32 0.0, %v4089
      %v4091 = vpop.f32.mrb[0].mxu0
      %4092 = vmatprep.mubr.bf16.mxu0 0
      %4093 = vmatmul.mubr.bf16.gmra.mrb[0].mxu0 %v4034
      %v4094 = vpop.f32.mrb[0].mxu0
      %v4095 = vadd.f32 0.0, %v4094
      %v4096 = vpop.f32.mrb[0].mxu0
      %v4097 = vpop.f32.mrb[0].mxu0
      %v4098 = vadd.f32 0.0, %v4097
      %v4099 = vpop.f32.mrb[0].mxu0
      %4100 = vdwg.mxu0
      %v4101 = vadd.f32 %v3953, %v4071
      %v4102 = vadd.f32 %v3956, %v4074
      %v4103 = vadd.f32 %v3961, %v4079
      %v4104 = vadd.f32 %v3964, %v4082
      %v4105 = vadd.f32 %v3969, %v4087
      %v4106 = vadd.f32 %v3972, %v4090
      %v4107 = vadd.f32 %v3977, %v4095
      %v4108 = vadd.f32 %v3980, %v4098
      %s4109 = scalar_lea.vmem %s5, 96
      %v4110 = vld [vmem:[%s4109] sm:$0xf]
      %v4111 = vld [vmem:[%s4109 + $0x4] sm:$0xf]
      %v4112 = vld [vmem:[%s4109 + $0x8] sm:$0xf]
      %v4113 = vld [vmem:[%s4109 + $0xc] sm:$0xf]
      %v4114 = vld [vmem:[%s4109 + $0x10] sm:$0xf]
      %v4115 = vld [vmem:[%s4109 + $0x14] sm:$0xf]
      %v4116 = vld [vmem:[%s4109 + $0x18] sm:$0xf]
      %v4117 = vld [vmem:[%s4109 + $0x1c] sm:$0xf]
      %v4126 = vunpack.c.l.b16 %v4110
      %v4127 = vunpack.c.l.b16 %v4111
      %v4128 = vunpack.c.l.b16 %v4112
      %v4129 = vunpack.c.l.b16 %v4113
      %v4130 = vunpack.c.l.b16 %v4114
      %v4131 = vunpack.c.l.b16 %v4115
      %v4132 = vunpack.c.l.b16 %v4116
      %v4133 = vunpack.c.l.b16 %v4117
      %v4134 = vpack.c.b16 %v4127, %v4126
      %v4135 = vpack.c.b16 %v4129, %v4128
      %v4136 = vpack.c.b16 %v4131, %v4130
      %v4137 = vpack.c.b16 %v4133, %v4132
      %4138 = vrot.lane.b32.xlu0 %v3751, 116
      %v4139 = vpop.permute.xlu0 %4138
      %4140 = vrot.lane.b32.xlu0 %v3752, 116
      %v4141 = vpop.permute.xlu0 %4140
      %4142 = vrot.lane.b32.xlu0 %v3753, 116
      %v4143 = vpop.permute.xlu0 %4142
      %4144 = vrot.lane.b32.xlu0 %v3754, 116
      %v4145 = vpop.permute.xlu0 %4144
      %v4151 = vsel %vm3808, %v4134, 0
      %v4154 = vsel %vm3808, %v4135, 0
      %v4157 = vsel %vm3808, %v4136, 0
      %v4160 = vsel %vm3808, %v4137, 0
      %4162 = vmatprep.subr.bf16.mxu0 0
      %4163 = vmatpush1.bf16.msra.mxu0 %v4139
      %4164 = vmatprep.subr.bf16.mxu0 0
      %4165 = vmatpush1.bf16.msra.mxu0 %v4141
      %4166 = vmatprep.subr.bf16.mxu0 0
      %4167 = vmatpush1.bf16.msra.mxu0 %v4143
      %4168 = vmatprep.subr.bf16.mxu0 0
      %4169 = vmatpush1.bf16.msra.mxu0 %v4145
      %4170 = vmatprep.subr.bf16.mxu0 0
      %4171 = vmatpush1.bf16.msra.mxu0 0
      %4172 = vmatprep.subr.bf16.mxu0 0
      %4173 = vmatpush1.bf16.msra.mxu0 0
      %4174 = vmatprep.subr.bf16.mxu0 0
      %4175 = vmatpush1.bf16.msra.mxu0 0
      %4176 = vmatprep.subr.bf16.mxu0 0
      %4177 = vmatpush1.bf16.msra.mxu0 0
      %4178 = vmatprep.subr.bf16.mxu0 0
      %4179 = vmatpush1.bf16.msra.mxu0 0
      %4180 = vmatprep.subr.bf16.mxu0 0
      %4181 = vmatpush1.bf16.msra.mxu0 0
      %4182 = vmatprep.subr.bf16.mxu0 0
      %4183 = vmatpush1.bf16.msra.mxu0 0
      %4184 = vmatprep.subr.bf16.mxu0 0
      %4185 = vmatpush1.bf16.msra.mxu0 0
      %4186 = vmatprep.subr.bf16.mxu0 0
      %4187 = vmatpush1.bf16.msra.mxu0 0
      %4188 = vmatprep.subr.bf16.mxu0 0
      %4189 = vmatpush1.bf16.msra.mxu0 0
      %4190 = vmatprep.subr.bf16.mxu0 0
      %4191 = vmatpush1.bf16.msra.mxu0 0
      %4192 = vmatprep.subr.bf16.mxu0 0
      %4193 = vmatpush1.bf16.msra.mxu0 0
      %4194 = vmatprep.mubr.bf16.mxu0 0
      %4195 = vmatmul.mubr.bf16.gmra.mrb[0].mxu0 %v4151
      %v4196 = vpop.f32.mrb[0].mxu0
      %v4197 = vadd.f32 0.0, %v4196
      %v4198 = vpop.f32.mrb[0].mxu0
      %v4199 = vpop.f32.mrb[0].mxu0
      %v4200 = vadd.f32 0.0, %v4199
      %v4201 = vpop.f32.mrb[0].mxu0
      %4202 = vmatprep.mubr.bf16.mxu0 0
      %4203 = vmatmul.mubr.bf16.gmra.mrb[0].mxu0 %v4154
      %v4204 = vpop.f32.mrb[0].mxu0
      %v4205 = vadd.f32 0.0, %v4204
      %v4206 = vpop.f32.mrb[0].mxu0
      %v4207 = vpop.f32.mrb[0].mxu0
      %v4208 = vadd.f32 0.0, %v4207
      %v4209 = vpop.f32.mrb[0].mxu0
      %4210 = vmatprep.mubr.bf16.mxu0 0
      %4211 = vmatmul.mubr.bf16.gmra.mrb[0].mxu0 %v4157
      %v4212 = vpop.f32.mrb[0].mxu0
      %v4213 = vadd.f32 0.0, %v4212
      %v4214 = vpop.f32.mrb[0].mxu0
      %v4215 = vpop.f32.mrb[0].mxu0
      %v4216 = vadd.f32 0.0, %v4215
      %v4217 = vpop.f32.mrb[0].mxu0
      %4218 = vmatprep.mubr.bf16.mxu0 0
      %4219 = vmatmul.mubr.bf16.gmra.mrb[0].mxu0 %v4160
      %v4220 = vpop.f32.mrb[0].mxu0
      %v4221 = vadd.f32 0.0, %v4220
      %v4222 = vpop.f32.mrb[0].mxu0
      %v4223 = vpop.f32.mrb[0].mxu0
      %v4224 = vadd.f32 0.0, %v4223
      %v4225 = vpop.f32.mrb[0].mxu0
      %4226 = vdwg.mxu0
      %v4227 = vadd.f32 %v4101, %v4197
      %v4228 = vadd.f32 %v4102, %v4200
      %v4229 = vadd.f32 %v4103, %v4205
      %v4230 = vadd.f32 %v4104, %v4208
      %v4231 = vadd.f32 %v4105, %v4213
      %v4232 = vadd.f32 %v4106, %v4216
      %v4233 = vadd.f32 %v4107, %v4221
      %v4234 = vadd.f32 %v4108, %v4224
      %s4235 = scalar_lea.vmem %s5, 128
      %v4236 = vld [vmem:[%s4235] sm:$0xf]
      %v4237 = vld [vmem:[%s4235 + $0x4] sm:$0xf]
      %v4238 = vld [vmem:[%s4235 + $0x8] sm:$0xf]
      %v4239 = vld [vmem:[%s4235 + $0xc] sm:$0xf]
      %v4240 = vld [vmem:[%s4235 + $0x10] sm:$0xf]
      %v4241 = vld [vmem:[%s4235 + $0x14] sm:$0xf]
      %v4242 = vld [vmem:[%s4235 + $0x18] sm:$0xf]
      %v4243 = vld [vmem:[%s4235 + $0x1c] sm:$0xf]
      %v4252 = vunpack.c.l.b16 %v4236
      %v4253 = vunpack.c.l.b16 %v4237
      %v4254 = vunpack.c.l.b16 %v4238
      %v4255 = vunpack.c.l.b16 %v4239
      %v4256 = vunpack.c.l.b16 %v4240
      %v4257 = vunpack.c.l.b16 %v4241
      %v4258 = vunpack.c.l.b16 %v4242
      %v4259 = vunpack.c.l.b16 %v4243
      %v4260 = vpack.c.b16 %v4253, %v4252
      %v4261 = vpack.c.b16 %v4255, %v4254
      %v4262 = vpack.c.b16 %v4257, %v4256
      %v4263 = vpack.c.b16 %v4259, %v4258
      %4264 = vrot.lane.b32.xlu0 %v3751, 115
      %v4265 = vpop.permute.xlu0 %4264
      %4266 = vrot.lane.b32.xlu0 %v3752, 115
      %v4267 = vpop.permute.xlu0 %4266
      %4268 = vrot.lane.b32.xlu0 %v3753, 115
      %v4269 = vpop.permute.xlu0 %4268
      %4270 = vrot.lane.b32.xlu0 %v3754, 115
      %v4271 = vpop.permute.xlu0 %4270
      %v4277 = vsel %vm3808, %v4260, 0
      %v4280 = vsel %vm3808, %v4261, 0
      %v4283 = vsel %vm3808, %v4262, 0
      %v4286 = vsel %vm3808, %v4263, 0
      %4288 = vmatprep.subr.bf16.mxu0 0
      %4289 = vmatpush1.bf16.msra.mxu0 %v4265
      %4290 = vmatprep.subr.bf16.mxu0 0
      %4291 = vmatpush1.bf16.msra.mxu0 %v4267
      %4292 = vmatprep.subr.bf16.mxu0 0
      %4293 = vmatpush1.bf16.msra.mxu0 %v4269
      %4294 = vmatprep.subr.bf16.mxu0 0
      %4295 = vmatpush1.bf16.msra.mxu0 %v4271
      %4296 = vmatprep.subr.bf16.mxu0 0
      %4297 = vmatpush1.bf16.msra.mxu0 0
      %4298 = vmatprep.subr.bf16.mxu0 0
      %4299 = vmatpush1.bf16.msra.mxu0 0
      %4300 = vmatprep.subr.bf16.mxu0 0
      %4301 = vmatpush1.bf16.msra.mxu0 0
      %4302 = vmatprep.subr.bf16.mxu0 0
      %4303 = vmatpush1.bf16.msra.mxu0 0
      %4304 = vmatprep.subr.bf16.mxu0 0
      %4305 = vmatpush1.bf16.msra.mxu0 0
      %4306 = vmatprep.subr.bf16.mxu0 0
      %4307 = vmatpush1.bf16.msra.mxu0 0
      %4308 = vmatprep.subr.bf16.mxu0 0
      %4309 = vmatpush1.bf16.msra.mxu0 0
      %4310 = vmatprep.subr.bf16.mxu0 0
      %4311 = vmatpush1.bf16.msra.mxu0 0
      %4312 = vmatprep.subr.bf16.mxu0 0
      %4313 = vmatpush1.bf16.msra.mxu0 0
      %4314 = vmatprep.subr.bf16.mxu0 0
      %4315 = vmatpush1.bf16.msra.mxu0 0
      %4316 = vmatprep.subr.bf16.mxu0 0
      %4317 = vmatpush1.bf16.msra.mxu0 0
      %4318 = vmatprep.subr.bf16.mxu0 0
      %4319 = vmatpush1.bf16.msra.mxu0 0
      %4320 = vmatprep.mubr.bf16.mxu0 0
      %4321 = vmatmul.mubr.bf16.gmra.mrb[0].mxu0 %v4277
      %v4322 = vpop.f32.mrb[0].mxu0
      %v4323 = vadd.f32 0.0, %v4322
      %v4324 = vpop.f32.mrb[0].mxu0
      %v4325 = vpop.f32.mrb[0].mxu0
      %v4326 = vadd.f32 0.0, %v4325
      %v4327 = vpop.f32.mrb[0].mxu0
      %4328 = vmatprep.mubr.bf16.mxu0 0
      %4329 = vmatmul.mubr.bf16.gmra.mrb[0].mxu0 %v4280
      %v4330 = vpop.f32.mrb[0].mxu0
      %v4331 = vadd.f32 0.0, %v4330
      %v4332 = vpop.f32.mrb[0].mxu0
      %v4333 = vpop.f32.mrb[0].mxu0
      %v4334 = vadd.f32 0.0, %v4333
      %v4335 = vpop.f32.mrb[0].mxu0
      %4336 = vmatprep.mubr.bf16.mxu0 0
      %4337 = vmatmul.mubr.bf16.gmra.mrb[0].mxu0 %v4283
      %v4338 = vpop.f32.mrb[0].mxu0
      %v4339 = vadd.f32 0.0, %v4338
      %v4340 = vpop.f32.mrb[0].mxu0
      %v4341 = vpop.f32.mrb[0].mxu0
      %v4342 = vadd.f32 0.0, %v4341
      %v4343 = vpop.f32.mrb[0].mxu0
      %4344 = vmatprep.mubr.bf16.mxu0 0
      %4345 = vmatmul.mubr.bf16.gmra.mrb[0].mxu0 %v4286
      %v4346 = vpop.f32.mrb[0].mxu0
      %v4347 = vadd.f32 0.0, %v4346
      %v4348 = vpop.f32.mrb[0].mxu0
      %v4349 = vpop.f32.mrb[0].mxu0
      %v4350 = vadd.f32 0.0, %v4349
      %v4351 = vpop.f32.mrb[0].mxu0
      %4352 = vdwg.mxu0
      %v4353 = vadd.f32 %v4227, %v4323
      %v4354 = vadd.f32 %v4228, %v4326
      %v4355 = vadd.f32 %v4229, %v4331
      %v4356 = vadd.f32 %v4230, %v4334
      %v4357 = vadd.f32 %v4231, %v4339
      %v4358 = vadd.f32 %v4232, %v4342
      %v4359 = vadd.f32 %v4233, %v4347
      %v4360 = vadd.f32 %v4234, %v4350
      %s4361 = scalar_lea.vmem %s5, 160
      %v4362 = vld [vmem:[%s4361] sm:$0xf]
      %v4363 = vld [vmem:[%s4361 + $0x4] sm:$0xf]
      %v4364 = vld [vmem:[%s4361 + $0x8] sm:$0xf]
      %v4365 = vld [vmem:[%s4361 + $0xc] sm:$0xf]
      %v4366 = vld [vmem:[%s4361 + $0x10] sm:$0xf]
      %v4367 = vld [vmem:[%s4361 + $0x14] sm:$0xf]
      %v4368 = vld [vmem:[%s4361 + $0x18] sm:$0xf]
      %v4369 = vld [vmem:[%s4361 + $0x1c] sm:$0xf]
      %v4378 = vunpack.c.l.b16 %v4362
      %v4379 = vunpack.c.l.b16 %v4363
      %v4380 = vunpack.c.l.b16 %v4364
      %v4381 = vunpack.c.l.b16 %v4365
      %v4382 = vunpack.c.l.b16 %v4366
      %v4383 = vunpack.c.l.b16 %v4367
      %v4384 = vunpack.c.l.b16 %v4368
      %v4385 = vunpack.c.l.b16 %v4369
      %v4386 = vpack.c.b16 %v4379, %v4378
      %v4387 = vpack.c.b16 %v4381, %v4380
      %v4388 = vpack.c.b16 %v4383, %v4382
      %v4389 = vpack.c.b16 %v4385, %v4384
      %4390 = vrot.lane.b32.xlu0 %v3751, 114
      %v4391 = vpop.permute.xlu0 %4390
      %4392 = vrot.lane.b32.xlu0 %v3752, 114
      %v4393 = vpop.permute.xlu0 %4392
      %4394 = vrot.lane.b32.xlu0 %v3753, 114
      %v4395 = vpop.permute.xlu0 %4394
      %4396 = vrot.lane.b32.xlu0 %v3754, 114
      %v4397 = vpop.permute.xlu0 %4396
      %v4403 = vsel %vm3808, %v4386, 0
      %v4406 = vsel %vm3808, %v4387, 0
      %v4409 = vsel %vm3808, %v4388, 0
      %v4412 = vsel %vm3808, %v4389, 0
      %4414 = vmatprep.subr.bf16.mxu0 0
      %4415 = vmatpush1.bf16.msra.mxu0 %v4391
      %4416 = vmatprep.subr.bf16.mxu0 0
      %4417 = vmatpush1.bf16.msra.mxu0 %v4393
      %4418 = vmatprep.subr.bf16.mxu0 0
      %4419 = vmatpush1.bf16.msra.mxu0 %v4395
      %4420 = vmatprep.subr.bf16.mxu0 0
      %4421 = vmatpush1.bf16.msra.mxu0 %v4397
      %4422 = vmatprep.subr.bf16.mxu0 0
      %4423 = vmatpush1.bf16.msra.mxu0 0
      %4424 = vmatprep.subr.bf16.mxu0 0
      %4425 = vmatpush1.bf16.msra.mxu0 0
      %4426 = vmatprep.subr.bf16.mxu0 0
      %4427 = vmatpush1.bf16.msra.mxu0 0
      %4428 = vmatprep.subr.bf16.mxu0 0
      %4429 = vmatpush1.bf16.msra.mxu0 0
      %4430 = vmatprep.subr.bf16.mxu0 0
      %4431 = vmatpush1.bf16.msra.mxu0 0
      %4432 = vmatprep.subr.bf16.mxu0 0
      %4433 = vmatpush1.bf16.msra.mxu0 0
      %4434 = vmatprep.subr.bf16.mxu0 0
      %4435 = vmatpush1.bf16.msra.mxu0 0
      %4436 = vmatprep.subr.bf16.mxu0 0
      %4437 = vmatpush1.bf16.msra.mxu0 0
      %4438 = vmatprep.subr.bf16.mxu0 0
      %4439 = vmatpush1.bf16.msra.mxu0 0
      %4440 = vmatprep.subr.bf16.mxu0 0
      %4441 = vmatpush1.bf16.msra.mxu0 0
      %4442 = vmatprep.subr.bf16.mxu0 0
      %4443 = vmatpush1.bf16.msra.mxu0 0
      %4444 = vmatprep.subr.bf16.mxu0 0
      %4445 = vmatpush1.bf16.msra.mxu0 0
      %4446 = vmatprep.mubr.bf16.mxu0 0
      %4447 = vmatmul.mubr.bf16.gmra.mrb[0].mxu0 %v4403
      %v4448 = vpop.f32.mrb[0].mxu0
      %v4449 = vadd.f32 0.0, %v4448
      %v4450 = vpop.f32.mrb[0].mxu0
      %v4451 = vpop.f32.mrb[0].mxu0
      %v4452 = vadd.f32 0.0, %v4451
      %v4453 = vpop.f32.mrb[0].mxu0
      %4454 = vmatprep.mubr.bf16.mxu0 0
      %4455 = vmatmul.mubr.bf16.gmra.mrb[0].mxu0 %v4406
      %v4456 = vpop.f32.mrb[0].mxu0
      %v4457 = vadd.f32 0.0, %v4456
      %v4458 = vpop.f32.mrb[0].mxu0
      %v4459 = vpop.f32.mrb[0].mxu0
      %v4460 = vadd.f32 0.0, %v4459
      %v4461 = vpop.f32.mrb[0].mxu0
      %4462 = vmatprep.mubr.bf16.mxu0 0
      %4463 = vmatmul.mubr.bf16.gmra.mrb[0].mxu0 %v4409
      %v4464 = vpop.f32.mrb[0].mxu0
      %v4465 = vadd.f32 0.0, %v4464
      %v4466 = vpop.f32.mrb[0].mxu0
      %v4467 = vpop.f32.mrb[0].mxu0
      %v4468 = vadd.f32 0.0, %v4467
      %v4469 = vpop.f32.mrb[0].mxu0
      %4470 = vmatprep.mubr.bf16.mxu0 0
      %4471 = vmatmul.mubr.bf16.gmra.mrb[0].mxu0 %v4412
      %v4472 = vpop.f32.mrb[0].mxu0
      %v4473 = vadd.f32 0.0, %v4472
      %v4474 = vpop.f32.mrb[0].mxu0
      %v4475 = vpop.f32.mrb[0].mxu0
      %v4476 = vadd.f32 0.0, %v4475
      %v4477 = vpop.f32.mrb[0].mxu0
      %4478 = vdwg.mxu0
      %v4479 = vadd.f32 %v4353, %v4449
      %v4480 = vadd.f32 %v4354, %v4452
      %v4481 = vadd.f32 %v4355, %v4457
      %v4482 = vadd.f32 %v4356, %v4460
      %v4483 = vadd.f32 %v4357, %v4465
      %v4484 = vadd.f32 %v4358, %v4468
      %v4485 = vadd.f32 %v4359, %v4473
      %v4486 = vadd.f32 %v4360, %v4476
      %s4487 = scalar_lea.vmem %s5, 192
      %v4488 = vld [vmem:[%s4487] sm:$0xf]
      %v4489 = vld [vmem:[%s4487 + $0x4] sm:$0xf]
      %v4490 = vld [vmem:[%s4487 + $0x8] sm:$0xf]
      %v4491 = vld [vmem:[%s4487 + $0xc] sm:$0xf]
      %v4492 = vld [vmem:[%s4487 + $0x10] sm:$0xf]
      %v4493 = vld [vmem:[%s4487 + $0x14] sm:$0xf]
      %v4494 = vld [vmem:[%s4487 + $0x18] sm:$0xf]
      %v4495 = vld [vmem:[%s4487 + $0x1c] sm:$0xf]
      %v4504 = vunpack.c.l.b16 %v4488
      %v4505 = vunpack.c.l.b16 %v4489
      %v4506 = vunpack.c.l.b16 %v4490
      %v4507 = vunpack.c.l.b16 %v4491
      %v4508 = vunpack.c.l.b16 %v4492
      %v4509 = vunpack.c.l.b16 %v4493
      %v4510 = vunpack.c.l.b16 %v4494
      %v4511 = vunpack.c.l.b16 %v4495
      %v4512 = vpack.c.b16 %v4505, %v4504
      %v4513 = vpack.c.b16 %v4507, %v4506
      %v4514 = vpack.c.b16 %v4509, %v4508
      %v4515 = vpack.c.b16 %v4511, %v4510
      %4516 = vrot.lane.b32.xlu0 %v3751, 104
      %v4517 = vpop.permute.xlu0 %4516
      %4518 = vrot.lane.b32.xlu0 %v3752, 104
      %v4519 = vpop.permute.xlu0 %4518
      %4520 = vrot.lane.b32.xlu0 %v3753, 104
      %v4521 = vpop.permute.xlu0 %4520
      %4522 = vrot.lane.b32.xlu0 %v3754, 104
      %v4523 = vpop.permute.xlu0 %4522
      %v4529 = vsel %vm3808, %v4512, 0
      %v4532 = vsel %vm3808, %v4513, 0
      %v4535 = vsel %vm3808, %v4514, 0
      %v4538 = vsel %vm3808, %v4515, 0
      %4540 = vmatprep.subr.bf16.mxu0 0
      %4541 = vmatpush1.bf16.msra.mxu0 %v4517
      %4542 = vmatprep.subr.bf16.mxu0 0
      %4543 = vmatpush1.bf16.msra.mxu0 %v4519
      %4544 = vmatprep.subr.bf16.mxu0 0
      %4545 = vmatpush1.bf16.msra.mxu0 %v4521
      %4546 = vmatprep.subr.bf16.mxu0 0
      %4547 = vmatpush1.bf16.msra.mxu0 %v4523
      %4548 = vmatprep.subr.bf16.mxu0 0
      %4549 = vmatpush1.bf16.msra.mxu0 0
      %4550 = vmatprep.subr.bf16.mxu0 0
      %4551 = vmatpush1.bf16.msra.mxu0 0
      %4552 = vmatprep.subr.bf16.mxu0 0
      %4553 = vmatpush1.bf16.msra.mxu0 0
      %4554 = vmatprep.subr.bf16.mxu0 0
      %4555 = vmatpush1.bf16.msra.mxu0 0
      %4556 = vmatprep.subr.bf16.mxu0 0
      %4557 = vmatpush1.bf16.msra.mxu0 0
      %4558 = vmatprep.subr.bf16.mxu0 0
      %4559 = vmatpush1.bf16.msra.mxu0 0
      %4560 = vmatprep.subr.bf16.mxu0 0
      %4561 = vmatpush1.bf16.msra.mxu0 0
      %4562 = vmatprep.subr.bf16.mxu0 0
      %4563 = vmatpush1.bf16.msra.mxu0 0
      %4564 = vmatprep.subr.bf16.mxu0 0
      %4565 = vmatpush1.bf16.msra.mxu0 0
      %4566 = vmatprep.subr.bf16.mxu0 0
      %4567 = vmatpush1.bf16.msra.mxu0 0
      %4568 = vmatprep.subr.bf16.mxu0 0
      %4569 = vmatpush1.bf16.msra.mxu0 0
      %4570 = vmatprep.subr.bf16.mxu0 0
      %4571 = vmatpush1.bf16.msra.mxu0 0
      %4572 = vmatprep.mubr.bf16.mxu0 0
      %4573 = vmatmul.mubr.bf16.gmra.mrb[0].mxu0 %v4529
      %v4574 = vpop.f32.mrb[0].mxu0
      %v4575 = vadd.f32 0.0, %v4574
      %v4576 = vpop.f32.mrb[0].mxu0
      %v4577 = vpop.f32.mrb[0].mxu0
      %v4578 = vadd.f32 0.0, %v4577
      %v4579 = vpop.f32.mrb[0].mxu0
      %4580 = vmatprep.mubr.bf16.mxu0 0
      %4581 = vmatmul.mubr.bf16.gmra.mrb[0].mxu0 %v4532
      %v4582 = vpop.f32.mrb[0].mxu0
      %v4583 = vadd.f32 0.0, %v4582
      %v4584 = vpop.f32.mrb[0].mxu0
      %v4585 = vpop.f32.mrb[0].mxu0
      %v4586 = vadd.f32 0.0, %v4585
      %v4587 = vpop.f32.mrb[0].mxu0
      %4588 = vmatprep.mubr.bf16.mxu0 0
      %4589 = vmatmul.mubr.bf16.gmra.mrb[0].mxu0 %v4535
      %v4590 = vpop.f32.mrb[0].mxu0
      %v4591 = vadd.f32 0.0, %v4590
      %v4592 = vpop.f32.mrb[0].mxu0
      %v4593 = vpop.f32.mrb[0].mxu0
      %v4594 = vadd.f32 0.0, %v4593
      %v4595 = vpop.f32.mrb[0].mxu0
      %4596 = vmatprep.mubr.bf16.mxu0 0
      %4597 = vmatmul.mubr.bf16.gmra.mrb[0].mxu0 %v4538
      %v4598 = vpop.f32.mrb[0].mxu0
      %v4599 = vadd.f32 0.0, %v4598
      %v4600 = vpop.f32.mrb[0].mxu0
      %v4601 = vpop.f32.mrb[0].mxu0
      %v4602 = vadd.f32 0.0, %v4601
      %v4603 = vpop.f32.mrb[0].mxu0
      %4604 = vdwg.mxu0
      %v4605 = vadd.f32 %v4479, %v4575
      %v4606 = vadd.f32 %v4480, %v4578
      %v4607 = vadd.f32 %v4481, %v4583
      %v4608 = vadd.f32 %v4482, %v4586
      %v4609 = vadd.f32 %v4483, %v4591
      %v4610 = vadd.f32 %v4484, %v4594
      %v4611 = vadd.f32 %v4485, %v4599
      %v4612 = vadd.f32 %v4486, %v4602
      %s4613 = scalar_lea.vmem %s5, 224
      %v4614 = vld [vmem:[%s4613] sm:$0xf]
      %v4615 = vld [vmem:[%s4613 + $0x4] sm:$0xf]
      %v4616 = vld [vmem:[%s4613 + $0x8] sm:$0xf]
      %v4617 = vld [vmem:[%s4613 + $0xc] sm:$0xf]
      %v4618 = vld [vmem:[%s4613 + $0x10] sm:$0xf]
      %v4619 = vld [vmem:[%s4613 + $0x14] sm:$0xf]
      %v4620 = vld [vmem:[%s4613 + $0x18] sm:$0xf]
      %v4621 = vld [vmem:[%s4613 + $0x1c] sm:$0xf]
      %v4630 = vunpack.c.l.b16 %v4614
      %v4631 = vunpack.c.l.b16 %v4615
      %v4632 = vunpack.c.l.b16 %v4616
      %v4633 = vunpack.c.l.b16 %v4617
      %v4634 = vunpack.c.l.b16 %v4618
      %v4635 = vunpack.c.l.b16 %v4619
      %v4636 = vunpack.c.l.b16 %v4620
      %v4637 = vunpack.c.l.b16 %v4621
      %v4638 = vpack.c.b16 %v4631, %v4630
      %v4639 = vpack.c.b16 %v4633, %v4632
      %v4640 = vpack.c.b16 %v4635, %v4634
      %v4641 = vpack.c.b16 %v4637, %v4636
      %4642 = vrot.lane.b32.xlu0 %v3751, 103
      %v4643 = vpop.permute.xlu0 %4642
      %4644 = vrot.lane.b32.xlu0 %v3752, 103
      %v4645 = vpop.permute.xlu0 %4644
      %4646 = vrot.lane.b32.xlu0 %v3753, 103
      %v4647 = vpop.permute.xlu0 %4646
      %4648 = vrot.lane.b32.xlu0 %v3754, 103
      %v4649 = vpop.permute.xlu0 %4648
      %v4655 = vsel %vm3808, %v4638, 0
      %v4658 = vsel %vm3808, %v4639, 0
      %v4661 = vsel %vm3808, %v4640, 0
      %v4664 = vsel %vm3808, %v4641, 0
      %4666 = vmatprep.subr.bf16.mxu0 0
      %4667 = vmatpush1.bf16.msra.mxu0 %v4643
      %4668 = vmatprep.subr.bf16.mxu0 0
      %4669 = vmatpush1.bf16.msra.mxu0 %v4645
      %4670 = vmatprep.subr.bf16.mxu0 0
      %4671 = vmatpush1.bf16.msra.mxu0 %v4647
      %4672 = vmatprep.subr.bf16.mxu0 0
      %4673 = vmatpush1.bf16.msra.mxu0 %v4649
      %4674 = vmatprep.subr.bf16.mxu0 0
      %4675 = vmatpush1.bf16.msra.mxu0 0
      %4676 = vmatprep.subr.bf16.mxu0 0
      %4677 = vmatpush1.bf16.msra.mxu0 0
      %4678 = vmatprep.subr.bf16.mxu0 0
      %4679 = vmatpush1.bf16.msra.mxu0 0
      %4680 = vmatprep.subr.bf16.mxu0 0
      %4681 = vmatpush1.bf16.msra.mxu0 0
      %4682 = vmatprep.subr.bf16.mxu0 0
      %4683 = vmatpush1.bf16.msra.mxu0 0
      %4684 = vmatprep.subr.bf16.mxu0 0
      %4685 = vmatpush1.bf16.msra.mxu0 0
      %4686 = vmatprep.subr.bf16.mxu0 0
      %4687 = vmatpush1.bf16.msra.mxu0 0
      %4688 = vmatprep.subr.bf16.mxu0 0
      %4689 = vmatpush1.bf16.msra.mxu0 0
      %4690 = vmatprep.subr.bf16.mxu0 0
      %4691 = vmatpush1.bf16.msra.mxu0 0
      %4692 = vmatprep.subr.bf16.mxu0 0
      %4693 = vmatpush1.bf16.msra.mxu0 0
      %4694 = vmatprep.subr.bf16.mxu0 0
      %4695 = vmatpush1.bf16.msra.mxu0 0
      %4696 = vmatprep.subr.bf16.mxu0 0
      %4697 = vmatpush1.bf16.msra.mxu0 0
      %4698 = vmatprep.mubr.bf16.mxu0 0
      %4699 = vmatmul.mubr.bf16.gmra.mrb[0].mxu0 %v4655
      %v4700 = vpop.f32.mrb[0].mxu0
      %v4701 = vadd.f32 0.0, %v4700
      %v4702 = vpop.f32.mrb[0].mxu0
      %v4703 = vpop.f32.mrb[0].mxu0
      %v4704 = vadd.f32 0.0, %v4703
      %v4705 = vpop.f32.mrb[0].mxu0
      %4706 = vmatprep.mubr.bf16.mxu0 0
      %4707 = vmatmul.mubr.bf16.gmra.mrb[0].mxu0 %v4658
      %v4708 = vpop.f32.mrb[0].mxu0
      %v4709 = vadd.f32 0.0, %v4708
      %v4710 = vpop.f32.mrb[0].mxu0
      %v4711 = vpop.f32.mrb[0].mxu0
      %v4712 = vadd.f32 0.0, %v4711
      %v4713 = vpop.f32.mrb[0].mxu0
      %4714 = vmatprep.mubr.bf16.mxu0 0
      %4715 = vmatmul.mubr.bf16.gmra.mrb[0].mxu0 %v4661
      %v4716 = vpop.f32.mrb[0].mxu0
      %v4717 = vadd.f32 0.0, %v4716
      %v4718 = vpop.f32.mrb[0].mxu0
      %v4719 = vpop.f32.mrb[0].mxu0
      %v4720 = vadd.f32 0.0, %v4719
      %v4721 = vpop.f32.mrb[0].mxu0
      %4722 = vmatprep.mubr.bf16.mxu0 0
      %4723 = vmatmul.mubr.bf16.gmra.mrb[0].mxu0 %v4664
      %v4724 = vpop.f32.mrb[0].mxu0
      %v4725 = vadd.f32 0.0, %v4724
      %v4726 = vpop.f32.mrb[0].mxu0
      %v4727 = vpop.f32.mrb[0].mxu0
      %v4728 = vadd.f32 0.0, %v4727
      %v4729 = vpop.f32.mrb[0].mxu0
      %4730 = vdwg.mxu0
      %v4731 = vadd.f32 %v4605, %v4701
      %v4732 = vadd.f32 %v4606, %v4704
      %v4733 = vadd.f32 %v4607, %v4709
      %v4734 = vadd.f32 %v4608, %v4712
      %v4735 = vadd.f32 %v4609, %v4717
      %v4736 = vadd.f32 %v4610, %v4720
      %v4737 = vadd.f32 %v4611, %v4725
      %v4738 = vadd.f32 %v4612, %v4728
      %s4739 = scalar_lea.vmem %s5, 256
      %v4740 = vld [vmem:[%s4739] sm:$0xf]
      %v4741 = vld [vmem:[%s4739 + $0x4] sm:$0xf]
      %v4742 = vld [vmem:[%s4739 + $0x8] sm:$0xf]
      %v4743 = vld [vmem:[%s4739 + $0xc] sm:$0xf]
      %v4744 = vld [vmem:[%s4739 + $0x10] sm:$0xf]
      %v4745 = vld [vmem:[%s4739 + $0x14] sm:$0xf]
      %v4746 = vld [vmem:[%s4739 + $0x18] sm:$0xf]
      %v4747 = vld [vmem:[%s4739 + $0x1c] sm:$0xf]
      %v4756 = vunpack.c.l.b16 %v4740
      %v4757 = vunpack.c.l.b16 %v4741
      %v4758 = vunpack.c.l.b16 %v4742
      %v4759 = vunpack.c.l.b16 %v4743
      %v4760 = vunpack.c.l.b16 %v4744
      %v4761 = vunpack.c.l.b16 %v4745
      %v4762 = vunpack.c.l.b16 %v4746
      %v4763 = vunpack.c.l.b16 %v4747
      %v4764 = vpack.c.b16 %v4757, %v4756
      %v4765 = vpack.c.b16 %v4759, %v4758
      %v4766 = vpack.c.b16 %v4761, %v4760
      %v4767 = vpack.c.b16 %v4763, %v4762
      %4768 = vrot.lane.b32.xlu0 %v3751, 102
      %v4769 = vpop.permute.xlu0 %4768
      %4770 = vrot.lane.b32.xlu0 %v3752, 102
      %v4771 = vpop.permute.xlu0 %4770
      %4772 = vrot.lane.b32.xlu0 %v3753, 102
      %v4773 = vpop.permute.xlu0 %4772
      %4774 = vrot.lane.b32.xlu0 %v3754, 102
      %v4775 = vpop.permute.xlu0 %4774
      %v4781 = vsel %vm3808, %v4764, 0
      %v4784 = vsel %vm3808, %v4765, 0
      %v4787 = vsel %vm3808, %v4766, 0
      %v4790 = vsel %vm3808, %v4767, 0
      %4792 = vmatprep.subr.bf16.mxu0 0
      %4793 = vmatpush1.bf16.msra.mxu0 %v4769
      %4794 = vmatprep.subr.bf16.mxu0 0
      %4795 = vmatpush1.bf16.msra.mxu0 %v4771
      %4796 = vmatprep.subr.bf16.mxu0 0
      %4797 = vmatpush1.bf16.msra.mxu0 %v4773
      %4798 = vmatprep.subr.bf16.mxu0 0
      %4799 = vmatpush1.bf16.msra.mxu0 %v4775
      %4800 = vmatprep.subr.bf16.mxu0 0
      %4801 = vmatpush1.bf16.msra.mxu0 0
      %4802 = vmatprep.subr.bf16.mxu0 0
      %4803 = vmatpush1.bf16.msra.mxu0 0
      %4804 = vmatprep.subr.bf16.mxu0 0
      %4805 = vmatpush1.bf16.msra.mxu0 0
      %4806 = vmatprep.subr.bf16.mxu0 0
      %4807 = vmatpush1.bf16.msra.mxu0 0
      %4808 = vmatprep.subr.bf16.mxu0 0
      %4809 = vmatpush1.bf16.msra.mxu0 0
      %4810 = vmatprep.subr.bf16.mxu0 0
      %4811 = vmatpush1.bf16.msra.mxu0 0
      %4812 = vmatprep.subr.bf16.mxu0 0
      %4813 = vmatpush1.bf16.msra.mxu0 0
      %4814 = vmatprep.subr.bf16.mxu0 0
      %4815 = vmatpush1.bf16.msra.mxu0 0
      %4816 = vmatprep.subr.bf16.mxu0 0
      %4817 = vmatpush1.bf16.msra.mxu0 0
      %4818 = vmatprep.subr.bf16.mxu0 0
      %4819 = vmatpush1.bf16.msra.mxu0 0
      %4820 = vmatprep.subr.bf16.mxu0 0
      %4821 = vmatpush1.bf16.msra.mxu0 0
      %4822 = vmatprep.subr.bf16.mxu0 0
      %4823 = vmatpush1.bf16.msra.mxu0 0
      %4824 = vmatprep.mubr.bf16.mxu0 0
      %4825 = vmatmul.mubr.bf16.gmra.mrb[0].mxu0 %v4781
      %v4826 = vpop.f32.mrb[0].mxu0
      %v4827 = vadd.f32 0.0, %v4826
      %v4828 = vpop.f32.mrb[0].mxu0
      %v4829 = vpop.f32.mrb[0].mxu0
      %v4830 = vadd.f32 0.0, %v4829
      %v4831 = vpop.f32.mrb[0].mxu0
      %4832 = vmatprep.mubr.bf16.mxu0 0
      %4833 = vmatmul.mubr.bf16.gmra.mrb[0].mxu0 %v4784
      %v4834 = vpop.f32.mrb[0].mxu0
      %v4835 = vadd.f32 0.0, %v4834
      %v4836 = vpop.f32.mrb[0].mxu0
      %v4837 = vpop.f32.mrb[0].mxu0
      %v4838 = vadd.f32 0.0, %v4837
      %v4839 = vpop.f32.mrb[0].mxu0
      %4840 = vmatprep.mubr.bf16.mxu0 0
      %4841 = vmatmul.mubr.bf16.gmra.mrb[0].mxu0 %v4787
      %v4842 = vpop.f32.mrb[0].mxu0
      %v4843 = vadd.f32 0.0, %v4842
      %v4844 = vpop.f32.mrb[0].mxu0
      %v4845 = vpop.f32.mrb[0].mxu0
      %v4846 = vadd.f32 0.0, %v4845
      %v4847 = vpop.f32.mrb[0].mxu0
      %4848 = vmatprep.mubr.bf16.mxu0 0
      %4849 = vmatmul.mubr.bf16.gmra.mrb[0].mxu0 %v4790
      %v4850 = vpop.f32.mrb[0].mxu0
      %v4851 = vadd.f32 0.0, %v4850
      %v4852 = vpop.f32.mrb[0].mxu0
      %v4853 = vpop.f32.mrb[0].mxu0
      %v4854 = vadd.f32 0.0, %v4853
      %v4855 = vpop.f32.mrb[0].mxu0
      %4856 = vdwg.mxu0
      %v4857 = vadd.f32 %v4731, %v4827
      %v4858 = vadd.f32 %v4732, %v4830
      %v4859 = vadd.f32 %v4733, %v4835
      %v4860 = vadd.f32 %v4734, %v4838
      %v4861 = vadd.f32 %v4735, %v4843
      %v4862 = vadd.f32 %v4736, %v4846
      %v4863 = vadd.f32 %v4737, %v4851
      %v4864 = vadd.f32 %v4738, %v4854
      %v4865 = vld [vmem:[%s6] sm:$0xff]
      %v4866 = vld [vmem:[%s6 + $0x8] sm:$0xff]
      %v4867 = vld [vmem:[%s6 + $0x10] sm:$0xff]
      %v4868 = vld [vmem:[%s6 + $0x18] sm:$0xff]
      %v4869 = vld [vmem:[%s6 + $0x20] sm:$0xff]
      %v4870 = vld [vmem:[%s6 + $0x28] sm:$0xff]
      %v4871 = vld [vmem:[%s6 + $0x30] sm:$0xff]
      %v4872 = vld [vmem:[%s6 + $0x38] sm:$0xff]
      %4874 = vset.pattern.permute.xlu0 0
      %4875 = vperm.xlu0 %4874, %v4865
      %v4876 = vpop.permute.xlu0 %4875
      %4879 = vset.pattern.permute.xlu0 0
      %4880 = vperm.xlu0 %4879, %v4866
      %v4881 = vpop.permute.xlu0 %4880
      %4884 = vset.pattern.permute.xlu0 0
      %4885 = vperm.xlu0 %4884, %v4867
      %v4886 = vpop.permute.xlu0 %4885
      %4889 = vset.pattern.permute.xlu0 0
      %4890 = vperm.xlu0 %4889, %v4868
      %v4891 = vpop.permute.xlu0 %4890
      %4894 = vset.pattern.permute.xlu0 0
      %4895 = vperm.xlu0 %4894, %v4869
      %v4896 = vpop.permute.xlu0 %4895
      %4899 = vset.pattern.permute.xlu0 0
      %4900 = vperm.xlu0 %4899, %v4870
      %v4901 = vpop.permute.xlu0 %4900
      %4904 = vset.pattern.permute.xlu0 0
      %4905 = vperm.xlu0 %4904, %v4871
      %v4906 = vpop.permute.xlu0 %4905
      %4909 = vset.pattern.permute.xlu0 0
      %4910 = vperm.xlu0 %4909, %v4872
      %v4911 = vpop.permute.xlu0 %4910
      %v4913 = vadd.f32 %v4857, %v4876
      %v4914 = vadd.f32 %v4858, %v4881
      %v4915 = vadd.f32 %v4859, %v4886
      %v4916 = vadd.f32 %v4860, %v4891
      %v4917 = vadd.f32 %v4861, %v4896
      %v4918 = vadd.f32 %v4862, %v4901
      %v4919 = vadd.f32 %v4863, %v4906
      %v4920 = vadd.f32 %v4864, %v4911
      %v4921 = vmax.f32 %v4913, 0.0
      %v4922 = vmax.f32 %v4914, 0.0
      %v4923 = vmax.f32 %v4915, 0.0
      %v4924 = vmax.f32 %v4916, 0.0
      %v4925 = vmax.f32 %v4917, 0.0
      %v4926 = vmax.f32 %v4918, 0.0
      %v4927 = vmax.f32 %v4919, 0.0
      %v4928 = vmax.f32 %v4920, 0.0
      %v4929 = vpack.c.bf16 %v4922, %v4921
      %v4930 = vpack.c.bf16 %v4924, %v4923
      %v4931 = vpack.c.bf16 %v4926, %v4925
      %v4932 = vpack.c.bf16 %v4928, %v4927
      %4937 = vrot.lane.b32.xlu0 %v4929, 123
      %v4938 = vpop.permute.xlu0 %4937
      %4939 = vrot.lane.b32.xlu0 %v4930, 123
      %v4940 = vpop.permute.xlu0 %4939
      %4941 = vrot.lane.b32.xlu0 %v4931, 123
      %v4942 = vpop.permute.xlu0 %4941
      %4943 = vrot.lane.b32.xlu0 %v4932, 123
      %v4944 = vpop.permute.xlu0 %4943
      %4945 = vrot.lane.b32.xlu0 %v4929, 118
      %v4946 = vpop.permute.xlu0 %4945
      %4947 = vrot.lane.b32.xlu0 %v4930, 118
      %v4948 = vpop.permute.xlu0 %4947
      %4949 = vrot.lane.b32.xlu0 %v4931, 118
      %v4950 = vpop.permute.xlu0 %4949
      %4951 = vrot.lane.b32.xlu0 %v4932, 118
      %v4952 = vpop.permute.xlu0 %4951
      %4953 = vrot.lane.b32.xlu0 %v4929, 113
      %v4954 = vpop.permute.xlu0 %4953
      %4955 = vrot.lane.b32.xlu0 %v4930, 113
      %v4956 = vpop.permute.xlu0 %4955
      %4957 = vrot.lane.b32.xlu0 %v4931, 113
      %v4958 = vpop.permute.xlu0 %4957
      %4959 = vrot.lane.b32.xlu0 %v4932, 113
      %v4960 = vpop.permute.xlu0 %4959
      %4961 = vrot.lane.b32.xlu0 %v4929, 108
      %v4962 = vpop.permute.xlu0 %4961
      %4963 = vrot.lane.b32.xlu0 %v4930, 108
      %v4964 = vpop.permute.xlu0 %4963
      %4965 = vrot.lane.b32.xlu0 %v4931, 108
      %v4966 = vpop.permute.xlu0 %4965
      %4967 = vrot.lane.b32.xlu0 %v4932, 108
      %v4968 = vpop.permute.xlu0 %4967
      %4969 = vrot.lane.b32.xlu0 %v4929, 103
      %v4970 = vpop.permute.xlu0 %4969
      %4971 = vrot.lane.b32.xlu0 %v4930, 103
      %v4972 = vpop.permute.xlu0 %4971
      %4973 = vrot.lane.b32.xlu0 %v4931, 103
      %v4974 = vpop.permute.xlu0 %4973
      %4975 = vrot.lane.b32.xlu0 %v4932, 103
      %v4976 = vpop.permute.xlu0 %4975
      %4977 = vrot.lane.b32.xlu0 %v4929, 98
      %v4978 = vpop.permute.xlu0 %4977
      %4979 = vrot.lane.b32.xlu0 %v4930, 98
      %v4980 = vpop.permute.xlu0 %4979
      %4981 = vrot.lane.b32.xlu0 %v4931, 98
      %v4982 = vpop.permute.xlu0 %4981
      %4983 = vrot.lane.b32.xlu0 %v4932, 98
      %v4984 = vpop.permute.xlu0 %4983
      %vm4985 = vcmask 56320
      %v4988 = vsel %vm4985, %v4929, %v4938
      %v4991 = vsel %vm4985, %v4930, %v4940
      %v4994 = vsel %vm4985, %v4931, %v4942
      %v4997 = vsel %vm4985, %v4932, %v4944
      %vm4998 = vcmask 113664
      %v5000 = vsel %vm4998, %v4988, %v4946
      %v5002 = vsel %vm4998, %v4991, %v4948
      %v5004 = vsel %vm4998, %v4994, %v4950
      %v5006 = vsel %vm4998, %v4997, %v4952
      %vm5007 = vcmask 171008
      %v5009 = vsel %vm5007, %v5000, %v4954
      %v5011 = vsel %vm5007, %v5002, %v4956
      %v5013 = vsel %vm5007, %v5004, %v4958
      %v5015 = vsel %vm5007, %v5006, %v4960
      %vm5016 = vcmask 228352
      %v5018 = vsel %vm5016, %v5009, %v4962
      %v5020 = vsel %vm5016, %v5011, %v4964
      %v5022 = vsel %vm5016, %v5013, %v4966
      %v5024 = vsel %vm5016, %v5015, %v4968
      %vm5025 = vcmask 285696
      %v5027 = vsel %vm5025, %v5018, %v4970
      %v5029 = vsel %vm5025, %v5020, %v4972
      %v5031 = vsel %vm5025, %v5022, %v4974
      %v5033 = vsel %vm5025, %v5024, %v4976
      %vm5034 = vcmask 343040
      %v5036 = vsel %vm5034, %v5027, %v4978
      %v5038 = vsel %vm5034, %v5029, %v4980
      %v5040 = vsel %vm5034, %v5031, %v4982
      %v5042 = vsel %vm5034, %v5033, %v4984
      %v5043 = vshrl.u32 %v5036, 16
      %5045 = vrot.lane.b32.xlu0 %v5043, 49
      %v5046 = vpop.permute.xlu0 %5045
      %v5048 = vrot.slane %v5036, 1
      %5049 = vrot.lane.b32.xlu0 %v5048, 98
      %v5050 = vpop.permute.xlu0 %5049
      %v5051 = vrot.slane %v5043, 1
      %5052 = vrot.lane.b32.xlu0 %v5051, 19
      %v5053 = vpop.permute.xlu0 %5052
      %v5054 = vrot.slane %v5036, 2
      %5055 = vrot.lane.b32.xlu0 %v5054, 68
      %v5056 = vpop.permute.xlu0 %5055
      %v5057 = vrot.slane %v5043, 2
      %5058 = vrot.lane.b32.xlu0 %v5057, 117
      %v5059 = vpop.permute.xlu0 %5058
      %v5060 = vrot.slane %v5036, 3
      %5061 = vrot.lane.b32.xlu0 %v5060, 38
      %v5062 = vpop.permute.xlu0 %5061
      %v5063 = vrot.slane %v5043, 3
      %5064 = vrot.lane.b32.xlu0 %v5063, 87
      %v5065 = vpop.permute.xlu0 %5064
      %vm5066 = vcmask 400384
      %v5068 = vsel %vm5066, %v5036, %v5046
      %vm5069 = vcmask 801792
      %v5071 = vsel %vm5069, %v5068, %v5050
      %vm5073 = vcmask 154624
      %v5075 = vsel %vm5073, %v5050, %v5053
      %vm5076 = vcmask 556032
      %v5078 = vsel %vm5076, %v5075, %v5056
      %vm5079 = vcmask 957440
      %v5081 = vsel %vm5079, %v5078, %v5059
      %vm5083 = vcmask 310272
      %v5085 = vsel %vm5083, %v5059, %v5062
      %vm5086 = vcmask 711680
      %v5088 = vsel %vm5086, %v5085, %v5065
      %v5090 = vshrl.u32 %v5038, 16
      %5092 = vrot.lane.b32.xlu0 %v5090, 49
      %v5093 = vpop.permute.xlu0 %5092
      %v5095 = vrot.slane %v5038, 1
      %5096 = vrot.lane.b32.xlu0 %v5095, 98
      %v5097 = vpop.permute.xlu0 %5096
      %v5098 = vrot.slane %v5090, 1
      %5099 = vrot.lane.b32.xlu0 %v5098, 19
      %v5100 = vpop.permute.xlu0 %5099
      %v5101 = vrot.slane %v5038, 2
      %5102 = vrot.lane.b32.xlu0 %v5101, 68
      %v5103 = vpop.permute.xlu0 %5102
      %v5104 = vrot.slane %v5090, 2
      %5105 = vrot.lane.b32.xlu0 %v5104, 117
      %v5106 = vpop.permute.xlu0 %5105
      %v5107 = vrot.slane %v5038, 3
      %5108 = vrot.lane.b32.xlu0 %v5107, 38
      %v5109 = vpop.permute.xlu0 %5108
      %v5110 = vrot.slane %v5090, 3
      %5111 = vrot.lane.b32.xlu0 %v5110, 87
      %v5112 = vpop.permute.xlu0 %5111
      %v5114 = vsel %vm5066, %v5038, %v5093
      %v5116 = vsel %vm5069, %v5114, %v5097
      %v5118 = vsel %vm5073, %v5097, %v5100
      %v5120 = vsel %vm5076, %v5118, %v5103
      %v5122 = vsel %vm5079, %v5120, %v5106
      %v5124 = vsel %vm5083, %v5106, %v5109
      %v5126 = vsel %vm5086, %v5124, %v5112
      %v5127 = vshrl.u32 %v5040, 16
      %5129 = vrot.lane.b32.xlu0 %v5127, 49
      %v5130 = vpop.permute.xlu0 %5129
      %v5132 = vrot.slane %v5040, 1
      %5133 = vrot.lane.b32.xlu0 %v5132, 98
      %v5134 = vpop.permute.xlu0 %5133
      %v5135 = vrot.slane %v5127, 1
      %5136 = vrot.lane.b32.xlu0 %v5135, 19
      %v5137 = vpop.permute.xlu0 %5136
      %v5138 = vrot.slane %v5040, 2
      %5139 = vrot.lane.b32.xlu0 %v5138, 68
      %v5140 = vpop.permute.xlu0 %5139
      %v5141 = vrot.slane %v5127, 2
      %5142 = vrot.lane.b32.xlu0 %v5141, 117
      %v5143 = vpop.permute.xlu0 %5142
      %v5144 = vrot.slane %v5040, 3
      %5145 = vrot.lane.b32.xlu0 %v5144, 38
      %v5146 = vpop.permute.xlu0 %5145
      %v5147 = vrot.slane %v5127, 3
      %5148 = vrot.lane.b32.xlu0 %v5147, 87
      %v5149 = vpop.permute.xlu0 %5148
      %v5151 = vsel %vm5066, %v5040, %v5130
      %v5153 = vsel %vm5069, %v5151, %v5134
      %v5155 = vsel %vm5073, %v5134, %v5137
      %v5157 = vsel %vm5076, %v5155, %v5140
      %v5159 = vsel %vm5079, %v5157, %v5143
      %v5161 = vsel %vm5083, %v5143, %v5146
      %v5163 = vsel %vm5086, %v5161, %v5149
      %v5164 = vshrl.u32 %v5042, 16
      %5166 = vrot.lane.b32.xlu0 %v5164, 49
      %v5167 = vpop.permute.xlu0 %5166
      %v5169 = vrot.slane %v5042, 1
      %5170 = vrot.lane.b32.xlu0 %v5169, 98
      %v5171 = vpop.permute.xlu0 %5170
      %v5172 = vrot.slane %v5164, 1
      %5173 = vrot.lane.b32.xlu0 %v5172, 19
      %v5174 = vpop.permute.xlu0 %5173
      %v5175 = vrot.slane %v5042, 2
      %5176 = vrot.lane.b32.xlu0 %v5175, 68
      %v5177 = vpop.permute.xlu0 %5176
      %v5178 = vrot.slane %v5164, 2
      %5179 = vrot.lane.b32.xlu0 %v5178, 117
      %v5180 = vpop.permute.xlu0 %5179
      %v5181 = vrot.slane %v5042, 3
      %5182 = vrot.lane.b32.xlu0 %v5181, 38
      %v5183 = vpop.permute.xlu0 %5182
      %v5184 = vrot.slane %v5164, 3
      %5185 = vrot.lane.b32.xlu0 %v5184, 87
      %v5186 = vpop.permute.xlu0 %5185
      %v5188 = vsel %vm5066, %v5042, %v5167
      %v5190 = vsel %vm5069, %v5188, %v5171
      %v5192 = vsel %vm5073, %v5171, %v5174
      %v5194 = vsel %vm5076, %v5192, %v5177
      %v5196 = vsel %vm5079, %v5194, %v5180
      %v5198 = vsel %vm5083, %v5180, %v5183
      %v5200 = vsel %vm5086, %v5198, %v5186
      %v5204 = vrot.slane %v5071, 4
      %v5205 = vrot.slane %v5081, 4
      %v5206 = vrot.slane %v5088, 4
      %v5207 = vrot.slane %v5065, 4
      %5208 = vrot.lane.b32.xlu0 %v5204, 8
      %v5209 = vpop.permute.xlu0 %5208
      %5210 = vrot.lane.b32.xlu0 %v5205, 8
      %v5211 = vpop.permute.xlu0 %5210
      %5212 = vrot.lane.b32.xlu0 %v5206, 8
      %v5213 = vpop.permute.xlu0 %5212
      %5214 = vrot.lane.b32.xlu0 %v5207, 8
      %v5215 = vpop.permute.xlu0 %5214
      %vm5216 = vcmask 64512
      %v5217 = vsel %vm5216, %v5209, %v5211
      %v5218 = vsel %vm5216, %v5211, %v5213
      %v5219 = vsel %vm5216, %v5213, %v5215
      %5225 = vrot.lane.b32.xlu0 %v5116, 16
      %v5226 = vpop.permute.xlu0 %5225
      %5227 = vrot.lane.b32.xlu0 %v5122, 16
      %v5228 = vpop.permute.xlu0 %5227
      %5229 = vrot.lane.b32.xlu0 %v5126, 16
      %v5230 = vpop.permute.xlu0 %5229
      %5231 = vrot.lane.b32.xlu0 %v5112, 16
      %v5232 = vpop.permute.xlu0 %5231
      %vm5233 = vcmask 130048
      %v5234 = vsel %vm5233, %v5226, %v5228
      %v5235 = vsel %vm5233, %v5228, %v5230
      %v5236 = vsel %vm5233, %v5230, %v5232
      %v5239 = vrot.slane %v5116, 4
      %v5240 = vrot.slane %v5122, 4
      %v5241 = vrot.slane %v5126, 4
      %v5242 = vrot.slane %v5112, 4
      %5243 = vrot.lane.b32.xlu0 %v5239, 24
      %v5244 = vpop.permute.xlu0 %5243
      %5245 = vrot.lane.b32.xlu0 %v5240, 24
      %v5246 = vpop.permute.xlu0 %5245
      %5247 = vrot.lane.b32.xlu0 %v5241, 24
      %v5248 = vpop.permute.xlu0 %5247
      %5249 = vrot.lane.b32.xlu0 %v5242, 24
      %v5250 = vpop.permute.xlu0 %5249
      %vm5251 = vcmask 195584
      %v5252 = vsel %vm5251, %v5244, %v5246
      %v5253 = vsel %vm5251, %v5246, %v5248
      %v5254 = vsel %vm5251, %v5248, %v5250
      %5260 = vrot.lane.b32.xlu0 %v5153, 32
      %v5261 = vpop.permute.xlu0 %5260
      %5262 = vrot.lane.b32.xlu0 %v5159, 32
      %v5263 = vpop.permute.xlu0 %5262
      %5264 = vrot.lane.b32.xlu0 %v5163, 32
      %v5265 = vpop.permute.xlu0 %5264
      %5266 = vrot.lane.b32.xlu0 %v5149, 32
      %v5267 = vpop.permute.xlu0 %5266
      %vm5268 = vcmask 261120
      %v5269 = vsel %vm5268, %v5261, %v5263
      %v5270 = vsel %vm5268, %v5263, %v5265
      %v5271 = vsel %vm5268, %v5265, %v5267
      %v5274 = vrot.slane %v5153, 4
      %v5275 = vrot.slane %v5159, 4
      %v5276 = vrot.slane %v5163, 4
      %v5277 = vrot.slane %v5149, 4
      %5278 = vrot.lane.b32.xlu0 %v5274, 40
      %v5279 = vpop.permute.xlu0 %5278
      %5280 = vrot.lane.b32.xlu0 %v5275, 40
      %v5281 = vpop.permute.xlu0 %5280
      %5282 = vrot.lane.b32.xlu0 %v5276, 40
      %v5283 = vpop.permute.xlu0 %5282
      %5284 = vrot.lane.b32.xlu0 %v5277, 40
      %v5285 = vpop.permute.xlu0 %5284
      %vm5286 = vcmask 326656
      %v5287 = vsel %vm5286, %v5279, %v5281
      %v5288 = vsel %vm5286, %v5281, %v5283
      %v5289 = vsel %vm5286, %v5283, %v5285
      %5295 = vrot.lane.b32.xlu0 %v5190, 48
      %v5296 = vpop.permute.xlu0 %5295
      %5297 = vrot.lane.b32.xlu0 %v5196, 48
      %v5298 = vpop.permute.xlu0 %5297
      %5299 = vrot.lane.b32.xlu0 %v5200, 48
      %v5300 = vpop.permute.xlu0 %5299
      %5301 = vrot.lane.b32.xlu0 %v5186, 48
      %v5302 = vpop.permute.xlu0 %5301
      %vm5303 = vcmask 392192
      %v5304 = vsel %vm5303, %v5296, %v5298
      %v5305 = vsel %vm5303, %v5298, %v5300
      %v5306 = vsel %vm5303, %v5300, %v5302
      %v5309 = vrot.slane %v5190, 4
      %v5310 = vrot.slane %v5196, 4
      %v5311 = vrot.slane %v5200, 4
      %v5312 = vrot.slane %v5186, 4
      %5313 = vrot.lane.b32.xlu0 %v5309, 56
      %v5314 = vpop.permute.xlu0 %5313
      %5315 = vrot.lane.b32.xlu0 %v5310, 56
      %v5316 = vpop.permute.xlu0 %5315
      %5317 = vrot.lane.b32.xlu0 %v5311, 56
      %v5318 = vpop.permute.xlu0 %5317
      %5319 = vrot.lane.b32.xlu0 %v5312, 56
      %v5320 = vpop.permute.xlu0 %5319
      %vm5321 = vcmask 457728
      %v5322 = vsel %vm5321, %v5314, %v5316
      %v5323 = vsel %vm5321, %v5316, %v5318
      %v5324 = vsel %vm5321, %v5318, %v5320
      %vm5327 = vcmask 64512
      %v5329 = vsel %vm5327, %v5065, %v5209
      %vm5331 = vcmask 130048
      %v5334 = vsel %vm5331, %v5219, %v5226
      %vm5336 = vcmask 195584
      %v5339 = vsel %vm5336, %v5236, %v5244
      %v5343 = vsel %vm1836, %v5254, %v5261
      %vm5345 = vcmask 326656
      %v5348 = vsel %vm5345, %v5271, %v5279
      %vm5350 = vcmask 392192
      %v5353 = vsel %vm5350, %v5289, %v5296
      %vm5355 = vcmask 457728
      %v5358 = vsel %vm5355, %v5306, %v5314
      %v5360 = vld [vmem:[%s7] sm:$0xf]
      %v5361 = vld [vmem:[%s7 + $0x4] sm:$0xf]
      %v5362 = vld [vmem:[%s7 + $0x8] sm:$0xf]
      %v5363 = vld [vmem:[%s7 + $0xc] sm:$0xf]
      %v5364 = vld [vmem:[%s7 + $0x10] sm:$0xf]
      %v5365 = vld [vmem:[%s7 + $0x14] sm:$0xf]
      %v5366 = vld [vmem:[%s7 + $0x18] sm:$0xf]
      %v5367 = vld [vmem:[%s7 + $0x1c] sm:$0xf]
      %v5368 = vld [vmem:[%s7 + $0x20] sm:$0xf]
      %v5369 = vld [vmem:[%s7 + $0x24] sm:$0xf]
      %v5370 = vld [vmem:[%s7 + $0x28] sm:$0xf]
      %v5371 = vld [vmem:[%s7 + $0x2c] sm:$0xf]
      %v5372 = vld [vmem:[%s7 + $0x30] sm:$0xf]
      %v5373 = vld [vmem:[%s7 + $0x34] sm:$0xf]
      %v5374 = vld [vmem:[%s7 + $0x38] sm:$0xf]
      %v5375 = vld [vmem:[%s7 + $0x3c] sm:$0xf]
      %v5376 = vld [vmem:[%s7 + $0x40] sm:$0xf]
      %v5377 = vld [vmem:[%s7 + $0x44] sm:$0xf]
      %v5378 = vld [vmem:[%s7 + $0x48] sm:$0xf]
      %v5379 = vld [vmem:[%s7 + $0x4c] sm:$0xf]
      %v5380 = vld [vmem:[%s7 + $0x50] sm:$0xf]
      %v5381 = vld [vmem:[%s7 + $0x54] sm:$0xf]
      %v5382 = vld [vmem:[%s7 + $0x58] sm:$0xf]
      %v5383 = vld [vmem:[%s7 + $0x5c] sm:$0xf]
      %v5384 = vld [vmem:[%s7 + $0x60] sm:$0xf]
      %v5385 = vld [vmem:[%s7 + $0x64] sm:$0xf]
      %v5386 = vld [vmem:[%s7 + $0x68] sm:$0xf]
      %v5387 = vld [vmem:[%s7 + $0x6c] sm:$0xf]
      %v5388 = vld [vmem:[%s7 + $0x70] sm:$0xf]
      %v5389 = vld [vmem:[%s7 + $0x74] sm:$0xf]
      %v5390 = vld [vmem:[%s7 + $0x78] sm:$0xf]
      %v5391 = vld [vmem:[%s7 + $0x7c] sm:$0xf]
      %v5392 = vld [vmem:[%s7 + $0x80] sm:$0xf]
      %v5393 = vld [vmem:[%s7 + $0x84] sm:$0xf]
      %v5394 = vld [vmem:[%s7 + $0x88] sm:$0xf]
      %v5395 = vld [vmem:[%s7 + $0x8c] sm:$0xf]
      %v5396 = vld [vmem:[%s7 + $0x90] sm:$0xf]
      %v5397 = vld [vmem:[%s7 + $0x94] sm:$0xf]
      %v5398 = vld [vmem:[%s7 + $0x98] sm:$0xf]
      %v5399 = vld [vmem:[%s7 + $0x9c] sm:$0xf]
      %v5400 = vld [vmem:[%s7 + $0xa0] sm:$0xf]
      %v5401 = vld [vmem:[%s7 + $0xa4] sm:$0xf]
      %v5402 = vld [vmem:[%s7 + $0xa8] sm:$0xf]
      %v5403 = vld [vmem:[%s7 + $0xac] sm:$0xf]
      %v5404 = vld [vmem:[%s7 + $0xb0] sm:$0xf]
      %v5405 = vld [vmem:[%s7 + $0xb4] sm:$0xf]
      %v5406 = vld [vmem:[%s7 + $0xb8] sm:$0xf]
      %v5407 = vld [vmem:[%s7 + $0xbc] sm:$0xf]
      %v5408 = vld [vmem:[%s7 + $0xc0] sm:$0xf]
      %v5409 = vld [vmem:[%s7 + $0xc4] sm:$0xf]
      %v5410 = vld [vmem:[%s7 + $0xc8] sm:$0xf]
      %v5411 = vld [vmem:[%s7 + $0xcc] sm:$0xf]
      %v5412 = vld [vmem:[%s7 + $0xd0] sm:$0xf]
      %v5413 = vld [vmem:[%s7 + $0xd4] sm:$0xf]
      %v5414 = vld [vmem:[%s7 + $0xd8] sm:$0xf]
      %v5415 = vld [vmem:[%s7 + $0xdc] sm:$0xf]
      %v5416 = vld [vmem:[%s7 + $0xe0] sm:$0xf]
      %v5417 = vld [vmem:[%s7 + $0xe4] sm:$0xf]
      %v5418 = vld [vmem:[%s7 + $0xe8] sm:$0xf]
      %v5419 = vld [vmem:[%s7 + $0xec] sm:$0xf]
      %v5420 = vld [vmem:[%s7 + $0xf0] sm:$0xf]
      %v5421 = vld [vmem:[%s7 + $0xf4] sm:$0xf]
      %v5422 = vld [vmem:[%s7 + $0xf8] sm:$0xf]
      %v5423 = vld [vmem:[%s7 + $0xfc] sm:$0xf]
      %v5424 = vld [vmem:[%s7 + $0x100] sm:$0xf]
      %v5425 = vld [vmem:[%s7 + $0x104] sm:$0xf]
      %v5426 = vld [vmem:[%s7 + $0x108] sm:$0xf]
      %v5427 = vld [vmem:[%s7 + $0x10c] sm:$0xf]
      %v5428 = vld [vmem:[%s7 + $0x110] sm:$0xf]
      %v5429 = vld [vmem:[%s7 + $0x114] sm:$0xf]
      %v5430 = vld [vmem:[%s7 + $0x118] sm:$0xf]
      %v5431 = vld [vmem:[%s7 + $0x11c] sm:$0xf]
      %v5432 = vld [vmem:[%s7 + $0x120] sm:$0xf]
      %v5433 = vld [vmem:[%s7 + $0x124] sm:$0xf]
      %v5434 = vld [vmem:[%s7 + $0x128] sm:$0xf]
      %v5435 = vld [vmem:[%s7 + $0x12c] sm:$0xf]
      %v5436 = vld [vmem:[%s7 + $0x130] sm:$0xf]
      %v5437 = vld [vmem:[%s7 + $0x134] sm:$0xf]
      %v5438 = vld [vmem:[%s7 + $0x138] sm:$0xf]
      %v5439 = vld [vmem:[%s7 + $0x13c] sm:$0xf]
      %v5440 = vld [vmem:[%s7 + $0x140] sm:$0xf]
      %v5441 = vld [vmem:[%s7 + $0x144] sm:$0xf]
      %v5442 = vld [vmem:[%s7 + $0x148] sm:$0xf]
      %v5443 = vld [vmem:[%s7 + $0x14c] sm:$0xf]
      %v5444 = vld [vmem:[%s7 + $0x150] sm:$0xf]
      %v5445 = vld [vmem:[%s7 + $0x154] sm:$0xf]
      %v5446 = vld [vmem:[%s7 + $0x158] sm:$0xf]
      %v5447 = vld [vmem:[%s7 + $0x15c] sm:$0xf]
      %v5448 = vld [vmem:[%s7 + $0x160] sm:$0xf]
      %v5449 = vld [vmem:[%s7 + $0x164] sm:$0xf]
      %v5450 = vld [vmem:[%s7 + $0x168] sm:$0xf]
      %v5451 = vld [vmem:[%s7 + $0x16c] sm:$0xf]
      %v5452 = vld [vmem:[%s7 + $0x170] sm:$0xf]
      %v5453 = vld [vmem:[%s7 + $0x174] sm:$0xf]
      %v5454 = vld [vmem:[%s7 + $0x178] sm:$0xf]
      %v5455 = vld [vmem:[%s7 + $0x17c] sm:$0xf]
      %v5456 = vld [vmem:[%s7 + $0x180] sm:$0xf]
      %v5457 = vld [vmem:[%s7 + $0x184] sm:$0xf]
      %v5458 = vld [vmem:[%s7 + $0x188] sm:$0xf]
      %v5459 = vld [vmem:[%s7 + $0x18c] sm:$0xf]
      %v5460 = vld [vmem:[%s7 + $0x190] sm:$0xf]
      %v5461 = vld [vmem:[%s7 + $0x194] sm:$0xf]
      %v5462 = vld [vmem:[%s7 + $0x198] sm:$0xf]
      %v5463 = vld [vmem:[%s7 + $0x19c] sm:$0xf]
      %v5464 = vld [vmem:[%s7 + $0x1a0] sm:$0xf]
      %v5465 = vld [vmem:[%s7 + $0x1a4] sm:$0xf]
      %v5466 = vld [vmem:[%s7 + $0x1a8] sm:$0xf]
      %v5467 = vld [vmem:[%s7 + $0x1ac] sm:$0xf]
      %v5468 = vld [vmem:[%s7 + $0x1b0] sm:$0xf]
      %v5469 = vld [vmem:[%s7 + $0x1b4] sm:$0xf]
      %v5470 = vld [vmem:[%s7 + $0x1b8] sm:$0xf]
      %v5471 = vld [vmem:[%s7 + $0x1bc] sm:$0xf]
      %v5472 = vld [vmem:[%s7 + $0x1c0] sm:$0xf]
      %v5473 = vld [vmem:[%s7 + $0x1c4] sm:$0xf]
      %v5474 = vld [vmem:[%s7 + $0x1c8] sm:$0xf]
      %v5475 = vld [vmem:[%s7 + $0x1cc] sm:$0xf]
      %v5476 = vld [vmem:[%s7 + $0x1d0] sm:$0xf]
      %v5477 = vld [vmem:[%s7 + $0x1d4] sm:$0xf]
      %v5478 = vld [vmem:[%s7 + $0x1d8] sm:$0xf]
      %v5479 = vld [vmem:[%s7 + $0x1dc] sm:$0xf]
      %v5480 = vld [vmem:[%s7 + $0x1e0] sm:$0xf]
      %v5481 = vld [vmem:[%s7 + $0x1e4] sm:$0xf]
      %v5482 = vld [vmem:[%s7 + $0x1e8] sm:$0xf]
      %v5483 = vld [vmem:[%s7 + $0x1ec] sm:$0xf]
      %v5484 = vld [vmem:[%s7 + $0x1f0] sm:$0xf]
      %v5485 = vld [vmem:[%s7 + $0x1f4] sm:$0xf]
      %v5486 = vld [vmem:[%s7 + $0x1f8] sm:$0xf]
      %v5487 = vld [vmem:[%s7 + $0x1fc] sm:$0xf]
      %v5488 = vld [vmem:[%s7 + $0x200] sm:$0xf]
      %v5489 = vld [vmem:[%s7 + $0x204] sm:$0xf]
      %v5490 = vld [vmem:[%s7 + $0x208] sm:$0xf]
      %v5491 = vld [vmem:[%s7 + $0x20c] sm:$0xf]
      %v5492 = vld [vmem:[%s7 + $0x210] sm:$0xf]
      %v5493 = vld [vmem:[%s7 + $0x214] sm:$0xf]
      %v5494 = vld [vmem:[%s7 + $0x218] sm:$0xf]
      %v5495 = vld [vmem:[%s7 + $0x21c] sm:$0xf]
      %v5496 = vld [vmem:[%s7 + $0x220] sm:$0xf]
      %v5497 = vld [vmem:[%s7 + $0x224] sm:$0xf]
      %v5498 = vld [vmem:[%s7 + $0x228] sm:$0xf]
      %v5499 = vld [vmem:[%s7 + $0x22c] sm:$0xf]
      %v5500 = vld [vmem:[%s7 + $0x230] sm:$0xf]
      %v5501 = vld [vmem:[%s7 + $0x234] sm:$0xf]
      %v5502 = vld [vmem:[%s7 + $0x238] sm:$0xf]
      %v5503 = vld [vmem:[%s7 + $0x23c] sm:$0xf]
      %v5504 = vld [vmem:[%s7 + $0x240] sm:$0xf]
      %v5505 = vld [vmem:[%s7 + $0x244] sm:$0xf]
      %v5506 = vld [vmem:[%s7 + $0x248] sm:$0xf]
      %v5507 = vld [vmem:[%s7 + $0x24c] sm:$0xf]
      %v5508 = vld [vmem:[%s7 + $0x250] sm:$0xf]
      %v5509 = vld [vmem:[%s7 + $0x254] sm:$0xf]
      %v5510 = vld [vmem:[%s7 + $0x258] sm:$0xf]
      %v5511 = vld [vmem:[%s7 + $0x25c] sm:$0xf]
      %v5512 = vld [vmem:[%s7 + $0x260] sm:$0xf]
      %v5513 = vld [vmem:[%s7 + $0x264] sm:$0xf]
      %v5514 = vld [vmem:[%s7 + $0x268] sm:$0xf]
      %v5515 = vld [vmem:[%s7 + $0x26c] sm:$0xf]
      %v5516 = vld [vmem:[%s7 + $0x270] sm:$0xf]
      %v5517 = vld [vmem:[%s7 + $0x274] sm:$0xf]
      %v5518 = vld [vmem:[%s7 + $0x278] sm:$0xf]
      %v5519 = vld [vmem:[%s7 + $0x27c] sm:$0xf]
      %v5520 = vld [vmem:[%s7 + $0x280] sm:$0xf]
      %v5521 = vld [vmem:[%s7 + $0x284] sm:$0xf]
      %v5522 = vld [vmem:[%s7 + $0x288] sm:$0xf]
      %v5523 = vld [vmem:[%s7 + $0x28c] sm:$0xf]
      %v5524 = vld [vmem:[%s7 + $0x290] sm:$0xf]
      %v5525 = vld [vmem:[%s7 + $0x294] sm:$0xf]
      %v5526 = vld [vmem:[%s7 + $0x298] sm:$0xf]
      %v5527 = vld [vmem:[%s7 + $0x29c] sm:$0xf]
      %v5528 = vld [vmem:[%s7 + $0x2a0] sm:$0xf]
      %v5529 = vld [vmem:[%s7 + $0x2a4] sm:$0xf]
      %v5530 = vld [vmem:[%s7 + $0x2a8] sm:$0xf]
      %v5531 = vld [vmem:[%s7 + $0x2ac] sm:$0xf]
      %v5532 = vld [vmem:[%s7 + $0x2b0] sm:$0xf]
      %v5533 = vld [vmem:[%s7 + $0x2b4] sm:$0xf]
      %v5534 = vld [vmem:[%s7 + $0x2b8] sm:$0xf]
      %v5535 = vld [vmem:[%s7 + $0x2bc] sm:$0xf]
      %v5536 = vld [vmem:[%s7 + $0x2c0] sm:$0xf]
      %v5537 = vld [vmem:[%s7 + $0x2c4] sm:$0xf]
      %v5538 = vld [vmem:[%s7 + $0x2c8] sm:$0xf]
      %v5539 = vld [vmem:[%s7 + $0x2cc] sm:$0xf]
      %v5540 = vld [vmem:[%s7 + $0x2d0] sm:$0xf]
      %v5541 = vld [vmem:[%s7 + $0x2d4] sm:$0xf]
      %v5542 = vld [vmem:[%s7 + $0x2d8] sm:$0xf]
      %v5543 = vld [vmem:[%s7 + $0x2dc] sm:$0xf]
      %v5544 = vld [vmem:[%s7 + $0x2e0] sm:$0xf]
      %v5545 = vld [vmem:[%s7 + $0x2e4] sm:$0xf]
      %v5546 = vld [vmem:[%s7 + $0x2e8] sm:$0xf]
      %v5547 = vld [vmem:[%s7 + $0x2ec] sm:$0xf]
      %v5548 = vld [vmem:[%s7 + $0x2f0] sm:$0xf]
      %v5549 = vld [vmem:[%s7 + $0x2f4] sm:$0xf]
      %v5550 = vld [vmem:[%s7 + $0x2f8] sm:$0xf]
      %v5551 = vld [vmem:[%s7 + $0x2fc] sm:$0xf]
      %v5552 = vld [vmem:[%s7 + $0x300] sm:$0xf]
      %v5553 = vld [vmem:[%s7 + $0x304] sm:$0xf]
      %v5554 = vld [vmem:[%s7 + $0x308] sm:$0xf]
      %v5555 = vld [vmem:[%s7 + $0x30c] sm:$0xf]
      %v5556 = vld [vmem:[%s7 + $0x310] sm:$0xf]
      %v5557 = vld [vmem:[%s7 + $0x314] sm:$0xf]
      %v5558 = vld [vmem:[%s7 + $0x318] sm:$0xf]
      %v5559 = vld [vmem:[%s7 + $0x31c] sm:$0xf]
      %v5560 = vld [vmem:[%s7 + $0x320] sm:$0xf]
      %v5561 = vld [vmem:[%s7 + $0x324] sm:$0xf]
      %v5562 = vld [vmem:[%s7 + $0x328] sm:$0xf]
      %v5563 = vld [vmem:[%s7 + $0x32c] sm:$0xf]
      %v5564 = vld [vmem:[%s7 + $0x330] sm:$0xf]
      %v5565 = vld [vmem:[%s7 + $0x334] sm:$0xf]
      %v5566 = vld [vmem:[%s7 + $0x338] sm:$0xf]
      %v5567 = vld [vmem:[%s7 + $0x33c] sm:$0xf]
      %v5568 = vld [vmem:[%s7 + $0x340] sm:$0xf]
      %v5569 = vld [vmem:[%s7 + $0x344] sm:$0xf]
      %v5570 = vld [vmem:[%s7 + $0x348] sm:$0xf]
      %v5571 = vld [vmem:[%s7 + $0x34c] sm:$0xf]
      %v5572 = vld [vmem:[%s7 + $0x350] sm:$0xf]
      %v5573 = vld [vmem:[%s7 + $0x354] sm:$0xf]
      %v5574 = vld [vmem:[%s7 + $0x358] sm:$0xf]
      %v5575 = vld [vmem:[%s7 + $0x35c] sm:$0xf]
      %v5576 = vld [vmem:[%s7 + $0x360] sm:$0xf]
      %v5577 = vld [vmem:[%s7 + $0x364] sm:$0xf]
      %v5578 = vld [vmem:[%s7 + $0x368] sm:$0xf]
      %v5579 = vld [vmem:[%s7 + $0x36c] sm:$0xf]
      %v5580 = vld [vmem:[%s7 + $0x370] sm:$0xf]
      %v5581 = vld [vmem:[%s7 + $0x374] sm:$0xf]
      %v5582 = vld [vmem:[%s7 + $0x378] sm:$0xf]
      %v5583 = vld [vmem:[%s7 + $0x37c] sm:$0xf]
      %v5584 = vld [vmem:[%s7 + $0x380] sm:$0xf]
      %v5585 = vld [vmem:[%s7 + $0x384] sm:$0xf]
      %v5586 = vld [vmem:[%s7 + $0x388] sm:$0xf]
      %v5587 = vld [vmem:[%s7 + $0x38c] sm:$0xf]
      %v5588 = vld [vmem:[%s7 + $0x390] sm:$0xf]
      %v5589 = vld [vmem:[%s7 + $0x394] sm:$0xf]
      %v5590 = vld [vmem:[%s7 + $0x398] sm:$0xf]
      %v5591 = vld [vmem:[%s7 + $0x39c] sm:$0xf]
      %v5592 = vld [vmem:[%s7 + $0x3a0] sm:$0xf]
      %v5593 = vld [vmem:[%s7 + $0x3a4] sm:$0xf]
      %v5594 = vld [vmem:[%s7 + $0x3a8] sm:$0xf]
      %v5595 = vld [vmem:[%s7 + $0x3ac] sm:$0xf]
      %v5596 = vld [vmem:[%s7 + $0x3b0] sm:$0xf]
      %v5597 = vld [vmem:[%s7 + $0x3b4] sm:$0xf]
      %v5598 = vld [vmem:[%s7 + $0x3b8] sm:$0xf]
      %v5599 = vld [vmem:[%s7 + $0x3bc] sm:$0xf]
      %v5600 = vld [vmem:[%s7 + $0x3c0] sm:$0xf]
      %v5601 = vld [vmem:[%s7 + $0x3c4] sm:$0xf]
      %v5602 = vld [vmem:[%s7 + $0x3c8] sm:$0xf]
      %v5603 = vld [vmem:[%s7 + $0x3cc] sm:$0xf]
      %v5604 = vld [vmem:[%s7 + $0x3d0] sm:$0xf]
      %v5605 = vld [vmem:[%s7 + $0x3d4] sm:$0xf]
      %v5606 = vld [vmem:[%s7 + $0x3d8] sm:$0xf]
      %v5607 = vld [vmem:[%s7 + $0x3dc] sm:$0xf]
      %v5608 = vld [vmem:[%s7 + $0x3e0] sm:$0xf]
      %v5609 = vld [vmem:[%s7 + $0x3e4] sm:$0xf]
      %v5610 = vld [vmem:[%s7 + $0x3e8] sm:$0xf]
      %v5611 = vld [vmem:[%s7 + $0x3ec] sm:$0xf]
      %v5612 = vld [vmem:[%s7 + $0x3f0] sm:$0xf]
      %v5613 = vld [vmem:[%s7 + $0x3f4] sm:$0xf]
      %v5614 = vld [vmem:[%s7 + $0x3f8] sm:$0xf]
      %v5615 = vld [vmem:[%s7 + $0x3fc] sm:$0xf]
      %v5616 = vld [vmem:[%s7 + $0x400] sm:$0xf]
      %v5617 = vld [vmem:[%s7 + $0x404] sm:$0xf]
      %v5618 = vld [vmem:[%s7 + $0x408] sm:$0xf]
      %v5619 = vld [vmem:[%s7 + $0x40c] sm:$0xf]
      %v5620 = vld [vmem:[%s7 + $0x410] sm:$0xf]
      %v5621 = vld [vmem:[%s7 + $0x414] sm:$0xf]
      %v5622 = vld [vmem:[%s7 + $0x418] sm:$0xf]
      %v5623 = vld [vmem:[%s7 + $0x41c] sm:$0xf]
      %v5624 = vld [vmem:[%s7 + $0x420] sm:$0xf]
      %v5625 = vld [vmem:[%s7 + $0x424] sm:$0xf]
      %v5626 = vld [vmem:[%s7 + $0x428] sm:$0xf]
      %v5627 = vld [vmem:[%s7 + $0x42c] sm:$0xf]
      %v5628 = vld [vmem:[%s7 + $0x430] sm:$0xf]
      %v5629 = vld [vmem:[%s7 + $0x434] sm:$0xf]
      %v5630 = vld [vmem:[%s7 + $0x438] sm:$0xf]
      %v5631 = vld [vmem:[%s7 + $0x43c] sm:$0xf]
      %v5632 = vld [vmem:[%s7 + $0x440] sm:$0xf]
      %v5633 = vld [vmem:[%s7 + $0x444] sm:$0xf]
      %v5634 = vld [vmem:[%s7 + $0x448] sm:$0xf]
      %v5635 = vld [vmem:[%s7 + $0x44c] sm:$0xf]
      %v5636 = vld [vmem:[%s7 + $0x450] sm:$0xf]
      %v5637 = vld [vmem:[%s7 + $0x454] sm:$0xf]
      %v5638 = vld [vmem:[%s7 + $0x458] sm:$0xf]
      %v5639 = vld [vmem:[%s7 + $0x45c] sm:$0xf]
      %v5640 = vld [vmem:[%s7 + $0x460] sm:$0xf]
      %v5641 = vld [vmem:[%s7 + $0x464] sm:$0xf]
      %v5642 = vld [vmem:[%s7 + $0x468] sm:$0xf]
      %v5643 = vld [vmem:[%s7 + $0x46c] sm:$0xf]
      %v5644 = vld [vmem:[%s7 + $0x470] sm:$0xf]
      %v5645 = vld [vmem:[%s7 + $0x474] sm:$0xf]
      %v5646 = vld [vmem:[%s7 + $0x478] sm:$0xf]
      %v5647 = vld [vmem:[%s7 + $0x47c] sm:$0xf]
      %v5648 = vld [vmem:[%s7 + $0x480] sm:$0xf]
      %v5649 = vld [vmem:[%s7 + $0x484] sm:$0xf]
      %v5650 = vld [vmem:[%s7 + $0x488] sm:$0xf]
      %v5651 = vld [vmem:[%s7 + $0x48c] sm:$0xf]
      %v5652 = vld [vmem:[%s7 + $0x490] sm:$0xf]
      %v5653 = vld [vmem:[%s7 + $0x494] sm:$0xf]
      %v5654 = vld [vmem:[%s7 + $0x498] sm:$0xf]
      %v5655 = vld [vmem:[%s7 + $0x49c] sm:$0xf]
      %v5656 = vld [vmem:[%s7 + $0x4a0] sm:$0xf]
      %v5657 = vld [vmem:[%s7 + $0x4a4] sm:$0xf]
      %v5658 = vld [vmem:[%s7 + $0x4a8] sm:$0xf]
      %v5659 = vld [vmem:[%s7 + $0x4ac] sm:$0xf]
      %v5660 = vld [vmem:[%s7 + $0x4b0] sm:$0xf]
      %v5661 = vld [vmem:[%s7 + $0x4b4] sm:$0xf]
      %v5662 = vld [vmem:[%s7 + $0x4b8] sm:$0xf]
      %v5663 = vld [vmem:[%s7 + $0x4bc] sm:$0xf]
      %v5664 = vld [vmem:[%s7 + $0x4c0] sm:$0xf]
      %v5665 = vld [vmem:[%s7 + $0x4c4] sm:$0xf]
      %v5666 = vld [vmem:[%s7 + $0x4c8] sm:$0xf]
      %v5667 = vld [vmem:[%s7 + $0x4cc] sm:$0xf]
      %v5668 = vld [vmem:[%s7 + $0x4d0] sm:$0xf]
      %v5669 = vld [vmem:[%s7 + $0x4d4] sm:$0xf]
      %v5670 = vld [vmem:[%s7 + $0x4d8] sm:$0xf]
      %v5671 = vld [vmem:[%s7 + $0x4dc] sm:$0xf]
      %v5672 = vld [vmem:[%s7 + $0x4e0] sm:$0xf]
      %v5673 = vld [vmem:[%s7 + $0x4e4] sm:$0xf]
      %v5674 = vld [vmem:[%s7 + $0x4e8] sm:$0xf]
      %v5675 = vld [vmem:[%s7 + $0x4ec] sm:$0xf]
      %v5676 = vld [vmem:[%s7 + $0x4f0] sm:$0xf]
      %v5677 = vld [vmem:[%s7 + $0x4f4] sm:$0xf]
      %v5678 = vld [vmem:[%s7 + $0x4f8] sm:$0xf]
      %v5679 = vld [vmem:[%s7 + $0x4fc] sm:$0xf]
      %v5680 = vld [vmem:[%s7 + $0x500] sm:$0xf]
      %v5681 = vld [vmem:[%s7 + $0x504] sm:$0xf]
      %v5682 = vld [vmem:[%s7 + $0x508] sm:$0xf]
      %v5683 = vld [vmem:[%s7 + $0x50c] sm:$0xf]
      %v5684 = vld [vmem:[%s7 + $0x510] sm:$0xf]
      %v5685 = vld [vmem:[%s7 + $0x514] sm:$0xf]
      %v5686 = vld [vmem:[%s7 + $0x518] sm:$0xf]
      %v5687 = vld [vmem:[%s7 + $0x51c] sm:$0xf]
      %v5688 = vld [vmem:[%s7 + $0x520] sm:$0xf]
      %v5689 = vld [vmem:[%s7 + $0x524] sm:$0xf]
      %v5690 = vld [vmem:[%s7 + $0x528] sm:$0xf]
      %v5691 = vld [vmem:[%s7 + $0x52c] sm:$0xf]
      %v5692 = vld [vmem:[%s7 + $0x530] sm:$0xf]
      %v5693 = vld [vmem:[%s7 + $0x534] sm:$0xf]
      %v5694 = vld [vmem:[%s7 + $0x538] sm:$0xf]
      %v5695 = vld [vmem:[%s7 + $0x53c] sm:$0xf]
      %v5696 = vld [vmem:[%s7 + $0x540] sm:$0xf]
      %v5697 = vld [vmem:[%s7 + $0x544] sm:$0xf]
      %v5698 = vld [vmem:[%s7 + $0x548] sm:$0xf]
      %v5699 = vld [vmem:[%s7 + $0x54c] sm:$0xf]
      %v5700 = vld [vmem:[%s7 + $0x550] sm:$0xf]
      %v5701 = vld [vmem:[%s7 + $0x554] sm:$0xf]
      %v5702 = vld [vmem:[%s7 + $0x558] sm:$0xf]
      %v5703 = vld [vmem:[%s7 + $0x55c] sm:$0xf]
      %v5704 = vld [vmem:[%s7 + $0x560] sm:$0xf]
      %v5705 = vld [vmem:[%s7 + $0x564] sm:$0xf]
      %v5706 = vld [vmem:[%s7 + $0x568] sm:$0xf]
      %v5707 = vld [vmem:[%s7 + $0x56c] sm:$0xf]
      %v5708 = vld [vmem:[%s7 + $0x570] sm:$0xf]
      %v5709 = vld [vmem:[%s7 + $0x574] sm:$0xf]
      %v5710 = vld [vmem:[%s7 + $0x578] sm:$0xf]
      %v5711 = vld [vmem:[%s7 + $0x57c] sm:$0xf]
      %v5712 = vld [vmem:[%s7 + $0x580] sm:$0xf]
      %v5713 = vld [vmem:[%s7 + $0x584] sm:$0xf]
      %v5714 = vld [vmem:[%s7 + $0x588] sm:$0xf]
      %v5715 = vld [vmem:[%s7 + $0x58c] sm:$0xf]
      %v5716 = vld [vmem:[%s7 + $0x590] sm:$0xf]
      %v5717 = vld [vmem:[%s7 + $0x594] sm:$0xf]
      %v5718 = vld [vmem:[%s7 + $0x598] sm:$0xf]
      %v5719 = vld [vmem:[%s7 + $0x59c] sm:$0xf]
      %v5720 = vld [vmem:[%s7 + $0x5a0] sm:$0xf]
      %v5721 = vld [vmem:[%s7 + $0x5a4] sm:$0xf]
      %v5722 = vld [vmem:[%s7 + $0x5a8] sm:$0xf]
      %v5723 = vld [vmem:[%s7 + $0x5ac] sm:$0xf]
      %v5724 = vld [vmem:[%s7 + $0x5b0] sm:$0xf]
      %v5725 = vld [vmem:[%s7 + $0x5b4] sm:$0xf]
      %v5726 = vld [vmem:[%s7 + $0x5b8] sm:$0xf]
      %v5727 = vld [vmem:[%s7 + $0x5bc] sm:$0xf]
      %v5728 = vld [vmem:[%s7 + $0x5c0] sm:$0xf]
      %v5729 = vld [vmem:[%s7 + $0x5c4] sm:$0xf]
      %v5730 = vld [vmem:[%s7 + $0x5c8] sm:$0xf]
      %v5731 = vld [vmem:[%s7 + $0x5cc] sm:$0xf]
      %v5732 = vld [vmem:[%s7 + $0x5d0] sm:$0xf]
      %v5733 = vld [vmem:[%s7 + $0x5d4] sm:$0xf]
      %v5734 = vld [vmem:[%s7 + $0x5d8] sm:$0xf]
      %v5735 = vld [vmem:[%s7 + $0x5dc] sm:$0xf]
      %v5736 = vld [vmem:[%s7 + $0x5e0] sm:$0xf]
      %v5737 = vld [vmem:[%s7 + $0x5e4] sm:$0xf]
      %v5738 = vld [vmem:[%s7 + $0x5e8] sm:$0xf]
      %v5739 = vld [vmem:[%s7 + $0x5ec] sm:$0xf]
      %v5740 = vld [vmem:[%s7 + $0x5f0] sm:$0xf]
      %v5741 = vld [vmem:[%s7 + $0x5f4] sm:$0xf]
      %v5742 = vld [vmem:[%s7 + $0x5f8] sm:$0xf]
      %v5743 = vld [vmem:[%s7 + $0x5fc] sm:$0xf]
      %v5744 = vld [vmem:[%s7 + $0x600] sm:$0xf]
      %v5745 = vld [vmem:[%s7 + $0x604] sm:$0xf]
      %v5746 = vld [vmem:[%s7 + $0x608] sm:$0xf]
      %v5747 = vld [vmem:[%s7 + $0x60c] sm:$0xf]
      %v5748 = vld [vmem:[%s7 + $0x610] sm:$0xf]
      %v5749 = vld [vmem:[%s7 + $0x614] sm:$0xf]
      %v5750 = vld [vmem:[%s7 + $0x618] sm:$0xf]
      %v5751 = vld [vmem:[%s7 + $0x61c] sm:$0xf]
      %v5752 = vld [vmem:[%s8] sm:$0x1]
      %v6145 = vunpack.c.l.b16 %v5360
      %v6146 = vunpack.c.l.b16 %v5361
      %v6147 = vunpack.c.l.b16 %v5362
      %v6148 = vunpack.c.l.b16 %v5363
      %v6149 = vunpack.c.l.b16 %v5364
      %v6150 = vunpack.c.l.b16 %v5365
      %v6151 = vunpack.c.l.b16 %v5366
      %v6152 = vunpack.c.l.b16 %v5367
      %v6153 = vunpack.c.l.b16 %v5368
      %v6154 = vunpack.c.l.b16 %v5369
      %v6155 = vunpack.c.l.b16 %v5370
      %v6156 = vunpack.c.l.b16 %v5371
      %v6157 = vunpack.c.l.b16 %v5372
      %v6158 = vunpack.c.l.b16 %v5373
      %v6159 = vunpack.c.l.b16 %v5374
      %v6160 = vunpack.c.l.b16 %v5375
      %v6161 = vunpack.c.l.b16 %v5376
      %v6162 = vunpack.c.l.b16 %v5377
      %v6163 = vunpack.c.l.b16 %v5378
      %v6164 = vunpack.c.l.b16 %v5379
      %v6165 = vunpack.c.l.b16 %v5380
      %v6166 = vunpack.c.l.b16 %v5381
      %v6167 = vunpack.c.l.b16 %v5382
      %v6168 = vunpack.c.l.b16 %v5383
      %v6169 = vunpack.c.l.b16 %v5384
      %v6170 = vunpack.c.l.b16 %v5385
      %v6171 = vunpack.c.l.b16 %v5386
      %v6172 = vunpack.c.l.b16 %v5387
      %v6173 = vunpack.c.l.b16 %v5388
      %v6174 = vunpack.c.l.b16 %v5389
      %v6175 = vunpack.c.l.b16 %v5390
      %v6176 = vunpack.c.l.b16 %v5391
      %v6177 = vunpack.c.l.b16 %v5392
      %v6178 = vunpack.c.l.b16 %v5393
      %v6179 = vunpack.c.l.b16 %v5394
      %v6180 = vunpack.c.l.b16 %v5395
      %v6181 = vunpack.c.l.b16 %v5396
      %v6182 = vunpack.c.l.b16 %v5397
      %v6183 = vunpack.c.l.b16 %v5398
      %v6184 = vunpack.c.l.b16 %v5399
      %v6185 = vunpack.c.l.b16 %v5400
      %v6186 = vunpack.c.l.b16 %v5401
      %v6187 = vunpack.c.l.b16 %v5402
      %v6188 = vunpack.c.l.b16 %v5403
      %v6189 = vunpack.c.l.b16 %v5404
      %v6190 = vunpack.c.l.b16 %v5405
      %v6191 = vunpack.c.l.b16 %v5406
      %v6192 = vunpack.c.l.b16 %v5407
      %v6193 = vunpack.c.l.b16 %v5408
      %v6194 = vunpack.c.l.b16 %v5409
      %v6195 = vunpack.c.l.b16 %v5410
      %v6196 = vunpack.c.l.b16 %v5411
      %v6197 = vunpack.c.l.b16 %v5412
      %v6198 = vunpack.c.l.b16 %v5413
      %v6199 = vunpack.c.l.b16 %v5414
      %v6200 = vunpack.c.l.b16 %v5415
      %v6201 = vunpack.c.l.b16 %v5416
      %v6202 = vunpack.c.l.b16 %v5417
      %v6203 = vunpack.c.l.b16 %v5418
      %v6204 = vunpack.c.l.b16 %v5419
      %v6205 = vunpack.c.l.b16 %v5420
      %v6206 = vunpack.c.l.b16 %v5421
      %v6207 = vunpack.c.l.b16 %v5422
      %v6208 = vunpack.c.l.b16 %v5423
      %v6209 = vunpack.c.l.b16 %v5424
      %v6210 = vunpack.c.l.b16 %v5425
      %v6211 = vunpack.c.l.b16 %v5426
      %v6212 = vunpack.c.l.b16 %v5427
      %v6213 = vunpack.c.l.b16 %v5428
      %v6214 = vunpack.c.l.b16 %v5429
      %v6215 = vunpack.c.l.b16 %v5430
      %v6216 = vunpack.c.l.b16 %v5431
      %v6217 = vunpack.c.l.b16 %v5432
      %v6218 = vunpack.c.l.b16 %v5433
      %v6219 = vunpack.c.l.b16 %v5434
      %v6220 = vunpack.c.l.b16 %v5435
      %v6221 = vunpack.c.l.b16 %v5436
      %v6222 = vunpack.c.l.b16 %v5437
      %v6223 = vunpack.c.l.b16 %v5438
      %v6224 = vunpack.c.l.b16 %v5439
      %v6225 = vunpack.c.l.b16 %v5440
      %v6226 = vunpack.c.l.b16 %v5441
      %v6227 = vunpack.c.l.b16 %v5442
      %v6228 = vunpack.c.l.b16 %v5443
      %v6229 = vunpack.c.l.b16 %v5444
      %v6230 = vunpack.c.l.b16 %v5445
      %v6231 = vunpack.c.l.b16 %v5446
      %v6232 = vunpack.c.l.b16 %v5447
      %v6233 = vunpack.c.l.b16 %v5448
      %v6234 = vunpack.c.l.b16 %v5449
      %v6235 = vunpack.c.l.b16 %v5450
      %v6236 = vunpack.c.l.b16 %v5451
      %v6237 = vunpack.c.l.b16 %v5452
      %v6238 = vunpack.c.l.b16 %v5453
      %v6239 = vunpack.c.l.b16 %v5454
      %v6240 = vunpack.c.l.b16 %v5455
      %v6241 = vunpack.c.l.b16 %v5456
      %v6242 = vunpack.c.l.b16 %v5457
      %v6243 = vunpack.c.l.b16 %v5458
      %v6244 = vunpack.c.l.b16 %v5459
      %v6245 = vunpack.c.l.b16 %v5460
      %v6246 = vunpack.c.l.b16 %v5461
      %v6247 = vunpack.c.l.b16 %v5462
      %v6248 = vunpack.c.l.b16 %v5463
      %v6249 = vunpack.c.l.b16 %v5464
      %v6250 = vunpack.c.l.b16 %v5465
      %v6251 = vunpack.c.l.b16 %v5466
      %v6252 = vunpack.c.l.b16 %v5467
      %v6253 = vunpack.c.l.b16 %v5468
      %v6254 = vunpack.c.l.b16 %v5469
      %v6255 = vunpack.c.l.b16 %v5470
      %v6256 = vunpack.c.l.b16 %v5471
      %v6257 = vunpack.c.l.b16 %v5472
      %v6258 = vunpack.c.l.b16 %v5473
      %v6259 = vunpack.c.l.b16 %v5474
      %v6260 = vunpack.c.l.b16 %v5475
      %v6261 = vunpack.c.l.b16 %v5476
      %v6262 = vunpack.c.l.b16 %v5477
      %v6263 = vunpack.c.l.b16 %v5478
      %v6264 = vunpack.c.l.b16 %v5479
      %v6265 = vunpack.c.l.b16 %v5480
      %v6266 = vunpack.c.l.b16 %v5481
      %v6267 = vunpack.c.l.b16 %v5482
      %v6268 = vunpack.c.l.b16 %v5483
      %v6269 = vunpack.c.l.b16 %v5484
      %v6270 = vunpack.c.l.b16 %v5485
      %v6271 = vunpack.c.l.b16 %v5486
      %v6272 = vunpack.c.l.b16 %v5487
      %v6273 = vunpack.c.l.b16 %v5488
      %v6274 = vunpack.c.l.b16 %v5489
      %v6275 = vunpack.c.l.b16 %v5490
      %v6276 = vunpack.c.l.b16 %v5491
      %v6277 = vunpack.c.l.b16 %v5492
      %v6278 = vunpack.c.l.b16 %v5493
      %v6279 = vunpack.c.l.b16 %v5494
      %v6280 = vunpack.c.l.b16 %v5495
      %v6281 = vunpack.c.l.b16 %v5496
      %v6282 = vunpack.c.l.b16 %v5497
      %v6283 = vunpack.c.l.b16 %v5498
      %v6284 = vunpack.c.l.b16 %v5499
      %v6285 = vunpack.c.l.b16 %v5500
      %v6286 = vunpack.c.l.b16 %v5501
      %v6287 = vunpack.c.l.b16 %v5502
      %v6288 = vunpack.c.l.b16 %v5503
      %v6289 = vunpack.c.l.b16 %v5504
      %v6290 = vunpack.c.l.b16 %v5505
      %v6291 = vunpack.c.l.b16 %v5506
      %v6292 = vunpack.c.l.b16 %v5507
      %v6293 = vunpack.c.l.b16 %v5508
      %v6294 = vunpack.c.l.b16 %v5509
      %v6295 = vunpack.c.l.b16 %v5510
      %v6296 = vunpack.c.l.b16 %v5511
      %v6297 = vunpack.c.l.b16 %v5512
      %v6298 = vunpack.c.l.b16 %v5513
      %v6299 = vunpack.c.l.b16 %v5514
      %v6300 = vunpack.c.l.b16 %v5515
      %v6301 = vunpack.c.l.b16 %v5516
      %v6302 = vunpack.c.l.b16 %v5517
      %v6303 = vunpack.c.l.b16 %v5518
      %v6304 = vunpack.c.l.b16 %v5519
      %v6305 = vunpack.c.l.b16 %v5520
      %v6306 = vunpack.c.l.b16 %v5521
      %v6307 = vunpack.c.l.b16 %v5522
      %v6308 = vunpack.c.l.b16 %v5523
      %v6309 = vunpack.c.l.b16 %v5524
      %v6310 = vunpack.c.l.b16 %v5525
      %v6311 = vunpack.c.l.b16 %v5526
      %v6312 = vunpack.c.l.b16 %v5527
      %v6313 = vunpack.c.l.b16 %v5528
      %v6314 = vunpack.c.l.b16 %v5529
      %v6315 = vunpack.c.l.b16 %v5530
      %v6316 = vunpack.c.l.b16 %v5531
      %v6317 = vunpack.c.l.b16 %v5532
      %v6318 = vunpack.c.l.b16 %v5533
      %v6319 = vunpack.c.l.b16 %v5534
      %v6320 = vunpack.c.l.b16 %v5535
      %v6321 = vunpack.c.l.b16 %v5536
      %v6322 = vunpack.c.l.b16 %v5537
      %v6323 = vunpack.c.l.b16 %v5538
      %v6324 = vunpack.c.l.b16 %v5539
      %v6325 = vunpack.c.l.b16 %v5540
      %v6326 = vunpack.c.l.b16 %v5541
      %v6327 = vunpack.c.l.b16 %v5542
      %v6328 = vunpack.c.l.b16 %v5543
      %v6329 = vunpack.c.l.b16 %v5544
      %v6330 = vunpack.c.l.b16 %v5545
      %v6331 = vunpack.c.l.b16 %v5546
      %v6332 = vunpack.c.l.b16 %v5547
      %v6333 = vunpack.c.l.b16 %v5548
      %v6334 = vunpack.c.l.b16 %v5549
      %v6335 = vunpack.c.l.b16 %v5550
      %v6336 = vunpack.c.l.b16 %v5551
      %v6337 = vunpack.c.l.b16 %v5552
      %v6338 = vunpack.c.l.b16 %v5553
      %v6339 = vunpack.c.l.b16 %v5554
      %v6340 = vunpack.c.l.b16 %v5555
      %v6341 = vunpack.c.l.b16 %v5556
      %v6342 = vunpack.c.l.b16 %v5557
      %v6343 = vunpack.c.l.b16 %v5558
      %v6344 = vunpack.c.l.b16 %v5559
      %v6345 = vunpack.c.l.b16 %v5560
      %v6346 = vunpack.c.l.b16 %v5561
      %v6347 = vunpack.c.l.b16 %v5562
      %v6348 = vunpack.c.l.b16 %v5563
      %v6349 = vunpack.c.l.b16 %v5564
      %v6350 = vunpack.c.l.b16 %v5565
      %v6351 = vunpack.c.l.b16 %v5566
      %v6352 = vunpack.c.l.b16 %v5567
      %v6353 = vunpack.c.l.b16 %v5568
      %v6354 = vunpack.c.l.b16 %v5569
      %v6355 = vunpack.c.l.b16 %v5570
      %v6356 = vunpack.c.l.b16 %v5571
      %v6357 = vunpack.c.l.b16 %v5572
      %v6358 = vunpack.c.l.b16 %v5573
      %v6359 = vunpack.c.l.b16 %v5574
      %v6360 = vunpack.c.l.b16 %v5575
      %v6361 = vunpack.c.l.b16 %v5576
      %v6362 = vunpack.c.l.b16 %v5577
      %v6363 = vunpack.c.l.b16 %v5578
      %v6364 = vunpack.c.l.b16 %v5579
      %v6365 = vunpack.c.l.b16 %v5580
      %v6366 = vunpack.c.l.b16 %v5581
      %v6367 = vunpack.c.l.b16 %v5582
      %v6368 = vunpack.c.l.b16 %v5583
      %v6369 = vunpack.c.l.b16 %v5584
      %v6370 = vunpack.c.l.b16 %v5585
      %v6371 = vunpack.c.l.b16 %v5586
      %v6372 = vunpack.c.l.b16 %v5587
      %v6373 = vunpack.c.l.b16 %v5588
      %v6374 = vunpack.c.l.b16 %v5589
      %v6375 = vunpack.c.l.b16 %v5590
      %v6376 = vunpack.c.l.b16 %v5591
      %v6377 = vunpack.c.l.b16 %v5592
      %v6378 = vunpack.c.l.b16 %v5593
      %v6379 = vunpack.c.l.b16 %v5594
      %v6380 = vunpack.c.l.b16 %v5595
      %v6381 = vunpack.c.l.b16 %v5596
      %v6382 = vunpack.c.l.b16 %v5597
      %v6383 = vunpack.c.l.b16 %v5598
      %v6384 = vunpack.c.l.b16 %v5599
      %v6385 = vunpack.c.l.b16 %v5600
      %v6386 = vunpack.c.l.b16 %v5601
      %v6387 = vunpack.c.l.b16 %v5602
      %v6388 = vunpack.c.l.b16 %v5603
      %v6389 = vunpack.c.l.b16 %v5604
      %v6390 = vunpack.c.l.b16 %v5605
      %v6391 = vunpack.c.l.b16 %v5606
      %v6392 = vunpack.c.l.b16 %v5607
      %v6393 = vunpack.c.l.b16 %v5608
      %v6394 = vunpack.c.l.b16 %v5609
      %v6395 = vunpack.c.l.b16 %v5610
      %v6396 = vunpack.c.l.b16 %v5611
      %v6397 = vunpack.c.l.b16 %v5612
      %v6398 = vunpack.c.l.b16 %v5613
      %v6399 = vunpack.c.l.b16 %v5614
      %v6400 = vunpack.c.l.b16 %v5615
      %v6401 = vunpack.c.l.b16 %v5616
      %v6402 = vunpack.c.l.b16 %v5617
      %v6403 = vunpack.c.l.b16 %v5618
      %v6404 = vunpack.c.l.b16 %v5619
      %v6405 = vunpack.c.l.b16 %v5620
      %v6406 = vunpack.c.l.b16 %v5621
      %v6407 = vunpack.c.l.b16 %v5622
      %v6408 = vunpack.c.l.b16 %v5623
      %v6409 = vunpack.c.l.b16 %v5624
      %v6410 = vunpack.c.l.b16 %v5625
      %v6411 = vunpack.c.l.b16 %v5626
      %v6412 = vunpack.c.l.b16 %v5627
      %v6413 = vunpack.c.l.b16 %v5628
      %v6414 = vunpack.c.l.b16 %v5629
      %v6415 = vunpack.c.l.b16 %v5630
      %v6416 = vunpack.c.l.b16 %v5631
      %v6417 = vunpack.c.l.b16 %v5632
      %v6418 = vunpack.c.l.b16 %v5633
      %v6419 = vunpack.c.l.b16 %v5634
      %v6420 = vunpack.c.l.b16 %v5635
      %v6421 = vunpack.c.l.b16 %v5636
      %v6422 = vunpack.c.l.b16 %v5637
      %v6423 = vunpack.c.l.b16 %v5638
      %v6424 = vunpack.c.l.b16 %v5639
      %v6425 = vunpack.c.l.b16 %v5640
      %v6426 = vunpack.c.l.b16 %v5641
      %v6427 = vunpack.c.l.b16 %v5642
      %v6428 = vunpack.c.l.b16 %v5643
      %v6429 = vunpack.c.l.b16 %v5644
      %v6430 = vunpack.c.l.b16 %v5645
      %v6431 = vunpack.c.l.b16 %v5646
      %v6432 = vunpack.c.l.b16 %v5647
      %v6433 = vunpack.c.l.b16 %v5648
      %v6434 = vunpack.c.l.b16 %v5649
      %v6435 = vunpack.c.l.b16 %v5650
      %v6436 = vunpack.c.l.b16 %v5651
      %v6437 = vunpack.c.l.b16 %v5652
      %v6438 = vunpack.c.l.b16 %v5653
      %v6439 = vunpack.c.l.b16 %v5654
      %v6440 = vunpack.c.l.b16 %v5655
      %v6441 = vunpack.c.l.b16 %v5656
      %v6442 = vunpack.c.l.b16 %v5657
      %v6443 = vunpack.c.l.b16 %v5658
      %v6444 = vunpack.c.l.b16 %v5659
      %v6445 = vunpack.c.l.b16 %v5660
      %v6446 = vunpack.c.l.b16 %v5661
      %v6447 = vunpack.c.l.b16 %v5662
      %v6448 = vunpack.c.l.b16 %v5663
      %v6449 = vunpack.c.l.b16 %v5664
      %v6450 = vunpack.c.l.b16 %v5665
      %v6451 = vunpack.c.l.b16 %v5666
      %v6452 = vunpack.c.l.b16 %v5667
      %v6453 = vunpack.c.l.b16 %v5668
      %v6454 = vunpack.c.l.b16 %v5669
      %v6455 = vunpack.c.l.b16 %v5670
      %v6456 = vunpack.c.l.b16 %v5671
      %v6457 = vunpack.c.l.b16 %v5672
      %v6458 = vunpack.c.l.b16 %v5673
      %v6459 = vunpack.c.l.b16 %v5674
      %v6460 = vunpack.c.l.b16 %v5675
      %v6461 = vunpack.c.l.b16 %v5676
      %v6462 = vunpack.c.l.b16 %v5677
      %v6463 = vunpack.c.l.b16 %v5678
      %v6464 = vunpack.c.l.b16 %v5679
      %v6465 = vunpack.c.l.b16 %v5680
      %v6466 = vunpack.c.l.b16 %v5681
      %v6467 = vunpack.c.l.b16 %v5682
      %v6468 = vunpack.c.l.b16 %v5683
      %v6469 = vunpack.c.l.b16 %v5684
      %v6470 = vunpack.c.l.b16 %v5685
      %v6471 = vunpack.c.l.b16 %v5686
      %v6472 = vunpack.c.l.b16 %v5687
      %v6473 = vunpack.c.l.b16 %v5688
      %v6474 = vunpack.c.l.b16 %v5689
      %v6475 = vunpack.c.l.b16 %v5690
      %v6476 = vunpack.c.l.b16 %v5691
      %v6477 = vunpack.c.l.b16 %v5692
      %v6478 = vunpack.c.l.b16 %v5693
      %v6479 = vunpack.c.l.b16 %v5694
      %v6480 = vunpack.c.l.b16 %v5695
      %v6481 = vunpack.c.l.b16 %v5696
      %v6482 = vunpack.c.l.b16 %v5697
      %v6483 = vunpack.c.l.b16 %v5698
      %v6484 = vunpack.c.l.b16 %v5699
      %v6485 = vunpack.c.l.b16 %v5700
      %v6486 = vunpack.c.l.b16 %v5701
      %v6487 = vunpack.c.l.b16 %v5702
      %v6488 = vunpack.c.l.b16 %v5703
      %v6489 = vunpack.c.l.b16 %v5704
      %v6490 = vunpack.c.l.b16 %v5705
      %v6491 = vunpack.c.l.b16 %v5706
      %v6492 = vunpack.c.l.b16 %v5707
      %v6493 = vunpack.c.l.b16 %v5708
      %v6494 = vunpack.c.l.b16 %v5709
      %v6495 = vunpack.c.l.b16 %v5710
      %v6496 = vunpack.c.l.b16 %v5711
      %v6497 = vunpack.c.l.b16 %v5712
      %v6498 = vunpack.c.l.b16 %v5713
      %v6499 = vunpack.c.l.b16 %v5714
      %v6500 = vunpack.c.l.b16 %v5715
      %v6501 = vunpack.c.l.b16 %v5716
      %v6502 = vunpack.c.l.b16 %v5717
      %v6503 = vunpack.c.l.b16 %v5718
      %v6504 = vunpack.c.l.b16 %v5719
      %v6505 = vunpack.c.l.b16 %v5720
      %v6506 = vunpack.c.l.b16 %v5721
      %v6507 = vunpack.c.l.b16 %v5722
      %v6508 = vunpack.c.l.b16 %v5723
      %v6509 = vunpack.c.l.b16 %v5724
      %v6510 = vunpack.c.l.b16 %v5725
      %v6511 = vunpack.c.l.b16 %v5726
      %v6512 = vunpack.c.l.b16 %v5727
      %v6513 = vunpack.c.l.b16 %v5728
      %v6514 = vunpack.c.l.b16 %v5729
      %v6515 = vunpack.c.l.b16 %v5730
      %v6516 = vunpack.c.l.b16 %v5731
      %v6517 = vunpack.c.l.b16 %v5732
      %v6518 = vunpack.c.l.b16 %v5733
      %v6519 = vunpack.c.l.b16 %v5734
      %v6520 = vunpack.c.l.b16 %v5735
      %v6521 = vunpack.c.l.b16 %v5736
      %v6522 = vunpack.c.l.b16 %v5737
      %v6523 = vunpack.c.l.b16 %v5738
      %v6524 = vunpack.c.l.b16 %v5739
      %v6525 = vunpack.c.l.b16 %v5740
      %v6526 = vunpack.c.l.b16 %v5741
      %v6527 = vunpack.c.l.b16 %v5742
      %v6528 = vunpack.c.l.b16 %v5743
      %v6529 = vunpack.c.l.b16 %v5744
      %v6530 = vunpack.c.l.b16 %v5745
      %v6531 = vunpack.c.l.b16 %v5746
      %v6532 = vunpack.c.l.b16 %v5747
      %v6533 = vunpack.c.l.b16 %v5748
      %v6534 = vunpack.c.l.b16 %v5749
      %v6535 = vunpack.c.l.b16 %v5750
      %v6536 = vunpack.c.l.b16 %v5751
      %v6537 = vpack.c.b16 %v6146, %v6145
      %v6538 = vpack.c.b16 %v6148, %v6147
      %v6539 = vpack.c.b16 %v6150, %v6149
      %v6540 = vpack.c.b16 %v6152, %v6151
      %v6541 = vpack.c.b16 %v6154, %v6153
      %v6542 = vpack.c.b16 %v6156, %v6155
      %v6543 = vpack.c.b16 %v6158, %v6157
      %v6544 = vpack.c.b16 %v6160, %v6159
      %v6545 = vpack.c.b16 %v6162, %v6161
      %v6546 = vpack.c.b16 %v6164, %v6163
      %v6547 = vpack.c.b16 %v6166, %v6165
      %v6548 = vpack.c.b16 %v6168, %v6167
      %v6549 = vpack.c.b16 %v6170, %v6169
      %v6550 = vpack.c.b16 %v6172, %v6171
      %v6551 = vpack.c.b16 %v6174, %v6173
      %v6552 = vpack.c.b16 %v6176, %v6175
      %v6553 = vpack.c.b16 %v6178, %v6177
      %v6554 = vpack.c.b16 %v6180, %v6179
      %v6555 = vpack.c.b16 %v6182, %v6181
      %v6556 = vpack.c.b16 %v6184, %v6183
      %v6557 = vpack.c.b16 %v6186, %v6185
      %v6558 = vpack.c.b16 %v6188, %v6187
      %v6559 = vpack.c.b16 %v6190, %v6189
      %v6560 = vpack.c.b16 %v6192, %v6191
      %v6561 = vpack.c.b16 %v6194, %v6193
      %v6562 = vpack.c.b16 %v6196, %v6195
      %v6563 = vpack.c.b16 %v6198, %v6197
      %v6564 = vpack.c.b16 %v6200, %v6199
      %v6565 = vpack.c.b16 %v6202, %v6201
      %v6566 = vpack.c.b16 %v6204, %v6203
      %v6567 = vpack.c.b16 %v6206, %v6205
      %v6568 = vpack.c.b16 %v6208, %v6207
      %v6569 = vpack.c.b16 %v6210, %v6209
      %v6570 = vpack.c.b16 %v6212, %v6211
      %v6571 = vpack.c.b16 %v6214, %v6213
      %v6572 = vpack.c.b16 %v6216, %v6215
      %v6573 = vpack.c.b16 %v6218, %v6217
      %v6574 = vpack.c.b16 %v6220, %v6219
      %v6575 = vpack.c.b16 %v6222, %v6221
      %v6576 = vpack.c.b16 %v6224, %v6223
      %v6577 = vpack.c.b16 %v6226, %v6225
      %v6578 = vpack.c.b16 %v6228, %v6227
      %v6579 = vpack.c.b16 %v6230, %v6229
      %v6580 = vpack.c.b16 %v6232, %v6231
      %v6581 = vpack.c.b16 %v6234, %v6233
      %v6582 = vpack.c.b16 %v6236, %v6235
      %v6583 = vpack.c.b16 %v6238, %v6237
      %v6584 = vpack.c.b16 %v6240, %v6239
      %v6585 = vpack.c.b16 %v6242, %v6241
      %v6586 = vpack.c.b16 %v6244, %v6243
      %v6587 = vpack.c.b16 %v6246, %v6245
      %v6588 = vpack.c.b16 %v6248, %v6247
      %v6589 = vpack.c.b16 %v6250, %v6249
      %v6590 = vpack.c.b16 %v6252, %v6251
      %v6591 = vpack.c.b16 %v6254, %v6253
      %v6592 = vpack.c.b16 %v6256, %v6255
      %v6593 = vpack.c.b16 %v6258, %v6257
      %v6594 = vpack.c.b16 %v6260, %v6259
      %v6595 = vpack.c.b16 %v6262, %v6261
      %v6596 = vpack.c.b16 %v6264, %v6263
      %v6597 = vpack.c.b16 %v6266, %v6265
      %v6598 = vpack.c.b16 %v6268, %v6267
      %v6599 = vpack.c.b16 %v6270, %v6269
      %v6600 = vpack.c.b16 %v6272, %v6271
      %v6601 = vpack.c.b16 %v6274, %v6273
      %v6602 = vpack.c.b16 %v6276, %v6275
      %v6603 = vpack.c.b16 %v6278, %v6277
      %v6604 = vpack.c.b16 %v6280, %v6279
      %v6605 = vpack.c.b16 %v6282, %v6281
      %v6606 = vpack.c.b16 %v6284, %v6283
      %v6607 = vpack.c.b16 %v6286, %v6285
      %v6608 = vpack.c.b16 %v6288, %v6287
      %v6609 = vpack.c.b16 %v6290, %v6289
      %v6610 = vpack.c.b16 %v6292, %v6291
      %v6611 = vpack.c.b16 %v6294, %v6293
      %v6612 = vpack.c.b16 %v6296, %v6295
      %v6613 = vpack.c.b16 %v6298, %v6297
      %v6614 = vpack.c.b16 %v6300, %v6299
      %v6615 = vpack.c.b16 %v6302, %v6301
      %v6616 = vpack.c.b16 %v6304, %v6303
      %v6617 = vpack.c.b16 %v6306, %v6305
      %v6618 = vpack.c.b16 %v6308, %v6307
      %v6619 = vpack.c.b16 %v6310, %v6309
      %v6620 = vpack.c.b16 %v6312, %v6311
      %v6621 = vpack.c.b16 %v6314, %v6313
      %v6622 = vpack.c.b16 %v6316, %v6315
      %v6623 = vpack.c.b16 %v6318, %v6317
      %v6624 = vpack.c.b16 %v6320, %v6319
      %v6625 = vpack.c.b16 %v6322, %v6321
      %v6626 = vpack.c.b16 %v6324, %v6323
      %v6627 = vpack.c.b16 %v6326, %v6325
      %v6628 = vpack.c.b16 %v6328, %v6327
      %v6629 = vpack.c.b16 %v6330, %v6329
      %v6630 = vpack.c.b16 %v6332, %v6331
      %v6631 = vpack.c.b16 %v6334, %v6333
      %v6632 = vpack.c.b16 %v6336, %v6335
      %v6633 = vpack.c.b16 %v6338, %v6337
      %v6634 = vpack.c.b16 %v6340, %v6339
      %v6635 = vpack.c.b16 %v6342, %v6341
      %v6636 = vpack.c.b16 %v6344, %v6343
      %v6637 = vpack.c.b16 %v6346, %v6345
      %v6638 = vpack.c.b16 %v6348, %v6347
      %v6639 = vpack.c.b16 %v6350, %v6349
      %v6640 = vpack.c.b16 %v6352, %v6351
      %v6641 = vpack.c.b16 %v6354, %v6353
      %v6642 = vpack.c.b16 %v6356, %v6355
      %v6643 = vpack.c.b16 %v6358, %v6357
      %v6644 = vpack.c.b16 %v6360, %v6359
      %v6645 = vpack.c.b16 %v6362, %v6361
      %v6646 = vpack.c.b16 %v6364, %v6363
      %v6647 = vpack.c.b16 %v6366, %v6365
      %v6648 = vpack.c.b16 %v6368, %v6367
      %v6649 = vpack.c.b16 %v6370, %v6369
      %v6650 = vpack.c.b16 %v6372, %v6371
      %v6651 = vpack.c.b16 %v6374, %v6373
      %v6652 = vpack.c.b16 %v6376, %v6375
      %v6653 = vpack.c.b16 %v6378, %v6377
      %v6654 = vpack.c.b16 %v6380, %v6379
      %v6655 = vpack.c.b16 %v6382, %v6381
      %v6656 = vpack.c.b16 %v6384, %v6383
      %v6657 = vpack.c.b16 %v6386, %v6385
      %v6658 = vpack.c.b16 %v6388, %v6387
      %v6659 = vpack.c.b16 %v6390, %v6389
      %v6660 = vpack.c.b16 %v6392, %v6391
      %v6661 = vpack.c.b16 %v6394, %v6393
      %v6662 = vpack.c.b16 %v6396, %v6395
      %v6663 = vpack.c.b16 %v6398, %v6397
      %v6664 = vpack.c.b16 %v6400, %v6399
      %v6665 = vpack.c.b16 %v6402, %v6401
      %v6666 = vpack.c.b16 %v6404, %v6403
      %v6667 = vpack.c.b16 %v6406, %v6405
      %v6668 = vpack.c.b16 %v6408, %v6407
      %v6669 = vpack.c.b16 %v6410, %v6409
      %v6670 = vpack.c.b16 %v6412, %v6411
      %v6671 = vpack.c.b16 %v6414, %v6413
      %v6672 = vpack.c.b16 %v6416, %v6415
      %v6673 = vpack.c.b16 %v6418, %v6417
      %v6674 = vpack.c.b16 %v6420, %v6419
      %v6675 = vpack.c.b16 %v6422, %v6421
      %v6676 = vpack.c.b16 %v6424, %v6423
      %v6677 = vpack.c.b16 %v6426, %v6425
      %v6678 = vpack.c.b16 %v6428, %v6427
      %v6679 = vpack.c.b16 %v6430, %v6429
      %v6680 = vpack.c.b16 %v6432, %v6431
      %v6681 = vpack.c.b16 %v6434, %v6433
      %v6682 = vpack.c.b16 %v6436, %v6435
      %v6683 = vpack.c.b16 %v6438, %v6437
      %v6684 = vpack.c.b16 %v6440, %v6439
      %v6685 = vpack.c.b16 %v6442, %v6441
      %v6686 = vpack.c.b16 %v6444, %v6443
      %v6687 = vpack.c.b16 %v6446, %v6445
      %v6688 = vpack.c.b16 %v6448, %v6447
      %v6689 = vpack.c.b16 %v6450, %v6449
      %v6690 = vpack.c.b16 %v6452, %v6451
      %v6691 = vpack.c.b16 %v6454, %v6453
      %v6692 = vpack.c.b16 %v6456, %v6455
      %v6693 = vpack.c.b16 %v6458, %v6457
      %v6694 = vpack.c.b16 %v6460, %v6459
      %v6695 = vpack.c.b16 %v6462, %v6461
      %v6696 = vpack.c.b16 %v6464, %v6463
      %v6697 = vpack.c.b16 %v6466, %v6465
      %v6698 = vpack.c.b16 %v6468, %v6467
      %v6699 = vpack.c.b16 %v6470, %v6469
      %v6700 = vpack.c.b16 %v6472, %v6471
      %v6701 = vpack.c.b16 %v6474, %v6473
      %v6702 = vpack.c.b16 %v6476, %v6475
      %v6703 = vpack.c.b16 %v6478, %v6477
      %v6704 = vpack.c.b16 %v6480, %v6479
      %v6705 = vpack.c.b16 %v6482, %v6481
      %v6706 = vpack.c.b16 %v6484, %v6483
      %v6707 = vpack.c.b16 %v6486, %v6485
      %v6708 = vpack.c.b16 %v6488, %v6487
      %v6709 = vpack.c.b16 %v6490, %v6489
      %v6710 = vpack.c.b16 %v6492, %v6491
      %v6711 = vpack.c.b16 %v6494, %v6493
      %v6712 = vpack.c.b16 %v6496, %v6495
      %v6713 = vpack.c.b16 %v6498, %v6497
      %v6714 = vpack.c.b16 %v6500, %v6499
      %v6715 = vpack.c.b16 %v6502, %v6501
      %v6716 = vpack.c.b16 %v6504, %v6503
      %v6717 = vpack.c.b16 %v6506, %v6505
      %v6718 = vpack.c.b16 %v6508, %v6507
      %v6719 = vpack.c.b16 %v6510, %v6509
      %v6720 = vpack.c.b16 %v6512, %v6511
      %v6721 = vpack.c.b16 %v6514, %v6513
      %v6722 = vpack.c.b16 %v6516, %v6515
      %v6723 = vpack.c.b16 %v6518, %v6517
      %v6724 = vpack.c.b16 %v6520, %v6519
      %v6725 = vpack.c.b16 %v6522, %v6521
      %v6726 = vpack.c.b16 %v6524, %v6523
      %v6727 = vpack.c.b16 %v6526, %v6525
      %v6728 = vpack.c.b16 %v6528, %v6527
      %v6729 = vpack.c.b16 %v6530, %v6529
      %v6730 = vpack.c.b16 %v6532, %v6531
      %v6731 = vpack.c.b16 %v6534, %v6533
      %v6732 = vpack.c.b16 %v6536, %v6535
      %v6930 = vsel %vm3808, %v5324, 0
      %6932 = vmatprep.subr.bf16.mxu0 0
      %6933 = vmatpush1.bf16.msra.mxu0 %v6537
      %6934 = vmatprep.subr.bf16.mxu0 0
      %6935 = vmatpush1.bf16.msra.mxu0 %v6538
      %6936 = vmatprep.subr.bf16.mxu0 0
      %6937 = vmatpush1.bf16.msra.mxu0 %v6539
      %6938 = vmatprep.subr.bf16.mxu0 0
      %6939 = vmatpush1.bf16.msra.mxu0 %v6540
      %6940 = vmatprep.subr.bf16.mxu0 0
      %6941 = vmatpush1.bf16.msra.mxu0 %v6541
      %6942 = vmatprep.subr.bf16.mxu0 0
      %6943 = vmatpush1.bf16.msra.mxu0 %v6542
      %6944 = vmatprep.subr.bf16.mxu0 0
      %6945 = vmatpush1.bf16.msra.mxu0 %v6543
      %6946 = vmatprep.subr.bf16.mxu0 0
      %6947 = vmatpush1.bf16.msra.mxu0 %v6544
      %6948 = vmatprep.subr.bf16.mxu0 0
      %6949 = vmatpush1.bf16.msra.mxu0 %v6545
      %6950 = vmatprep.subr.bf16.mxu0 0
      %6951 = vmatpush1.bf16.msra.mxu0 %v6546
      %6952 = vmatprep.subr.bf16.mxu0 0
      %6953 = vmatpush1.bf16.msra.mxu0 %v6547
      %6954 = vmatprep.subr.bf16.mxu0 0
      %6955 = vmatpush1.bf16.msra.mxu0 %v6548
      %6956 = vmatprep.subr.bf16.mxu0 0
      %6957 = vmatpush1.bf16.msra.mxu0 %v6549
      %6958 = vmatprep.subr.bf16.mxu0 0
      %6959 = vmatpush1.bf16.msra.mxu0 %v6550
      %6960 = vmatprep.subr.bf16.mxu0 0
      %6961 = vmatpush1.bf16.msra.mxu0 %v6551
      %6962 = vmatprep.subr.bf16.mxu0 0
      %6963 = vmatpush1.bf16.msra.mxu0 %v6552
      %6964 = vmatprep.mubr.bf16.mxu0 %v5081
      %6965 = vmatmul.mubr.bf16.gmra.mrb[0].mxu0 %v5071
      %v6966 = vpop.f32.mrb[0].mxu0
      %v6967 = vadd.f32 %v5752, %v6966
      %v6968 = vpop.f32.mrb[0].mxu0
      %v6969 = vpop.f32.mrb[0].mxu0
      %v6970 = vpop.f32.mrb[0].mxu0
      %6971 = vdwg.mxu0
      %6972 = vmatprep.subr.bf16.mxu0 0
      %6973 = vmatpush1.bf16.msra.mxu0 %v6553
      %6974 = vmatprep.subr.bf16.mxu0 0
      %6975 = vmatpush1.bf16.msra.mxu0 %v6554
      %6976 = vmatprep.subr.bf16.mxu0 0
      %6977 = vmatpush1.bf16.msra.mxu0 %v6555
      %6978 = vmatprep.subr.bf16.mxu0 0
      %6979 = vmatpush1.bf16.msra.mxu0 %v6556
      %6980 = vmatprep.subr.bf16.mxu0 0
      %6981 = vmatpush1.bf16.msra.mxu0 %v6557
      %6982 = vmatprep.subr.bf16.mxu0 0
      %6983 = vmatpush1.bf16.msra.mxu0 %v6558
      %6984 = vmatprep.subr.bf16.mxu0 0
      %6985 = vmatpush1.bf16.msra.mxu0 %v6559
      %6986 = vmatprep.subr.bf16.mxu0 0
      %6987 = vmatpush1.bf16.msra.mxu0 %v6560
      %6988 = vmatprep.subr.bf16.mxu0 0
      %6989 = vmatpush1.bf16.msra.mxu0 %v6561
      %6990 = vmatprep.subr.bf16.mxu0 0
      %6991 = vmatpush1.bf16.msra.mxu0 %v6562
      %6992 = vmatprep.subr.bf16.mxu0 0
      %6993 = vmatpush1.bf16.msra.mxu0 %v6563
      %6994 = vmatprep.subr.bf16.mxu0 0
      %6995 = vmatpush1.bf16.msra.mxu0 %v6564
      %6996 = vmatprep.subr.bf16.mxu0 0
      %6997 = vmatpush1.bf16.msra.mxu0 %v6565
      %6998 = vmatprep.subr.bf16.mxu0 0
      %6999 = vmatpush1.bf16.msra.mxu0 %v6566
      %7000 = vmatprep.subr.bf16.mxu0 0
      %7001 = vmatpush1.bf16.msra.mxu0 %v6567
      %7002 = vmatprep.subr.bf16.mxu0 0
      %7003 = vmatpush1.bf16.msra.mxu0 %v6568
      %7004 = vmatprep.mubr.bf16.mxu0 %v5329
      %7005 = vmatmul.mubr.bf16.gmra.mrb[0].mxu0 %v5088
      %v7006 = vpop.f32.mrb[0].mxu0
      %v7007 = vadd.f32 %v6967, %v7006
      %v7008 = vpop.f32.mrb[0].mxu0
      %v7009 = vpop.f32.mrb[0].mxu0
      %v7010 = vpop.f32.mrb[0].mxu0
      %7011 = vdwg.mxu0
      %7012 = vmatprep.subr.bf16.mxu0 0
      %7013 = vmatpush1.bf16.msra.mxu0 %v6569
      %7014 = vmatprep.subr.bf16.mxu0 0
      %7015 = vmatpush1.bf16.msra.mxu0 %v6570
      %7016 = vmatprep.subr.bf16.mxu0 0
      %7017 = vmatpush1.bf16.msra.mxu0 %v6571
      %7018 = vmatprep.subr.bf16.mxu0 0
      %7019 = vmatpush1.bf16.msra.mxu0 %v6572
      %7020 = vmatprep.subr.bf16.mxu0 0
      %7021 = vmatpush1.bf16.msra.mxu0 %v6573
      %7022 = vmatprep.subr.bf16.mxu0 0
      %7023 = vmatpush1.bf16.msra.mxu0 %v6574
      %7024 = vmatprep.subr.bf16.mxu0 0
      %7025 = vmatpush1.bf16.msra.mxu0 %v6575
      %7026 = vmatprep.subr.bf16.mxu0 0
      %7027 = vmatpush1.bf16.msra.mxu0 %v6576
      %7028 = vmatprep.subr.bf16.mxu0 0
      %7029 = vmatpush1.bf16.msra.mxu0 %v6577
      %7030 = vmatprep.subr.bf16.mxu0 0
      %7031 = vmatpush1.bf16.msra.mxu0 %v6578
      %7032 = vmatprep.subr.bf16.mxu0 0
      %7033 = vmatpush1.bf16.msra.mxu0 %v6579
      %7034 = vmatprep.subr.bf16.mxu0 0
      %7035 = vmatpush1.bf16.msra.mxu0 %v6580
      %7036 = vmatprep.subr.bf16.mxu0 0
      %7037 = vmatpush1.bf16.msra.mxu0 %v6581
      %7038 = vmatprep.subr.bf16.mxu0 0
      %7039 = vmatpush1.bf16.msra.mxu0 %v6582
      %7040 = vmatprep.subr.bf16.mxu0 0
      %7041 = vmatpush1.bf16.msra.mxu0 %v6583
      %7042 = vmatprep.subr.bf16.mxu0 0
      %7043 = vmatpush1.bf16.msra.mxu0 %v6584
      %7044 = vmatprep.mubr.bf16.mxu0 %v5218
      %7045 = vmatmul.mubr.bf16.gmra.mrb[0].mxu0 %v5217
      %v7046 = vpop.f32.mrb[0].mxu0
      %v7047 = vadd.f32 %v7007, %v7046
      %v7048 = vpop.f32.mrb[0].mxu0
      %v7049 = vpop.f32.mrb[0].mxu0
      %v7050 = vpop.f32.mrb[0].mxu0
      %7051 = vdwg.mxu0
      %7052 = vmatprep.subr.bf16.mxu0 0
      %7053 = vmatpush1.bf16.msra.mxu0 %v6585
      %7054 = vmatprep.subr.bf16.mxu0 0
      %7055 = vmatpush1.bf16.msra.mxu0 %v6586
      %7056 = vmatprep.subr.bf16.mxu0 0
      %7057 = vmatpush1.bf16.msra.mxu0 %v6587
      %7058 = vmatprep.subr.bf16.mxu0 0
      %7059 = vmatpush1.bf16.msra.mxu0 %v6588
      %7060 = vmatprep.subr.bf16.mxu0 0
      %7061 = vmatpush1.bf16.msra.mxu0 %v6589
      %7062 = vmatprep.subr.bf16.mxu0 0
      %7063 = vmatpush1.bf16.msra.mxu0 %v6590
      %7064 = vmatprep.subr.bf16.mxu0 0
      %7065 = vmatpush1.bf16.msra.mxu0 %v6591
      %7066 = vmatprep.subr.bf16.mxu0 0
      %7067 = vmatpush1.bf16.msra.mxu0 %v6592
      %7068 = vmatprep.subr.bf16.mxu0 0
      %7069 = vmatpush1.bf16.msra.mxu0 %v6593
      %7070 = vmatprep.subr.bf16.mxu0 0
      %7071 = vmatpush1.bf16.msra.mxu0 %v6594
      %7072 = vmatprep.subr.bf16.mxu0 0
      %7073 = vmatpush1.bf16.msra.mxu0 %v6595
      %7074 = vmatprep.subr.bf16.mxu0 0
      %7075 = vmatpush1.bf16.msra.mxu0 %v6596
      %7076 = vmatprep.subr.bf16.mxu0 0
      %7077 = vmatpush1.bf16.msra.mxu0 %v6597
      %7078 = vmatprep.subr.bf16.mxu0 0
      %7079 = vmatpush1.bf16.msra.mxu0 %v6598
      %7080 = vmatprep.subr.bf16.mxu0 0
      %7081 = vmatpush1.bf16.msra.mxu0 %v6599
      %7082 = vmatprep.subr.bf16.mxu0 0
      %7083 = vmatpush1.bf16.msra.mxu0 %v6600
      %7084 = vmatprep.mubr.bf16.mxu0 %v5234
      %7085 = vmatmul.mubr.bf16.gmra.mrb[0].mxu0 %v5334
      %v7086 = vpop.f32.mrb[0].mxu0
      %v7087 = vadd.f32 %v7047, %v7086
      %v7088 = vpop.f32.mrb[0].mxu0
      %v7089 = vpop.f32.mrb[0].mxu0
      %v7090 = vpop.f32.mrb[0].mxu0
      %7091 = vdwg.mxu0
      %7092 = vmatprep.subr.bf16.mxu0 0
      %7093 = vmatpush1.bf16.msra.mxu0 %v6601
      %7094 = vmatprep.subr.bf16.mxu0 0
      %7095 = vmatpush1.bf16.msra.mxu0 %v6602
      %7096 = vmatprep.subr.bf16.mxu0 0
      %7097 = vmatpush1.bf16.msra.mxu0 %v6603
      %7098 = vmatprep.subr.bf16.mxu0 0
      %7099 = vmatpush1.bf16.msra.mxu0 %v6604
      %7100 = vmatprep.subr.bf16.mxu0 0
      %7101 = vmatpush1.bf16.msra.mxu0 %v6605
      %7102 = vmatprep.subr.bf16.mxu0 0
      %7103 = vmatpush1.bf16.msra.mxu0 %v6606
      %7104 = vmatprep.subr.bf16.mxu0 0
      %7105 = vmatpush1.bf16.msra.mxu0 %v6607
      %7106 = vmatprep.subr.bf16.mxu0 0
      %7107 = vmatpush1.bf16.msra.mxu0 %v6608
      %7108 = vmatprep.subr.bf16.mxu0 0
      %7109 = vmatpush1.bf16.msra.mxu0 %v6609
      %7110 = vmatprep.subr.bf16.mxu0 0
      %7111 = vmatpush1.bf16.msra.mxu0 %v6610
      %7112 = vmatprep.subr.bf16.mxu0 0
      %7113 = vmatpush1.bf16.msra.mxu0 %v6611
      %7114 = vmatprep.subr.bf16.mxu0 0
      %7115 = vmatpush1.bf16.msra.mxu0 %v6612
      %7116 = vmatprep.subr.bf16.mxu0 0
      %7117 = vmatpush1.bf16.msra.mxu0 %v6613
      %7118 = vmatprep.subr.bf16.mxu0 0
      %7119 = vmatpush1.bf16.msra.mxu0 %v6614
      %7120 = vmatprep.subr.bf16.mxu0 0
      %7121 = vmatpush1.bf16.msra.mxu0 %v6615
      %7122 = vmatprep.subr.bf16.mxu0 0
      %7123 = vmatpush1.bf16.msra.mxu0 %v6616
      %7124 = vmatprep.mubr.bf16.mxu0 %v5339
      %7125 = vmatmul.mubr.bf16.gmra.mrb[0].mxu0 %v5235
      %v7126 = vpop.f32.mrb[0].mxu0
      %v7127 = vadd.f32 %v7087, %v7126
      %v7128 = vpop.f32.mrb[0].mxu0
      %v7129 = vpop.f32.mrb[0].mxu0
      %v7130 = vpop.f32.mrb[0].mxu0
      %7131 = vdwg.mxu0
      %7132 = vmatprep.subr.bf16.mxu0 0
      %7133 = vmatpush1.bf16.msra.mxu0 %v6617
      %7134 = vmatprep.subr.bf16.mxu0 0
      %7135 = vmatpush1.bf16.msra.mxu0 %v6618
      %7136 = vmatprep.subr.bf16.mxu0 0
      %7137 = vmatpush1.bf16.msra.mxu0 %v6619
      %7138 = vmatprep.subr.bf16.mxu0 0
      %7139 = vmatpush1.bf16.msra.mxu0 %v6620
      %7140 = vmatprep.subr.bf16.mxu0 0
      %7141 = vmatpush1.bf16.msra.mxu0 %v6621
      %7142 = vmatprep.subr.bf16.mxu0 0
      %7143 = vmatpush1.bf16.msra.mxu0 %v6622
      %7144 = vmatprep.subr.bf16.mxu0 0
      %7145 = vmatpush1.bf16.msra.mxu0 %v6623
      %7146 = vmatprep.subr.bf16.mxu0 0
      %7147 = vmatpush1.bf16.msra.mxu0 %v6624
      %7148 = vmatprep.subr.bf16.mxu0 0
      %7149 = vmatpush1.bf16.msra.mxu0 %v6625
      %7150 = vmatprep.subr.bf16.mxu0 0
      %7151 = vmatpush1.bf16.msra.mxu0 %v6626
      %7152 = vmatprep.subr.bf16.mxu0 0
      %7153 = vmatpush1.bf16.msra.mxu0 %v6627
      %7154 = vmatprep.subr.bf16.mxu0 0
      %7155 = vmatpush1.bf16.msra.mxu0 %v6628
      %7156 = vmatprep.subr.bf16.mxu0 0
      %7157 = vmatpush1.bf16.msra.mxu0 %v6629
      %7158 = vmatprep.subr.bf16.mxu0 0
      %7159 = vmatpush1.bf16.msra.mxu0 %v6630
      %7160 = vmatprep.subr.bf16.mxu0 0
      %7161 = vmatpush1.bf16.msra.mxu0 %v6631
      %7162 = vmatprep.subr.bf16.mxu0 0
      %7163 = vmatpush1.bf16.msra.mxu0 %v6632
      %7164 = vmatprep.mubr.bf16.mxu0 %v5253
      %7165 = vmatmul.mubr.bf16.gmra.mrb[0].mxu0 %v5252
      %v7166 = vpop.f32.mrb[0].mxu0
      %v7167 = vadd.f32 %v7127, %v7166
      %v7168 = vpop.f32.mrb[0].mxu0
      %v7169 = vpop.f32.mrb[0].mxu0
      %v7170 = vpop.f32.mrb[0].mxu0
      %7171 = vdwg.mxu0
      %7172 = vmatprep.subr.bf16.mxu0 0
      %7173 = vmatpush1.bf16.msra.mxu0 %v6633
      %7174 = vmatprep.subr.bf16.mxu0 0
      %7175 = vmatpush1.bf16.msra.mxu0 %v6634
      %7176 = vmatprep.subr.bf16.mxu0 0
      %7177 = vmatpush1.bf16.msra.mxu0 %v6635
      %7178 = vmatprep.subr.bf16.mxu0 0
      %7179 = vmatpush1.bf16.msra.mxu0 %v6636
      %7180 = vmatprep.subr.bf16.mxu0 0
      %7181 = vmatpush1.bf16.msra.mxu0 %v6637
      %7182 = vmatprep.subr.bf16.mxu0 0
      %7183 = vmatpush1.bf16.msra.mxu0 %v6638
      %7184 = vmatprep.subr.bf16.mxu0 0
      %7185 = vmatpush1.bf16.msra.mxu0 %v6639
      %7186 = vmatprep.subr.bf16.mxu0 0
      %7187 = vmatpush1.bf16.msra.mxu0 %v6640
      %7188 = vmatprep.subr.bf16.mxu0 0
      %7189 = vmatpush1.bf16.msra.mxu0 %v6641
      %7190 = vmatprep.subr.bf16.mxu0 0
      %7191 = vmatpush1.bf16.msra.mxu0 %v6642
      %7192 = vmatprep.subr.bf16.mxu0 0
      %7193 = vmatpush1.bf16.msra.mxu0 %v6643
      %7194 = vmatprep.subr.bf16.mxu0 0
      %7195 = vmatpush1.bf16.msra.mxu0 %v6644
      %7196 = vmatprep.subr.bf16.mxu0 0
      %7197 = vmatpush1.bf16.msra.mxu0 %v6645
      %7198 = vmatprep.subr.bf16.mxu0 0
      %7199 = vmatpush1.bf16.msra.mxu0 %v6646
      %7200 = vmatprep.subr.bf16.mxu0 0
      %7201 = vmatpush1.bf16.msra.mxu0 %v6647
      %7202 = vmatprep.subr.bf16.mxu0 0
      %7203 = vmatpush1.bf16.msra.mxu0 %v6648
      %7204 = vmatprep.mubr.bf16.mxu0 %v5269
      %7205 = vmatmul.mubr.bf16.gmra.mrb[0].mxu0 %v5343
      %v7206 = vpop.f32.mrb[0].mxu0
      %v7207 = vadd.f32 %v7167, %v7206
      %v7208 = vpop.f32.mrb[0].mxu0
      %v7209 = vpop.f32.mrb[0].mxu0
      %v7210 = vpop.f32.mrb[0].mxu0
      %7211 = vdwg.mxu0
      %7212 = vmatprep.subr.bf16.mxu0 0
      %7213 = vmatpush1.bf16.msra.mxu0 %v6649
      %7214 = vmatprep.subr.bf16.mxu0 0
      %7215 = vmatpush1.bf16.msra.mxu0 %v6650
      %7216 = vmatprep.subr.bf16.mxu0 0
      %7217 = vmatpush1.bf16.msra.mxu0 %v6651
      %7218 = vmatprep.subr.bf16.mxu0 0
      %7219 = vmatpush1.bf16.msra.mxu0 %v6652
      %7220 = vmatprep.subr.bf16.mxu0 0
      %7221 = vmatpush1.bf16.msra.mxu0 %v6653
      %7222 = vmatprep.subr.bf16.mxu0 0
      %7223 = vmatpush1.bf16.msra.mxu0 %v6654
      %7224 = vmatprep.subr.bf16.mxu0 0
      %7225 = vmatpush1.bf16.msra.mxu0 %v6655
      %7226 = vmatprep.subr.bf16.mxu0 0
      %7227 = vmatpush1.bf16.msra.mxu0 %v6656
      %7228 = vmatprep.subr.bf16.mxu0 0
      %7229 = vmatpush1.bf16.msra.mxu0 %v6657
      %7230 = vmatprep.subr.bf16.mxu0 0
      %7231 = vmatpush1.bf16.msra.mxu0 %v6658
      %7232 = vmatprep.subr.bf16.mxu0 0
      %7233 = vmatpush1.bf16.msra.mxu0 %v6659
      %7234 = vmatprep.subr.bf16.mxu0 0
      %7235 = vmatpush1.bf16.msra.mxu0 %v6660
      %7236 = vmatprep.subr.bf16.mxu0 0
      %7237 = vmatpush1.bf16.msra.mxu0 %v6661
      %7238 = vmatprep.subr.bf16.mxu0 0
      %7239 = vmatpush1.bf16.msra.mxu0 %v6662
      %7240 = vmatprep.subr.bf16.mxu0 0
      %7241 = vmatpush1.bf16.msra.mxu0 %v6663
      %7242 = vmatprep.subr.bf16.mxu0 0
      %7243 = vmatpush1.bf16.msra.mxu0 %v6664
      %7244 = vmatprep.mubr.bf16.mxu0 %v5348
      %7245 = vmatmul.mubr.bf16.gmra.mrb[0].mxu0 %v5270
      %v7246 = vpop.f32.mrb[0].mxu0
      %v7247 = vadd.f32 %v7207, %v7246
      %v7248 = vpop.f32.mrb[0].mxu0
      %v7249 = vpop.f32.mrb[0].mxu0
      %v7250 = vpop.f32.mrb[0].mxu0
      %7251 = vdwg.mxu0
      %7252 = vmatprep.subr.bf16.mxu0 0
      %7253 = vmatpush1.bf16.msra.mxu0 %v6665
      %7254 = vmatprep.subr.bf16.mxu0 0
      %7255 = vmatpush1.bf16.msra.mxu0 %v6666
      %7256 = vmatprep.subr.bf16.mxu0 0
      %7257 = vmatpush1.bf16.msra.mxu0 %v6667
      %7258 = vmatprep.subr.bf16.mxu0 0
      %7259 = vmatpush1.bf16.msra.mxu0 %v6668
      %7260 = vmatprep.subr.bf16.mxu0 0
      %7261 = vmatpush1.bf16.msra.mxu0 %v6669
      %7262 = vmatprep.subr.bf16.mxu0 0
      %7263 = vmatpush1.bf16.msra.mxu0 %v6670
      %7264 = vmatprep.subr.bf16.mxu0 0
      %7265 = vmatpush1.bf16.msra.mxu0 %v6671
      %7266 = vmatprep.subr.bf16.mxu0 0
      %7267 = vmatpush1.bf16.msra.mxu0 %v6672
      %7268 = vmatprep.subr.bf16.mxu0 0
      %7269 = vmatpush1.bf16.msra.mxu0 %v6673
      %7270 = vmatprep.subr.bf16.mxu0 0
      %7271 = vmatpush1.bf16.msra.mxu0 %v6674
      %7272 = vmatprep.subr.bf16.mxu0 0
      %7273 = vmatpush1.bf16.msra.mxu0 %v6675
      %7274 = vmatprep.subr.bf16.mxu0 0
      %7275 = vmatpush1.bf16.msra.mxu0 %v6676
      %7276 = vmatprep.subr.bf16.mxu0 0
      %7277 = vmatpush1.bf16.msra.mxu0 %v6677
      %7278 = vmatprep.subr.bf16.mxu0 0
      %7279 = vmatpush1.bf16.msra.mxu0 %v6678
      %7280 = vmatprep.subr.bf16.mxu0 0
      %7281 = vmatpush1.bf16.msra.mxu0 %v6679
      %7282 = vmatprep.subr.bf16.mxu0 0
      %7283 = vmatpush1.bf16.msra.mxu0 %v6680
      %7284 = vmatprep.mubr.bf16.mxu0 %v5288
      %7285 = vmatmul.mubr.bf16.gmra.mrb[0].mxu0 %v5287
      %v7286 = vpop.f32.mrb[0].mxu0
      %v7287 = vadd.f32 %v7247, %v7286
      %v7288 = vpop.f32.mrb[0].mxu0
      %v7289 = vpop.f32.mrb[0].mxu0
      %v7290 = vpop.f32.mrb[0].mxu0
      %7291 = vdwg.mxu0
      %7292 = vmatprep.subr.bf16.mxu0 0
      %7293 = vmatpush1.bf16.msra.mxu0 %v6681
      %7294 = vmatprep.subr.bf16.mxu0 0
      %7295 = vmatpush1.bf16.msra.mxu0 %v6682
      %7296 = vmatprep.subr.bf16.mxu0 0
      %7297 = vmatpush1.bf16.msra.mxu0 %v6683
      %7298 = vmatprep.subr.bf16.mxu0 0
      %7299 = vmatpush1.bf16.msra.mxu0 %v6684
      %7300 = vmatprep.subr.bf16.mxu0 0
      %7301 = vmatpush1.bf16.msra.mxu0 %v6685
      %7302 = vmatprep.subr.bf16.mxu0 0
      %7303 = vmatpush1.bf16.msra.mxu0 %v6686
      %7304 = vmatprep.subr.bf16.mxu0 0
      %7305 = vmatpush1.bf16.msra.mxu0 %v6687
      %7306 = vmatprep.subr.bf16.mxu0 0
      %7307 = vmatpush1.bf16.msra.mxu0 %v6688
      %7308 = vmatprep.subr.bf16.mxu0 0
      %7309 = vmatpush1.bf16.msra.mxu0 %v6689
      %7310 = vmatprep.subr.bf16.mxu0 0
      %7311 = vmatpush1.bf16.msra.mxu0 %v6690
      %7312 = vmatprep.subr.bf16.mxu0 0
      %7313 = vmatpush1.bf16.msra.mxu0 %v6691
      %7314 = vmatprep.subr.bf16.mxu0 0
      %7315 = vmatpush1.bf16.msra.mxu0 %v6692
      %7316 = vmatprep.subr.bf16.mxu0 0
      %7317 = vmatpush1.bf16.msra.mxu0 %v6693
      %7318 = vmatprep.subr.bf16.mxu0 0
      %7319 = vmatpush1.bf16.msra.mxu0 %v6694
      %7320 = vmatprep.subr.bf16.mxu0 0
      %7321 = vmatpush1.bf16.msra.mxu0 %v6695
      %7322 = vmatprep.subr.bf16.mxu0 0
      %7323 = vmatpush1.bf16.msra.mxu0 %v6696
      %7324 = vmatprep.mubr.bf16.mxu0 %v5304
      %7325 = vmatmul.mubr.bf16.gmra.mrb[0].mxu0 %v5353
      %v7326 = vpop.f32.mrb[0].mxu0
      %v7327 = vadd.f32 %v7287, %v7326
      %v7328 = vpop.f32.mrb[0].mxu0
      %v7329 = vpop.f32.mrb[0].mxu0
      %v7330 = vpop.f32.mrb[0].mxu0
      %7331 = vdwg.mxu0
      %7332 = vmatprep.subr.bf16.mxu0 0
      %7333 = vmatpush1.bf16.msra.mxu0 %v6697
      %7334 = vmatprep.subr.bf16.mxu0 0
      %7335 = vmatpush1.bf16.msra.mxu0 %v6698
      %7336 = vmatprep.subr.bf16.mxu0 0
      %7337 = vmatpush1.bf16.msra.mxu0 %v6699
      %7338 = vmatprep.subr.bf16.mxu0 0
      %7339 = vmatpush1.bf16.msra.mxu0 %v6700
      %7340 = vmatprep.subr.bf16.mxu0 0
      %7341 = vmatpush1.bf16.msra.mxu0 %v6701
      %7342 = vmatprep.subr.bf16.mxu0 0
      %7343 = vmatpush1.bf16.msra.mxu0 %v6702
      %7344 = vmatprep.subr.bf16.mxu0 0
      %7345 = vmatpush1.bf16.msra.mxu0 %v6703
      %7346 = vmatprep.subr.bf16.mxu0 0
      %7347 = vmatpush1.bf16.msra.mxu0 %v6704
      %7348 = vmatprep.subr.bf16.mxu0 0
      %7349 = vmatpush1.bf16.msra.mxu0 %v6705
      %7350 = vmatprep.subr.bf16.mxu0 0
      %7351 = vmatpush1.bf16.msra.mxu0 %v6706
      %7352 = vmatprep.subr.bf16.mxu0 0
      %7353 = vmatpush1.bf16.msra.mxu0 %v6707
      %7354 = vmatprep.subr.bf16.mxu0 0
      %7355 = vmatpush1.bf16.msra.mxu0 %v6708
      %7356 = vmatprep.subr.bf16.mxu0 0
      %7357 = vmatpush1.bf16.msra.mxu0 %v6709
      %7358 = vmatprep.subr.bf16.mxu0 0
      %7359 = vmatpush1.bf16.msra.mxu0 %v6710
      %7360 = vmatprep.subr.bf16.mxu0 0
      %7361 = vmatpush1.bf16.msra.mxu0 %v6711
      %7362 = vmatprep.subr.bf16.mxu0 0
      %7363 = vmatpush1.bf16.msra.mxu0 %v6712
      %7364 = vmatprep.mubr.bf16.mxu0 %v5358
      %7365 = vmatmul.mubr.bf16.gmra.mrb[0].mxu0 %v5305
      %v7366 = vpop.f32.mrb[0].mxu0
      %v7367 = vadd.f32 %v7327, %v7366
      %v7368 = vpop.f32.mrb[0].mxu0
      %v7369 = vpop.f32.mrb[0].mxu0
      %v7370 = vpop.f32.mrb[0].mxu0
      %7371 = vdwg.mxu0
      %7372 = vmatprep.subr.bf16.mxu0 0
      %7373 = vmatpush1.bf16.msra.mxu0 %v6713
      %7374 = vmatprep.subr.bf16.mxu0 0
      %7375 = vmatpush1.bf16.msra.mxu0 %v6714
      %7376 = vmatprep.subr.bf16.mxu0 0
      %7377 = vmatpush1.bf16.msra.mxu0 %v6715
      %7378 = vmatprep.subr.bf16.mxu0 0
      %7379 = vmatpush1.bf16.msra.mxu0 %v6716
      %7380 = vmatprep.subr.bf16.mxu0 0
      %7381 = vmatpush1.bf16.msra.mxu0 %v6717
      %7382 = vmatprep.subr.bf16.mxu0 0
      %7383 = vmatpush1.bf16.msra.mxu0 %v6718
      %7384 = vmatprep.subr.bf16.mxu0 0
      %7385 = vmatpush1.bf16.msra.mxu0 %v6719
      %7386 = vmatprep.subr.bf16.mxu0 0
      %7387 = vmatpush1.bf16.msra.mxu0 %v6720
      %7388 = vmatprep.subr.bf16.mxu0 0
      %7389 = vmatpush1.bf16.msra.mxu0 %v6721
      %7390 = vmatprep.subr.bf16.mxu0 0
      %7391 = vmatpush1.bf16.msra.mxu0 %v6722
      %7392 = vmatprep.subr.bf16.mxu0 0
      %7393 = vmatpush1.bf16.msra.mxu0 %v6723
      %7394 = vmatprep.subr.bf16.mxu0 0
      %7395 = vmatpush1.bf16.msra.mxu0 %v6724
      %7396 = vmatprep.subr.bf16.mxu0 0
      %7397 = vmatpush1.bf16.msra.mxu0 %v6725
      %7398 = vmatprep.subr.bf16.mxu0 0
      %7399 = vmatpush1.bf16.msra.mxu0 %v6726
      %7400 = vmatprep.subr.bf16.mxu0 0
      %7401 = vmatpush1.bf16.msra.mxu0 %v6727
      %7402 = vmatprep.subr.bf16.mxu0 0
      %7403 = vmatpush1.bf16.msra.mxu0 %v6728
      %7404 = vmatprep.mubr.bf16.mxu0 %v5323
      %7405 = vmatmul.mubr.bf16.gmra.mrb[0].mxu0 %v5322
      %v7406 = vpop.f32.mrb[0].mxu0
      %v7407 = vadd.f32 %v7367, %v7406
      %v7408 = vpop.f32.mrb[0].mxu0
      %v7409 = vpop.f32.mrb[0].mxu0
      %v7410 = vpop.f32.mrb[0].mxu0
      %7411 = vdwg.mxu0
      %7412 = vmatprep.subr.bf16.mxu0 0
      %7413 = vmatpush1.bf16.msra.mxu0 %v6729
      %7414 = vmatprep.subr.bf16.mxu0 0
      %7415 = vmatpush1.bf16.msra.mxu0 %v6730
      %7416 = vmatprep.subr.bf16.mxu0 0
      %7417 = vmatpush1.bf16.msra.mxu0 %v6731
      %7418 = vmatprep.subr.bf16.mxu0 0
      %7419 = vmatpush1.bf16.msra.mxu0 %v6732
      %7420 = vmatprep.subr.bf16.mxu0 0
      %7421 = vmatpush1.bf16.msra.mxu0 0
      %7422 = vmatprep.subr.bf16.mxu0 0
      %7423 = vmatpush1.bf16.msra.mxu0 0
      %7424 = vmatprep.subr.bf16.mxu0 0
      %7425 = vmatpush1.bf16.msra.mxu0 0
      %7426 = vmatprep.subr.bf16.mxu0 0
      %7427 = vmatpush1.bf16.msra.mxu0 0
      %7428 = vmatprep.subr.bf16.mxu0 0
      %7429 = vmatpush1.bf16.msra.mxu0 0
      %7430 = vmatprep.subr.bf16.mxu0 0
      %7431 = vmatpush1.bf16.msra.mxu0 0
      %7432 = vmatprep.subr.bf16.mxu0 0
      %7433 = vmatpush1.bf16.msra.mxu0 0
      %7434 = vmatprep.subr.bf16.mxu0 0
      %7435 = vmatpush1.bf16.msra.mxu0 0
      %7436 = vmatprep.subr.bf16.mxu0 0
      %7437 = vmatpush1.bf16.msra.mxu0 0
      %7438 = vmatprep.subr.bf16.mxu0 0
      %7439 = vmatpush1.bf16.msra.mxu0 0
      %7440 = vmatprep.subr.bf16.mxu0 0
      %7441 = vmatpush1.bf16.msra.mxu0 0
      %7442 = vmatprep.subr.bf16.mxu0 0
      %7443 = vmatpush1.bf16.msra.mxu0 0
      %7444 = vmatprep.mubr.bf16.mxu0 0
      %7445 = vmatmul.mubr.bf16.gmra.mrb[0].mxu0 %v6930
      %v7446 = vpop.f32.mrb[0].mxu0
      %v7447 = vadd.f32 %v7407, %v7446
      %v7448 = vpop.f32.mrb[0].mxu0
      %v7449 = vpop.f32.mrb[0].mxu0
      %v7450 = vpop.f32.mrb[0].mxu0
      %7451 = vdwg.mxu0
      %v7452 = vmax.f32 %v7447, 0.0
      %v7453 = vpack.c.bf16 %v7452, %v7452
      %v7454 = vld [vmem:[%s9] sm:$0xf]
      %v7455 = vld [vmem:[%s9 + $0x4] sm:$0xf]
      %v7456 = vld [vmem:[%s9 + $0x8] sm:$0xf]
      %v7457 = vld [vmem:[%s9 + $0xc] sm:$0xf]
      %v7458 = vld [vmem:[%s10] sm:$0x1]
      %v7463 = vunpack.c.l.b16 %v7454
      %v7464 = vunpack.c.l.b16 %v7455
      %v7465 = vunpack.c.l.b16 %v7456
      %v7466 = vunpack.c.l.b16 %v7457
      %v7467 = vpack.c.b16 %v7464, %v7463
      %v7468 = vpack.c.b16 %v7466, %v7465
      %v7472 = vsel %vm1836, %v7453, 0
      %7474 = vmatprep.subr.bf16.mxu0 0
      %7475 = vmatpush1.bf16.msra.mxu0 %v7467
      %7476 = vmatprep.subr.bf16.mxu0 0
      %7477 = vmatpush1.bf16.msra.mxu0 %v7468
      %7478 = vmatprep.subr.bf16.mxu0 0
      %7479 = vmatpush1.bf16.msra.mxu0 0
      %7480 = vmatprep.subr.bf16.mxu0 0
      %7481 = vmatpush1.bf16.msra.mxu0 0
      %7482 = vmatprep.subr.bf16.mxu0 0
      %7483 = vmatpush1.bf16.msra.mxu0 0
      %7484 = vmatprep.subr.bf16.mxu0 0
      %7485 = vmatpush1.bf16.msra.mxu0 0
      %7486 = vmatprep.subr.bf16.mxu0 0
      %7487 = vmatpush1.bf16.msra.mxu0 0
      %7488 = vmatprep.subr.bf16.mxu0 0
      %7489 = vmatpush1.bf16.msra.mxu0 0
      %7490 = vmatprep.subr.bf16.mxu0 0
      %7491 = vmatpush1.bf16.msra.mxu0 0
      %7492 = vmatprep.subr.bf16.mxu0 0
      %7493 = vmatpush1.bf16.msra.mxu0 0
      %7494 = vmatprep.subr.bf16.mxu0 0
      %7495 = vmatpush1.bf16.msra.mxu0 0
      %7496 = vmatprep.subr.bf16.mxu0 0
      %7497 = vmatpush1.bf16.msra.mxu0 0
      %7498 = vmatprep.subr.bf16.mxu0 0
      %7499 = vmatpush1.bf16.msra.mxu0 0
      %7500 = vmatprep.subr.bf16.mxu0 0
      %7501 = vmatpush1.bf16.msra.mxu0 0
      %7502 = vmatprep.subr.bf16.mxu0 0
      %7503 = vmatpush1.bf16.msra.mxu0 0
      %7504 = vmatprep.subr.bf16.mxu0 0
      %7505 = vmatpush1.bf16.msra.mxu0 0
      %7506 = vmatprep.mubr.bf16.mxu0 0
      %7507 = vmatmul.mubr.bf16.gmra.mrb[0].mxu0 %v7472
      %v7508 = vpop.f32.mrb[0].mxu0
      %v7509 = vadd.f32 %v7458, %v7508
      %v7510 = vpop.f32.mrb[0].mxu0
      %v7511 = vpop.f32.mrb[0].mxu0
      %v7512 = vpop.f32.mrb[0].mxu0
      %7513 = vdwg.mxu0
      %v7514 = vld [vmem:[%s11] sm:$0xf]
      %v7515 = vld [vmem:[%s11 + $0x4] sm:$0xf]
      %v7516 = vld [vmem:[%s11 + $0x8] sm:$0xf]
      %v7517 = vld [vmem:[%s11 + $0xc] sm:$0xf]
      %v7518 = vld [vmem:[%s12] sm:$0x1]
      %7520 = vrot.lane.b32.xlu0 %v7453, 96
      %v7521 = vpop.permute.xlu0 %7520
      %v7526 = vunpack.c.l.b16 %v7514
      %v7527 = vunpack.c.l.b16 %v7515
      %v7528 = vunpack.c.l.b16 %v7516
      %v7529 = vunpack.c.l.b16 %v7517
      %v7530 = vpack.c.b16 %v7527, %v7526
      %v7531 = vpack.c.b16 %v7529, %v7528
      %v7535 = vsel %vm1836, %v7521, 0
      %7537 = vmatprep.subr.bf16.mxu0 0
      %7538 = vmatpush1.bf16.msra.mxu0 %v7530
      %7539 = vmatprep.subr.bf16.mxu0 0
      %7540 = vmatpush1.bf16.msra.mxu0 %v7531
      %7541 = vmatprep.subr.bf16.mxu0 0
      %7542 = vmatpush1.bf16.msra.mxu0 0
      %7543 = vmatprep.subr.bf16.mxu0 0
      %7544 = vmatpush1.bf16.msra.mxu0 0
      %7545 = vmatprep.subr.bf16.mxu0 0
      %7546 = vmatpush1.bf16.msra.mxu0 0
      %7547 = vmatprep.subr.bf16.mxu0 0
      %7548 = vmatpush1.bf16.msra.mxu0 0
      %7549 = vmatprep.subr.bf16.mxu0 0
      %7550 = vmatpush1.bf16.msra.mxu0 0
      %7551 = vmatprep.subr.bf16.mxu0 0
      %7552 = vmatpush1.bf16.msra.mxu0 0
      %7553 = vmatprep.subr.bf16.mxu0 0
      %7554 = vmatpush1.bf16.msra.mxu0 0
      %7555 = vmatprep.subr.bf16.mxu0 0
      %7556 = vmatpush1.bf16.msra.mxu0 0
      %7557 = vmatprep.subr.bf16.mxu0 0
      %7558 = vmatpush1.bf16.msra.mxu0 0
      %7559 = vmatprep.subr.bf16.mxu0 0
      %7560 = vmatpush1.bf16.msra.mxu0 0
      %7561 = vmatprep.subr.bf16.mxu0 0
      %7562 = vmatpush1.bf16.msra.mxu0 0
      %7563 = vmatprep.subr.bf16.mxu0 0
      %7564 = vmatpush1.bf16.msra.mxu0 0
      %7565 = vmatprep.subr.bf16.mxu0 0
      %7566 = vmatpush1.bf16.msra.mxu0 0
      %7567 = vmatprep.subr.bf16.mxu0 0
      %7568 = vmatpush1.bf16.msra.mxu0 0
      %7569 = vmatprep.mubr.bf16.mxu0 0
      %7570 = vmatmul.mubr.bf16.gmra.mrb[0].mxu0 %v7535
      %v7571 = vpop.f32.mrb[0].mxu0
      %v7572 = vadd.f32 %v7518, %v7571
      %v7573 = vpop.f32.mrb[0].mxu0
      %v7574 = vpop.f32.mrb[0].mxu0
      %v7575 = vpop.f32.mrb[0].mxu0
      %7576 = vdwg.mxu0
      %7578 = vrot.lane.b32.xlu0 %v7572, 120
      %v7579 = vpop.permute.xlu0 %7578
      %v7581 = vadd.f32 %v7572, %v7579
      %7582 = vrot.lane.b32.xlu0 %v7572, 112
      %v7583 = vpop.permute.xlu0 %7582
      %v7585 = vadd.f32 %v7581, %v7583
      %7586 = vrot.lane.b32.xlu0 %v7572, 104
      %v7587 = vpop.permute.xlu0 %7586
      %v7589 = vadd.f32 %v7585, %v7587
      %v7590 = vmul.f32 %v7589, 0.25
      %v7591 = vadd.f32 %v7509, %v7572
      %v7592 = vsub.f32 %v7591, %v7590
      %vm7593 = vcmask 57344
      %v7594 = vsel %vm7593, %v7592, -inf
      %7595 = vmax.xlane.f32.xlu0 %v7594
      %v7596 = vpop.xlane.xlu0 %7595
      %v7597 = vsub.f32 %v7592, %v7596
      %v7598 = vmul.f32 %v7597, 1.442695
      %v7599 = vpow.pop %v7598
      %v7600 = vsel %vm7593, %v7599, 0.0
      %7601 = vadd.xlane.f32.xlu0 %v7600
      %v7602 = vpop.xlane.xlu0 %7601
      %v7603 = vrcp.pop %v7602
      %v7604 = vmul.f32 %v7599, %v7603
      %7605 = vst.msk [vmem:[%s436] sm:$0x1] %vm7593, %v7604
      %v7606 = vadd.f32 %v7509, %v7579
      %v7607 = vsub.f32 %v7606, %v7590
      %v7608 = vsel %vm7593, %v7607, -inf
      %7609 = vmax.xlane.f32.xlu0 %v7608
      %v7610 = vpop.xlane.xlu0 %7609
      %v7611 = vsub.f32 %v7607, %v7610
      %v7612 = vmul.f32 %v7611, 1.442695
      %v7613 = vpow.pop %v7612
      %v7614 = vsel %vm7593, %v7613, 0.0
      %7615 = vadd.xlane.f32.xlu0 %v7614
      %v7616 = vpop.xlane.xlu0 %7615
      %v7617 = vrcp.pop %v7616
      %v7618 = vmul.f32 %v7613, %v7617
      %7620 = vrot.lane.b32.xlu0 %v7618, 8
      %v7621 = vpop.permute.xlu0 %7620
      %vm7623 = vcmask 122944
      %7624 = vst.msk [vmem:[%s436] sm:$0x1] %vm7623, %v7621
      %v7625 = vadd.f32 %v7509, %v7583
      %v7626 = vsub.f32 %v7625, %v7590
      %v7627 = vsel %vm7593, %v7626, -inf
      %7628 = vmax.xlane.f32.xlu0 %v7627
      %v7629 = vpop.xlane.xlu0 %7628
      %v7630 = vsub.f32 %v7626, %v7629
      %v7631 = vmul.f32 %v7630, 1.442695
      %v7632 = vpow.pop %v7631
      %v7633 = vsel %vm7593, %v7632, 0.0
      %7634 = vadd.xlane.f32.xlu0 %v7633
      %v7635 = vpop.xlane.xlu0 %7634
      %v7636 = vrcp.pop %v7635
      %v7637 = vmul.f32 %v7632, %v7636
      %7639 = vrot.lane.b32.xlu0 %v7637, 16
      %v7640 = vpop.permute.xlu0 %7639
      %vm7642 = vcmask 188544
      %7643 = vst.msk [vmem:[%s436] sm:$0x1] %vm7642, %v7640
      %v7644 = vadd.f32 %v7509, %v7587
      %v7645 = vsub.f32 %v7644, %v7590
      %v7646 = vsel %vm7593, %v7645, -inf
      %7647 = vmax.xlane.f32.xlu0 %v7646
      %v7648 = vpop.xlane.xlu0 %7647
      %v7649 = vsub.f32 %v7645, %v7648
      %v7650 = vmul.f32 %v7649, 1.442695
      %v7651 = vpow.pop %v7650
      %v7652 = vsel %vm7593, %v7651, 0.0
      %7653 = vadd.xlane.f32.xlu0 %v7652
      %v7654 = vpop.xlane.xlu0 %7653
      %v7655 = vrcp.pop %v7654
      %v7656 = vmul.f32 %v7651, %v7655
      %7658 = vrot.lane.b32.xlu0 %v7656, 24
      %v7659 = vpop.permute.xlu0 %7658
      %vm7661 = vcmask 254144
      %7662 = vst.msk [vmem:[%s436] sm:$0x1] %vm7661, %v7659
      %p7663 = scmp.lt.s32.totalorder %s24, 1
      %s7664 = scalar_select %p7663, %s24, 1
      %s7665 = scalar_lea.vmem %s13, %s7664
      // Predicated region
      $region73: #{base_network_forward.1} parent=71 // pred_check
        %p7666 = pneg %p320
      $region74: #{base_network_forward.1} parent=71 // pred_check_branch
        %7668 = sbr.rel (%p7666) target = $region76
      $region75: #{base_network_forward.1} parent=71 // pred_region
        _
      $region76: #{base_network_forward.1} parent=71 // pred_fallthru
        _
    $region72: #{base_network_forward.1} parent=5 // pred_fallthru
      _
    %p7669 = scmp.le.s32.totalorder 2, %s19
    // Predicated region
    $region77: #{base_network_forward.1} parent=5 // pred_check
      %p7670 = pneg %p7669
    $region78: #{base_network_forward.1} parent=5 // pred_check_branch
      %7672 = sbr.rel (%p7670) target = $region80
    $region79: #{base_network_forward.1} parent=5 // pred_region
      %s7673 = ssub.s32 %s19, 2
      // Predicated region
      $region81: #{base_network_forward.1} parent=79 // pred_check
        %p7674 = pneg %p326
      $region82: #{base_network_forward.1} parent=79 // pred_check_branch
        %7676 = sbr.rel (%p7674) target = $region84
      $region83: #{base_network_forward.1} parent=79 // pred_region
        %p7677 = scmp.lt.s32.totalorder %s25, 1
        %s7678 = scalar_select %p7677, %s25, 1
        %s7679 = scalar_lea.vmem %s13, %s7678
      $region84: #{base_network_forward.1} parent=79 // pred_fallthru
        _
    $region80: #{base_network_forward.1} parent=5 // pred_fallthru
      _
  $region6: #{base_network_forward.1} parent=0 // loop_footer
    %s23 = sadd.s32 1, %s19
  $region7: #{base_network_forward.1} parent=0 // loop_footer_branch
    %18 = sbr.rel target = $region3
  $region8: #{base_network_forward.1} parent=0 // loop_exit
    _

</llo_original>
